<compile_context>
chip_gen: v5e
topology: v5e:2x2
jax: 0.10.0
libtpu: 0.0.40
codegen_flags: <defaults>
</compile_context>

<pallas_src>
import math

import jax
import jax.numpy as jnp
from jax.experimental import pallas as pl
from jax.experimental.pallas import tpu as pltpu

LANE = 128  # every channel dim is zero-padded to this


# --------------------------- small padding helpers ---------------------------

def _pad_last(x, c):
    pad = c - x.shape[-1]
    if pad == 0:
        return x
    return jnp.pad(x, [(0, 0)] * (x.ndim - 1) + [(0, pad)])


def _pad_mat(m, r, c):
    return jnp.pad(m, ((0, r - m.shape[0]), (0, c - m.shape[1])))


def _pad_vec_row(v, c):
    return jnp.pad(v, (0, c - v.shape[0]))[None, :]          # (1, c)


def _subsample_matrix(n, h, w, stride):
    """0/1 matrix S so that S @ flatten(N,H,W)-rows == stride-subsampled rows."""
    ho, wo = h // stride, w // stride
    m_out, m_full = n * ho * wo, n * h * w
    i = jnp.arange(m_out)
    nn = i // (ho * wo)
    hh = (i // wo) % ho
    ww = i % wo
    cols = nn * (h * w) + (hh * stride) * w + (ww * stride)
    return (jnp.arange(m_full)[None, :] == cols[:, None]).astype(jnp.float32)


# ----------------------- fused NetworkBlock kernel body -----------------------

def _make_network_block_kernel(n, cp, metas):
    """Whole NetworkBlock: for each BasicBlock do
       bn1+relu -> conv1(3x3,stride) -> bn2+relu -> conv2(3x3) + shortcut,
       fully fused, activations never leave VMEM between blocks."""
    taps = [(di, dj) for di in range(3) for dj in range(3)]

    def mxu(a, b):
        return jnp.dot(a, b, preferred_element_type=jnp.float32)

    def kernel(*refs):
        # ---- parse the flat ref list -------------------------------------
        idx = 0
        x_ref = refs[idx]; idx += 1
        params = []
        for meta in metas:
            pr = dict(s1=refs[idx], b1=refs[idx + 1], w1=refs[idx + 2],
                      b2=refs[idx + 3], w2=refs[idx + 4])
            idx += 5
            if not meta["equal"]:
                pr["wsc"] = refs[idx]; idx += 1
            if meta["stride"] > 1:
                pr["sel"] = refs[idx]; idx += 1
            params.append(pr)
        o_ref = refs[idx]; idx += 1
        scratch = refs[idx:]                    # [apad_0, hpad_0, apad_1, ...]

        # ---- chain of BasicBlocks, carry `x` as a VMEM-resident value -----
        x = x_ref[...]                                   # (n, h0, w0, cp)
        for b, (meta, pr) in enumerate(zip(metas, params)):
            h, w, ho, wo = meta["h"], meta["w"], meta["ho"], meta["wo"]
            stride, equal = meta["stride"], meta["equal"]
            m_full, m_out = n * h * w, n * ho * wo
            apad_ref = scratch[2 * b]
            hpad_ref = scratch[2 * b + 1]

            # bn1 + relu (eval-mode BN folded to per-channel scale/bias)
            a = jnp.maximum(x * pr["s1"][...] + pr["b1"][...], 0.0)

            # zero-padded copy of `a` in VMEM scratch (spatial pad = 1)
            apad_ref[...] = jnp.zeros((n, h + 2, w + 2, cp), jnp.float32)
            apad_ref[:, 1:h + 1, 1:w + 1, :] = a

            # conv1 as 9 shifted (M, C) @ (C, C) MXU matmuls (bn2 scale is
            # folded into w1 at init).  Stride-2 subsample is a 0/1 selection
            # matmul so no strided slicing happens in the kernel.
            acc1 = jnp.zeros((m_full, cp), jnp.float32)
            for t, (di, dj) in enumerate(taps):
                lhs = apad_ref[:, di:di + h, dj:dj + w, :].reshape(m_full, cp)
                acc1 = acc1 + mxu(lhs, pr["w1"][t])
            if stride > 1:
                acc1 = mxu(pr["sel"][...], acc1)         # (m_out, cp)

            # bn2 bias + relu; dropout(dropRate=0.0) == identity
            hmat = jnp.maximum(acc1 + pr["b2"][...], 0.0)

            # conv2 (3x3, pad 1, stride 1), same shifted-matmul scheme
            hpad_ref[...] = jnp.zeros((n, ho + 2, wo + 2, cp), jnp.float32)
            hpad_ref[:, 1:ho + 1, 1:wo + 1, :] = hmat.reshape(n, ho, wo, cp)
            acc2 = jnp.zeros((m_out, cp), jnp.float32)
            for t, (di, dj) in enumerate(taps):
                lhs = hpad_ref[:, di:di + ho, dj:dj + wo, :].reshape(m_out, cp)
                acc2 = acc2 + mxu(lhs, pr["w2"][t])

            # shortcut: identity (pre-bn x) if shapes match, else 1x1 conv of `a`
            if equal:
                res = x.reshape(m_out, cp)
            else:
                a2d = a.reshape(m_full, cp)
                if stride > 1:
                    a2d = mxu(pr["sel"][...], a2d)
                res = mxu(a2d, pr["wsc"][...])

            x = (acc2 + res).reshape(n, ho, wo, cp)      # feeds the next block

        o_ref[...] = x

    return kernel


def network_block_pallas(x_nhwc, prepped, cout):
    """x_nhwc: (N, H, W, Cin) NHWC activations; one pallas_call for the chain."""
    n = x_nhwc.shape[0]
    cp = LANE
    x_p = _pad_last(x_nhwc, cp)

    metas = [dict(h=bp["h"], w=bp["w"], ho=bp["ho"], wo=bp["wo"],
                  stride=bp["stride"], equal=bp["equal"]) for bp in prepped]

    inputs = [x_p]
    for bp in prepped:
        inputs += [bp["s1"], bp["b1"], bp["w1"], bp["b2"], bp["w2"]]
        if not bp["equal"]:
            inputs.append(bp["wsc"])
        if bp["stride"] > 1:
            inputs.append(bp["sel"])

    scratch_shapes = []
    for bp in prepped:
        scratch_shapes.append(
            pltpu.VMEM((n, bp["h"] + 2, bp["w"] + 2, cp), jnp.float32))
        scratch_shapes.append(
            pltpu.VMEM((n, bp["ho"] + 2, bp["wo"] + 2, cp), jnp.float32))

    hf, wf = prepped[-1]["ho"], prepped[-1]["wo"]
    out = pl.pallas_call(
        _make_network_block_kernel(n, cp, metas),
        out_shape=jax.ShapeDtypeStruct((n, hf, wf, cp), jnp.float32),
        in_specs=[pl.BlockSpec(memory_space=pltpu.MemorySpace.VMEM)
                  for _ in inputs],
        out_specs=pl.BlockSpec(memory_space=pltpu.MemorySpace.VMEM),
        scratch_shapes=scratch_shapes,
    )(*inputs)
    return out[..., :cout]


# ------------------------- parameter prep (done once) -------------------------

def prep_basic_block(p, stride, equal, n, h, w):
    cp = LANE
    cout, cin = p["w1"].shape[0], p["w1"].shape[1]
    # OIHW -> (kh*kw, Cin, Cout); fold bn2 scale into conv1's output channels
    w1 = jnp.transpose(p["w1"], (2, 3, 1, 0)).reshape(9, cin, cout) \
        * p["s2"][None, None, :]
    w2 = jnp.transpose(p["w2"], (2, 3, 1, 0)).reshape(9, cout, cout)
    bp = dict(
        stride=stride, equal=equal, h=h, w=w, ho=h // stride, wo=w // stride,
        s1=_pad_vec_row(p["s1"], cp), b1=_pad_vec_row(p["b1"], cp),
        b2=_pad_vec_row(p["b2"], cp),
        w1=jnp.stack([_pad_mat(w1[t], cp, cp) for t in range(9)]),
        w2=jnp.stack([_pad_mat(w2[t], cp, cp) for t in range(9)]),
    )
    if not equal:
        bp["wsc"] = _pad_mat(p["wsc"][:, :, 0, 0].T, cp, cp)   # (Cin, Cout) padded
    if stride > 1:
        bp["sel"] = _subsample_matrix(n, h, w, stride)
    return bp


def prep_network_block(layers, n, h, w):
    prepped = []
    for p, stride, equal in layers:
        prepped.append(prep_basic_block(p, stride, equal, n, h, w))
        h, w = h // stride, w // stride
    return prepped


# ----------------------------- pure-JAX reference -----------------------------

def _ref_conv(x, w_oihw, stride, padding):
    return jax.lax.conv_general_dilated(
        x, w_oihw, window_strides=(stride, stride),
        padding=[(padding, padding), (padding, padding)],
        dimension_numbers=("NHWC", "OIHW", "NHWC"),
        precision=jax.lax.Precision.HIGHEST)


def basic_block_ref(x, p, stride, equal):
    a = jnp.maximum(x * p["s1"] + p["b1"], 0.0)
    h = _ref_conv(a, p["w1"], stride, 1)
    h = jnp.maximum(h * p["s2"] + p["b2"], 0.0)
    h = _ref_conv(h, p["w2"], 1, 1)
    res = x if equal else _ref_conv(a, p["wsc"], stride, 0)
    return res + h


def network_block_ref(x, layers):
    for p, stride, equal in layers:
        x = basic_block_ref(x, p, stride, equal)
    return x


# ------------------------------------ init ------------------------------------

def _init_bn(key, c, eps=1e-5):
    k1, k2, k3, k4 = jax.random.split(key, 4)
    gamma = 1.0 + 0.1 * jax.random.normal(k1, (c,), jnp.float32)
    beta = 0.1 * jax.random.normal(k2, (c,), jnp.float32)
    mean = 0.1 * jax.random.normal(k3, (c,), jnp.float32)
    var = 1.0 + 0.1 * jax.random.uniform(k4, (c,), jnp.float32)
    scale = gamma / jnp.sqrt(var + eps)
    bias = beta - mean * scale
    return scale, bias


def _init_conv(key, cout, cin, ksz):
    fan = ksz * ksz * cout  # WRN init: normal(0, sqrt(2/(k*k*out)))
    return jax.random.normal(key, (cout, cin, ksz, ksz), jnp.float32) * math.sqrt(2.0 / fan)


def init_basic_block(key, in_planes, out_planes, has_shortcut):
    ks = jax.random.split(key, 5)
    s1, b1 = _init_bn(ks[0], in_planes)
    s2, b2 = _init_bn(ks[1], out_planes)
    p = dict(
        s1=s1, b1=b1, s2=s2, b2=b2,
        w1=_init_conv(ks[2], out_planes, in_planes, 3),
        w2=_init_conv(ks[3], out_planes, out_planes, 3),
    )
    if has_shortcut:
        p["wsc"] = _init_conv(ks[4], out_planes, in_planes, 1)
    return p


def init_network_block(key, nb_layers, in_planes, out_planes, stride):
    layers = []
    keys = jax.random.split(key, nb_layers)
    for i in range(nb_layers):
        ip = in_planes if i == 0 else out_planes
        st = stride if i == 0 else 1
        equal = (ip == out_planes)
        layers.append((init_basic_block(keys[i], ip, out_planes, not equal), st, equal))
    return layers


# ------------------------------------ main -------------------------------------

if __name__ == "__main__":
    key = jax.random.PRNGKey(0)
    k_x, k_p = jax.random.split(key)

    # NetworkBlock(nb_layers=2, in_planes=4, out_planes=8, block=BasicBlock,
    #              conv_layer=nn.Conv2d, stride=2, dropRate=0.0)
    N, Cin, H, W = 2, 4, 16, 16
    Cout, nb_layers, stride = 8, 2, 2

    x_nchw = jax.random.normal(k_x, (N, Cin, H, W), jnp.float32)
    x_nhwc = jnp.transpose(x_nchw, (0, 2, 3, 1))

    layers = init_network_block(k_p, nb_layers, Cin, Cout, stride)
    prepped = prep_network_block(layers, N, H, W)

    fwd = jax.jit(lambda x: network_block_pallas(x, prepped, Cout))
    out_nhwc = jax.block_until_ready(fwd(x_nhwc))
    out_nchw = jnp.transpose(out_nhwc, (0, 3, 1, 2))   # back to PyTorch NCHW

    ref_nhwc = network_block_ref(x_nhwc, layers)
    assert out_nchw.shape == (N, Cout, H // stride, W // stride)
    err = float(jnp.max(jnp.abs(out_nhwc - ref_nhwc)))
    if not jnp.allclose(out_nhwc, ref_nhwc, atol=1e-4, rtol=1e-4):
        raise AssertionError(f"mismatch vs reference, max abs err = {err}")
    print("KERNEL_OK")
</pallas_src>

<mosaic_0001>
module attributes {stable_mosaic.version = 11 : i64} {
  func.func @kernel(%arg0: memref<2x16x16x128xf32, #tpu.memory_space<vmem>>, %arg1: memref<1x128xf32, #tpu.memory_space<vmem>>, %arg2: memref<1x128xf32, #tpu.memory_space<vmem>>, %arg3: memref<9x128x128xf32, #tpu.memory_space<vmem>>, %arg4: memref<1x128xf32, #tpu.memory_space<vmem>>, %arg5: memref<9x128x128xf32, #tpu.memory_space<vmem>>, %arg6: memref<128x128xf32, #tpu.memory_space<vmem>>, %arg7: memref<128x512xf32, #tpu.memory_space<vmem>>, %arg8: memref<1x128xf32, #tpu.memory_space<vmem>>, %arg9: memref<1x128xf32, #tpu.memory_space<vmem>>, %arg10: memref<9x128x128xf32, #tpu.memory_space<vmem>>, %arg11: memref<1x128xf32, #tpu.memory_space<vmem>>, %arg12: memref<9x128x128xf32, #tpu.memory_space<vmem>>, %arg13: memref<2x8x8x128xf32, #tpu.memory_space<vmem>>, %arg14: memref<2x18x18x128xf32, #tpu.memory_space<vmem>>, %arg15: memref<2x10x10x128xf32, #tpu.memory_space<vmem>>, %arg16: memref<2x10x10x128xf32, #tpu.memory_space<vmem>>, %arg17: memref<2x10x10x128xf32, #tpu.memory_space<vmem>>) attributes {dimension_semantics = [], scalar_prefetch = 0 : i64, scratch_operands = 4 : i64, tpu.core_type = #tpu.core_type<tc>} {
    %c0 = arith.constant 0 : index
    %c0_0 = arith.constant 0 : index
    %c0_1 = arith.constant 0 : index
    %c0_2 = arith.constant 0 : index
    %0 = vector.load %arg0[%c0, %c0_0, %c0_1, %c0_2] : memref<2x16x16x128xf32, #tpu.memory_space<vmem>>, vector<2x16x16x128xf32>
    %c0_3 = arith.constant 0 : index
    %c0_4 = arith.constant 0 : index
    %1 = vector.load %arg1[%c0_3, %c0_4] : memref<1x128xf32, #tpu.memory_space<vmem>>, vector<1x128xf32>
    %2 = vector.shape_cast %1 : vector<1x128xf32> to vector<1x1x1x128xf32>
    %3 = vector.broadcast %2 : vector<1x1x1x128xf32> to vector<2x16x16x128xf32>
    %4 = arith.mulf %0, %3 : vector<2x16x16x128xf32>
    %c0_5 = arith.constant 0 : index
    %c0_6 = arith.constant 0 : index
    %5 = vector.load %arg2[%c0_5, %c0_6] : memref<1x128xf32, #tpu.memory_space<vmem>>, vector<1x128xf32>
    %6 = vector.shape_cast %5 : vector<1x128xf32> to vector<1x1x1x128xf32>
    %7 = vector.broadcast %6 : vector<1x1x1x128xf32> to vector<2x16x16x128xf32>
    %8 = arith.addf %4, %7 : vector<2x16x16x128xf32>
    %cst = arith.constant 0.000000e+00 : f32
    %9 = vector.broadcast %cst : f32 to vector<2x16x16x128xf32>
    %10 = arith.maximumf %8, %9 : vector<2x16x16x128xf32>
    %cst_7 = arith.constant 0.000000e+00 : f32
    %11 = vector.broadcast %cst_7 : f32 to vector<2x18x18x128xf32>
    %c0_8 = arith.constant 0 : index
    %c0_9 = arith.constant 0 : index
    %c0_10 = arith.constant 0 : index
    %c0_11 = arith.constant 0 : index
    %12 = vector.load %arg14[%c0_8, %c0_9, %c0_10, %c0_11] : memref<2x18x18x128xf32, #tpu.memory_space<vmem>>, vector<2x18x18x128xf32>
    tpu.vector_store %arg14[%c0_8, %c0_9, %c0_10, %c0_11], %11 {strides = array<i32>} : memref<2x18x18x128xf32, #tpu.memory_space<vmem>>, vector<2x18x18x128xf32>,
    %c0_12 = arith.constant 0 : index
    %c1 = arith.constant 1 : index
    %c1_13 = arith.constant 1 : index
    %c0_14 = arith.constant 0 : index
    %13 = vector.load %arg14[%c0_12, %c1, %c1_13, %c0_14] : memref<2x18x18x128xf32, #tpu.memory_space<vmem>>, vector<2x16x16x128xf32>
    tpu.vector_store %arg14[%c0_12, %c1, %c1_13, %c0_14], %10 {strides = array<i32>} : memref<2x18x18x128xf32, #tpu.memory_space<vmem>>, vector<2x16x16x128xf32>,
    %cst_15 = arith.constant 0.000000e+00 : f32
    %14 = vector.broadcast %cst_15 : f32 to vector<512x128xf32>
    %c0_16 = arith.constant 0 : index
    %c0_17 = arith.constant 0 : index
    %c0_18 = arith.constant 0 : index
    %c0_19 = arith.constant 0 : index
    %15 = vector.load %arg14[%c0_16, %c0_17, %c0_18, %c0_19] : memref<2x18x18x128xf32, #tpu.memory_space<vmem>>, vector<2x16x16x128xf32>
    %16 = vector.shape_cast %15 : vector<2x16x16x128xf32> to vector<512x128xf32>
    %c0_20 = arith.constant 0 : index
    %c0_21 = arith.constant 0 : index
    %c0_22 = arith.constant 0 : index
    %17 = vector.load %arg3[%c0_20, %c0_21, %c0_22] : memref<9x128x128xf32, #tpu.memory_space<vmem>>, vector<1x128x128xf32>
    %18 = vector.shape_cast %17 : vector<1x128x128xf32> to vector<128x128xf32>
    %cst_23 = arith.constant dense<0.000000e+00> : vector<512x128xf32>
    %19 = tpu.matmul %16, %18, %cst_23 {dimension_numbers = #tpu.dot_dimension_numbers<[1], [0], [0], [1], [0, 0, 1, 1], [], []>} : vector<512x128xf32>, vector<128x128xf32>, vector<512x128xf32> -> vector<512x128xf32>
    %20 = arith.addf %14, %19 : vector<512x128xf32>
    %c0_24 = arith.constant 0 : index
    %c0_25 = arith.constant 0 : index
    %c1_26 = arith.constant 1 : index
    %c0_27 = arith.constant 0 : index
    %21 = vector.load %arg14[%c0_24, %c0_25, %c1_26, %c0_27] : memref<2x18x18x128xf32, #tpu.memory_space<vmem>>, vector<2x16x16x128xf32>
    %22 = vector.shape_cast %21 : vector<2x16x16x128xf32> to vector<512x128xf32>
    %c1_28 = arith.constant 1 : index
    %c0_29 = arith.constant 0 : index
    %c0_30 = arith.constant 0 : index
    %23 = vector.load %arg3[%c1_28, %c0_29, %c0_30] : memref<9x128x128xf32, #tpu.memory_space<vmem>>, vector<1x128x128xf32>
    %24 = vector.shape_cast %23 : vector<1x128x128xf32> to vector<128x128xf32>
    %cst_31 = arith.constant dense<0.000000e+00> : vector<512x128xf32>
    %25 = tpu.matmul %22, %24, %cst_31 {dimension_numbers = #tpu.dot_dimension_numbers<[1], [0], [0], [1], [0, 0, 1, 1], [], []>} : vector<512x128xf32>, vector<128x128xf32>, vector<512x128xf32> -> vector<512x128xf32>
    %26 = arith.addf %20, %25 : vector<512x128xf32>
    %c0_32 = arith.constant 0 : index
    %c0_33 = arith.constant 0 : index
    %c2 = arith.constant 2 : index
    %c0_34 = arith.constant 0 : index
    %27 = vector.load %arg14[%c0_32, %c0_33, %c2, %c0_34] : memref<2x18x18x128xf32, #tpu.memory_space<vmem>>, vector<2x16x16x128xf32>
    %28 = vector.shape_cast %27 : vector<2x16x16x128xf32> to vector<512x128xf32>
    %c2_35 = arith.constant 2 : index
    %c0_36 = arith.constant 0 : index
    %c0_37 = arith.constant 0 : index
    %29 = vector.load %arg3[%c2_35, %c0_36, %c0_37] : memref<9x128x128xf32, #tpu.memory_space<vmem>>, vector<1x128x128xf32>
    %30 = vector.shape_cast %29 : vector<1x128x128xf32> to vector<128x128xf32>
    %cst_38 = arith.constant dense<0.000000e+00> : vector<512x128xf32>
    %31 = tpu.matmul %28, %30, %cst_38 {dimension_numbers = #tpu.dot_dimension_numbers<[1], [0], [0], [1], [0, 0, 1, 1], [], []>} : vector<512x128xf32>, vector<128x128xf32>, vector<512x128xf32> -> vector<512x128xf32>
    %32 = arith.addf %26, %31 : vector<512x128xf32>
    %c0_39 = arith.constant 0 : index
    %c1_40 = arith.constant 1 : index
    %c0_41 = arith.constant 0 : index
    %c0_42 = arith.constant 0 : index
    %33 = vector.load %arg14[%c0_39, %c1_40, %c0_41, %c0_42] : memref<2x18x18x128xf32, #tpu.memory_space<vmem>>, vector<2x16x16x128xf32>
    %34 = vector.shape_cast %33 : vector<2x16x16x128xf32> to vector<512x128xf32>
    %c3 = arith.constant 3 : index
    %c0_43 = arith.constant 0 : index
    %c0_44 = arith.constant 0 : index
    %35 = vector.load %arg3[%c3, %c0_43, %c0_44] : memref<9x128x128xf32, #tpu.memory_space<vmem>>, vector<1x128x128xf32>
    %36 = vector.shape_cast %35 : vector<1x128x128xf32> to vector<128x128xf32>
    %cst_45 = arith.constant dense<0.000000e+00> : vector<512x128xf32>
    %37 = tpu.matmul %34, %36, %cst_45 {dimension_numbers = #tpu.dot_dimension_numbers<[1], [0], [0], [1], [0, 0, 1, 1], [], []>} : vector<512x128xf32>, vector<128x128xf32>, vector<512x128xf32> -> vector<512x128xf32>
    %38 = arith.addf %32, %37 : vector<512x128xf32>
    %c0_46 = arith.constant 0 : index
    %c1_47 = arith.constant 1 : index
    %c1_48 = arith.constant 1 : index
    %c0_49 = arith.constant 0 : index
    %39 = vector.load %arg14[%c0_46, %c1_47, %c1_48, %c0_49] : memref<2x18x18x128xf32, #tpu.memory_space<vmem>>, vector<2x16x16x128xf32>
    %40 = vector.shape_cast %39 : vector<2x16x16x128xf32> to vector<512x128xf32>
    %c4 = arith.constant 4 : index
    %c0_50 = arith.constant 0 : index
    %c0_51 = arith.constant 0 : index
    %41 = vector.load %arg3[%c4, %c0_50, %c0_51] : memref<9x128x128xf32, #tpu.memory_space<vmem>>, vector<1x128x128xf32>
    %42 = vector.shape_cast %41 : vector<1x128x128xf32> to vector<128x128xf32>
    %cst_52 = arith.constant dense<0.000000e+00> : vector<512x128xf32>
    %43 = tpu.matmul %40, %42, %cst_52 {dimension_numbers = #tpu.dot_dimension_numbers<[1], [0], [0], [1], [0, 0, 1, 1], [], []>} : vector<512x128xf32>, vector<128x128xf32>, vector<512x128xf32> -> vector<512x128xf32>
    %44 = arith.addf %38, %43 : vector<512x128xf32>
    %c0_53 = arith.constant 0 : index
    %c1_54 = arith.constant 1 : index
    %c2_55 = arith.constant 2 : index
    %c0_56 = arith.constant 0 : index
    %45 = vector.load %arg14[%c0_53, %c1_54, %c2_55, %c0_56] : memref<2x18x18x128xf32, #tpu.memory_space<vmem>>, vector<2x16x16x128xf32>
    %46 = vector.shape_cast %45 : vector<2x16x16x128xf32> to vector<512x128xf32>
    %c5 = arith.constant 5 : index
    %c0_57 = arith.constant 0 : index
    %c0_58 = arith.constant 0 : index
    %47 = vector.load %arg3[%c5, %c0_57, %c0_58] : memref<9x128x128xf32, #tpu.memory_space<vmem>>, vector<1x128x128xf32>
    %48 = vector.shape_cast %47 : vector<1x128x128xf32> to vector<128x128xf32>
    %cst_59 = arith.constant dense<0.000000e+00> : vector<512x128xf32>
    %49 = tpu.matmul %46, %48, %cst_59 {dimension_numbers = #tpu.dot_dimension_numbers<[1], [0], [0], [1], [0, 0, 1, 1], [], []>} : vector<512x128xf32>, vector<128x128xf32>, vector<512x128xf32> -> vector<512x128xf32>
    %50 = arith.addf %44, %49 : vector<512x128xf32>
    %c0_60 = arith.constant 0 : index
    %c2_61 = arith.constant 2 : index
    %c0_62 = arith.constant 0 : index
    %c0_63 = arith.constant 0 : index
    %51 = vector.load %arg14[%c0_60, %c2_61, %c0_62, %c0_63] : memref<2x18x18x128xf32, #tpu.memory_space<vmem>>, vector<2x16x16x128xf32>
    %52 = vector.shape_cast %51 : vector<2x16x16x128xf32> to vector<512x128xf32>
    %c6 = arith.constant 6 : index
    %c0_64 = arith.constant 0 : index
    %c0_65 = arith.constant 0 : index
    %53 = vector.load %arg3[%c6, %c0_64, %c0_65] : memref<9x128x128xf32, #tpu.memory_space<vmem>>, vector<1x128x128xf32>
    %54 = vector.shape_cast %53 : vector<1x128x128xf32> to vector<128x128xf32>
    %cst_66 = arith.constant dense<0.000000e+00> : vector<512x128xf32>
    %55 = tpu.matmul %52, %54, %cst_66 {dimension_numbers = #tpu.dot_dimension_numbers<[1], [0], [0], [1], [0, 0, 1, 1], [], []>} : vector<512x128xf32>, vector<128x128xf32>, vector<512x128xf32> -> vector<512x128xf32>
    %56 = arith.addf %50, %55 : vector<512x128xf32>
    %c0_67 = arith.constant 0 : index
    %c2_68 = arith.constant 2 : index
    %c1_69 = arith.constant 1 : index
    %c0_70 = arith.constant 0 : index
    %57 = vector.load %arg14[%c0_67, %c2_68, %c1_69, %c0_70] : memref<2x18x18x128xf32, #tpu.memory_space<vmem>>, vector<2x16x16x128xf32>
    %58 = vector.shape_cast %57 : vector<2x16x16x128xf32> to vector<512x128xf32>
    %c7 = arith.constant 7 : index
    %c0_71 = arith.constant 0 : index
    %c0_72 = arith.constant 0 : index
    %59 = vector.load %arg3[%c7, %c0_71, %c0_72] : memref<9x128x128xf32, #tpu.memory_space<vmem>>, vector<1x128x128xf32>
    %60 = vector.shape_cast %59 : vector<1x128x128xf32> to vector<128x128xf32>
    %cst_73 = arith.constant dense<0.000000e+00> : vector<512x128xf32>
    %61 = tpu.matmul %58, %60, %cst_73 {dimension_numbers = #tpu.dot_dimension_numbers<[1], [0], [0], [1], [0, 0, 1, 1], [], []>} : vector<512x128xf32>, vector<128x128xf32>, vector<512x128xf32> -> vector<512x128xf32>
    %62 = arith.addf %56, %61 : vector<512x128xf32>
    %c0_74 = arith.constant 0 : index
    %c2_75 = arith.constant 2 : index
    %c2_76 = arith.constant 2 : index
    %c0_77 = arith.constant 0 : index
    %63 = vector.load %arg14[%c0_74, %c2_75, %c2_76, %c0_77] : memref<2x18x18x128xf32, #tpu.memory_space<vmem>>, vector<2x16x16x128xf32>
    %64 = vector.shape_cast %63 : vector<2x16x16x128xf32> to vector<512x128xf32>
    %c8 = arith.constant 8 : index
    %c0_78 = arith.constant 0 : index
    %c0_79 = arith.constant 0 : index
    %65 = vector.load %arg3[%c8, %c0_78, %c0_79] : memref<9x128x128xf32, #tpu.memory_space<vmem>>, vector<1x128x128xf32>
    %66 = vector.shape_cast %65 : vector<1x128x128xf32> to vector<128x128xf32>
    %cst_80 = arith.constant dense<0.000000e+00> : vector<512x128xf32>
    %67 = tpu.matmul %64, %66, %cst_80 {dimension_numbers = #tpu.dot_dimension_numbers<[1], [0], [0], [1], [0, 0, 1, 1], [], []>} : vector<512x128xf32>, vector<128x128xf32>, vector<512x128xf32> -> vector<512x128xf32>
    %68 = arith.addf %62, %67 : vector<512x128xf32>
    %c0_81 = arith.constant 0 : index
    %c0_82 = arith.constant 0 : index
    %69 = vector.load %arg7[%c0_81, %c0_82] : memref<128x512xf32, #tpu.memory_space<vmem>>, vector<128x512xf32>
    %cst_83 = arith.constant dense<0.000000e+00> : vector<128x128xf32>
    %70 = tpu.matmul %69, %68, %cst_83 {dimension_numbers = #tpu.dot_dimension_numbers<[1], [0], [0], [1], [0, 0, 1, 1], [], []>} : vector<128x512xf32>, vector<512x128xf32>, vector<128x128xf32> -> vector<128x128xf32>
    %c0_84 = arith.constant 0 : index
    %c0_85 = arith.constant 0 : index
    %71 = vector.load %arg4[%c0_84, %c0_85] : memref<1x128xf32, #tpu.memory_space<vmem>>, vector<1x128xf32>
    %72 = vector.broadcast %71 : vector<1x128xf32> to vector<128x128xf32>
    %73 = arith.addf %70, %72 : vector<128x128xf32>
    %cst_86 = arith.constant 0.000000e+00 : f32
    %74 = vector.broadcast %cst_86 : f32 to vector<128x128xf32>
    %75 = arith.maximumf %73, %74 : vector<128x128xf32>
    %cst_87 = arith.constant 0.000000e+00 : f32
    %76 = vector.broadcast %cst_87 : f32 to vector<2x10x10x128xf32>
    %c0_88 = arith.constant 0 : index
    %c0_89 = arith.constant 0 : index
    %c0_90 = arith.constant 0 : index
    %c0_91 = arith.constant 0 : index
    %77 = vector.load %arg15[%c0_88, %c0_89, %c0_90, %c0_91] : memref<2x10x10x128xf32, #tpu.memory_space<vmem>>, vector<2x10x10x128xf32>
    tpu.vector_store %arg15[%c0_88, %c0_89, %c0_90, %c0_91], %76 {strides = array<i32>} : memref<2x10x10x128xf32, #tpu.memory_space<vmem>>, vector<2x10x10x128xf32>,
    %78 = vector.shape_cast %75 : vector<128x128xf32> to vector<2x8x8x128xf32>
    %c0_92 = arith.constant 0 : index
    %c1_93 = arith.constant 1 : index
    %c1_94 = arith.constant 1 : index
    %c0_95 = arith.constant 0 : index
    %79 = vector.load %arg15[%c0_92, %c1_93, %c1_94, %c0_95] : memref<2x10x10x128xf32, #tpu.memory_space<vmem>>, vector<2x8x8x128xf32>
    tpu.vector_store %arg15[%c0_92, %c1_93, %c1_94, %c0_95], %78 {strides = array<i32>} : memref<2x10x10x128xf32, #tpu.memory_space<vmem>>, vector<2x8x8x128xf32>,
    %cst_96 = arith.constant 0.000000e+00 : f32
    %80 = vector.broadcast %cst_96 : f32 to vector<128x128xf32>
    %c0_97 = arith.constant 0 : index
    %c0_98 = arith.constant 0 : index
    %c0_99 = arith.constant 0 : index
    %c0_100 = arith.constant 0 : index
    %81 = vector.load %arg15[%c0_97, %c0_98, %c0_99, %c0_100] : memref<2x10x10x128xf32, #tpu.memory_space<vmem>>, vector<2x8x8x128xf32>
    %82 = vector.shape_cast %81 : vector<2x8x8x128xf32> to vector<128x128xf32>
    %c0_101 = arith.constant 0 : index
    %c0_102 = arith.constant 0 : index
    %c0_103 = arith.constant 0 : index
    %83 = vector.load %arg5[%c0_101, %c0_102, %c0_103] : memref<9x128x128xf32, #tpu.memory_space<vmem>>, vector<1x128x128xf32>
    %84 = vector.shape_cast %83 : vector<1x128x128xf32> to vector<128x128xf32>
    %cst_104 = arith.constant dense<0.000000e+00> : vector<128x128xf32>
    %85 = tpu.matmul %82, %84, %cst_104 {dimension_numbers = #tpu.dot_dimension_numbers<[1], [0], [0], [1], [0, 0, 1, 1], [], []>} : vector<128x128xf32>, vector<128x128xf32>, vector<128x128xf32> -> vector<128x128xf32>
    %86 = arith.addf %80, %85 : vector<128x128xf32>
    %c0_105 = arith.constant 0 : index
    %c0_106 = arith.constant 0 : index
    %c1_107 = arith.constant 1 : index
    %c0_108 = arith.constant 0 : index
    %87 = vector.load %arg15[%c0_105, %c0_106, %c1_107, %c0_108] : memref<2x10x10x128xf32, #tpu.memory_space<vmem>>, vector<2x8x8x128xf32>
    %88 = vector.shape_cast %87 : vector<2x8x8x128xf32> to vector<128x128xf32>
    %c1_109 = arith.constant 1 : index
    %c0_110 = arith.constant 0 : index
    %c0_111 = arith.constant 0 : index
    %89 = vector.load %arg5[%c1_109, %c0_110, %c0_111] : memref<9x128x128xf32, #tpu.memory_space<vmem>>, vector<1x128x128xf32>
    %90 = vector.shape_cast %89 : vector<1x128x128xf32> to vector<128x128xf32>
    %cst_112 = arith.constant dense<0.000000e+00> : vector<128x128xf32>
    %91 = tpu.matmul %88, %90, %cst_112 {dimension_numbers = #tpu.dot_dimension_numbers<[1], [0], [0], [1], [0, 0, 1, 1], [], []>} : vector<128x128xf32>, vector<128x128xf32>, vector<128x128xf32> -> vector<128x128xf32>
    %92 = arith.addf %86, %91 : vector<128x128xf32>
    %c0_113 = arith.constant 0 : index
    %c0_114 = arith.constant 0 : index
    %c2_115 = arith.constant 2 : index
    %c0_116 = arith.constant 0 : index
    %93 = vector.load %arg15[%c0_113, %c0_114, %c2_115, %c0_116] : memref<2x10x10x128xf32, #tpu.memory_space<vmem>>, vector<2x8x8x128xf32>
    %94 = vector.shape_cast %93 : vector<2x8x8x128xf32> to vector<128x128xf32>
    %c2_117 = arith.constant 2 : index
    %c0_118 = arith.constant 0 : index
    %c0_119 = arith.constant 0 : index
    %95 = vector.load %arg5[%c2_117, %c0_118, %c0_119] : memref<9x128x128xf32, #tpu.memory_space<vmem>>, vector<1x128x128xf32>
    %96 = vector.shape_cast %95 : vector<1x128x128xf32> to vector<128x128xf32>
    %cst_120 = arith.constant dense<0.000000e+00> : vector<128x128xf32>
    %97 = tpu.matmul %94, %96, %cst_120 {dimension_numbers = #tpu.dot_dimension_numbers<[1], [0], [0], [1], [0, 0, 1, 1], [], []>} : vector<128x128xf32>, vector<128x128xf32>, vector<128x128xf32> -> vector<128x128xf32>
    %98 = arith.addf %92, %97 : vector<128x128xf32>
    %c0_121 = arith.constant 0 : index
    %c1_122 = arith.constant 1 : index
    %c0_123 = arith.constant 0 : index
    %c0_124 = arith.constant 0 : index
    %99 = vector.load %arg15[%c0_121, %c1_122, %c0_123, %c0_124] : memref<2x10x10x128xf32, #tpu.memory_space<vmem>>, vector<2x8x8x128xf32>
    %100 = vector.shape_cast %99 : vector<2x8x8x128xf32> to vector<128x128xf32>
    %c3_125 = arith.constant 3 : index
    %c0_126 = arith.constant 0 : index
    %c0_127 = arith.constant 0 : index
    %101 = vector.load %arg5[%c3_125, %c0_126, %c0_127] : memref<9x128x128xf32, #tpu.memory_space<vmem>>, vector<1x128x128xf32>
    %102 = vector.shape_cast %101 : vector<1x128x128xf32> to vector<128x128xf32>
    %cst_128 = arith.constant dense<0.000000e+00> : vector<128x128xf32>
    %103 = tpu.matmul %100, %102, %cst_128 {dimension_numbers = #tpu.dot_dimension_numbers<[1], [0], [0], [1], [0, 0, 1, 1], [], []>} : vector<128x128xf32>, vector<128x128xf32>, vector<128x128xf32> -> vector<128x128xf32>
    %104 = arith.addf %98, %103 : vector<128x128xf32>
    %c0_129 = arith.constant 0 : index
    %c1_130 = arith.constant 1 : index
    %c1_131 = arith.constant 1 : index
    %c0_132 = arith.constant 0 : index
    %105 = vector.load %arg15[%c0_129, %c1_130, %c1_131, %c0_132] : memref<2x10x10x128xf32, #tpu.memory_space<vmem>>, vector<2x8x8x128xf32>
    %106 = vector.shape_cast %105 : vector<2x8x8x128xf32> to vector<128x128xf32>
    %c4_133 = arith.constant 4 : index
    %c0_134 = arith.constant 0 : index
    %c0_135 = arith.constant 0 : index
    %107 = vector.load %arg5[%c4_133, %c0_134, %c0_135] : memref<9x128x128xf32, #tpu.memory_space<vmem>>, vector<1x128x128xf32>
    %108 = vector.shape_cast %107 : vector<1x128x128xf32> to vector<128x128xf32>
    %cst_136 = arith.constant dense<0.000000e+00> : vector<128x128xf32>
    %109 = tpu.matmul %106, %108, %cst_136 {dimension_numbers = #tpu.dot_dimension_numbers<[1], [0], [0], [1], [0, 0, 1, 1], [], []>} : vector<128x128xf32>, vector<128x128xf32>, vector<128x128xf32> -> vector<128x128xf32>
    %110 = arith.addf %104, %109 : vector<128x128xf32>
    %c0_137 = arith.constant 0 : index
    %c1_138 = arith.constant 1 : index
    %c2_139 = arith.constant 2 : index
    %c0_140 = arith.constant 0 : index
    %111 = vector.load %arg15[%c0_137, %c1_138, %c2_139, %c0_140] : memref<2x10x10x128xf32, #tpu.memory_space<vmem>>, vector<2x8x8x128xf32>
    %112 = vector.shape_cast %111 : vector<2x8x8x128xf32> to vector<128x128xf32>
    %c5_141 = arith.constant 5 : index
    %c0_142 = arith.constant 0 : index
    %c0_143 = arith.constant 0 : index
    %113 = vector.load %arg5[%c5_141, %c0_142, %c0_143] : memref<9x128x128xf32, #tpu.memory_space<vmem>>, vector<1x128x128xf32>
    %114 = vector.shape_cast %113 : vector<1x128x128xf32> to vector<128x128xf32>
    %cst_144 = arith.constant dense<0.000000e+00> : vector<128x128xf32>
    %115 = tpu.matmul %112, %114, %cst_144 {dimension_numbers = #tpu.dot_dimension_numbers<[1], [0], [0], [1], [0, 0, 1, 1], [], []>} : vector<128x128xf32>, vector<128x128xf32>, vector<128x128xf32> -> vector<128x128xf32>
    %116 = arith.addf %110, %115 : vector<128x128xf32>
    %c0_145 = arith.constant 0 : index
    %c2_146 = arith.constant 2 : index
    %c0_147 = arith.constant 0 : index
    %c0_148 = arith.constant 0 : index
    %117 = vector.load %arg15[%c0_145, %c2_146, %c0_147, %c0_148] : memref<2x10x10x128xf32, #tpu.memory_space<vmem>>, vector<2x8x8x128xf32>
    %118 = vector.shape_cast %117 : vector<2x8x8x128xf32> to vector<128x128xf32>
    %c6_149 = arith.constant 6 : index
    %c0_150 = arith.constant 0 : index
    %c0_151 = arith.constant 0 : index
    %119 = vector.load %arg5[%c6_149, %c0_150, %c0_151] : memref<9x128x128xf32, #tpu.memory_space<vmem>>, vector<1x128x128xf32>
    %120 = vector.shape_cast %119 : vector<1x128x128xf32> to vector<128x128xf32>
    %cst_152 = arith.constant dense<0.000000e+00> : vector<128x128xf32>
    %121 = tpu.matmul %118, %120, %cst_152 {dimension_numbers = #tpu.dot_dimension_numbers<[1], [0], [0], [1], [0, 0, 1, 1], [], []>} : vector<128x128xf32>, vector<128x128xf32>, vector<128x128xf32> -> vector<128x128xf32>
    %122 = arith.addf %116, %121 : vector<128x128xf32>
    %c0_153 = arith.constant 0 : index
    %c2_154 = arith.constant 2 : index
    %c1_155 = arith.constant 1 : index
    %c0_156 = arith.constant 0 : index
    %123 = vector.load %arg15[%c0_153, %c2_154, %c1_155, %c0_156] : memref<2x10x10x128xf32, #tpu.memory_space<vmem>>, vector<2x8x8x128xf32>
    %124 = vector.shape_cast %123 : vector<2x8x8x128xf32> to vector<128x128xf32>
    %c7_157 = arith.constant 7 : index
    %c0_158 = arith.constant 0 : index
    %c0_159 = arith.constant 0 : index
    %125 = vector.load %arg5[%c7_157, %c0_158, %c0_159] : memref<9x128x128xf32, #tpu.memory_space<vmem>>, vector<1x128x128xf32>
    %126 = vector.shape_cast %125 : vector<1x128x128xf32> to vector<128x128xf32>
    %cst_160 = arith.constant dense<0.000000e+00> : vector<128x128xf32>
    %127 = tpu.matmul %124, %126, %cst_160 {dimension_numbers = #tpu.dot_dimension_numbers<[1], [0], [0], [1], [0, 0, 1, 1], [], []>} : vector<128x128xf32>, vector<128x128xf32>, vector<128x128xf32> -> vector<128x128xf32>
    %128 = arith.addf %122, %127 : vector<128x128xf32>
    %c0_161 = arith.constant 0 : index
    %c2_162 = arith.constant 2 : index
    %c2_163 = arith.constant 2 : index
    %c0_164 = arith.constant 0 : index
    %129 = vector.load %arg15[%c0_161, %c2_162, %c2_163, %c0_164] : memref<2x10x10x128xf32, #tpu.memory_space<vmem>>, vector<2x8x8x128xf32>
    %130 = vector.shape_cast %129 : vector<2x8x8x128xf32> to vector<128x128xf32>
    %c8_165 = arith.constant 8 : index
    %c0_166 = arith.constant 0 : index
    %c0_167 = arith.constant 0 : index
    %131 = vector.load %arg5[%c8_165, %c0_166, %c0_167] : memref<9x128x128xf32, #tpu.memory_space<vmem>>, vector<1x128x128xf32>
    %132 = vector.shape_cast %131 : vector<1x128x128xf32> to vector<128x128xf32>
    %cst_168 = arith.constant dense<0.000000e+00> : vector<128x128xf32>
    %133 = tpu.matmul %130, %132, %cst_168 {dimension_numbers = #tpu.dot_dimension_numbers<[1], [0], [0], [1], [0, 0, 1, 1], [], []>} : vector<128x128xf32>, vector<128x128xf32>, vector<128x128xf32> -> vector<128x128xf32>
    %134 = arith.addf %128, %133 : vector<128x128xf32>
    %135 = vector.shape_cast %10 : vector<2x16x16x128xf32> to vector<512x128xf32>
    %c0_169 = arith.constant 0 : index
    %c0_170 = arith.constant 0 : index
    %136 = vector.load %arg7[%c0_169, %c0_170] : memref<128x512xf32, #tpu.memory_space<vmem>>, vector<128x512xf32>
    %cst_171 = arith.constant dense<0.000000e+00> : vector<128x128xf32>
    %137 = tpu.matmul %136, %135, %cst_171 {dimension_numbers = #tpu.dot_dimension_numbers<[1], [0], [0], [1], [0, 0, 1, 1], [], []>} : vector<128x512xf32>, vector<512x128xf32>, vector<128x128xf32> -> vector<128x128xf32>
    %c0_172 = arith.constant 0 : index
    %c0_173 = arith.constant 0 : index
    %138 = vector.load %arg6[%c0_172, %c0_173] : memref<128x128xf32, #tpu.memory_space<vmem>>, vector<128x128xf32>
    %cst_174 = arith.constant dense<0.000000e+00> : vector<128x128xf32>
    %139 = tpu.matmul %137, %138, %cst_174 {dimension_numbers = #tpu.dot_dimension_numbers<[1], [0], [0], [1], [0, 0, 1, 1], [], []>} : vector<128x128xf32>, vector<128x128xf32>, vector<128x128xf32> -> vector<128x128xf32>
    %140 = arith.addf %134, %139 : vector<128x128xf32>
    %141 = vector.shape_cast %140 : vector<128x128xf32> to vector<2x8x8x128xf32>
    %c0_175 = arith.constant 0 : index
    %c0_176 = arith.constant 0 : index
    %142 = vector.load %arg8[%c0_175, %c0_176] : memref<1x128xf32, #tpu.memory_space<vmem>>, vector<1x128xf32>
    %143 = vector.shape_cast %142 : vector<1x128xf32> to vector<1x1x1x128xf32>
    %144 = vector.broadcast %143 : vector<1x1x1x128xf32> to vector<2x8x8x128xf32>
    %145 = arith.mulf %141, %144 : vector<2x8x8x128xf32>
    %c0_177 = arith.constant 0 : index
    %c0_178 = arith.constant 0 : index
    %146 = vector.load %arg9[%c0_177, %c0_178] : memref<1x128xf32, #tpu.memory_space<vmem>>, vector<1x128xf32>
    %147 = vector.shape_cast %146 : vector<1x128xf32> to vector<1x1x1x128xf32>
    %148 = vector.broadcast %147 : vector<1x1x1x128xf32> to vector<2x8x8x128xf32>
    %149 = arith.addf %145, %148 : vector<2x8x8x128xf32>
    %cst_179 = arith.constant 0.000000e+00 : f32
    %150 = vector.broadcast %cst_179 : f32 to vector<2x8x8x128xf32>
    %151 = arith.maximumf %149, %150 : vector<2x8x8x128xf32>
    %cst_180 = arith.constant 0.000000e+00 : f32
    %152 = vector.broadcast %cst_180 : f32 to vector<2x10x10x128xf32>
    %c0_181 = arith.constant 0 : index
    %c0_182 = arith.constant 0 : index
    %c0_183 = arith.constant 0 : index
    %c0_184 = arith.constant 0 : index
    %153 = vector.load %arg16[%c0_181, %c0_182, %c0_183, %c0_184] : memref<2x10x10x128xf32, #tpu.memory_space<vmem>>, vector<2x10x10x128xf32>
    tpu.vector_store %arg16[%c0_181, %c0_182, %c0_183, %c0_184], %152 {strides = array<i32>} : memref<2x10x10x128xf32, #tpu.memory_space<vmem>>, vector<2x10x10x128xf32>,
    %c0_185 = arith.constant 0 : index
    %c1_186 = arith.constant 1 : index
    %c1_187 = arith.constant 1 : index
    %c0_188 = arith.constant 0 : index
    %154 = vector.load %arg16[%c0_185, %c1_186, %c1_187, %c0_188] : memref<2x10x10x128xf32, #tpu.memory_space<vmem>>, vector<2x8x8x128xf32>
    tpu.vector_store %arg16[%c0_185, %c1_186, %c1_187, %c0_188], %151 {strides = array<i32>} : memref<2x10x10x128xf32, #tpu.memory_space<vmem>>, vector<2x8x8x128xf32>,
    %cst_189 = arith.constant 0.000000e+00 : f32
    %155 = vector.broadcast %cst_189 : f32 to vector<128x128xf32>
    %c0_190 = arith.constant 0 : index
    %c0_191 = arith.constant 0 : index
    %c0_192 = arith.constant 0 : index
    %c0_193 = arith.constant 0 : index
    %156 = vector.load %arg16[%c0_190, %c0_191, %c0_192, %c0_193] : memref<2x10x10x128xf32, #tpu.memory_space<vmem>>, vector<2x8x8x128xf32>
    %157 = vector.shape_cast %156 : vector<2x8x8x128xf32> to vector<128x128xf32>
    %c0_194 = arith.constant 0 : index
    %c0_195 = arith.constant 0 : index
    %c0_196 = arith.constant 0 : index
    %158 = vector.load %arg10[%c0_194, %c0_195, %c0_196] : memref<9x128x128xf32, #tpu.memory_space<vmem>>, vector<1x128x128xf32>
    %159 = vector.shape_cast %158 : vector<1x128x128xf32> to vector<128x128xf32>
    %cst_197 = arith.constant dense<0.000000e+00> : vector<128x128xf32>
    %160 = tpu.matmul %157, %159, %cst_197 {dimension_numbers = #tpu.dot_dimension_numbers<[1], [0], [0], [1], [0, 0, 1, 1], [], []>} : vector<128x128xf32>, vector<128x128xf32>, vector<128x128xf32> -> vector<128x128xf32>
    %161 = arith.addf %155, %160 : vector<128x128xf32>
    %c0_198 = arith.constant 0 : index
    %c0_199 = arith.constant 0 : index
    %c1_200 = arith.constant 1 : index
    %c0_201 = arith.constant 0 : index
    %162 = vector.load %arg16[%c0_198, %c0_199, %c1_200, %c0_201] : memref<2x10x10x128xf32, #tpu.memory_space<vmem>>, vector<2x8x8x128xf32>
    %163 = vector.shape_cast %162 : vector<2x8x8x128xf32> to vector<128x128xf32>
    %c1_202 = arith.constant 1 : index
    %c0_203 = arith.constant 0 : index
    %c0_204 = arith.constant 0 : index
    %164 = vector.load %arg10[%c1_202, %c0_203, %c0_204] : memref<9x128x128xf32, #tpu.memory_space<vmem>>, vector<1x128x128xf32>
    %165 = vector.shape_cast %164 : vector<1x128x128xf32> to vector<128x128xf32>
    %cst_205 = arith.constant dense<0.000000e+00> : vector<128x128xf32>
    %166 = tpu.matmul %163, %165, %cst_205 {dimension_numbers = #tpu.dot_dimension_numbers<[1], [0], [0], [1], [0, 0, 1, 1], [], []>} : vector<128x128xf32>, vector<128x128xf32>, vector<128x128xf32> -> vector<128x128xf32>
    %167 = arith.addf %161, %166 : vector<128x128xf32>
    %c0_206 = arith.constant 0 : index
    %c0_207 = arith.constant 0 : index
    %c2_208 = arith.constant 2 : index
    %c0_209 = arith.constant 0 : index
    %168 = vector.load %arg16[%c0_206, %c0_207, %c2_208, %c0_209] : memref<2x10x10x128xf32, #tpu.memory_space<vmem>>, vector<2x8x8x128xf32>
    %169 = vector.shape_cast %168 : vector<2x8x8x128xf32> to vector<128x128xf32>
    %c2_210 = arith.constant 2 : index
    %c0_211 = arith.constant 0 : index
    %c0_212 = arith.constant 0 : index
    %170 = vector.load %arg10[%c2_210, %c0_211, %c0_212] : memref<9x128x128xf32, #tpu.memory_space<vmem>>, vector<1x128x128xf32>
    %171 = vector.shape_cast %170 : vector<1x128x128xf32> to vector<128x128xf32>
    %cst_213 = arith.constant dense<0.000000e+00> : vector<128x128xf32>
    %172 = tpu.matmul %169, %171, %cst_213 {dimension_numbers = #tpu.dot_dimension_numbers<[1], [0], [0], [1], [0, 0, 1, 1], [], []>} : vector<128x128xf32>, vector<128x128xf32>, vector<128x128xf32> -> vector<128x128xf32>
    %173 = arith.addf %167, %172 : vector<128x128xf32>
    %c0_214 = arith.constant 0 : index
    %c1_215 = arith.constant 1 : index
    %c0_216 = arith.constant 0 : index
    %c0_217 = arith.constant 0 : index
    %174 = vector.load %arg16[%c0_214, %c1_215, %c0_216, %c0_217] : memref<2x10x10x128xf32, #tpu.memory_space<vmem>>, vector<2x8x8x128xf32>
    %175 = vector.shape_cast %174 : vector<2x8x8x128xf32> to vector<128x128xf32>
    %c3_218 = arith.constant 3 : index
    %c0_219 = arith.constant 0 : index
    %c0_220 = arith.constant 0 : index
    %176 = vector.load %arg10[%c3_218, %c0_219, %c0_220] : memref<9x128x128xf32, #tpu.memory_space<vmem>>, vector<1x128x128xf32>
    %177 = vector.shape_cast %176 : vector<1x128x128xf32> to vector<128x128xf32>
    %cst_221 = arith.constant dense<0.000000e+00> : vector<128x128xf32>
    %178 = tpu.matmul %175, %177, %cst_221 {dimension_numbers = #tpu.dot_dimension_numbers<[1], [0], [0], [1], [0, 0, 1, 1], [], []>} : vector<128x128xf32>, vector<128x128xf32>, vector<128x128xf32> -> vector<128x128xf32>
    %179 = arith.addf %173, %178 : vector<128x128xf32>
    %c0_222 = arith.constant 0 : index
    %c1_223 = arith.constant 1 : index
    %c1_224 = arith.constant 1 : index
    %c0_225 = arith.constant 0 : index
    %180 = vector.load %arg16[%c0_222, %c1_223, %c1_224, %c0_225] : memref<2x10x10x128xf32, #tpu.memory_space<vmem>>, vector<2x8x8x128xf32>
    %181 = vector.shape_cast %180 : vector<2x8x8x128xf32> to vector<128x128xf32>
    %c4_226 = arith.constant 4 : index
    %c0_227 = arith.constant 0 : index
    %c0_228 = arith.constant 0 : index
    %182 = vector.load %arg10[%c4_226, %c0_227, %c0_228] : memref<9x128x128xf32, #tpu.memory_space<vmem>>, vector<1x128x128xf32>
    %183 = vector.shape_cast %182 : vector<1x128x128xf32> to vector<128x128xf32>
    %cst_229 = arith.constant dense<0.000000e+00> : vector<128x128xf32>
    %184 = tpu.matmul %181, %183, %cst_229 {dimension_numbers = #tpu.dot_dimension_numbers<[1], [0], [0], [1], [0, 0, 1, 1], [], []>} : vector<128x128xf32>, vector<128x128xf32>, vector<128x128xf32> -> vector<128x128xf32>
    %185 = arith.addf %179, %184 : vector<128x128xf32>
    %c0_230 = arith.constant 0 : index
    %c1_231 = arith.constant 1 : index
    %c2_232 = arith.constant 2 : index
    %c0_233 = arith.constant 0 : index
    %186 = vector.load %arg16[%c0_230, %c1_231, %c2_232, %c0_233] : memref<2x10x10x128xf32, #tpu.memory_space<vmem>>, vector<2x8x8x128xf32>
    %187 = vector.shape_cast %186 : vector<2x8x8x128xf32> to vector<128x128xf32>
    %c5_234 = arith.constant 5 : index
    %c0_235 = arith.constant 0 : index
    %c0_236 = arith.constant 0 : index
    %188 = vector.load %arg10[%c5_234, %c0_235, %c0_236] : memref<9x128x128xf32, #tpu.memory_space<vmem>>, vector<1x128x128xf32>
    %189 = vector.shape_cast %188 : vector<1x128x128xf32> to vector<128x128xf32>
    %cst_237 = arith.constant dense<0.000000e+00> : vector<128x128xf32>
    %190 = tpu.matmul %187, %189, %cst_237 {dimension_numbers = #tpu.dot_dimension_numbers<[1], [0], [0], [1], [0, 0, 1, 1], [], []>} : vector<128x128xf32>, vector<128x128xf32>, vector<128x128xf32> -> vector<128x128xf32>
    %191 = arith.addf %185, %190 : vector<128x128xf32>
    %c0_238 = arith.constant 0 : index
    %c2_239 = arith.constant 2 : index
    %c0_240 = arith.constant 0 : index
    %c0_241 = arith.constant 0 : index
    %192 = vector.load %arg16[%c0_238, %c2_239, %c0_240, %c0_241] : memref<2x10x10x128xf32, #tpu.memory_space<vmem>>, vector<2x8x8x128xf32>
    %193 = vector.shape_cast %192 : vector<2x8x8x128xf32> to vector<128x128xf32>
    %c6_242 = arith.constant 6 : index
    %c0_243 = arith.constant 0 : index
    %c0_244 = arith.constant 0 : index
    %194 = vector.load %arg10[%c6_242, %c0_243, %c0_244] : memref<9x128x128xf32, #tpu.memory_space<vmem>>, vector<1x128x128xf32>
    %195 = vector.shape_cast %194 : vector<1x128x128xf32> to vector<128x128xf32>
    %cst_245 = arith.constant dense<0.000000e+00> : vector<128x128xf32>
    %196 = tpu.matmul %193, %195, %cst_245 {dimension_numbers = #tpu.dot_dimension_numbers<[1], [0], [0], [1], [0, 0, 1, 1], [], []>} : vector<128x128xf32>, vector<128x128xf32>, vector<128x128xf32> -> vector<128x128xf32>
    %197 = arith.addf %191, %196 : vector<128x128xf32>
    %c0_246 = arith.constant 0 : index
    %c2_247 = arith.constant 2 : index
    %c1_248 = arith.constant 1 : index
    %c0_249 = arith.constant 0 : index
    %198 = vector.load %arg16[%c0_246, %c2_247, %c1_248, %c0_249] : memref<2x10x10x128xf32, #tpu.memory_space<vmem>>, vector<2x8x8x128xf32>
    %199 = vector.shape_cast %198 : vector<2x8x8x128xf32> to vector<128x128xf32>
    %c7_250 = arith.constant 7 : index
    %c0_251 = arith.constant 0 : index
    %c0_252 = arith.constant 0 : index
    %200 = vector.load %arg10[%c7_250, %c0_251, %c0_252] : memref<9x128x128xf32, #tpu.memory_space<vmem>>, vector<1x128x128xf32>
    %201 = vector.shape_cast %200 : vector<1x128x128xf32> to vector<128x128xf32>
    %cst_253 = arith.constant dense<0.000000e+00> : vector<128x128xf32>
    %202 = tpu.matmul %199, %201, %cst_253 {dimension_numbers = #tpu.dot_dimension_numbers<[1], [0], [0], [1], [0, 0, 1, 1], [], []>} : vector<128x128xf32>, vector<128x128xf32>, vector<128x128xf32> -> vector<128x128xf32>
    %203 = arith.addf %197, %202 : vector<128x128xf32>
    %c0_254 = arith.constant 0 : index
    %c2_255 = arith.constant 2 : index
    %c2_256 = arith.constant 2 : index
    %c0_257 = arith.constant 0 : index
    %204 = vector.load %arg16[%c0_254, %c2_255, %c2_256, %c0_257] : memref<2x10x10x128xf32, #tpu.memory_space<vmem>>, vector<2x8x8x128xf32>
    %205 = vector.shape_cast %204 : vector<2x8x8x128xf32> to vector<128x128xf32>
    %c8_258 = arith.constant 8 : index
    %c0_259 = arith.constant 0 : index
    %c0_260 = arith.constant 0 : index
    %206 = vector.load %arg10[%c8_258, %c0_259, %c0_260] : memref<9x128x128xf32, #tpu.memory_space<vmem>>, vector<1x128x128xf32>
    %207 = vector.shape_cast %206 : vector<1x128x128xf32> to vector<128x128xf32>
    %cst_261 = arith.constant dense<0.000000e+00> : vector<128x128xf32>
    %208 = tpu.matmul %205, %207, %cst_261 {dimension_numbers = #tpu.dot_dimension_numbers<[1], [0], [0], [1], [0, 0, 1, 1], [], []>} : vector<128x128xf32>, vector<128x128xf32>, vector<128x128xf32> -> vector<128x128xf32>
    %209 = arith.addf %203, %208 : vector<128x128xf32>
    %c0_262 = arith.constant 0 : index
    %c0_263 = arith.constant 0 : index
    %210 = vector.load %arg11[%c0_262, %c0_263] : memref<1x128xf32, #tpu.memory_space<vmem>>, vector<1x128xf32>
    %211 = vector.broadcast %210 : vector<1x128xf32> to vector<128x128xf32>
    %212 = arith.addf %209, %211 : vector<128x128xf32>
    %cst_264 = arith.constant 0.000000e+00 : f32
    %213 = vector.broadcast %cst_264 : f32 to vector<128x128xf32>
    %214 = arith.maximumf %212, %213 : vector<128x128xf32>
    %cst_265 = arith.constant 0.000000e+00 : f32
    %215 = vector.broadcast %cst_265 : f32 to vector<2x10x10x128xf32>
    %c0_266 = arith.constant 0 : index
    %c0_267 = arith.constant 0 : index
    %c0_268 = arith.constant 0 : index
    %c0_269 = arith.constant 0 : index
    %216 = vector.load %arg17[%c0_266, %c0_267, %c0_268, %c0_269] : memref<2x10x10x128xf32, #tpu.memory_space<vmem>>, vector<2x10x10x128xf32>
    tpu.vector_store %arg17[%c0_266, %c0_267, %c0_268, %c0_269], %215 {strides = array<i32>} : memref<2x10x10x128xf32, #tpu.memory_space<vmem>>, vector<2x10x10x128xf32>,
    %217 = vector.shape_cast %214 : vector<128x128xf32> to vector<2x8x8x128xf32>
    %c0_270 = arith.constant 0 : index
    %c1_271 = arith.constant 1 : index
    %c1_272 = arith.constant 1 : index
    %c0_273 = arith.constant 0 : index
    %218 = vector.load %arg17[%c0_270, %c1_271, %c1_272, %c0_273] : memref<2x10x10x128xf32, #tpu.memory_space<vmem>>, vector<2x8x8x128xf32>
    tpu.vector_store %arg17[%c0_270, %c1_271, %c1_272, %c0_273], %217 {strides = array<i32>} : memref<2x10x10x128xf32, #tpu.memory_space<vmem>>, vector<2x8x8x128xf32>,
    %cst_274 = arith.constant 0.000000e+00 : f32
    %219 = vector.broadcast %cst_274 : f32 to vector<128x128xf32>
    %c0_275 = arith.constant 0 : index
    %c0_276 = arith.constant 0 : index
    %c0_277 = arith.constant 0 : index
    %c0_278 = arith.constant 0 : index
    %220 = vector.load %arg17[%c0_275, %c0_276, %c0_277, %c0_278] : memref<2x10x10x128xf32, #tpu.memory_space<vmem>>, vector<2x8x8x128xf32>
    %221 = vector.shape_cast %220 : vector<2x8x8x128xf32> to vector<128x128xf32>
    %c0_279 = arith.constant 0 : index
    %c0_280 = arith.constant 0 : index
    %c0_281 = arith.constant 0 : index
    %222 = vector.load %arg12[%c0_279, %c0_280, %c0_281] : memref<9x128x128xf32, #tpu.memory_space<vmem>>, vector<1x128x128xf32>
    %223 = vector.shape_cast %222 : vector<1x128x128xf32> to vector<128x128xf32>
    %cst_282 = arith.constant dense<0.000000e+00> : vector<128x128xf32>
    %224 = tpu.matmul %221, %223, %cst_282 {dimension_numbers = #tpu.dot_dimension_numbers<[1], [0], [0], [1], [0, 0, 1, 1], [], []>} : vector<128x128xf32>, vector<128x128xf32>, vector<128x128xf32> -> vector<128x128xf32>
    %225 = arith.addf %219, %224 : vector<128x128xf32>
    %c0_283 = arith.constant 0 : index
    %c0_284 = arith.constant 0 : index
    %c1_285 = arith.constant 1 : index
    %c0_286 = arith.constant 0 : index
    %226 = vector.load %arg17[%c0_283, %c0_284, %c1_285, %c0_286] : memref<2x10x10x128xf32, #tpu.memory_space<vmem>>, vector<2x8x8x128xf32>
    %227 = vector.shape_cast %226 : vector<2x8x8x128xf32> to vector<128x128xf32>
    %c1_287 = arith.constant 1 : index
    %c0_288 = arith.constant 0 : index
    %c0_289 = arith.constant 0 : index
    %228 = vector.load %arg12[%c1_287, %c0_288, %c0_289] : memref<9x128x128xf32, #tpu.memory_space<vmem>>, vector<1x128x128xf32>
    %229 = vector.shape_cast %228 : vector<1x128x128xf32> to vector<128x128xf32>
    %cst_290 = arith.constant dense<0.000000e+00> : vector<128x128xf32>
    %230 = tpu.matmul %227, %229, %cst_290 {dimension_numbers = #tpu.dot_dimension_numbers<[1], [0], [0], [1], [0, 0, 1, 1], [], []>} : vector<128x128xf32>, vector<128x128xf32>, vector<128x128xf32> -> vector<128x128xf32>
    %231 = arith.addf %225, %230 : vector<128x128xf32>
    %c0_291 = arith.constant 0 : index
    %c0_292 = arith.constant 0 : index
    %c2_293 = arith.constant 2 : index
    %c0_294 = arith.constant 0 : index
    %232 = vector.load %arg17[%c0_291, %c0_292, %c2_293, %c0_294] : memref<2x10x10x128xf32, #tpu.memory_space<vmem>>, vector<2x8x8x128xf32>
    %233 = vector.shape_cast %232 : vector<2x8x8x128xf32> to vector<128x128xf32>
    %c2_295 = arith.constant 2 : index
    %c0_296 = arith.constant 0 : index
    %c0_297 = arith.constant 0 : index
    %234 = vector.load %arg12[%c2_295, %c0_296, %c0_297] : memref<9x128x128xf32, #tpu.memory_space<vmem>>, vector<1x128x128xf32>
    %235 = vector.shape_cast %234 : vector<1x128x128xf32> to vector<128x128xf32>
    %cst_298 = arith.constant dense<0.000000e+00> : vector<128x128xf32>
    %236 = tpu.matmul %233, %235, %cst_298 {dimension_numbers = #tpu.dot_dimension_numbers<[1], [0], [0], [1], [0, 0, 1, 1], [], []>} : vector<128x128xf32>, vector<128x128xf32>, vector<128x128xf32> -> vector<128x128xf32>
    %237 = arith.addf %231, %236 : vector<128x128xf32>
    %c0_299 = arith.constant 0 : index
    %c1_300 = arith.constant 1 : index
    %c0_301 = arith.constant 0 : index
    %c0_302 = arith.constant 0 : index
    %238 = vector.load %arg17[%c0_299, %c1_300, %c0_301, %c0_302] : memref<2x10x10x128xf32, #tpu.memory_space<vmem>>, vector<2x8x8x128xf32>
    %239 = vector.shape_cast %238 : vector<2x8x8x128xf32> to vector<128x128xf32>
    %c3_303 = arith.constant 3 : index
    %c0_304 = arith.constant 0 : index
    %c0_305 = arith.constant 0 : index
    %240 = vector.load %arg12[%c3_303, %c0_304, %c0_305] : memref<9x128x128xf32, #tpu.memory_space<vmem>>, vector<1x128x128xf32>
    %241 = vector.shape_cast %240 : vector<1x128x128xf32> to vector<128x128xf32>
    %cst_306 = arith.constant dense<0.000000e+00> : vector<128x128xf32>
    %242 = tpu.matmul %239, %241, %cst_306 {dimension_numbers = #tpu.dot_dimension_numbers<[1], [0], [0], [1], [0, 0, 1, 1], [], []>} : vector<128x128xf32>, vector<128x128xf32>, vector<128x128xf32> -> vector<128x128xf32>
    %243 = arith.addf %237, %242 : vector<128x128xf32>
    %c0_307 = arith.constant 0 : index
    %c1_308 = arith.constant 1 : index
    %c1_309 = arith.constant 1 : index
    %c0_310 = arith.constant 0 : index
    %244 = vector.load %arg17[%c0_307, %c1_308, %c1_309, %c0_310] : memref<2x10x10x128xf32, #tpu.memory_space<vmem>>, vector<2x8x8x128xf32>
    %245 = vector.shape_cast %244 : vector<2x8x8x128xf32> to vector<128x128xf32>
    %c4_311 = arith.constant 4 : index
    %c0_312 = arith.constant 0 : index
    %c0_313 = arith.constant 0 : index
    %246 = vector.load %arg12[%c4_311, %c0_312, %c0_313] : memref<9x128x128xf32, #tpu.memory_space<vmem>>, vector<1x128x128xf32>
    %247 = vector.shape_cast %246 : vector<1x128x128xf32> to vector<128x128xf32>
    %cst_314 = arith.constant dense<0.000000e+00> : vector<128x128xf32>
    %248 = tpu.matmul %245, %247, %cst_314 {dimension_numbers = #tpu.dot_dimension_numbers<[1], [0], [0], [1], [0, 0, 1, 1], [], []>} : vector<128x128xf32>, vector<128x128xf32>, vector<128x128xf32> -> vector<128x128xf32>
    %249 = arith.addf %243, %248 : vector<128x128xf32>
    %c0_315 = arith.constant 0 : index
    %c1_316 = arith.constant 1 : index
    %c2_317 = arith.constant 2 : index
    %c0_318 = arith.constant 0 : index
    %250 = vector.load %arg17[%c0_315, %c1_316, %c2_317, %c0_318] : memref<2x10x10x128xf32, #tpu.memory_space<vmem>>, vector<2x8x8x128xf32>
    %251 = vector.shape_cast %250 : vector<2x8x8x128xf32> to vector<128x128xf32>
    %c5_319 = arith.constant 5 : index
    %c0_320 = arith.constant 0 : index
    %c0_321 = arith.constant 0 : index
    %252 = vector.load %arg12[%c5_319, %c0_320, %c0_321] : memref<9x128x128xf32, #tpu.memory_space<vmem>>, vector<1x128x128xf32>
    %253 = vector.shape_cast %252 : vector<1x128x128xf32> to vector<128x128xf32>
    %cst_322 = arith.constant dense<0.000000e+00> : vector<128x128xf32>
    %254 = tpu.matmul %251, %253, %cst_322 {dimension_numbers = #tpu.dot_dimension_numbers<[1], [0], [0], [1], [0, 0, 1, 1], [], []>} : vector<128x128xf32>, vector<128x128xf32>, vector<128x128xf32> -> vector<128x128xf32>
    %255 = arith.addf %249, %254 : vector<128x128xf32>
    %c0_323 = arith.constant 0 : index
    %c2_324 = arith.constant 2 : index
    %c0_325 = arith.constant 0 : index
    %c0_326 = arith.constant 0 : index
    %256 = vector.load %arg17[%c0_323, %c2_324, %c0_325, %c0_326] : memref<2x10x10x128xf32, #tpu.memory_space<vmem>>, vector<2x8x8x128xf32>
    %257 = vector.shape_cast %256 : vector<2x8x8x128xf32> to vector<128x128xf32>
    %c6_327 = arith.constant 6 : index
    %c0_328 = arith.constant 0 : index
    %c0_329 = arith.constant 0 : index
    %258 = vector.load %arg12[%c6_327, %c0_328, %c0_329] : memref<9x128x128xf32, #tpu.memory_space<vmem>>, vector<1x128x128xf32>
    %259 = vector.shape_cast %258 : vector<1x128x128xf32> to vector<128x128xf32>
    %cst_330 = arith.constant dense<0.000000e+00> : vector<128x128xf32>
    %260 = tpu.matmul %257, %259, %cst_330 {dimension_numbers = #tpu.dot_dimension_numbers<[1], [0], [0], [1], [0, 0, 1, 1], [], []>} : vector<128x128xf32>, vector<128x128xf32>, vector<128x128xf32> -> vector<128x128xf32>
    %261 = arith.addf %255, %260 : vector<128x128xf32>
    %c0_331 = arith.constant 0 : index
    %c2_332 = arith.constant 2 : index
    %c1_333 = arith.constant 1 : index
    %c0_334 = arith.constant 0 : index
    %262 = vector.load %arg17[%c0_331, %c2_332, %c1_333, %c0_334] : memref<2x10x10x128xf32, #tpu.memory_space<vmem>>, vector<2x8x8x128xf32>
    %263 = vector.shape_cast %262 : vector<2x8x8x128xf32> to vector<128x128xf32>
    %c7_335 = arith.constant 7 : index
    %c0_336 = arith.constant 0 : index
    %c0_337 = arith.constant 0 : index
    %264 = vector.load %arg12[%c7_335, %c0_336, %c0_337] : memref<9x128x128xf32, #tpu.memory_space<vmem>>, vector<1x128x128xf32>
    %265 = vector.shape_cast %264 : vector<1x128x128xf32> to vector<128x128xf32>
    %cst_338 = arith.constant dense<0.000000e+00> : vector<128x128xf32>
    %266 = tpu.matmul %263, %265, %cst_338 {dimension_numbers = #tpu.dot_dimension_numbers<[1], [0], [0], [1], [0, 0, 1, 1], [], []>} : vector<128x128xf32>, vector<128x128xf32>, vector<128x128xf32> -> vector<128x128xf32>
    %267 = arith.addf %261, %266 : vector<128x128xf32>
    %c0_339 = arith.constant 0 : index
    %c2_340 = arith.constant 2 : index
    %c2_341 = arith.constant 2 : index
    %c0_342 = arith.constant 0 : index
    %268 = vector.load %arg17[%c0_339, %c2_340, %c2_341, %c0_342] : memref<2x10x10x128xf32, #tpu.memory_space<vmem>>, vector<2x8x8x128xf32>
    %269 = vector.shape_cast %268 : vector<2x8x8x128xf32> to vector<128x128xf32>
    %c8_343 = arith.constant 8 : index
    %c0_344 = arith.constant 0 : index
    %c0_345 = arith.constant 0 : index
    %270 = vector.load %arg12[%c8_343, %c0_344, %c0_345] : memref<9x128x128xf32, #tpu.memory_space<vmem>>, vector<1x128x128xf32>
    %271 = vector.shape_cast %270 : vector<1x128x128xf32> to vector<128x128xf32>
    %cst_346 = arith.constant dense<0.000000e+00> : vector<128x128xf32>
    %272 = tpu.matmul %269, %271, %cst_346 {dimension_numbers = #tpu.dot_dimension_numbers<[1], [0], [0], [1], [0, 0, 1, 1], [], []>} : vector<128x128xf32>, vector<128x128xf32>, vector<128x128xf32> -> vector<128x128xf32>
    %273 = arith.addf %267, %272 : vector<128x128xf32>
    %274 = vector.shape_cast %141 : vector<2x8x8x128xf32> to vector<128x128xf32>
    %275 = arith.addf %273, %274 : vector<128x128xf32>
    %276 = vector.shape_cast %275 : vector<128x128xf32> to vector<2x8x8x128xf32>
    %c0_347 = arith.constant 0 : index
    %c0_348 = arith.constant 0 : index
    %c0_349 = arith.constant 0 : index
    %c0_350 = arith.constant 0 : index
    %277 = vector.load %arg13[%c0_347, %c0_348, %c0_349, %c0_350] : memref<2x8x8x128xf32, #tpu.memory_space<vmem>>, vector<2x8x8x128xf32>
    tpu.vector_store %arg13[%c0_347, %c0_348, %c0_349, %c0_350], %276 {strides = array<i32>} : memref<2x8x8x128xf32, #tpu.memory_space<vmem>>, vector<2x8x8x128xf32>,
    return
  }
}

</mosaic_0001>

<llo_original>
// kernel: _lambda_.1
$region0: #{_lambda_.1}
  #allocation0 [shape = 'u32[]', space=smem, size = 0x4, offset = 0x4, fixed_abs, tag = 'smem constant byte address 0x4 - core index']
  #allocation1 [shape = 'u32[72,128]{1,0:T(1,128)}', space=vmem, size = 0x9000, scoped, tag = 'internal scratch']
  #allocation2 [shape = 'f32[2,18,18,128]{3,2,1,0:T(8,128)}', space=vmem, size = 0x6c000, scoped, tag = 'scratch operand']
  #allocation3 [shape = 'f32[2,10,10,128]{3,2,1,0:T(8,128)}', space=vmem, size = 0x28000, scoped, tag = 'scratch operand']
  #allocation4 [shape = 'f32[2,10,10,128]{3,2,1,0:T(8,128)}', space=vmem, size = 0x28000, scoped, tag = 'scratch operand']
  #allocation5 [shape = 'f32[2,10,10,128]{3,2,1,0:T(8,128)}', space=vmem, size = 0x28000, scoped, tag = 'scratch operand']
  %s0 = inlined_call_operand.vmem [shape: f32[2,16,16,128], index: 0, kind: input, shape index: {}]
  %s1 = inlined_call_operand.vmem [shape: f32[1,128], index: 1, kind: input, shape index: {}]
  %s2 = inlined_call_operand.vmem [shape: f32[1,128], index: 2, kind: input, shape index: {}]
  %s3 = inlined_call_operand.hbm [shape: f32[9,128,128], index: 3, kind: input, shape index: {}]
  %s4 = inlined_call_operand.vmem [shape: f32[1,128], index: 4, kind: input, shape index: {}]
  %s5 = inlined_call_operand.hbm [shape: f32[9,128,128], index: 5, kind: input, shape index: {}]
  %s6 = inlined_call_operand.hbm [shape: f32[128,128], index: 6, kind: input, shape index: {}]
  %s7 = inlined_call_operand.vmem [shape: f32[128,512], index: 7, kind: input, shape index: {}]
  %s8 = inlined_call_operand.vmem [shape: f32[1,128], index: 8, kind: input, shape index: {}]
  %s9 = inlined_call_operand.vmem [shape: f32[1,128], index: 9, kind: input, shape index: {}]
  %s10 = inlined_call_operand.hbm [shape: f32[9,128,128], index: 10, kind: input, shape index: {}]
  %s11 = inlined_call_operand.vmem [shape: f32[1,128], index: 11, kind: input, shape index: {}]
  %s12 = inlined_call_operand.vmem [shape: f32[9,128,128], index: 12, kind: input, shape index: {}]
  %s13 = inlined_call_operand.hbm [shape: f32[2,8,8,128], index: 13, kind: output, shape index: {}]
  %s14 = sld [smem:[#allocation0]]
  $region78: #{_lambda_.1} parent=0
    _
  %s16 = ssub.s32 1, %s14
  %s17 = scalar_select 0, %s16, %s14
  $region1: #{_lambda_.1} parent=0
    #allocation6 [shape = 'u8[589824]{0}', space=vmem, size = 0x90000, scoped, tag = 'input window, operand 3, single buffered']
    #allocation7 [shape = 's32[1]{0}', space=sflag, size = 0x4, scoped, tag = 'scoped memory for _lambda_.1']
    #allocation8 [shape = 's32[1]{0}', space=sflag, size = 0x4, scoped, tag = 'scoped memory for _lambda_.1']
    #allocation9 [shape = 'u8[589824]{0}', space=vmem, size = 0x90000, scoped, tag = 'input window, operand 5, single buffered']
    #allocation10 [shape = 's32[1]{0}', space=sflag, size = 0x4, scoped, tag = 'scoped memory for _lambda_.1']
    #allocation11 [shape = 'u8[65536]{0}', space=vmem, size = 0x10000, scoped, tag = 'input window, operand 6, single buffered']
    #allocation12 [shape = 'u8[589824]{0}', space=vmem, size = 0x90000, scoped, tag = 'input window, operand 10, single buffered']
    #allocation13 [shape = 's32[1]{0}', space=sflag, size = 0x4, scoped, tag = 'scoped memory for _lambda_.1']
    #allocation14 [shape = 'u8[65536]{0}', space=vmem, size = 0x10000, scoped, tag = 'output window, operand 0, single buffered']
    %18 = vsyncpa [#allocation7], 0
    %19 = vsyncpa [#allocation10], 0
    %20 = vsyncpa [#allocation13], 0
    %21 = vsyncpa [#allocation8], 0
    // Predicated region
    $region2: #{_lambda_.1} parent=1 // pred_check
      _
    $region3: #{_lambda_.1} parent=1 // pred_check_branch
      %23 = sbr.rel (0) target = $region5
    $region4: #{_lambda_.1} parent=1 // pred_region
      _
    $region5: #{_lambda_.1} parent=1 // pred_fallthru
      _
    // Predicated region
    $region6: #{_lambda_.1} parent=1 // pred_check
      _
    $region7: #{_lambda_.1} parent=1 // pred_check_branch
      %25 = sbr.rel (0) target = $region9
    $region8: #{_lambda_.1} parent=1 // pred_region
      _
    $region9: #{_lambda_.1} parent=1 // pred_fallthru
      _
    // Predicated region
    $region10: #{_lambda_.1} parent=1 // pred_check
      _
    $region11: #{_lambda_.1} parent=1 // pred_check_branch
      %27 = sbr.rel (0) target = $region13
    $region12: #{_lambda_.1} parent=1 // pred_region
      _
    $region13: #{_lambda_.1} parent=1 // pred_fallthru
      _
    // Predicated region
    $region14: #{_lambda_.1} parent=1 // pred_check
      _
    $region15: #{_lambda_.1} parent=1 // pred_check_branch
      %29 = sbr.rel (0) target = $region17
    $region16: #{_lambda_.1} parent=1 // pred_region
      %31 = vsyncadd [#allocation7], 0
      %s32 = sshll.u32 %s3, 4
      %s33 = int_to_ptr.hbm [resolvable:$true] %s32
      %s34 = sshll.u32 [#allocation6], 4
      %s35 = int_to_ptr.vmem [resolvable:$true] %s34
      %40 = dma.hbm_to_vmem [thread:$0]  %s33, 18432, %s35, [#allocation7], 128, 128, 8
    $region17: #{_lambda_.1} parent=1 // pred_fallthru
      _
    // Predicated region
    $region18: #{_lambda_.1} parent=1 // pred_check
      _
    $region19: #{_lambda_.1} parent=1 // pred_check_branch
      %42 = sbr.rel (0) target = $region21
    $region20: #{_lambda_.1} parent=1 // pred_region
      _
    $region21: #{_lambda_.1} parent=1 // pred_fallthru
      _
    // Predicated region
    $region22: #{_lambda_.1} parent=1 // pred_check
      _
    $region23: #{_lambda_.1} parent=1 // pred_check_branch
      %44 = sbr.rel (0) target = $region25
    $region24: #{_lambda_.1} parent=1 // pred_region
      %46 = vsyncadd [#allocation10], 0
      %s47 = sshll.u32 %s5, 4
      %s48 = int_to_ptr.hbm [resolvable:$true] %s47
      %s49 = sshll.u32 [#allocation9], 4
      %s50 = int_to_ptr.vmem [resolvable:$true] %s49
      %55 = dma.hbm_to_vmem [thread:$0]  %s48, 18432, %s50, [#allocation10], 128, 128, 8
    $region25: #{_lambda_.1} parent=1 // pred_fallthru
      _
    // Predicated region
    $region26: #{_lambda_.1} parent=1 // pred_check
      _
    $region27: #{_lambda_.1} parent=1 // pred_check_branch
      %57 = sbr.rel (0) target = $region29
    $region28: #{_lambda_.1} parent=1 // pred_region
      %59 = vsyncadd [#allocation10], 0
      %s60 = sshll.u32 %s6, 4
      %s61 = int_to_ptr.hbm [resolvable:$true] %s60
      %s62 = sshll.u32 [#allocation11], 4
      %s63 = int_to_ptr.vmem [resolvable:$true] %s62
      %68 = dma.hbm_to_vmem [thread:$0]  %s61, 2048, %s63, [#allocation10], 128, 128, 8
    $region29: #{_lambda_.1} parent=1 // pred_fallthru
      _
    // Predicated region
    $region30: #{_lambda_.1} parent=1 // pred_check
      _
    $region31: #{_lambda_.1} parent=1 // pred_check_branch
      %70 = sbr.rel (0) target = $region33
    $region32: #{_lambda_.1} parent=1 // pred_region
      _
    $region33: #{_lambda_.1} parent=1 // pred_fallthru
      _
    // Predicated region
    $region34: #{_lambda_.1} parent=1 // pred_check
      _
    $region35: #{_lambda_.1} parent=1 // pred_check_branch
      %72 = sbr.rel (0) target = $region37
    $region36: #{_lambda_.1} parent=1 // pred_region
      _
    $region37: #{_lambda_.1} parent=1 // pred_fallthru
      _
    // Predicated region
    $region38: #{_lambda_.1} parent=1 // pred_check
      _
    $region39: #{_lambda_.1} parent=1 // pred_check_branch
      %74 = sbr.rel (0) target = $region41
    $region40: #{_lambda_.1} parent=1 // pred_region
      _
    $region41: #{_lambda_.1} parent=1 // pred_fallthru
      _
    // Predicated region
    $region42: #{_lambda_.1} parent=1 // pred_check
      _
    $region43: #{_lambda_.1} parent=1 // pred_check_branch
      %76 = sbr.rel (0) target = $region45
    $region44: #{_lambda_.1} parent=1 // pred_region
      %78 = vsyncadd [#allocation13], 0
      %s79 = sshll.u32 %s10, 4
      %s80 = int_to_ptr.hbm [resolvable:$true] %s79
      %s81 = sshll.u32 [#allocation12], 4
      %s82 = int_to_ptr.vmem [resolvable:$true] %s81
      %87 = dma.hbm_to_vmem [thread:$0]  %s80, 18432, %s82, [#allocation13], 128, 128, 8
    $region45: #{_lambda_.1} parent=1 // pred_fallthru
      _
    // Predicated region
    $region46: #{_lambda_.1} parent=1 // pred_check
      _
    $region47: #{_lambda_.1} parent=1 // pred_check_branch
      %89 = sbr.rel (0) target = $region49
    $region48: #{_lambda_.1} parent=1 // pred_region
      _
    $region49: #{_lambda_.1} parent=1 // pred_fallthru
      _
    // Predicated region
    $region50: #{_lambda_.1} parent=1 // pred_check
      _
    $region51: #{_lambda_.1} parent=1 // pred_check_branch
      %91 = sbr.rel (0) target = $region53
    $region52: #{_lambda_.1} parent=1 // pred_region
      _
    $region53: #{_lambda_.1} parent=1 // pred_fallthru
      _
    // Predicated region
    $region54: #{_lambda_.1} parent=1 // pred_check
      _
    $region55: #{_lambda_.1} parent=1 // pred_check_branch
      %93 = sbr.rel (0) target = $region57
    $region56: #{_lambda_.1} parent=1 // pred_region
      %95 = dma.done [#allocation7], 18432
    $region57: #{_lambda_.1} parent=1 // pred_fallthru
      _
    // Predicated region
    $region58: #{_lambda_.1} parent=1 // pred_check
      _
    $region59: #{_lambda_.1} parent=1 // pred_check_branch
      %97 = sbr.rel (0) target = $region61
    $region60: #{_lambda_.1} parent=1 // pred_region
      %99 = dma.done [#allocation10], 18432
    $region61: #{_lambda_.1} parent=1 // pred_fallthru
      _
    // Predicated region
    $region62: #{_lambda_.1} parent=1 // pred_check
      _
    $region63: #{_lambda_.1} parent=1 // pred_check_branch
      %101 = sbr.rel (0) target = $region65
    $region64: #{_lambda_.1} parent=1 // pred_region
      %103 = dma.done [#allocation10], 2048
    $region65: #{_lambda_.1} parent=1 // pred_fallthru
      _
    // Predicated region
    $region66: #{_lambda_.1} parent=1 // pred_check
      _
    $region67: #{_lambda_.1} parent=1 // pred_check_branch
      %105 = sbr.rel (0) target = $region69
    $region68: #{_lambda_.1} parent=1 // pred_region
      %107 = dma.done [#allocation13], 18432
    $region69: #{_lambda_.1} parent=1 // pred_fallthru
      _
    %v108 = vld [vmem:[%s0] sm:$0xff]
    %v109 = vld [vmem:[%s0 + $0x8] sm:$0xff]
    %v110 = vld [vmem:[%s0 + $0x10] sm:$0xff]
    %v111 = vld [vmem:[%s0 + $0x18] sm:$0xff]
    %v112 = vld [vmem:[%s0 + $0x20] sm:$0xff]
    %v113 = vld [vmem:[%s0 + $0x28] sm:$0xff]
    %v114 = vld [vmem:[%s0 + $0x30] sm:$0xff]
    %v115 = vld [vmem:[%s0 + $0x38] sm:$0xff]
    %v116 = vld [vmem:[%s0 + $0x40] sm:$0xff]
    %v117 = vld [vmem:[%s0 + $0x48] sm:$0xff]
    %v118 = vld [vmem:[%s0 + $0x50] sm:$0xff]
    %v119 = vld [vmem:[%s0 + $0x58] sm:$0xff]
    %v120 = vld [vmem:[%s0 + $0x60] sm:$0xff]
    %v121 = vld [vmem:[%s0 + $0x68] sm:$0xff]
    %v122 = vld [vmem:[%s0 + $0x70] sm:$0xff]
    %v123 = vld [vmem:[%s0 + $0x78] sm:$0xff]
    %v124 = vld [vmem:[%s0 + $0x80] sm:$0xff]
    %v125 = vld [vmem:[%s0 + $0x88] sm:$0xff]
    %v126 = vld [vmem:[%s0 + $0x90] sm:$0xff]
    %v127 = vld [vmem:[%s0 + $0x98] sm:$0xff]
    %v128 = vld [vmem:[%s0 + $0xa0] sm:$0xff]
    %v129 = vld [vmem:[%s0 + $0xa8] sm:$0xff]
    %v130 = vld [vmem:[%s0 + $0xb0] sm:$0xff]
    %v131 = vld [vmem:[%s0 + $0xb8] sm:$0xff]
    %v132 = vld [vmem:[%s0 + $0xc0] sm:$0xff]
    %v133 = vld [vmem:[%s0 + $0xc8] sm:$0xff]
    %v134 = vld [vmem:[%s0 + $0xd0] sm:$0xff]
    %v135 = vld [vmem:[%s0 + $0xd8] sm:$0xff]
    %v136 = vld [vmem:[%s0 + $0xe0] sm:$0xff]
    %v137 = vld [vmem:[%s0 + $0xe8] sm:$0xff]
    %v138 = vld [vmem:[%s0 + $0xf0] sm:$0xff]
    %v139 = vld [vmem:[%s0 + $0xf8] sm:$0xff]
    %v140 = vld [vmem:[%s0 + $0x100] sm:$0xff]
    %v141 = vld [vmem:[%s0 + $0x108] sm:$0xff]
    %v142 = vld [vmem:[%s0 + $0x110] sm:$0xff]
    %v143 = vld [vmem:[%s0 + $0x118] sm:$0xff]
    %v144 = vld [vmem:[%s0 + $0x120] sm:$0xff]
    %v145 = vld [vmem:[%s0 + $0x128] sm:$0xff]
    %v146 = vld [vmem:[%s0 + $0x130] sm:$0xff]
    %v147 = vld [vmem:[%s0 + $0x138] sm:$0xff]
    %v148 = vld [vmem:[%s0 + $0x140] sm:$0xff]
    %v149 = vld [vmem:[%s0 + $0x148] sm:$0xff]
    %v150 = vld [vmem:[%s0 + $0x150] sm:$0xff]
    %v151 = vld [vmem:[%s0 + $0x158] sm:$0xff]
    %v152 = vld [vmem:[%s0 + $0x160] sm:$0xff]
    %v153 = vld [vmem:[%s0 + $0x168] sm:$0xff]
    %v154 = vld [vmem:[%s0 + $0x170] sm:$0xff]
    %v155 = vld [vmem:[%s0 + $0x178] sm:$0xff]
    %v156 = vld [vmem:[%s0 + $0x180] sm:$0xff]
    %v157 = vld [vmem:[%s0 + $0x188] sm:$0xff]
    %v158 = vld [vmem:[%s0 + $0x190] sm:$0xff]
    %v159 = vld [vmem:[%s0 + $0x198] sm:$0xff]
    %v160 = vld [vmem:[%s0 + $0x1a0] sm:$0xff]
    %v161 = vld [vmem:[%s0 + $0x1a8] sm:$0xff]
    %v162 = vld [vmem:[%s0 + $0x1b0] sm:$0xff]
    %v163 = vld [vmem:[%s0 + $0x1b8] sm:$0xff]
    %v164 = vld [vmem:[%s0 + $0x1c0] sm:$0xff]
    %v165 = vld [vmem:[%s0 + $0x1c8] sm:$0xff]
    %v166 = vld [vmem:[%s0 + $0x1d0] sm:$0xff]
    %v167 = vld [vmem:[%s0 + $0x1d8] sm:$0xff]
    %v168 = vld [vmem:[%s0 + $0x1e0] sm:$0xff]
    %v169 = vld [vmem:[%s0 + $0x1e8] sm:$0xff]
    %v170 = vld [vmem:[%s0 + $0x1f0] sm:$0xff]
    %v171 = vld [vmem:[%s0 + $0x1f8] sm:$0xff]
    %v172 = vld [vmem:[%s1] sm:$0x1]
    %v174 = vperm.slane %v172, 0
    %v176 = vmul.f32 %v108, %v174
    %v177 = vmul.f32 %v109, %v174
    %v178 = vmul.f32 %v110, %v174
    %v179 = vmul.f32 %v111, %v174
    %v180 = vmul.f32 %v112, %v174
    %v181 = vmul.f32 %v113, %v174
    %v182 = vmul.f32 %v114, %v174
    %v183 = vmul.f32 %v115, %v174
    %v184 = vmul.f32 %v116, %v174
    %v185 = vmul.f32 %v117, %v174
    %v186 = vmul.f32 %v118, %v174
    %v187 = vmul.f32 %v119, %v174
    %v188 = vmul.f32 %v120, %v174
    %v189 = vmul.f32 %v121, %v174
    %v190 = vmul.f32 %v122, %v174
    %v191 = vmul.f32 %v123, %v174
    %v192 = vmul.f32 %v124, %v174
    %v193 = vmul.f32 %v125, %v174
    %v194 = vmul.f32 %v126, %v174
    %v195 = vmul.f32 %v127, %v174
    %v196 = vmul.f32 %v128, %v174
    %v197 = vmul.f32 %v129, %v174
    %v198 = vmul.f32 %v130, %v174
    %v199 = vmul.f32 %v131, %v174
    %v200 = vmul.f32 %v132, %v174
    %v201 = vmul.f32 %v133, %v174
    %v202 = vmul.f32 %v134, %v174
    %v203 = vmul.f32 %v135, %v174
    %v204 = vmul.f32 %v136, %v174
    %v205 = vmul.f32 %v137, %v174
    %v206 = vmul.f32 %v138, %v174
    %v207 = vmul.f32 %v139, %v174
    %v208 = vmul.f32 %v140, %v174
    %v209 = vmul.f32 %v141, %v174
    %v210 = vmul.f32 %v142, %v174
    %v211 = vmul.f32 %v143, %v174
    %v212 = vmul.f32 %v144, %v174
    %v213 = vmul.f32 %v145, %v174
    %v214 = vmul.f32 %v146, %v174
    %v215 = vmul.f32 %v147, %v174
    %v216 = vmul.f32 %v148, %v174
    %v217 = vmul.f32 %v149, %v174
    %v218 = vmul.f32 %v150, %v174
    %v219 = vmul.f32 %v151, %v174
    %v220 = vmul.f32 %v152, %v174
    %v221 = vmul.f32 %v153, %v174
    %v222 = vmul.f32 %v154, %v174
    %v223 = vmul.f32 %v155, %v174
    %v224 = vmul.f32 %v156, %v174
    %v225 = vmul.f32 %v157, %v174
    %v226 = vmul.f32 %v158, %v174
    %v227 = vmul.f32 %v159, %v174
    %v228 = vmul.f32 %v160, %v174
    %v229 = vmul.f32 %v161, %v174
    %v230 = vmul.f32 %v162, %v174
    %v231 = vmul.f32 %v163, %v174
    %v232 = vmul.f32 %v164, %v174
    %v233 = vmul.f32 %v165, %v174
    %v234 = vmul.f32 %v166, %v174
    %v235 = vmul.f32 %v167, %v174
    %v236 = vmul.f32 %v168, %v174
    %v237 = vmul.f32 %v169, %v174
    %v238 = vmul.f32 %v170, %v174
    %v239 = vmul.f32 %v171, %v174
    %v240 = vld [vmem:[%s2] sm:$0x1]
    %v242 = vperm.slane %v240, 0
    %v244 = vadd.f32 %v176, %v242
    %v245 = vadd.f32 %v177, %v242
    %v246 = vadd.f32 %v178, %v242
    %v247 = vadd.f32 %v179, %v242
    %v248 = vadd.f32 %v180, %v242
    %v249 = vadd.f32 %v181, %v242
    %v250 = vadd.f32 %v182, %v242
    %v251 = vadd.f32 %v183, %v242
    %v252 = vadd.f32 %v184, %v242
    %v253 = vadd.f32 %v185, %v242
    %v254 = vadd.f32 %v186, %v242
    %v255 = vadd.f32 %v187, %v242
    %v256 = vadd.f32 %v188, %v242
    %v257 = vadd.f32 %v189, %v242
    %v258 = vadd.f32 %v190, %v242
    %v259 = vadd.f32 %v191, %v242
    %v260 = vadd.f32 %v192, %v242
    %v261 = vadd.f32 %v193, %v242
    %v262 = vadd.f32 %v194, %v242
    %v263 = vadd.f32 %v195, %v242
    %v264 = vadd.f32 %v196, %v242
    %v265 = vadd.f32 %v197, %v242
    %v266 = vadd.f32 %v198, %v242
    %v267 = vadd.f32 %v199, %v242
    %v268 = vadd.f32 %v200, %v242
    %v269 = vadd.f32 %v201, %v242
    %v270 = vadd.f32 %v202, %v242
    %v271 = vadd.f32 %v203, %v242
    %v272 = vadd.f32 %v204, %v242
    %v273 = vadd.f32 %v205, %v242
    %v274 = vadd.f32 %v206, %v242
    %v275 = vadd.f32 %v207, %v242
    %v276 = vadd.f32 %v208, %v242
    %v277 = vadd.f32 %v209, %v242
    %v278 = vadd.f32 %v210, %v242
    %v279 = vadd.f32 %v211, %v242
    %v280 = vadd.f32 %v212, %v242
    %v281 = vadd.f32 %v213, %v242
    %v282 = vadd.f32 %v214, %v242
    %v283 = vadd.f32 %v215, %v242
    %v284 = vadd.f32 %v216, %v242
    %v285 = vadd.f32 %v217, %v242
    %v286 = vadd.f32 %v218, %v242
    %v287 = vadd.f32 %v219, %v242
    %v288 = vadd.f32 %v220, %v242
    %v289 = vadd.f32 %v221, %v242
    %v290 = vadd.f32 %v222, %v242
    %v291 = vadd.f32 %v223, %v242
    %v292 = vadd.f32 %v224, %v242
    %v293 = vadd.f32 %v225, %v242
    %v294 = vadd.f32 %v226, %v242
    %v295 = vadd.f32 %v227, %v242
    %v296 = vadd.f32 %v228, %v242
    %v297 = vadd.f32 %v229, %v242
    %v298 = vadd.f32 %v230, %v242
    %v299 = vadd.f32 %v231, %v242
    %v300 = vadd.f32 %v232, %v242
    %v301 = vadd.f32 %v233, %v242
    %v302 = vadd.f32 %v234, %v242
    %v303 = vadd.f32 %v235, %v242
    %v304 = vadd.f32 %v236, %v242
    %v305 = vadd.f32 %v237, %v242
    %v306 = vadd.f32 %v238, %v242
    %v307 = vadd.f32 %v239, %v242
    %v308 = vmax.f32 %v244, 0.0
    %v309 = vmax.f32 %v245, 0.0
    %v310 = vmax.f32 %v246, 0.0
    %v311 = vmax.f32 %v247, 0.0
    %v312 = vmax.f32 %v248, 0.0
    %v313 = vmax.f32 %v249, 0.0
    %v314 = vmax.f32 %v250, 0.0
    %v315 = vmax.f32 %v251, 0.0
    %v316 = vmax.f32 %v252, 0.0
    %v317 = vmax.f32 %v253, 0.0
    %v318 = vmax.f32 %v254, 0.0
    %v319 = vmax.f32 %v255, 0.0
    %v320 = vmax.f32 %v256, 0.0
    %v321 = vmax.f32 %v257, 0.0
    %v322 = vmax.f32 %v258, 0.0
    %v323 = vmax.f32 %v259, 0.0
    %v324 = vmax.f32 %v260, 0.0
    %v325 = vmax.f32 %v261, 0.0
    %v326 = vmax.f32 %v262, 0.0
    %v327 = vmax.f32 %v263, 0.0
    %v328 = vmax.f32 %v264, 0.0
    %v329 = vmax.f32 %v265, 0.0
    %v330 = vmax.f32 %v266, 0.0
    %v331 = vmax.f32 %v267, 0.0
    %v332 = vmax.f32 %v268, 0.0
    %v333 = vmax.f32 %v269, 0.0
    %v334 = vmax.f32 %v270, 0.0
    %v335 = vmax.f32 %v271, 0.0
    %v336 = vmax.f32 %v272, 0.0
    %v337 = vmax.f32 %v273, 0.0
    %v338 = vmax.f32 %v274, 0.0
    %v339 = vmax.f32 %v275, 0.0
    %v340 = vmax.f32 %v276, 0.0
    %v341 = vmax.f32 %v277, 0.0
    %v342 = vmax.f32 %v278, 0.0
    %v343 = vmax.f32 %v279, 0.0
    %v344 = vmax.f32 %v280, 0.0
    %v345 = vmax.f32 %v281, 0.0
    %v346 = vmax.f32 %v282, 0.0
    %v347 = vmax.f32 %v283, 0.0
    %v348 = vmax.f32 %v284, 0.0
    %v349 = vmax.f32 %v285, 0.0
    %v350 = vmax.f32 %v286, 0.0
    %v351 = vmax.f32 %v287, 0.0
    %v352 = vmax.f32 %v288, 0.0
    %v353 = vmax.f32 %v289, 0.0
    %v354 = vmax.f32 %v290, 0.0
    %v355 = vmax.f32 %v291, 0.0
    %v356 = vmax.f32 %v292, 0.0
    %v357 = vmax.f32 %v293, 0.0
    %v358 = vmax.f32 %v294, 0.0
    %v359 = vmax.f32 %v295, 0.0
    %v360 = vmax.f32 %v296, 0.0
    %v361 = vmax.f32 %v297, 0.0
    %v362 = vmax.f32 %v298, 0.0
    %v363 = vmax.f32 %v299, 0.0
    %v364 = vmax.f32 %v300, 0.0
    %v365 = vmax.f32 %v301, 0.0
    %v366 = vmax.f32 %v302, 0.0
    %v367 = vmax.f32 %v303, 0.0
    %v368 = vmax.f32 %v304, 0.0
    %v369 = vmax.f32 %v305, 0.0
    %v370 = vmax.f32 %v306, 0.0
    %v371 = vmax.f32 %v307, 0.0
    %372 = vst [vmem:[#allocation2] sm:$0xff] 0.0
    %373 = vst [vmem:[#allocation2 + $0x8] sm:$0xff] 0.0
    %374 = vst [vmem:[#allocation2 + $0x10] sm:$0x3] 0.0
    %375 = vst [vmem:[#allocation2 + $0x18] sm:$0xff] 0.0
    %376 = vst [vmem:[#allocation2 + $0x20] sm:$0xff] 0.0
    %377 = vst [vmem:[#allocation2 + $0x28] sm:$0x3] 0.0
    %378 = vst [vmem:[#allocation2 + $0x30] sm:$0xff] 0.0
    %379 = vst [vmem:[#allocation2 + $0x38] sm:$0xff] 0.0
    %380 = vst [vmem:[#allocation2 + $0x40] sm:$0x3] 0.0
    %381 = vst [vmem:[#allocation2 + $0x48] sm:$0xff] 0.0
    %382 = vst [vmem:[#allocation2 + $0x50] sm:$0xff] 0.0
    %383 = vst [vmem:[#allocation2 + $0x58] sm:$0x3] 0.0
    %384 = vst [vmem:[#allocation2 + $0x60] sm:$0xff] 0.0
    %385 = vst [vmem:[#allocation2 + $0x68] sm:$0xff] 0.0
    %386 = vst [vmem:[#allocation2 + $0x70] sm:$0x3] 0.0
    %387 = vst [vmem:[#allocation2 + $0x78] sm:$0xff] 0.0
    %388 = vst [vmem:[#allocation2 + $0x80] sm:$0xff] 0.0
    %389 = vst [vmem:[#allocation2 + $0x88] sm:$0x3] 0.0
    %390 = vst [vmem:[#allocation2 + $0x90] sm:$0xff] 0.0
    %391 = vst [vmem:[#allocation2 + $0x98] sm:$0xff] 0.0
    %392 = vst [vmem:[#allocation2 + $0xa0] sm:$0x3] 0.0
    %393 = vst [vmem:[#allocation2 + $0xa8] sm:$0xff] 0.0
    %394 = vst [vmem:[#allocation2 + $0xb0] sm:$0xff] 0.0
    %395 = vst [vmem:[#allocation2 + $0xb8] sm:$0x3] 0.0
    %396 = vst [vmem:[#allocation2 + $0xc0] sm:$0xff] 0.0
    %397 = vst [vmem:[#allocation2 + $0xc8] sm:$0xff] 0.0
    %398 = vst [vmem:[#allocation2 + $0xd0] sm:$0x3] 0.0
    %399 = vst [vmem:[#allocation2 + $0xd8] sm:$0xff] 0.0
    %400 = vst [vmem:[#allocation2 + $0xe0] sm:$0xff] 0.0
    %401 = vst [vmem:[#allocation2 + $0xe8] sm:$0x3] 0.0
    %402 = vst [vmem:[#allocation2 + $0xf0] sm:$0xff] 0.0
    %403 = vst [vmem:[#allocation2 + $0xf8] sm:$0xff] 0.0
    %404 = vst [vmem:[#allocation2 + $0x100] sm:$0x3] 0.0
    %405 = vst [vmem:[#allocation2 + $0x108] sm:$0xff] 0.0
    %406 = vst [vmem:[#allocation2 + $0x110] sm:$0xff] 0.0
    %407 = vst [vmem:[#allocation2 + $0x118] sm:$0x3] 0.0
    %408 = vst [vmem:[#allocation2 + $0x120] sm:$0xff] 0.0
    %409 = vst [vmem:[#allocation2 + $0x128] sm:$0xff] 0.0
    %410 = vst [vmem:[#allocation2 + $0x130] sm:$0x3] 0.0
    %411 = vst [vmem:[#allocation2 + $0x138] sm:$0xff] 0.0
    %412 = vst [vmem:[#allocation2 + $0x140] sm:$0xff] 0.0
    %413 = vst [vmem:[#allocation2 + $0x148] sm:$0x3] 0.0
    %414 = vst [vmem:[#allocation2 + $0x150] sm:$0xff] 0.0
    %415 = vst [vmem:[#allocation2 + $0x158] sm:$0xff] 0.0
    %416 = vst [vmem:[#allocation2 + $0x160] sm:$0x3] 0.0
    %417 = vst [vmem:[#allocation2 + $0x168] sm:$0xff] 0.0
    %418 = vst [vmem:[#allocation2 + $0x170] sm:$0xff] 0.0
    %419 = vst [vmem:[#allocation2 + $0x178] sm:$0x3] 0.0
    %420 = vst [vmem:[#allocation2 + $0x180] sm:$0xff] 0.0
    %421 = vst [vmem:[#allocation2 + $0x188] sm:$0xff] 0.0
    %422 = vst [vmem:[#allocation2 + $0x190] sm:$0x3] 0.0
    %423 = vst [vmem:[#allocation2 + $0x198] sm:$0xff] 0.0
    %424 = vst [vmem:[#allocation2 + $0x1a0] sm:$0xff] 0.0
    %425 = vst [vmem:[#allocation2 + $0x1a8] sm:$0x3] 0.0
    %426 = vst [vmem:[#allocation2 + $0x1b0] sm:$0xff] 0.0
    %427 = vst [vmem:[#allocation2 + $0x1b8] sm:$0xff] 0.0
    %428 = vst [vmem:[#allocation2 + $0x1c0] sm:$0x3] 0.0
    %429 = vst [vmem:[#allocation2 + $0x1c8] sm:$0xff] 0.0
    %430 = vst [vmem:[#allocation2 + $0x1d0] sm:$0xff] 0.0
    %431 = vst [vmem:[#allocation2 + $0x1d8] sm:$0x3] 0.0
    %432 = vst [vmem:[#allocation2 + $0x1e0] sm:$0xff] 0.0
    %433 = vst [vmem:[#allocation2 + $0x1e8] sm:$0xff] 0.0
    %434 = vst [vmem:[#allocation2 + $0x1f0] sm:$0x3] 0.0
    %435 = vst [vmem:[#allocation2 + $0x1f8] sm:$0xff] 0.0
    %436 = vst [vmem:[#allocation2 + $0x200] sm:$0xff] 0.0
    %437 = vst [vmem:[#allocation2 + $0x208] sm:$0x3] 0.0
    %438 = vst [vmem:[#allocation2 + $0x210] sm:$0xff] 0.0
    %439 = vst [vmem:[#allocation2 + $0x218] sm:$0xff] 0.0
    %440 = vst [vmem:[#allocation2 + $0x220] sm:$0x3] 0.0
    %441 = vst [vmem:[#allocation2 + $0x228] sm:$0xff] 0.0
    %442 = vst [vmem:[#allocation2 + $0x230] sm:$0xff] 0.0
    %443 = vst [vmem:[#allocation2 + $0x238] sm:$0x3] 0.0
    %444 = vst [vmem:[#allocation2 + $0x240] sm:$0xff] 0.0
    %445 = vst [vmem:[#allocation2 + $0x248] sm:$0xff] 0.0
    %446 = vst [vmem:[#allocation2 + $0x250] sm:$0x3] 0.0
    %447 = vst [vmem:[#allocation2 + $0x258] sm:$0xff] 0.0
    %448 = vst [vmem:[#allocation2 + $0x260] sm:$0xff] 0.0
    %449 = vst [vmem:[#allocation2 + $0x268] sm:$0x3] 0.0
    %450 = vst [vmem:[#allocation2 + $0x270] sm:$0xff] 0.0
    %451 = vst [vmem:[#allocation2 + $0x278] sm:$0xff] 0.0
    %452 = vst [vmem:[#allocation2 + $0x280] sm:$0x3] 0.0
    %453 = vst [vmem:[#allocation2 + $0x288] sm:$0xff] 0.0
    %454 = vst [vmem:[#allocation2 + $0x290] sm:$0xff] 0.0
    %455 = vst [vmem:[#allocation2 + $0x298] sm:$0x3] 0.0
    %456 = vst [vmem:[#allocation2 + $0x2a0] sm:$0xff] 0.0
    %457 = vst [vmem:[#allocation2 + $0x2a8] sm:$0xff] 0.0
    %458 = vst [vmem:[#allocation2 + $0x2b0] sm:$0x3] 0.0
    %459 = vst [vmem:[#allocation2 + $0x2b8] sm:$0xff] 0.0
    %460 = vst [vmem:[#allocation2 + $0x2c0] sm:$0xff] 0.0
    %461 = vst [vmem:[#allocation2 + $0x2c8] sm:$0x3] 0.0
    %462 = vst [vmem:[#allocation2 + $0x2d0] sm:$0xff] 0.0
    %463 = vst [vmem:[#allocation2 + $0x2d8] sm:$0xff] 0.0
    %464 = vst [vmem:[#allocation2 + $0x2e0] sm:$0x3] 0.0
    %465 = vst [vmem:[#allocation2 + $0x2e8] sm:$0xff] 0.0
    %466 = vst [vmem:[#allocation2 + $0x2f0] sm:$0xff] 0.0
    %467 = vst [vmem:[#allocation2 + $0x2f8] sm:$0x3] 0.0
    %468 = vst [vmem:[#allocation2 + $0x300] sm:$0xff] 0.0
    %469 = vst [vmem:[#allocation2 + $0x308] sm:$0xff] 0.0
    %470 = vst [vmem:[#allocation2 + $0x310] sm:$0x3] 0.0
    %471 = vst [vmem:[#allocation2 + $0x318] sm:$0xff] 0.0
    %472 = vst [vmem:[#allocation2 + $0x320] sm:$0xff] 0.0
    %473 = vst [vmem:[#allocation2 + $0x328] sm:$0x3] 0.0
    %474 = vst [vmem:[#allocation2 + $0x330] sm:$0xff] 0.0
    %475 = vst [vmem:[#allocation2 + $0x338] sm:$0xff] 0.0
    %476 = vst [vmem:[#allocation2 + $0x340] sm:$0x3] 0.0
    %477 = vst [vmem:[#allocation2 + $0x348] sm:$0xff] 0.0
    %478 = vst [vmem:[#allocation2 + $0x350] sm:$0xff] 0.0
    %479 = vst [vmem:[#allocation2 + $0x358] sm:$0x3] 0.0
    %s480 = scalar_lea.vmem [#allocation2], 24
    %481 = vst [vmem:[%s480 + $0x1] sm:$0xff] %v308
    %482 = vst [vmem:[%s480 + $0x9] sm:$0xff] %v309
    %483 = vst [vmem:[%s480 + $0x19] sm:$0xff] %v310
    %484 = vst [vmem:[%s480 + $0x21] sm:$0xff] %v311
    %485 = vst [vmem:[%s480 + $0x31] sm:$0xff] %v312
    %486 = vst [vmem:[%s480 + $0x39] sm:$0xff] %v313
    %487 = vst [vmem:[%s480 + $0x49] sm:$0xff] %v314
    %488 = vst [vmem:[%s480 + $0x51] sm:$0xff] %v315
    %489 = vst [vmem:[%s480 + $0x61] sm:$0xff] %v316
    %490 = vst [vmem:[%s480 + $0x69] sm:$0xff] %v317
    %491 = vst [vmem:[%s480 + $0x79] sm:$0xff] %v318
    %492 = vst [vmem:[%s480 + $0x81] sm:$0xff] %v319
    %493 = vst [vmem:[%s480 + $0x91] sm:$0xff] %v320
    %494 = vst [vmem:[%s480 + $0x99] sm:$0xff] %v321
    %495 = vst [vmem:[%s480 + $0xa9] sm:$0xff] %v322
    %496 = vst [vmem:[%s480 + $0xb1] sm:$0xff] %v323
    %497 = vst [vmem:[%s480 + $0xc1] sm:$0xff] %v324
    %498 = vst [vmem:[%s480 + $0xc9] sm:$0xff] %v325
    %499 = vst [vmem:[%s480 + $0xd9] sm:$0xff] %v326
    %500 = vst [vmem:[%s480 + $0xe1] sm:$0xff] %v327
    %501 = vst [vmem:[%s480 + $0xf1] sm:$0xff] %v328
    %502 = vst [vmem:[%s480 + $0xf9] sm:$0xff] %v329
    %503 = vst [vmem:[%s480 + $0x109] sm:$0xff] %v330
    %504 = vst [vmem:[%s480 + $0x111] sm:$0xff] %v331
    %505 = vst [vmem:[%s480 + $0x121] sm:$0xff] %v332
    %506 = vst [vmem:[%s480 + $0x129] sm:$0xff] %v333
    %507 = vst [vmem:[%s480 + $0x139] sm:$0xff] %v334
    %508 = vst [vmem:[%s480 + $0x141] sm:$0xff] %v335
    %509 = vst [vmem:[%s480 + $0x151] sm:$0xff] %v336
    %510 = vst [vmem:[%s480 + $0x159] sm:$0xff] %v337
    %511 = vst [vmem:[%s480 + $0x169] sm:$0xff] %v338
    %512 = vst [vmem:[%s480 + $0x171] sm:$0xff] %v339
    %513 = vst [vmem:[%s480 + $0x1b1] sm:$0xff] %v340
    %514 = vst [vmem:[%s480 + $0x1b9] sm:$0xff] %v341
    %515 = vst [vmem:[%s480 + $0x1c9] sm:$0xff] %v342
    %516 = vst [vmem:[%s480 + $0x1d1] sm:$0xff] %v343
    %517 = vst [vmem:[%s480 + $0x1e1] sm:$0xff] %v344
    %518 = vst [vmem:[%s480 + $0x1e9] sm:$0xff] %v345
    %519 = vst [vmem:[%s480 + $0x1f9] sm:$0xff] %v346
    %520 = vst [vmem:[%s480 + $0x201] sm:$0xff] %v347
    %521 = vst [vmem:[%s480 + $0x211] sm:$0xff] %v348
    %522 = vst [vmem:[%s480 + $0x219] sm:$0xff] %v349
    %523 = vst [vmem:[%s480 + $0x229] sm:$0xff] %v350
    %524 = vst [vmem:[%s480 + $0x231] sm:$0xff] %v351
    %525 = vst [vmem:[%s480 + $0x241] sm:$0xff] %v352
    %526 = vst [vmem:[%s480 + $0x249] sm:$0xff] %v353
    %527 = vst [vmem:[%s480 + $0x259] sm:$0xff] %v354
    %528 = vst [vmem:[%s480 + $0x261] sm:$0xff] %v355
    %529 = vst [vmem:[%s480 + $0x271] sm:$0xff] %v356
    %530 = vst [vmem:[%s480 + $0x279] sm:$0xff] %v357
    %531 = vst [vmem:[%s480 + $0x289] sm:$0xff] %v358
    %532 = vst [vmem:[%s480 + $0x291] sm:$0xff] %v359
    %533 = vst [vmem:[%s480 + $0x2a1] sm:$0xff] %v360
    %534 = vst [vmem:[%s480 + $0x2a9] sm:$0xff] %v361
    %535 = vst [vmem:[%s480 + $0x2b9] sm:$0xff] %v362
    %536 = vst [vmem:[%s480 + $0x2c1] sm:$0xff] %v363
    %537 = vst [vmem:[%s480 + $0x2d1] sm:$0xff] %v364
    %538 = vst [vmem:[%s480 + $0x2d9] sm:$0xff] %v365
    %539 = vst [vmem:[%s480 + $0x2e9] sm:$0xff] %v366
    %540 = vst [vmem:[%s480 + $0x2f1] sm:$0xff] %v367
    %541 = vst [vmem:[%s480 + $0x301] sm:$0xff] %v368
    %542 = vst [vmem:[%s480 + $0x309] sm:$0xff] %v369
    %543 = vst [vmem:[%s480 + $0x319] sm:$0xff] %v370
    %544 = vst [vmem:[%s480 + $0x321] sm:$0xff] %v371
    %v545 = vld [vmem:[#allocation2] sm:$0xff]
    %v546 = vld [vmem:[#allocation2 + $0x8] sm:$0xff]
    %v547 = vld [vmem:[#allocation2 + $0x18] sm:$0xff]
    %v548 = vld [vmem:[#allocation2 + $0x20] sm:$0xff]
    %v549 = vld [vmem:[#allocation2 + $0x30] sm:$0xff]
    %v550 = vld [vmem:[#allocation2 + $0x38] sm:$0xff]
    %v551 = vld [vmem:[#allocation2 + $0x48] sm:$0xff]
    %v552 = vld [vmem:[#allocation2 + $0x50] sm:$0xff]
    %v553 = vld [vmem:[#allocation2 + $0x60] sm:$0xff]
    %v554 = vld [vmem:[#allocation2 + $0x68] sm:$0xff]
    %v555 = vld [vmem:[#allocation2 + $0x78] sm:$0xff]
    %v556 = vld [vmem:[#allocation2 + $0x80] sm:$0xff]
    %v557 = vld [vmem:[#allocation2 + $0x90] sm:$0xff]
    %v558 = vld [vmem:[#allocation2 + $0x98] sm:$0xff]
    %v559 = vld [vmem:[#allocation2 + $0xa8] sm:$0xff]
    %v560 = vld [vmem:[#allocation2 + $0xb0] sm:$0xff]
    %v561 = vld [vmem:[#allocation2 + $0xc0] sm:$0xff]
    %v562 = vld [vmem:[#allocation2 + $0xc8] sm:$0xff]
    %v563 = vld [vmem:[#allocation2 + $0xd8] sm:$0xff]
    %v564 = vld [vmem:[#allocation2 + $0xe0] sm:$0xff]
    %v565 = vld [vmem:[#allocation2 + $0xf0] sm:$0xff]
    %v566 = vld [vmem:[#allocation2 + $0xf8] sm:$0xff]
    %v567 = vld [vmem:[#allocation2 + $0x108] sm:$0xff]
    %v568 = vld [vmem:[#allocation2 + $0x110] sm:$0xff]
    %v569 = vld [vmem:[#allocation2 + $0x120] sm:$0xff]
    %v570 = vld [vmem:[#allocation2 + $0x128] sm:$0xff]
    %v571 = vld [vmem:[#allocation2 + $0x138] sm:$0xff]
    %v572 = vld [vmem:[#allocation2 + $0x140] sm:$0xff]
    %v573 = vld [vmem:[#allocation2 + $0x150] sm:$0xff]
    %v574 = vld [vmem:[#allocation2 + $0x158] sm:$0xff]
    %v575 = vld [vmem:[#allocation2 + $0x168] sm:$0xff]
    %v576 = vld [vmem:[#allocation2 + $0x170] sm:$0xff]
    %v577 = vld [vmem:[#allocation2 + $0x1b0] sm:$0xff]
    %v578 = vld [vmem:[#allocation2 + $0x1b8] sm:$0xff]
    %v579 = vld [vmem:[#allocation2 + $0x1c8] sm:$0xff]
    %v580 = vld [vmem:[#allocation2 + $0x1d0] sm:$0xff]
    %v581 = vld [vmem:[#allocation2 + $0x1e0] sm:$0xff]
    %v582 = vld [vmem:[#allocation2 + $0x1e8] sm:$0xff]
    %v583 = vld [vmem:[#allocation2 + $0x1f8] sm:$0xff]
    %v584 = vld [vmem:[#allocation2 + $0x200] sm:$0xff]
    %v585 = vld [vmem:[#allocation2 + $0x210] sm:$0xff]
    %v586 = vld [vmem:[#allocation2 + $0x218] sm:$0xff]
    %v587 = vld [vmem:[#allocation2 + $0x228] sm:$0xff]
    %v588 = vld [vmem:[#allocation2 + $0x230] sm:$0xff]
    %v589 = vld [vmem:[#allocation2 + $0x240] sm:$0xff]
    %v590 = vld [vmem:[#allocation2 + $0x248] sm:$0xff]
    %v591 = vld [vmem:[#allocation2 + $0x258] sm:$0xff]
    %v592 = vld [vmem:[#allocation2 + $0x260] sm:$0xff]
    %v593 = vld [vmem:[#allocation2 + $0x270] sm:$0xff]
    %v594 = vld [vmem:[#allocation2 + $0x278] sm:$0xff]
    %v595 = vld [vmem:[#allocation2 + $0x288] sm:$0xff]
    %v596 = vld [vmem:[#allocation2 + $0x290] sm:$0xff]
    %v597 = vld [vmem:[#allocation2 + $0x2a0] sm:$0xff]
    %v598 = vld [vmem:[#allocation2 + $0x2a8] sm:$0xff]
    %v599 = vld [vmem:[#allocation2 + $0x2b8] sm:$0xff]
    %v600 = vld [vmem:[#allocation2 + $0x2c0] sm:$0xff]
    %v601 = vld [vmem:[#allocation2 + $0x2d0] sm:$0xff]
    %v602 = vld [vmem:[#allocation2 + $0x2d8] sm:$0xff]
    %v603 = vld [vmem:[#allocation2 + $0x2e8] sm:$0xff]
    %v604 = vld [vmem:[#allocation2 + $0x2f0] sm:$0xff]
    %v605 = vld [vmem:[#allocation2 + $0x300] sm:$0xff]
    %v606 = vld [vmem:[#allocation2 + $0x308] sm:$0xff]
    %v607 = vld [vmem:[#allocation2 + $0x318] sm:$0xff]
    %v608 = vld [vmem:[#allocation2 + $0x320] sm:$0xff]
    %v609 = vld [vmem:[#allocation6] sm:$0xff]
    %v610 = vld [vmem:[#allocation6 + $0x8] sm:$0xff]
    %v611 = vld [vmem:[#allocation6 + $0x10] sm:$0xff]
    %v612 = vld [vmem:[#allocation6 + $0x18] sm:$0xff]
    %v613 = vld [vmem:[#allocation6 + $0x20] sm:$0xff]
    %v614 = vld [vmem:[#allocation6 + $0x28] sm:$0xff]
    %v615 = vld [vmem:[#allocation6 + $0x30] sm:$0xff]
    %v616 = vld [vmem:[#allocation6 + $0x38] sm:$0xff]
    %v617 = vld [vmem:[#allocation6 + $0x40] sm:$0xff]
    %v618 = vld [vmem:[#allocation6 + $0x48] sm:$0xff]
    %v619 = vld [vmem:[#allocation6 + $0x50] sm:$0xff]
    %v620 = vld [vmem:[#allocation6 + $0x58] sm:$0xff]
    %v621 = vld [vmem:[#allocation6 + $0x60] sm:$0xff]
    %v622 = vld [vmem:[#allocation6 + $0x68] sm:$0xff]
    %v623 = vld [vmem:[#allocation6 + $0x70] sm:$0xff]
    %v624 = vld [vmem:[#allocation6 + $0x78] sm:$0xff]
    %v625 = vld [vmem:[#allocation2 + $0x1] sm:$0xff]
    %v626 = vld [vmem:[#allocation2 + $0x9] sm:$0xff]
    %v627 = vld [vmem:[#allocation2 + $0x19] sm:$0xff]
    %v628 = vld [vmem:[#allocation2 + $0x21] sm:$0xff]
    %v629 = vld [vmem:[#allocation2 + $0x31] sm:$0xff]
    %v630 = vld [vmem:[#allocation2 + $0x39] sm:$0xff]
    %v631 = vld [vmem:[#allocation2 + $0x49] sm:$0xff]
    %v632 = vld [vmem:[#allocation2 + $0x51] sm:$0xff]
    %v633 = vld [vmem:[#allocation2 + $0x61] sm:$0xff]
    %v634 = vld [vmem:[#allocation2 + $0x69] sm:$0xff]
    %v635 = vld [vmem:[#allocation2 + $0x79] sm:$0xff]
    %v636 = vld [vmem:[#allocation2 + $0x81] sm:$0xff]
    %v637 = vld [vmem:[#allocation2 + $0x91] sm:$0xff]
    %v638 = vld [vmem:[#allocation2 + $0x99] sm:$0xff]
    %v639 = vld [vmem:[#allocation2 + $0xa9] sm:$0xff]
    %v640 = vld [vmem:[#allocation2 + $0xb1] sm:$0xff]
    %v641 = vld [vmem:[#allocation2 + $0xc1] sm:$0xff]
    %v642 = vld [vmem:[#allocation2 + $0xc9] sm:$0xff]
    %v643 = vld [vmem:[#allocation2 + $0xd9] sm:$0xff]
    %v644 = vld [vmem:[#allocation2 + $0xe1] sm:$0xff]
    %v645 = vld [vmem:[#allocation2 + $0xf1] sm:$0xff]
    %v646 = vld [vmem:[#allocation2 + $0xf9] sm:$0xff]
    %v647 = vld [vmem:[#allocation2 + $0x109] sm:$0xff]
    %v648 = vld [vmem:[#allocation2 + $0x111] sm:$0xff]
    %v649 = vld [vmem:[#allocation2 + $0x121] sm:$0xff]
    %v650 = vld [vmem:[#allocation2 + $0x129] sm:$0xff]
    %v651 = vld [vmem:[#allocation2 + $0x139] sm:$0xff]
    %v652 = vld [vmem:[#allocation2 + $0x141] sm:$0xff]
    %v653 = vld [vmem:[#allocation2 + $0x151] sm:$0xff]
    %v654 = vld [vmem:[#allocation2 + $0x159] sm:$0xff]
    %v655 = vld [vmem:[#allocation2 + $0x169] sm:$0xff]
    %v656 = vld [vmem:[#allocation2 + $0x171] sm:$0xff]
    %v657 = vld [vmem:[#allocation2 + $0x1b1] sm:$0xff]
    %v658 = vld [vmem:[#allocation2 + $0x1b9] sm:$0xff]
    %v659 = vld [vmem:[#allocation2 + $0x1c9] sm:$0xff]
    %v660 = vld [vmem:[#allocation2 + $0x1d1] sm:$0xff]
    %v661 = vld [vmem:[#allocation2 + $0x1e1] sm:$0xff]
    %v662 = vld [vmem:[#allocation2 + $0x1e9] sm:$0xff]
    %v663 = vld [vmem:[#allocation2 + $0x1f9] sm:$0xff]
    %v664 = vld [vmem:[#allocation2 + $0x201] sm:$0xff]
    %v665 = vld [vmem:[#allocation2 + $0x211] sm:$0xff]
    %v666 = vld [vmem:[#allocation2 + $0x219] sm:$0xff]
    %v667 = vld [vmem:[#allocation2 + $0x229] sm:$0xff]
    %v668 = vld [vmem:[#allocation2 + $0x231] sm:$0xff]
    %v669 = vld [vmem:[#allocation2 + $0x241] sm:$0xff]
    %v670 = vld [vmem:[#allocation2 + $0x249] sm:$0xff]
    %v671 = vld [vmem:[#allocation2 + $0x259] sm:$0xff]
    %v672 = vld [vmem:[#allocation2 + $0x261] sm:$0xff]
    %v673 = vld [vmem:[#allocation2 + $0x271] sm:$0xff]
    %v674 = vld [vmem:[#allocation2 + $0x279] sm:$0xff]
    %v675 = vld [vmem:[#allocation2 + $0x289] sm:$0xff]
    %v676 = vld [vmem:[#allocation2 + $0x291] sm:$0xff]
    %v677 = vld [vmem:[#allocation2 + $0x2a1] sm:$0xff]
    %v678 = vld [vmem:[#allocation2 + $0x2a9] sm:$0xff]
    %v679 = vld [vmem:[#allocation2 + $0x2b9] sm:$0xff]
    %v680 = vld [vmem:[#allocation2 + $0x2c1] sm:$0xff]
    %v681 = vld [vmem:[#allocation2 + $0x2d1] sm:$0xff]
    %v682 = vld [vmem:[#allocation2 + $0x2d9] sm:$0xff]
    %v683 = vld [vmem:[#allocation2 + $0x2e9] sm:$0xff]
    %v684 = vld [vmem:[#allocation2 + $0x2f1] sm:$0xff]
    %v685 = vld [vmem:[#allocation2 + $0x301] sm:$0xff]
    %v686 = vld [vmem:[#allocation2 + $0x309] sm:$0xff]
    %v687 = vld [vmem:[#allocation2 + $0x319] sm:$0xff]
    %v688 = vld [vmem:[#allocation2 + $0x321] sm:$0xff]
    %s689 = scalar_lea.vmem [#allocation6], 128
    %v690 = vld [vmem:[%s689] sm:$0xff]
    %v691 = vld [vmem:[%s689 + $0x8] sm:$0xff]
    %v692 = vld [vmem:[%s689 + $0x10] sm:$0xff]
    %v693 = vld [vmem:[%s689 + $0x18] sm:$0xff]
    %v694 = vld [vmem:[%s689 + $0x20] sm:$0xff]
    %v695 = vld [vmem:[%s689 + $0x28] sm:$0xff]
    %v696 = vld [vmem:[%s689 + $0x30] sm:$0xff]
    %v697 = vld [vmem:[%s689 + $0x38] sm:$0xff]
    %v698 = vld [vmem:[%s689 + $0x40] sm:$0xff]
    %v699 = vld [vmem:[%s689 + $0x48] sm:$0xff]
    %v700 = vld [vmem:[%s689 + $0x50] sm:$0xff]
    %v701 = vld [vmem:[%s689 + $0x58] sm:$0xff]
    %v702 = vld [vmem:[%s689 + $0x60] sm:$0xff]
    %v703 = vld [vmem:[%s689 + $0x68] sm:$0xff]
    %v704 = vld [vmem:[%s689 + $0x70] sm:$0xff]
    %v705 = vld [vmem:[%s689 + $0x78] sm:$0xff]
    %706 = vmatpush.msra.mxu0 %v705
    %707 = vmatpush.msra.mxu0 %v704
    %708 = vmatpush.msra.mxu0 %v703
    %709 = vmatpush.msra.mxu0 %v702
    %710 = vmatpush.msra.mxu0 %v701
    %711 = vmatpush.msra.mxu0 %v700
    %712 = vmatpush.msra.mxu0 %v699
    %713 = vmatpush.msra.mxu0 %v698
    %714 = vmatpush.msra.mxu0 %v697
    %715 = vmatpush.msra.mxu0 %v696
    %716 = vmatpush.msra.mxu0 %v695
    %717 = vmatpush.msra.mxu0 %v694
    %718 = vmatpush.msra.mxu0 %v693
    %719 = vmatpush.msra.mxu0 %v692
    %720 = vmatpush.msra.mxu0 %v691
    %721 = vmatpush.msra.mxu0 %v690
    %722 = vmatmul.f32.gmra.mxu0 %v625
    %v723 = vpop.f32.mrf.mxu0
    %v724 = vadd.f32 0.0, %v723
    %725 = vmatmul.f32.gmra.mxu0 %v626
    %v726 = vpop.f32.mrf.mxu0
    %v727 = vadd.f32 0.0, %v726
    %728 = vmatmul.f32.gmra.mxu0 %v627
    %v729 = vpop.f32.mrf.mxu0
    %v730 = vadd.f32 0.0, %v729
    %731 = vmatmul.f32.gmra.mxu0 %v628
    %v732 = vpop.f32.mrf.mxu0
    %v733 = vadd.f32 0.0, %v732
    %734 = vmatmul.f32.gmra.mxu0 %v629
    %v735 = vpop.f32.mrf.mxu0
    %v736 = vadd.f32 0.0, %v735
    %737 = vmatmul.f32.gmra.mxu0 %v630
    %v738 = vpop.f32.mrf.mxu0
    %v739 = vadd.f32 0.0, %v738
    %740 = vmatmul.f32.gmra.mxu0 %v631
    %v741 = vpop.f32.mrf.mxu0
    %v742 = vadd.f32 0.0, %v741
    %743 = vmatmul.f32.gmra.mxu0 %v632
    %v744 = vpop.f32.mrf.mxu0
    %v745 = vadd.f32 0.0, %v744
    %746 = vmatmul.f32.gmra.mxu0 %v633
    %v747 = vpop.f32.mrf.mxu0
    %v748 = vadd.f32 0.0, %v747
    %749 = vmatmul.f32.gmra.mxu0 %v634
    %v750 = vpop.f32.mrf.mxu0
    %v751 = vadd.f32 0.0, %v750
    %752 = vmatmul.f32.gmra.mxu0 %v635
    %v753 = vpop.f32.mrf.mxu0
    %v754 = vadd.f32 0.0, %v753
    %755 = vmatmul.f32.gmra.mxu0 %v636
    %v756 = vpop.f32.mrf.mxu0
    %v757 = vadd.f32 0.0, %v756
    %758 = vmatmul.f32.gmra.mxu0 %v637
    %v759 = vpop.f32.mrf.mxu0
    %v760 = vadd.f32 0.0, %v759
    %761 = vmatmul.f32.gmra.mxu0 %v638
    %v762 = vpop.f32.mrf.mxu0
    %v763 = vadd.f32 0.0, %v762
    %764 = vmatmul.f32.gmra.mxu0 %v639
    %v765 = vpop.f32.mrf.mxu0
    %v766 = vadd.f32 0.0, %v765
    %767 = vmatmul.f32.gmra.mxu0 %v640
    %v768 = vpop.f32.mrf.mxu0
    %v769 = vadd.f32 0.0, %v768
    %770 = vmatmul.f32.gmra.mxu0 %v641
    %v771 = vpop.f32.mrf.mxu0
    %v772 = vadd.f32 0.0, %v771
    %773 = vmatmul.f32.gmra.mxu0 %v642
    %v774 = vpop.f32.mrf.mxu0
    %v775 = vadd.f32 0.0, %v774
    %776 = vmatmul.f32.gmra.mxu0 %v643
    %v777 = vpop.f32.mrf.mxu0
    %v778 = vadd.f32 0.0, %v777
    %779 = vmatmul.f32.gmra.mxu0 %v644
    %v780 = vpop.f32.mrf.mxu0
    %v781 = vadd.f32 0.0, %v780
    %782 = vmatmul.f32.gmra.mxu0 %v645
    %v783 = vpop.f32.mrf.mxu0
    %v784 = vadd.f32 0.0, %v783
    %785 = vmatmul.f32.gmra.mxu0 %v646
    %v786 = vpop.f32.mrf.mxu0
    %v787 = vadd.f32 0.0, %v786
    %788 = vmatmul.f32.gmra.mxu0 %v647
    %v789 = vpop.f32.mrf.mxu0
    %v790 = vadd.f32 0.0, %v789
    %791 = vmatmul.f32.gmra.mxu0 %v648
    %v792 = vpop.f32.mrf.mxu0
    %v793 = vadd.f32 0.0, %v792
    %794 = vmatmul.f32.gmra.mxu0 %v649
    %v795 = vpop.f32.mrf.mxu0
    %v796 = vadd.f32 0.0, %v795
    %797 = vmatmul.f32.gmra.mxu0 %v650
    %v798 = vpop.f32.mrf.mxu0
    %v799 = vadd.f32 0.0, %v798
    %800 = vmatmul.f32.gmra.mxu0 %v651
    %v801 = vpop.f32.mrf.mxu0
    %v802 = vadd.f32 0.0, %v801
    %803 = vmatmul.f32.gmra.mxu0 %v652
    %v804 = vpop.f32.mrf.mxu0
    %v805 = vadd.f32 0.0, %v804
    %806 = vmatmul.f32.gmra.mxu0 %v653
    %v807 = vpop.f32.mrf.mxu0
    %v808 = vadd.f32 0.0, %v807
    %809 = vmatmul.f32.gmra.mxu0 %v654
    %v810 = vpop.f32.mrf.mxu0
    %v811 = vadd.f32 0.0, %v810
    %812 = vmatmul.f32.gmra.mxu0 %v655
    %v813 = vpop.f32.mrf.mxu0
    %v814 = vadd.f32 0.0, %v813
    %815 = vmatmul.f32.gmra.mxu0 %v656
    %v816 = vpop.f32.mrf.mxu0
    %v817 = vadd.f32 0.0, %v816
    %818 = vmatmul.f32.gmra.mxu0 %v657
    %v819 = vpop.f32.mrf.mxu0
    %v820 = vadd.f32 0.0, %v819
    %821 = vmatmul.f32.gmra.mxu0 %v658
    %v822 = vpop.f32.mrf.mxu0
    %v823 = vadd.f32 0.0, %v822
    %824 = vmatmul.f32.gmra.mxu0 %v659
    %v825 = vpop.f32.mrf.mxu0
    %v826 = vadd.f32 0.0, %v825
    %827 = vmatmul.f32.gmra.mxu0 %v660
    %v828 = vpop.f32.mrf.mxu0
    %v829 = vadd.f32 0.0, %v828
    %830 = vmatmul.f32.gmra.mxu0 %v661
    %v831 = vpop.f32.mrf.mxu0
    %v832 = vadd.f32 0.0, %v831
    %833 = vmatmul.f32.gmra.mxu0 %v662
    %v834 = vpop.f32.mrf.mxu0
    %v835 = vadd.f32 0.0, %v834
    %836 = vmatmul.f32.gmra.mxu0 %v663
    %v837 = vpop.f32.mrf.mxu0
    %v838 = vadd.f32 0.0, %v837
    %839 = vmatmul.f32.gmra.mxu0 %v664
    %v840 = vpop.f32.mrf.mxu0
    %v841 = vadd.f32 0.0, %v840
    %842 = vmatmul.f32.gmra.mxu0 %v665
    %v843 = vpop.f32.mrf.mxu0
    %v844 = vadd.f32 0.0, %v843
    %845 = vmatmul.f32.gmra.mxu0 %v666
    %v846 = vpop.f32.mrf.mxu0
    %v847 = vadd.f32 0.0, %v846
    %848 = vmatmul.f32.gmra.mxu0 %v667
    %v849 = vpop.f32.mrf.mxu0
    %v850 = vadd.f32 0.0, %v849
    %851 = vmatmul.f32.gmra.mxu0 %v668
    %v852 = vpop.f32.mrf.mxu0
    %v853 = vadd.f32 0.0, %v852
    %854 = vmatmul.f32.gmra.mxu0 %v669
    %v855 = vpop.f32.mrf.mxu0
    %v856 = vadd.f32 0.0, %v855
    %857 = vmatmul.f32.gmra.mxu0 %v670
    %v858 = vpop.f32.mrf.mxu0
    %v859 = vadd.f32 0.0, %v858
    %860 = vmatmul.f32.gmra.mxu0 %v671
    %v861 = vpop.f32.mrf.mxu0
    %v862 = vadd.f32 0.0, %v861
    %863 = vmatmul.f32.gmra.mxu0 %v672
    %v864 = vpop.f32.mrf.mxu0
    %v865 = vadd.f32 0.0, %v864
    %866 = vmatmul.f32.gmra.mxu0 %v673
    %v867 = vpop.f32.mrf.mxu0
    %v868 = vadd.f32 0.0, %v867
    %869 = vmatmul.f32.gmra.mxu0 %v674
    %v870 = vpop.f32.mrf.mxu0
    %v871 = vadd.f32 0.0, %v870
    %872 = vmatmul.f32.gmra.mxu0 %v675
    %v873 = vpop.f32.mrf.mxu0
    %v874 = vadd.f32 0.0, %v873
    %875 = vmatmul.f32.gmra.mxu0 %v676
    %v876 = vpop.f32.mrf.mxu0
    %v877 = vadd.f32 0.0, %v876
    %878 = vmatmul.f32.gmra.mxu0 %v677
    %v879 = vpop.f32.mrf.mxu0
    %v880 = vadd.f32 0.0, %v879
    %881 = vmatmul.f32.gmra.mxu0 %v678
    %v882 = vpop.f32.mrf.mxu0
    %v883 = vadd.f32 0.0, %v882
    %884 = vmatmul.f32.gmra.mxu0 %v679
    %v885 = vpop.f32.mrf.mxu0
    %v886 = vadd.f32 0.0, %v885
    %887 = vmatmul.f32.gmra.mxu0 %v680
    %v888 = vpop.f32.mrf.mxu0
    %v889 = vadd.f32 0.0, %v888
    %890 = vmatmul.f32.gmra.mxu0 %v681
    %v891 = vpop.f32.mrf.mxu0
    %v892 = vadd.f32 0.0, %v891
    %893 = vmatmul.f32.gmra.mxu0 %v682
    %v894 = vpop.f32.mrf.mxu0
    %v895 = vadd.f32 0.0, %v894
    %896 = vmatmul.f32.gmra.mxu0 %v683
    %v897 = vpop.f32.mrf.mxu0
    %v898 = vadd.f32 0.0, %v897
    %899 = vmatmul.f32.gmra.mxu0 %v684
    %v900 = vpop.f32.mrf.mxu0
    %v901 = vadd.f32 0.0, %v900
    %902 = vmatmul.f32.gmra.mxu0 %v685
    %v903 = vpop.f32.mrf.mxu0
    %v904 = vadd.f32 0.0, %v903
    %905 = vmatmul.f32.gmra.mxu0 %v686
    %v906 = vpop.f32.mrf.mxu0
    %v907 = vadd.f32 0.0, %v906
    %908 = vmatmul.f32.gmra.mxu0 %v687
    %v909 = vpop.f32.mrf.mxu0
    %v910 = vadd.f32 0.0, %v909
    %911 = vmatmul.f32.gmra.mxu0 %v688
    %v912 = vpop.f32.mrf.mxu0
    %v913 = vadd.f32 0.0, %v912
    %914 = vdwg.mxu0
    %915 = vmatpush.msra.mxu0 %v624
    %916 = vmatpush.msra.mxu0 %v623
    %917 = vmatpush.msra.mxu0 %v622
    %918 = vmatpush.msra.mxu0 %v621
    %919 = vmatpush.msra.mxu0 %v620
    %920 = vmatpush.msra.mxu0 %v619
    %921 = vmatpush.msra.mxu0 %v618
    %922 = vmatpush.msra.mxu0 %v617
    %923 = vmatpush.msra.mxu0 %v616
    %924 = vmatpush.msra.mxu0 %v615
    %925 = vmatpush.msra.mxu0 %v614
    %926 = vmatpush.msra.mxu0 %v613
    %927 = vmatpush.msra.mxu0 %v612
    %928 = vmatpush.msra.mxu0 %v611
    %929 = vmatpush.msra.mxu0 %v610
    %930 = vmatpush.msra.mxu0 %v609
    %931 = vmatmul.f32.gmra.mxu0 %v545
    %v932 = vpop.f32.mrf.mxu0
    %v933 = vadd.f32 %v724, %v932
    %934 = vmatmul.f32.gmra.mxu0 %v546
    %v935 = vpop.f32.mrf.mxu0
    %v936 = vadd.f32 %v727, %v935
    %937 = vmatmul.f32.gmra.mxu0 %v547
    %v938 = vpop.f32.mrf.mxu0
    %v939 = vadd.f32 %v730, %v938
    %940 = vmatmul.f32.gmra.mxu0 %v548
    %v941 = vpop.f32.mrf.mxu0
    %v942 = vadd.f32 %v733, %v941
    %943 = vmatmul.f32.gmra.mxu0 %v549
    %v944 = vpop.f32.mrf.mxu0
    %v945 = vadd.f32 %v736, %v944
    %946 = vmatmul.f32.gmra.mxu0 %v550
    %v947 = vpop.f32.mrf.mxu0
    %v948 = vadd.f32 %v739, %v947
    %949 = vmatmul.f32.gmra.mxu0 %v551
    %v950 = vpop.f32.mrf.mxu0
    %v951 = vadd.f32 %v742, %v950
    %952 = vmatmul.f32.gmra.mxu0 %v552
    %v953 = vpop.f32.mrf.mxu0
    %v954 = vadd.f32 %v745, %v953
    %955 = vmatmul.f32.gmra.mxu0 %v553
    %v956 = vpop.f32.mrf.mxu0
    %v957 = vadd.f32 %v748, %v956
    %958 = vmatmul.f32.gmra.mxu0 %v554
    %v959 = vpop.f32.mrf.mxu0
    %v960 = vadd.f32 %v751, %v959
    %961 = vmatmul.f32.gmra.mxu0 %v555
    %v962 = vpop.f32.mrf.mxu0
    %v963 = vadd.f32 %v754, %v962
    %964 = vmatmul.f32.gmra.mxu0 %v556
    %v965 = vpop.f32.mrf.mxu0
    %v966 = vadd.f32 %v757, %v965
    %967 = vmatmul.f32.gmra.mxu0 %v557
    %v968 = vpop.f32.mrf.mxu0
    %v969 = vadd.f32 %v760, %v968
    %970 = vmatmul.f32.gmra.mxu0 %v558
    %v971 = vpop.f32.mrf.mxu0
    %v972 = vadd.f32 %v763, %v971
    %973 = vmatmul.f32.gmra.mxu0 %v559
    %v974 = vpop.f32.mrf.mxu0
    %v975 = vadd.f32 %v766, %v974
    %976 = vmatmul.f32.gmra.mxu0 %v560
    %v977 = vpop.f32.mrf.mxu0
    %v978 = vadd.f32 %v769, %v977
    %979 = vmatmul.f32.gmra.mxu0 %v561
    %v980 = vpop.f32.mrf.mxu0
    %v981 = vadd.f32 %v772, %v980
    %982 = vmatmul.f32.gmra.mxu0 %v562
    %v983 = vpop.f32.mrf.mxu0
    %v984 = vadd.f32 %v775, %v983
    %985 = vmatmul.f32.gmra.mxu0 %v563
    %v986 = vpop.f32.mrf.mxu0
    %v987 = vadd.f32 %v778, %v986
    %988 = vmatmul.f32.gmra.mxu0 %v564
    %v989 = vpop.f32.mrf.mxu0
    %v990 = vadd.f32 %v781, %v989
    %991 = vmatmul.f32.gmra.mxu0 %v565
    %v992 = vpop.f32.mrf.mxu0
    %v993 = vadd.f32 %v784, %v992
    %994 = vmatmul.f32.gmra.mxu0 %v566
    %v995 = vpop.f32.mrf.mxu0
    %v996 = vadd.f32 %v787, %v995
    %997 = vmatmul.f32.gmra.mxu0 %v567
    %v998 = vpop.f32.mrf.mxu0
    %v999 = vadd.f32 %v790, %v998
    %1000 = vmatmul.f32.gmra.mxu0 %v568
    %v1001 = vpop.f32.mrf.mxu0
    %v1002 = vadd.f32 %v793, %v1001
    %1003 = vmatmul.f32.gmra.mxu0 %v569
    %v1004 = vpop.f32.mrf.mxu0
    %v1005 = vadd.f32 %v796, %v1004
    %1006 = vmatmul.f32.gmra.mxu0 %v570
    %v1007 = vpop.f32.mrf.mxu0
    %v1008 = vadd.f32 %v799, %v1007
    %1009 = vmatmul.f32.gmra.mxu0 %v571
    %v1010 = vpop.f32.mrf.mxu0
    %v1011 = vadd.f32 %v802, %v1010
    %1012 = vmatmul.f32.gmra.mxu0 %v572
    %v1013 = vpop.f32.mrf.mxu0
    %v1014 = vadd.f32 %v805, %v1013
    %1015 = vmatmul.f32.gmra.mxu0 %v573
    %v1016 = vpop.f32.mrf.mxu0
    %v1017 = vadd.f32 %v808, %v1016
    %1018 = vmatmul.f32.gmra.mxu0 %v574
    %v1019 = vpop.f32.mrf.mxu0
    %v1020 = vadd.f32 %v811, %v1019
    %1021 = vmatmul.f32.gmra.mxu0 %v575
    %v1022 = vpop.f32.mrf.mxu0
    %v1023 = vadd.f32 %v814, %v1022
    %1024 = vmatmul.f32.gmra.mxu0 %v576
    %v1025 = vpop.f32.mrf.mxu0
    %v1026 = vadd.f32 %v817, %v1025
    %1027 = vmatmul.f32.gmra.mxu0 %v577
    %v1028 = vpop.f32.mrf.mxu0
    %v1029 = vadd.f32 %v820, %v1028
    %1030 = vmatmul.f32.gmra.mxu0 %v578
    %v1031 = vpop.f32.mrf.mxu0
    %v1032 = vadd.f32 %v823, %v1031
    %1033 = vmatmul.f32.gmra.mxu0 %v579
    %v1034 = vpop.f32.mrf.mxu0
    %v1035 = vadd.f32 %v826, %v1034
    %1036 = vmatmul.f32.gmra.mxu0 %v580
    %v1037 = vpop.f32.mrf.mxu0
    %v1038 = vadd.f32 %v829, %v1037
    %1039 = vmatmul.f32.gmra.mxu0 %v581
    %v1040 = vpop.f32.mrf.mxu0
    %v1041 = vadd.f32 %v832, %v1040
    %1042 = vmatmul.f32.gmra.mxu0 %v582
    %v1043 = vpop.f32.mrf.mxu0
    %v1044 = vadd.f32 %v835, %v1043
    %1045 = vmatmul.f32.gmra.mxu0 %v583
    %v1046 = vpop.f32.mrf.mxu0
    %v1047 = vadd.f32 %v838, %v1046
    %1048 = vmatmul.f32.gmra.mxu0 %v584
    %v1049 = vpop.f32.mrf.mxu0
    %v1050 = vadd.f32 %v841, %v1049
    %1051 = vmatmul.f32.gmra.mxu0 %v585
    %v1052 = vpop.f32.mrf.mxu0
    %v1053 = vadd.f32 %v844, %v1052
    %1054 = vmatmul.f32.gmra.mxu0 %v586
    %v1055 = vpop.f32.mrf.mxu0
    %v1056 = vadd.f32 %v847, %v1055
    %1057 = vmatmul.f32.gmra.mxu0 %v587
    %v1058 = vpop.f32.mrf.mxu0
    %v1059 = vadd.f32 %v850, %v1058
    %1060 = vmatmul.f32.gmra.mxu0 %v588
    %v1061 = vpop.f32.mrf.mxu0
    %v1062 = vadd.f32 %v853, %v1061
    %1063 = vmatmul.f32.gmra.mxu0 %v589
    %v1064 = vpop.f32.mrf.mxu0
    %v1065 = vadd.f32 %v856, %v1064
    %1066 = vmatmul.f32.gmra.mxu0 %v590
    %v1067 = vpop.f32.mrf.mxu0
    %v1068 = vadd.f32 %v859, %v1067
    %1069 = vmatmul.f32.gmra.mxu0 %v591
    %v1070 = vpop.f32.mrf.mxu0
    %v1071 = vadd.f32 %v862, %v1070
    %1072 = vmatmul.f32.gmra.mxu0 %v592
    %v1073 = vpop.f32.mrf.mxu0
    %v1074 = vadd.f32 %v865, %v1073
    %1075 = vmatmul.f32.gmra.mxu0 %v593
    %v1076 = vpop.f32.mrf.mxu0
    %v1077 = vadd.f32 %v868, %v1076
    %1078 = vmatmul.f32.gmra.mxu0 %v594
    %v1079 = vpop.f32.mrf.mxu0
    %v1080 = vadd.f32 %v871, %v1079
    %1081 = vmatmul.f32.gmra.mxu0 %v595
    %v1082 = vpop.f32.mrf.mxu0
    %v1083 = vadd.f32 %v874, %v1082
    %1084 = vmatmul.f32.gmra.mxu0 %v596
    %v1085 = vpop.f32.mrf.mxu0
    %v1086 = vadd.f32 %v877, %v1085
    %1087 = vmatmul.f32.gmra.mxu0 %v597
    %v1088 = vpop.f32.mrf.mxu0
    %v1089 = vadd.f32 %v880, %v1088
    %1090 = vmatmul.f32.gmra.mxu0 %v598
    %v1091 = vpop.f32.mrf.mxu0
    %v1092 = vadd.f32 %v883, %v1091
    %1093 = vmatmul.f32.gmra.mxu0 %v599
    %v1094 = vpop.f32.mrf.mxu0
    %v1095 = vadd.f32 %v886, %v1094
    %1096 = vmatmul.f32.gmra.mxu0 %v600
    %v1097 = vpop.f32.mrf.mxu0
    %v1098 = vadd.f32 %v889, %v1097
    %1099 = vmatmul.f32.gmra.mxu0 %v601
    %v1100 = vpop.f32.mrf.mxu0
    %v1101 = vadd.f32 %v892, %v1100
    %1102 = vmatmul.f32.gmra.mxu0 %v602
    %v1103 = vpop.f32.mrf.mxu0
    %v1104 = vadd.f32 %v895, %v1103
    %1105 = vmatmul.f32.gmra.mxu0 %v603
    %v1106 = vpop.f32.mrf.mxu0
    %v1107 = vadd.f32 %v898, %v1106
    %1108 = vmatmul.f32.gmra.mxu0 %v604
    %v1109 = vpop.f32.mrf.mxu0
    %v1110 = vadd.f32 %v901, %v1109
    %1111 = vmatmul.f32.gmra.mxu0 %v605
    %v1112 = vpop.f32.mrf.mxu0
    %v1113 = vadd.f32 %v904, %v1112
    %1114 = vmatmul.f32.gmra.mxu0 %v606
    %v1115 = vpop.f32.mrf.mxu0
    %v1116 = vadd.f32 %v907, %v1115
    %1117 = vmatmul.f32.gmra.mxu0 %v607
    %v1118 = vpop.f32.mrf.mxu0
    %v1119 = vadd.f32 %v910, %v1118
    %1120 = vmatmul.f32.gmra.mxu0 %v608
    %v1121 = vpop.f32.mrf.mxu0
    %v1122 = vadd.f32 %v913, %v1121
    %1123 = vdwg.mxu0
    %v1124 = vld [vmem:[#allocation2 + $0x2] sm:$0xff]
    %v1125 = vld [vmem:[#allocation2 + $0xa] sm:$0xff]
    %v1126 = vld [vmem:[#allocation2 + $0x1a] sm:$0xff]
    %v1127 = vld [vmem:[#allocation2 + $0x22] sm:$0xff]
    %v1128 = vld [vmem:[#allocation2 + $0x32] sm:$0xff]
    %v1129 = vld [vmem:[#allocation2 + $0x3a] sm:$0xff]
    %v1130 = vld [vmem:[#allocation2 + $0x4a] sm:$0xff]
    %v1131 = vld [vmem:[#allocation2 + $0x52] sm:$0xff]
    %v1132 = vld [vmem:[#allocation2 + $0x62] sm:$0xff]
    %v1133 = vld [vmem:[#allocation2 + $0x6a] sm:$0xff]
    %v1134 = vld [vmem:[#allocation2 + $0x7a] sm:$0xff]
    %v1135 = vld [vmem:[#allocation2 + $0x82] sm:$0xff]
    %v1136 = vld [vmem:[#allocation2 + $0x92] sm:$0xff]
    %v1137 = vld [vmem:[#allocation2 + $0x9a] sm:$0xff]
    %v1138 = vld [vmem:[#allocation2 + $0xaa] sm:$0xff]
    %v1139 = vld [vmem:[#allocation2 + $0xb2] sm:$0xff]
    %v1140 = vld [vmem:[#allocation2 + $0xc2] sm:$0xff]
    %v1141 = vld [vmem:[#allocation2 + $0xca] sm:$0xff]
    %v1142 = vld [vmem:[#allocation2 + $0xda] sm:$0xff]
    %v1143 = vld [vmem:[#allocation2 + $0xe2] sm:$0xff]
    %v1144 = vld [vmem:[#allocation2 + $0xf2] sm:$0xff]
    %v1145 = vld [vmem:[#allocation2 + $0xfa] sm:$0xff]
    %v1146 = vld [vmem:[#allocation2 + $0x10a] sm:$0xff]
    %v1147 = vld [vmem:[#allocation2 + $0x112] sm:$0xff]
    %v1148 = vld [vmem:[#allocation2 + $0x122] sm:$0xff]
    %v1149 = vld [vmem:[#allocation2 + $0x12a] sm:$0xff]
    %v1150 = vld [vmem:[#allocation2 + $0x13a] sm:$0xff]
    %v1151 = vld [vmem:[#allocation2 + $0x142] sm:$0xff]
    %v1152 = vld [vmem:[#allocation2 + $0x152] sm:$0xff]
    %v1153 = vld [vmem:[#allocation2 + $0x15a] sm:$0xff]
    %v1154 = vld [vmem:[#allocation2 + $0x16a] sm:$0xff]
    %v1155 = vld [vmem:[#allocation2 + $0x172] sm:$0xff]
    %v1156 = vld [vmem:[#allocation2 + $0x1b2] sm:$0xff]
    %v1157 = vld [vmem:[#allocation2 + $0x1ba] sm:$0xff]
    %v1158 = vld [vmem:[#allocation2 + $0x1ca] sm:$0xff]
    %v1159 = vld [vmem:[#allocation2 + $0x1d2] sm:$0xff]
    %v1160 = vld [vmem:[#allocation2 + $0x1e2] sm:$0xff]
    %v1161 = vld [vmem:[#allocation2 + $0x1ea] sm:$0xff]
    %v1162 = vld [vmem:[#allocation2 + $0x1fa] sm:$0xff]
    %v1163 = vld [vmem:[#allocation2 + $0x202] sm:$0xff]
    %v1164 = vld [vmem:[#allocation2 + $0x212] sm:$0xff]
    %v1165 = vld [vmem:[#allocation2 + $0x21a] sm:$0xff]
    %v1166 = vld [vmem:[#allocation2 + $0x22a] sm:$0xff]
    %v1167 = vld [vmem:[#allocation2 + $0x232] sm:$0xff]
    %v1168 = vld [vmem:[#allocation2 + $0x242] sm:$0xff]
    %v1169 = vld [vmem:[#allocation2 + $0x24a] sm:$0xff]
    %v1170 = vld [vmem:[#allocation2 + $0x25a] sm:$0xff]
    %v1171 = vld [vmem:[#allocation2 + $0x262] sm:$0xff]
    %v1172 = vld [vmem:[#allocation2 + $0x272] sm:$0xff]
    %v1173 = vld [vmem:[#allocation2 + $0x27a] sm:$0xff]
    %v1174 = vld [vmem:[#allocation2 + $0x28a] sm:$0xff]
    %v1175 = vld [vmem:[#allocation2 + $0x292] sm:$0xff]
    %v1176 = vld [vmem:[#allocation2 + $0x2a2] sm:$0xff]
    %v1177 = vld [vmem:[#allocation2 + $0x2aa] sm:$0xff]
    %v1178 = vld [vmem:[#allocation2 + $0x2ba] sm:$0xff]
    %v1179 = vld [vmem:[#allocation2 + $0x2c2] sm:$0xff]
    %v1180 = vld [vmem:[#allocation2 + $0x2d2] sm:$0xff]
    %v1181 = vld [vmem:[#allocation2 + $0x2da] sm:$0xff]
    %v1182 = vld [vmem:[#allocation2 + $0x2ea] sm:$0xff]
    %v1183 = vld [vmem:[#allocation2 + $0x2f2] sm:$0xff]
    %v1184 = vld [vmem:[#allocation2 + $0x302] sm:$0xff]
    %v1185 = vld [vmem:[#allocation2 + $0x30a] sm:$0xff]
    %v1186 = vld [vmem:[#allocation2 + $0x31a] sm:$0xff]
    %v1187 = vld [vmem:[#allocation2 + $0x322] sm:$0xff]
    %s1188 = scalar_lea.vmem [#allocation6], 256
    %v1189 = vld [vmem:[%s1188] sm:$0xff]
    %v1190 = vld [vmem:[%s1188 + $0x8] sm:$0xff]
    %v1191 = vld [vmem:[%s1188 + $0x10] sm:$0xff]
    %v1192 = vld [vmem:[%s1188 + $0x18] sm:$0xff]
    %v1193 = vld [vmem:[%s1188 + $0x20] sm:$0xff]
    %v1194 = vld [vmem:[%s1188 + $0x28] sm:$0xff]
    %v1195 = vld [vmem:[%s1188 + $0x30] sm:$0xff]
    %v1196 = vld [vmem:[%s1188 + $0x38] sm:$0xff]
    %v1197 = vld [vmem:[%s1188 + $0x40] sm:$0xff]
    %v1198 = vld [vmem:[%s1188 + $0x48] sm:$0xff]
    %v1199 = vld [vmem:[%s1188 + $0x50] sm:$0xff]
    %v1200 = vld [vmem:[%s1188 + $0x58] sm:$0xff]
    %v1201 = vld [vmem:[%s1188 + $0x60] sm:$0xff]
    %v1202 = vld [vmem:[%s1188 + $0x68] sm:$0xff]
    %v1203 = vld [vmem:[%s1188 + $0x70] sm:$0xff]
    %v1204 = vld [vmem:[%s1188 + $0x78] sm:$0xff]
    %1205 = vmatpush.msra.mxu0 %v1204
    %1206 = vmatpush.msra.mxu0 %v1203
    %1207 = vmatpush.msra.mxu0 %v1202
    %1208 = vmatpush.msra.mxu0 %v1201
    %1209 = vmatpush.msra.mxu0 %v1200
    %1210 = vmatpush.msra.mxu0 %v1199
    %1211 = vmatpush.msra.mxu0 %v1198
    %1212 = vmatpush.msra.mxu0 %v1197
    %1213 = vmatpush.msra.mxu0 %v1196
    %1214 = vmatpush.msra.mxu0 %v1195
    %1215 = vmatpush.msra.mxu0 %v1194
    %1216 = vmatpush.msra.mxu0 %v1193
    %1217 = vmatpush.msra.mxu0 %v1192
    %1218 = vmatpush.msra.mxu0 %v1191
    %1219 = vmatpush.msra.mxu0 %v1190
    %1220 = vmatpush.msra.mxu0 %v1189
    %1221 = vmatmul.f32.gmra.mxu0 %v1124
    %v1222 = vpop.f32.mrf.mxu0
    %v1223 = vadd.f32 0.0, %v1222
    %1224 = vmatmul.f32.gmra.mxu0 %v1125
    %v1225 = vpop.f32.mrf.mxu0
    %v1226 = vadd.f32 0.0, %v1225
    %1227 = vmatmul.f32.gmra.mxu0 %v1126
    %v1228 = vpop.f32.mrf.mxu0
    %v1229 = vadd.f32 0.0, %v1228
    %1230 = vmatmul.f32.gmra.mxu0 %v1127
    %v1231 = vpop.f32.mrf.mxu0
    %v1232 = vadd.f32 0.0, %v1231
    %1233 = vmatmul.f32.gmra.mxu0 %v1128
    %v1234 = vpop.f32.mrf.mxu0
    %v1235 = vadd.f32 0.0, %v1234
    %1236 = vmatmul.f32.gmra.mxu0 %v1129
    %v1237 = vpop.f32.mrf.mxu0
    %v1238 = vadd.f32 0.0, %v1237
    %1239 = vmatmul.f32.gmra.mxu0 %v1130
    %v1240 = vpop.f32.mrf.mxu0
    %v1241 = vadd.f32 0.0, %v1240
    %1242 = vmatmul.f32.gmra.mxu0 %v1131
    %v1243 = vpop.f32.mrf.mxu0
    %v1244 = vadd.f32 0.0, %v1243
    %1245 = vmatmul.f32.gmra.mxu0 %v1132
    %v1246 = vpop.f32.mrf.mxu0
    %v1247 = vadd.f32 0.0, %v1246
    %1248 = vmatmul.f32.gmra.mxu0 %v1133
    %v1249 = vpop.f32.mrf.mxu0
    %v1250 = vadd.f32 0.0, %v1249
    %1251 = vmatmul.f32.gmra.mxu0 %v1134
    %v1252 = vpop.f32.mrf.mxu0
    %v1253 = vadd.f32 0.0, %v1252
    %1254 = vmatmul.f32.gmra.mxu0 %v1135
    %v1255 = vpop.f32.mrf.mxu0
    %v1256 = vadd.f32 0.0, %v1255
    %1257 = vmatmul.f32.gmra.mxu0 %v1136
    %v1258 = vpop.f32.mrf.mxu0
    %v1259 = vadd.f32 0.0, %v1258
    %1260 = vmatmul.f32.gmra.mxu0 %v1137
    %v1261 = vpop.f32.mrf.mxu0
    %v1262 = vadd.f32 0.0, %v1261
    %1263 = vmatmul.f32.gmra.mxu0 %v1138
    %v1264 = vpop.f32.mrf.mxu0
    %v1265 = vadd.f32 0.0, %v1264
    %1266 = vmatmul.f32.gmra.mxu0 %v1139
    %v1267 = vpop.f32.mrf.mxu0
    %v1268 = vadd.f32 0.0, %v1267
    %1269 = vmatmul.f32.gmra.mxu0 %v1140
    %v1270 = vpop.f32.mrf.mxu0
    %v1271 = vadd.f32 0.0, %v1270
    %1272 = vmatmul.f32.gmra.mxu0 %v1141
    %v1273 = vpop.f32.mrf.mxu0
    %v1274 = vadd.f32 0.0, %v1273
    %1275 = vmatmul.f32.gmra.mxu0 %v1142
    %v1276 = vpop.f32.mrf.mxu0
    %v1277 = vadd.f32 0.0, %v1276
    %1278 = vmatmul.f32.gmra.mxu0 %v1143
    %v1279 = vpop.f32.mrf.mxu0
    %v1280 = vadd.f32 0.0, %v1279
    %1281 = vmatmul.f32.gmra.mxu0 %v1144
    %v1282 = vpop.f32.mrf.mxu0
    %v1283 = vadd.f32 0.0, %v1282
    %1284 = vmatmul.f32.gmra.mxu0 %v1145
    %v1285 = vpop.f32.mrf.mxu0
    %v1286 = vadd.f32 0.0, %v1285
    %1287 = vmatmul.f32.gmra.mxu0 %v1146
    %v1288 = vpop.f32.mrf.mxu0
    %v1289 = vadd.f32 0.0, %v1288
    %1290 = vmatmul.f32.gmra.mxu0 %v1147
    %v1291 = vpop.f32.mrf.mxu0
    %v1292 = vadd.f32 0.0, %v1291
    %1293 = vmatmul.f32.gmra.mxu0 %v1148
    %v1294 = vpop.f32.mrf.mxu0
    %v1295 = vadd.f32 0.0, %v1294
    %1296 = vmatmul.f32.gmra.mxu0 %v1149
    %v1297 = vpop.f32.mrf.mxu0
    %v1298 = vadd.f32 0.0, %v1297
    %1299 = vmatmul.f32.gmra.mxu0 %v1150
    %v1300 = vpop.f32.mrf.mxu0
    %v1301 = vadd.f32 0.0, %v1300
    %1302 = vmatmul.f32.gmra.mxu0 %v1151
    %v1303 = vpop.f32.mrf.mxu0
    %v1304 = vadd.f32 0.0, %v1303
    %1305 = vmatmul.f32.gmra.mxu0 %v1152
    %v1306 = vpop.f32.mrf.mxu0
    %v1307 = vadd.f32 0.0, %v1306
    %1308 = vmatmul.f32.gmra.mxu0 %v1153
    %v1309 = vpop.f32.mrf.mxu0
    %v1310 = vadd.f32 0.0, %v1309
    %1311 = vmatmul.f32.gmra.mxu0 %v1154
    %v1312 = vpop.f32.mrf.mxu0
    %v1313 = vadd.f32 0.0, %v1312
    %1314 = vmatmul.f32.gmra.mxu0 %v1155
    %v1315 = vpop.f32.mrf.mxu0
    %v1316 = vadd.f32 0.0, %v1315
    %1317 = vmatmul.f32.gmra.mxu0 %v1156
    %v1318 = vpop.f32.mrf.mxu0
    %v1319 = vadd.f32 0.0, %v1318
    %1320 = vmatmul.f32.gmra.mxu0 %v1157
    %v1321 = vpop.f32.mrf.mxu0
    %v1322 = vadd.f32 0.0, %v1321
    %1323 = vmatmul.f32.gmra.mxu0 %v1158
    %v1324 = vpop.f32.mrf.mxu0
    %v1325 = vadd.f32 0.0, %v1324
    %1326 = vmatmul.f32.gmra.mxu0 %v1159
    %v1327 = vpop.f32.mrf.mxu0
    %v1328 = vadd.f32 0.0, %v1327
    %1329 = vmatmul.f32.gmra.mxu0 %v1160
    %v1330 = vpop.f32.mrf.mxu0
    %v1331 = vadd.f32 0.0, %v1330
    %1332 = vmatmul.f32.gmra.mxu0 %v1161
    %v1333 = vpop.f32.mrf.mxu0
    %v1334 = vadd.f32 0.0, %v1333
    %1335 = vmatmul.f32.gmra.mxu0 %v1162
    %v1336 = vpop.f32.mrf.mxu0
    %v1337 = vadd.f32 0.0, %v1336
    %1338 = vmatmul.f32.gmra.mxu0 %v1163
    %v1339 = vpop.f32.mrf.mxu0
    %v1340 = vadd.f32 0.0, %v1339
    %1341 = vmatmul.f32.gmra.mxu0 %v1164
    %v1342 = vpop.f32.mrf.mxu0
    %v1343 = vadd.f32 0.0, %v1342
    %1344 = vmatmul.f32.gmra.mxu0 %v1165
    %v1345 = vpop.f32.mrf.mxu0
    %v1346 = vadd.f32 0.0, %v1345
    %1347 = vmatmul.f32.gmra.mxu0 %v1166
    %v1348 = vpop.f32.mrf.mxu0
    %v1349 = vadd.f32 0.0, %v1348
    %1350 = vmatmul.f32.gmra.mxu0 %v1167
    %v1351 = vpop.f32.mrf.mxu0
    %v1352 = vadd.f32 0.0, %v1351
    %1353 = vmatmul.f32.gmra.mxu0 %v1168
    %v1354 = vpop.f32.mrf.mxu0
    %v1355 = vadd.f32 0.0, %v1354
    %1356 = vmatmul.f32.gmra.mxu0 %v1169
    %v1357 = vpop.f32.mrf.mxu0
    %v1358 = vadd.f32 0.0, %v1357
    %1359 = vmatmul.f32.gmra.mxu0 %v1170
    %v1360 = vpop.f32.mrf.mxu0
    %v1361 = vadd.f32 0.0, %v1360
    %1362 = vmatmul.f32.gmra.mxu0 %v1171
    %v1363 = vpop.f32.mrf.mxu0
    %v1364 = vadd.f32 0.0, %v1363
    %1365 = vmatmul.f32.gmra.mxu0 %v1172
    %v1366 = vpop.f32.mrf.mxu0
    %v1367 = vadd.f32 0.0, %v1366
    %1368 = vmatmul.f32.gmra.mxu0 %v1173
    %v1369 = vpop.f32.mrf.mxu0
    %v1370 = vadd.f32 0.0, %v1369
    %1371 = vmatmul.f32.gmra.mxu0 %v1174
    %v1372 = vpop.f32.mrf.mxu0
    %v1373 = vadd.f32 0.0, %v1372
    %1374 = vmatmul.f32.gmra.mxu0 %v1175
    %v1375 = vpop.f32.mrf.mxu0
    %v1376 = vadd.f32 0.0, %v1375
    %1377 = vmatmul.f32.gmra.mxu0 %v1176
    %v1378 = vpop.f32.mrf.mxu0
    %v1379 = vadd.f32 0.0, %v1378
    %1380 = vmatmul.f32.gmra.mxu0 %v1177
    %v1381 = vpop.f32.mrf.mxu0
    %v1382 = vadd.f32 0.0, %v1381
    %1383 = vmatmul.f32.gmra.mxu0 %v1178
    %v1384 = vpop.f32.mrf.mxu0
    %v1385 = vadd.f32 0.0, %v1384
    %1386 = vmatmul.f32.gmra.mxu0 %v1179
    %v1387 = vpop.f32.mrf.mxu0
    %v1388 = vadd.f32 0.0, %v1387
    %1389 = vmatmul.f32.gmra.mxu0 %v1180
    %v1390 = vpop.f32.mrf.mxu0
    %v1391 = vadd.f32 0.0, %v1390
    %1392 = vmatmul.f32.gmra.mxu0 %v1181
    %v1393 = vpop.f32.mrf.mxu0
    %v1394 = vadd.f32 0.0, %v1393
    %1395 = vmatmul.f32.gmra.mxu0 %v1182
    %v1396 = vpop.f32.mrf.mxu0
    %v1397 = vadd.f32 0.0, %v1396
    %1398 = vmatmul.f32.gmra.mxu0 %v1183
    %v1399 = vpop.f32.mrf.mxu0
    %v1400 = vadd.f32 0.0, %v1399
    %1401 = vmatmul.f32.gmra.mxu0 %v1184
    %v1402 = vpop.f32.mrf.mxu0
    %v1403 = vadd.f32 0.0, %v1402
    %1404 = vmatmul.f32.gmra.mxu0 %v1185
    %v1405 = vpop.f32.mrf.mxu0
    %v1406 = vadd.f32 0.0, %v1405
    %1407 = vmatmul.f32.gmra.mxu0 %v1186
    %v1408 = vpop.f32.mrf.mxu0
    %v1409 = vadd.f32 0.0, %v1408
    %1410 = vmatmul.f32.gmra.mxu0 %v1187
    %v1411 = vpop.f32.mrf.mxu0
    %v1412 = vadd.f32 0.0, %v1411
    %1413 = vdwg.mxu0
    %v1414 = vadd.f32 %v933, %v1223
    %v1415 = vadd.f32 %v936, %v1226
    %v1416 = vadd.f32 %v939, %v1229
    %v1417 = vadd.f32 %v942, %v1232
    %v1418 = vadd.f32 %v945, %v1235
    %v1419 = vadd.f32 %v948, %v1238
    %v1420 = vadd.f32 %v951, %v1241
    %v1421 = vadd.f32 %v954, %v1244
    %v1422 = vadd.f32 %v957, %v1247
    %v1423 = vadd.f32 %v960, %v1250
    %v1424 = vadd.f32 %v963, %v1253
    %v1425 = vadd.f32 %v966, %v1256
    %v1426 = vadd.f32 %v969, %v1259
    %v1427 = vadd.f32 %v972, %v1262
    %v1428 = vadd.f32 %v975, %v1265
    %v1429 = vadd.f32 %v978, %v1268
    %v1430 = vadd.f32 %v981, %v1271
    %v1431 = vadd.f32 %v984, %v1274
    %v1432 = vadd.f32 %v987, %v1277
    %v1433 = vadd.f32 %v990, %v1280
    %v1434 = vadd.f32 %v993, %v1283
    %v1435 = vadd.f32 %v996, %v1286
    %v1436 = vadd.f32 %v999, %v1289
    %v1437 = vadd.f32 %v1002, %v1292
    %v1438 = vadd.f32 %v1005, %v1295
    %v1439 = vadd.f32 %v1008, %v1298
    %v1440 = vadd.f32 %v1011, %v1301
    %v1441 = vadd.f32 %v1014, %v1304
    %v1442 = vadd.f32 %v1017, %v1307
    %v1443 = vadd.f32 %v1020, %v1310
    %v1444 = vadd.f32 %v1023, %v1313
    %v1445 = vadd.f32 %v1026, %v1316
    %v1446 = vadd.f32 %v1029, %v1319
    %v1447 = vadd.f32 %v1032, %v1322
    %v1448 = vadd.f32 %v1035, %v1325
    %v1449 = vadd.f32 %v1038, %v1328
    %v1450 = vadd.f32 %v1041, %v1331
    %v1451 = vadd.f32 %v1044, %v1334
    %v1452 = vadd.f32 %v1047, %v1337
    %v1453 = vadd.f32 %v1050, %v1340
    %v1454 = vadd.f32 %v1053, %v1343
    %v1455 = vadd.f32 %v1056, %v1346
    %v1456 = vadd.f32 %v1059, %v1349
    %v1457 = vadd.f32 %v1062, %v1352
    %v1458 = vadd.f32 %v1065, %v1355
    %v1459 = vadd.f32 %v1068, %v1358
    %v1460 = vadd.f32 %v1071, %v1361
    %v1461 = vadd.f32 %v1074, %v1364
    %v1462 = vadd.f32 %v1077, %v1367
    %v1463 = vadd.f32 %v1080, %v1370
    %v1464 = vadd.f32 %v1083, %v1373
    %v1465 = vadd.f32 %v1086, %v1376
    %v1466 = vadd.f32 %v1089, %v1379
    %v1467 = vadd.f32 %v1092, %v1382
    %v1468 = vadd.f32 %v1095, %v1385
    %v1469 = vadd.f32 %v1098, %v1388
    %v1470 = vadd.f32 %v1101, %v1391
    %v1471 = vadd.f32 %v1104, %v1394
    %v1472 = vadd.f32 %v1107, %v1397
    %v1473 = vadd.f32 %v1110, %v1400
    %v1474 = vadd.f32 %v1113, %v1403
    %v1475 = vadd.f32 %v1116, %v1406
    %v1476 = vadd.f32 %v1119, %v1409
    %v1477 = vadd.f32 %v1122, %v1412
    %v1478 = vld [vmem:[%s480] sm:$0xff]
    %v1479 = vld [vmem:[%s480 + $0x8] sm:$0xff]
    %v1480 = vld [vmem:[%s480 + $0x18] sm:$0xff]
    %v1481 = vld [vmem:[%s480 + $0x20] sm:$0xff]
    %v1482 = vld [vmem:[%s480 + $0x30] sm:$0xff]
    %v1483 = vld [vmem:[%s480 + $0x38] sm:$0xff]
    %v1484 = vld [vmem:[%s480 + $0x48] sm:$0xff]
    %v1485 = vld [vmem:[%s480 + $0x50] sm:$0xff]
    %v1486 = vld [vmem:[%s480 + $0x60] sm:$0xff]
    %v1487 = vld [vmem:[%s480 + $0x68] sm:$0xff]
    %v1488 = vld [vmem:[%s480 + $0x78] sm:$0xff]
    %v1489 = vld [vmem:[%s480 + $0x80] sm:$0xff]
    %v1490 = vld [vmem:[%s480 + $0x90] sm:$0xff]
    %v1491 = vld [vmem:[%s480 + $0x98] sm:$0xff]
    %v1492 = vld [vmem:[%s480 + $0xa8] sm:$0xff]
    %v1493 = vld [vmem:[%s480 + $0xb0] sm:$0xff]
    %v1494 = vld [vmem:[%s480 + $0xc0] sm:$0xff]
    %v1495 = vld [vmem:[%s480 + $0xc8] sm:$0xff]
    %v1496 = vld [vmem:[%s480 + $0xd8] sm:$0xff]
    %v1497 = vld [vmem:[%s480 + $0xe0] sm:$0xff]
    %v1498 = vld [vmem:[%s480 + $0xf0] sm:$0xff]
    %v1499 = vld [vmem:[%s480 + $0xf8] sm:$0xff]
    %v1500 = vld [vmem:[%s480 + $0x108] sm:$0xff]
    %v1501 = vld [vmem:[%s480 + $0x110] sm:$0xff]
    %v1502 = vld [vmem:[%s480 + $0x120] sm:$0xff]
    %v1503 = vld [vmem:[%s480 + $0x128] sm:$0xff]
    %v1504 = vld [vmem:[%s480 + $0x138] sm:$0xff]
    %v1505 = vld [vmem:[%s480 + $0x140] sm:$0xff]
    %v1506 = vld [vmem:[%s480 + $0x150] sm:$0xff]
    %v1507 = vld [vmem:[%s480 + $0x158] sm:$0xff]
    %v1508 = vld [vmem:[%s480 + $0x168] sm:$0xff]
    %v1509 = vld [vmem:[%s480 + $0x170] sm:$0xff]
    %v1510 = vld [vmem:[%s480 + $0x1b0] sm:$0xff]
    %v1511 = vld [vmem:[%s480 + $0x1b8] sm:$0xff]
    %v1512 = vld [vmem:[%s480 + $0x1c8] sm:$0xff]
    %v1513 = vld [vmem:[%s480 + $0x1d0] sm:$0xff]
    %v1514 = vld [vmem:[%s480 + $0x1e0] sm:$0xff]
    %v1515 = vld [vmem:[%s480 + $0x1e8] sm:$0xff]
    %v1516 = vld [vmem:[%s480 + $0x1f8] sm:$0xff]
    %v1517 = vld [vmem:[%s480 + $0x200] sm:$0xff]
    %v1518 = vld [vmem:[%s480 + $0x210] sm:$0xff]
    %v1519 = vld [vmem:[%s480 + $0x218] sm:$0xff]
    %v1520 = vld [vmem:[%s480 + $0x228] sm:$0xff]
    %v1521 = vld [vmem:[%s480 + $0x230] sm:$0xff]
    %v1522 = vld [vmem:[%s480 + $0x240] sm:$0xff]
    %v1523 = vld [vmem:[%s480 + $0x248] sm:$0xff]
    %v1524 = vld [vmem:[%s480 + $0x258] sm:$0xff]
    %v1525 = vld [vmem:[%s480 + $0x260] sm:$0xff]
    %v1526 = vld [vmem:[%s480 + $0x270] sm:$0xff]
    %v1527 = vld [vmem:[%s480 + $0x278] sm:$0xff]
    %v1528 = vld [vmem:[%s480 + $0x288] sm:$0xff]
    %v1529 = vld [vmem:[%s480 + $0x290] sm:$0xff]
    %v1530 = vld [vmem:[%s480 + $0x2a0] sm:$0xff]
    %v1531 = vld [vmem:[%s480 + $0x2a8] sm:$0xff]
    %v1532 = vld [vmem:[%s480 + $0x2b8] sm:$0xff]
    %v1533 = vld [vmem:[%s480 + $0x2c0] sm:$0xff]
    %v1534 = vld [vmem:[%s480 + $0x2d0] sm:$0xff]
    %v1535 = vld [vmem:[%s480 + $0x2d8] sm:$0xff]
    %v1536 = vld [vmem:[%s480 + $0x2e8] sm:$0xff]
    %v1537 = vld [vmem:[%s480 + $0x2f0] sm:$0xff]
    %v1538 = vld [vmem:[%s480 + $0x300] sm:$0xff]
    %v1539 = vld [vmem:[%s480 + $0x308] sm:$0xff]
    %v1540 = vld [vmem:[%s480 + $0x318] sm:$0xff]
    %v1541 = vld [vmem:[%s480 + $0x320] sm:$0xff]
    %s1542 = scalar_lea.vmem [#allocation6], 384
    %v1543 = vld [vmem:[%s1542] sm:$0xff]
    %v1544 = vld [vmem:[%s1542 + $0x8] sm:$0xff]
    %v1545 = vld [vmem:[%s1542 + $0x10] sm:$0xff]
    %v1546 = vld [vmem:[%s1542 + $0x18] sm:$0xff]
    %v1547 = vld [vmem:[%s1542 + $0x20] sm:$0xff]
    %v1548 = vld [vmem:[%s1542 + $0x28] sm:$0xff]
    %v1549 = vld [vmem:[%s1542 + $0x30] sm:$0xff]
    %v1550 = vld [vmem:[%s1542 + $0x38] sm:$0xff]
    %v1551 = vld [vmem:[%s1542 + $0x40] sm:$0xff]
    %v1552 = vld [vmem:[%s1542 + $0x48] sm:$0xff]
    %v1553 = vld [vmem:[%s1542 + $0x50] sm:$0xff]
    %v1554 = vld [vmem:[%s1542 + $0x58] sm:$0xff]
    %v1555 = vld [vmem:[%s1542 + $0x60] sm:$0xff]
    %v1556 = vld [vmem:[%s1542 + $0x68] sm:$0xff]
    %v1557 = vld [vmem:[%s1542 + $0x70] sm:$0xff]
    %v1558 = vld [vmem:[%s1542 + $0x78] sm:$0xff]
    %1559 = vmatpush.msra.mxu0 %v1558
    %1560 = vmatpush.msra.mxu0 %v1557
    %1561 = vmatpush.msra.mxu0 %v1556
    %1562 = vmatpush.msra.mxu0 %v1555
    %1563 = vmatpush.msra.mxu0 %v1554
    %1564 = vmatpush.msra.mxu0 %v1553
    %1565 = vmatpush.msra.mxu0 %v1552
    %1566 = vmatpush.msra.mxu0 %v1551
    %1567 = vmatpush.msra.mxu0 %v1550
    %1568 = vmatpush.msra.mxu0 %v1549
    %1569 = vmatpush.msra.mxu0 %v1548
    %1570 = vmatpush.msra.mxu0 %v1547
    %1571 = vmatpush.msra.mxu0 %v1546
    %1572 = vmatpush.msra.mxu0 %v1545
    %1573 = vmatpush.msra.mxu0 %v1544
    %1574 = vmatpush.msra.mxu0 %v1543
    %1575 = vmatmul.f32.gmra.mxu0 %v1478
    %v1576 = vpop.f32.mrf.mxu0
    %v1577 = vadd.f32 0.0, %v1576
    %1578 = vmatmul.f32.gmra.mxu0 %v1479
    %v1579 = vpop.f32.mrf.mxu0
    %v1580 = vadd.f32 0.0, %v1579
    %1581 = vmatmul.f32.gmra.mxu0 %v1480
    %v1582 = vpop.f32.mrf.mxu0
    %v1583 = vadd.f32 0.0, %v1582
    %1584 = vmatmul.f32.gmra.mxu0 %v1481
    %v1585 = vpop.f32.mrf.mxu0
    %v1586 = vadd.f32 0.0, %v1585
    %1587 = vmatmul.f32.gmra.mxu0 %v1482
    %v1588 = vpop.f32.mrf.mxu0
    %v1589 = vadd.f32 0.0, %v1588
    %1590 = vmatmul.f32.gmra.mxu0 %v1483
    %v1591 = vpop.f32.mrf.mxu0
    %v1592 = vadd.f32 0.0, %v1591
    %1593 = vmatmul.f32.gmra.mxu0 %v1484
    %v1594 = vpop.f32.mrf.mxu0
    %v1595 = vadd.f32 0.0, %v1594
    %1596 = vmatmul.f32.gmra.mxu0 %v1485
    %v1597 = vpop.f32.mrf.mxu0
    %v1598 = vadd.f32 0.0, %v1597
    %1599 = vmatmul.f32.gmra.mxu0 %v1486
    %v1600 = vpop.f32.mrf.mxu0
    %v1601 = vadd.f32 0.0, %v1600
    %1602 = vmatmul.f32.gmra.mxu0 %v1487
    %v1603 = vpop.f32.mrf.mxu0
    %v1604 = vadd.f32 0.0, %v1603
    %1605 = vmatmul.f32.gmra.mxu0 %v1488
    %v1606 = vpop.f32.mrf.mxu0
    %v1607 = vadd.f32 0.0, %v1606
    %1608 = vmatmul.f32.gmra.mxu0 %v1489
    %v1609 = vpop.f32.mrf.mxu0
    %v1610 = vadd.f32 0.0, %v1609
    %1611 = vmatmul.f32.gmra.mxu0 %v1490
    %v1612 = vpop.f32.mrf.mxu0
    %v1613 = vadd.f32 0.0, %v1612
    %1614 = vmatmul.f32.gmra.mxu0 %v1491
    %v1615 = vpop.f32.mrf.mxu0
    %v1616 = vadd.f32 0.0, %v1615
    %1617 = vmatmul.f32.gmra.mxu0 %v1492
    %v1618 = vpop.f32.mrf.mxu0
    %v1619 = vadd.f32 0.0, %v1618
    %1620 = vmatmul.f32.gmra.mxu0 %v1493
    %v1621 = vpop.f32.mrf.mxu0
    %v1622 = vadd.f32 0.0, %v1621
    %1623 = vmatmul.f32.gmra.mxu0 %v1494
    %v1624 = vpop.f32.mrf.mxu0
    %v1625 = vadd.f32 0.0, %v1624
    %1626 = vmatmul.f32.gmra.mxu0 %v1495
    %v1627 = vpop.f32.mrf.mxu0
    %v1628 = vadd.f32 0.0, %v1627
    %1629 = vmatmul.f32.gmra.mxu0 %v1496
    %v1630 = vpop.f32.mrf.mxu0
    %v1631 = vadd.f32 0.0, %v1630
    %1632 = vmatmul.f32.gmra.mxu0 %v1497
    %v1633 = vpop.f32.mrf.mxu0
    %v1634 = vadd.f32 0.0, %v1633
    %1635 = vmatmul.f32.gmra.mxu0 %v1498
    %v1636 = vpop.f32.mrf.mxu0
    %v1637 = vadd.f32 0.0, %v1636
    %1638 = vmatmul.f32.gmra.mxu0 %v1499
    %v1639 = vpop.f32.mrf.mxu0
    %v1640 = vadd.f32 0.0, %v1639
    %1641 = vmatmul.f32.gmra.mxu0 %v1500
    %v1642 = vpop.f32.mrf.mxu0
    %v1643 = vadd.f32 0.0, %v1642
    %1644 = vmatmul.f32.gmra.mxu0 %v1501
    %v1645 = vpop.f32.mrf.mxu0
    %v1646 = vadd.f32 0.0, %v1645
    %1647 = vmatmul.f32.gmra.mxu0 %v1502
    %v1648 = vpop.f32.mrf.mxu0
    %v1649 = vadd.f32 0.0, %v1648
    %1650 = vmatmul.f32.gmra.mxu0 %v1503
    %v1651 = vpop.f32.mrf.mxu0
    %v1652 = vadd.f32 0.0, %v1651
    %1653 = vmatmul.f32.gmra.mxu0 %v1504
    %v1654 = vpop.f32.mrf.mxu0
    %v1655 = vadd.f32 0.0, %v1654
    %1656 = vmatmul.f32.gmra.mxu0 %v1505
    %v1657 = vpop.f32.mrf.mxu0
    %v1658 = vadd.f32 0.0, %v1657
    %1659 = vmatmul.f32.gmra.mxu0 %v1506
    %v1660 = vpop.f32.mrf.mxu0
    %v1661 = vadd.f32 0.0, %v1660
    %1662 = vmatmul.f32.gmra.mxu0 %v1507
    %v1663 = vpop.f32.mrf.mxu0
    %v1664 = vadd.f32 0.0, %v1663
    %1665 = vmatmul.f32.gmra.mxu0 %v1508
    %v1666 = vpop.f32.mrf.mxu0
    %v1667 = vadd.f32 0.0, %v1666
    %1668 = vmatmul.f32.gmra.mxu0 %v1509
    %v1669 = vpop.f32.mrf.mxu0
    %v1670 = vadd.f32 0.0, %v1669
    %1671 = vmatmul.f32.gmra.mxu0 %v1510
    %v1672 = vpop.f32.mrf.mxu0
    %v1673 = vadd.f32 0.0, %v1672
    %1674 = vmatmul.f32.gmra.mxu0 %v1511
    %v1675 = vpop.f32.mrf.mxu0
    %v1676 = vadd.f32 0.0, %v1675
    %1677 = vmatmul.f32.gmra.mxu0 %v1512
    %v1678 = vpop.f32.mrf.mxu0
    %v1679 = vadd.f32 0.0, %v1678
    %1680 = vmatmul.f32.gmra.mxu0 %v1513
    %v1681 = vpop.f32.mrf.mxu0
    %v1682 = vadd.f32 0.0, %v1681
    %1683 = vmatmul.f32.gmra.mxu0 %v1514
    %v1684 = vpop.f32.mrf.mxu0
    %v1685 = vadd.f32 0.0, %v1684
    %1686 = vmatmul.f32.gmra.mxu0 %v1515
    %v1687 = vpop.f32.mrf.mxu0
    %v1688 = vadd.f32 0.0, %v1687
    %1689 = vmatmul.f32.gmra.mxu0 %v1516
    %v1690 = vpop.f32.mrf.mxu0
    %v1691 = vadd.f32 0.0, %v1690
    %1692 = vmatmul.f32.gmra.mxu0 %v1517
    %v1693 = vpop.f32.mrf.mxu0
    %v1694 = vadd.f32 0.0, %v1693
    %1695 = vmatmul.f32.gmra.mxu0 %v1518
    %v1696 = vpop.f32.mrf.mxu0
    %v1697 = vadd.f32 0.0, %v1696
    %1698 = vmatmul.f32.gmra.mxu0 %v1519
    %v1699 = vpop.f32.mrf.mxu0
    %v1700 = vadd.f32 0.0, %v1699
    %1701 = vmatmul.f32.gmra.mxu0 %v1520
    %v1702 = vpop.f32.mrf.mxu0
    %v1703 = vadd.f32 0.0, %v1702
    %1704 = vmatmul.f32.gmra.mxu0 %v1521
    %v1705 = vpop.f32.mrf.mxu0
    %v1706 = vadd.f32 0.0, %v1705
    %1707 = vmatmul.f32.gmra.mxu0 %v1522
    %v1708 = vpop.f32.mrf.mxu0
    %v1709 = vadd.f32 0.0, %v1708
    %1710 = vmatmul.f32.gmra.mxu0 %v1523
    %v1711 = vpop.f32.mrf.mxu0
    %v1712 = vadd.f32 0.0, %v1711
    %1713 = vmatmul.f32.gmra.mxu0 %v1524
    %v1714 = vpop.f32.mrf.mxu0
    %v1715 = vadd.f32 0.0, %v1714
    %1716 = vmatmul.f32.gmra.mxu0 %v1525
    %v1717 = vpop.f32.mrf.mxu0
    %v1718 = vadd.f32 0.0, %v1717
    %1719 = vmatmul.f32.gmra.mxu0 %v1526
    %v1720 = vpop.f32.mrf.mxu0
    %v1721 = vadd.f32 0.0, %v1720
    %1722 = vmatmul.f32.gmra.mxu0 %v1527
    %v1723 = vpop.f32.mrf.mxu0
    %v1724 = vadd.f32 0.0, %v1723
    %1725 = vmatmul.f32.gmra.mxu0 %v1528
    %v1726 = vpop.f32.mrf.mxu0
    %v1727 = vadd.f32 0.0, %v1726
    %1728 = vmatmul.f32.gmra.mxu0 %v1529
    %v1729 = vpop.f32.mrf.mxu0
    %v1730 = vadd.f32 0.0, %v1729
    %1731 = vmatmul.f32.gmra.mxu0 %v1530
    %v1732 = vpop.f32.mrf.mxu0
    %v1733 = vadd.f32 0.0, %v1732
    %1734 = vmatmul.f32.gmra.mxu0 %v1531
    %v1735 = vpop.f32.mrf.mxu0
    %v1736 = vadd.f32 0.0, %v1735
    %1737 = vmatmul.f32.gmra.mxu0 %v1532
    %v1738 = vpop.f32.mrf.mxu0
    %v1739 = vadd.f32 0.0, %v1738
    %1740 = vmatmul.f32.gmra.mxu0 %v1533
    %v1741 = vpop.f32.mrf.mxu0
    %v1742 = vadd.f32 0.0, %v1741
    %1743 = vmatmul.f32.gmra.mxu0 %v1534
    %v1744 = vpop.f32.mrf.mxu0
    %v1745 = vadd.f32 0.0, %v1744
    %1746 = vmatmul.f32.gmra.mxu0 %v1535
    %v1747 = vpop.f32.mrf.mxu0
    %v1748 = vadd.f32 0.0, %v1747
    %1749 = vmatmul.f32.gmra.mxu0 %v1536
    %v1750 = vpop.f32.mrf.mxu0
    %v1751 = vadd.f32 0.0, %v1750
    %1752 = vmatmul.f32.gmra.mxu0 %v1537
    %v1753 = vpop.f32.mrf.mxu0
    %v1754 = vadd.f32 0.0, %v1753
    %1755 = vmatmul.f32.gmra.mxu0 %v1538
    %v1756 = vpop.f32.mrf.mxu0
    %v1757 = vadd.f32 0.0, %v1756
    %1758 = vmatmul.f32.gmra.mxu0 %v1539
    %v1759 = vpop.f32.mrf.mxu0
    %v1760 = vadd.f32 0.0, %v1759
    %1761 = vmatmul.f32.gmra.mxu0 %v1540
    %v1762 = vpop.f32.mrf.mxu0
    %v1763 = vadd.f32 0.0, %v1762
    %1764 = vmatmul.f32.gmra.mxu0 %v1541
    %v1765 = vpop.f32.mrf.mxu0
    %v1766 = vadd.f32 0.0, %v1765
    %1767 = vdwg.mxu0
    %v1768 = vadd.f32 %v1414, %v1577
    %v1769 = vadd.f32 %v1415, %v1580
    %v1770 = vadd.f32 %v1416, %v1583
    %v1771 = vadd.f32 %v1417, %v1586
    %v1772 = vadd.f32 %v1418, %v1589
    %v1773 = vadd.f32 %v1419, %v1592
    %v1774 = vadd.f32 %v1420, %v1595
    %v1775 = vadd.f32 %v1421, %v1598
    %v1776 = vadd.f32 %v1422, %v1601
    %v1777 = vadd.f32 %v1423, %v1604
    %v1778 = vadd.f32 %v1424, %v1607
    %v1779 = vadd.f32 %v1425, %v1610
    %v1780 = vadd.f32 %v1426, %v1613
    %v1781 = vadd.f32 %v1427, %v1616
    %v1782 = vadd.f32 %v1428, %v1619
    %v1783 = vadd.f32 %v1429, %v1622
    %v1784 = vadd.f32 %v1430, %v1625
    %v1785 = vadd.f32 %v1431, %v1628
    %v1786 = vadd.f32 %v1432, %v1631
    %v1787 = vadd.f32 %v1433, %v1634
    %v1788 = vadd.f32 %v1434, %v1637
    %v1789 = vadd.f32 %v1435, %v1640
    %v1790 = vadd.f32 %v1436, %v1643
    %v1791 = vadd.f32 %v1437, %v1646
    %v1792 = vadd.f32 %v1438, %v1649
    %v1793 = vadd.f32 %v1439, %v1652
    %v1794 = vadd.f32 %v1440, %v1655
    %v1795 = vadd.f32 %v1441, %v1658
    %v1796 = vadd.f32 %v1442, %v1661
    %v1797 = vadd.f32 %v1443, %v1664
    %v1798 = vadd.f32 %v1444, %v1667
    %v1799 = vadd.f32 %v1445, %v1670
    %v1800 = vadd.f32 %v1446, %v1673
    %v1801 = vadd.f32 %v1447, %v1676
    %v1802 = vadd.f32 %v1448, %v1679
    %v1803 = vadd.f32 %v1449, %v1682
    %v1804 = vadd.f32 %v1450, %v1685
    %v1805 = vadd.f32 %v1451, %v1688
    %v1806 = vadd.f32 %v1452, %v1691
    %v1807 = vadd.f32 %v1453, %v1694
    %v1808 = vadd.f32 %v1454, %v1697
    %v1809 = vadd.f32 %v1455, %v1700
    %v1810 = vadd.f32 %v1456, %v1703
    %v1811 = vadd.f32 %v1457, %v1706
    %v1812 = vadd.f32 %v1458, %v1709
    %v1813 = vadd.f32 %v1459, %v1712
    %v1814 = vadd.f32 %v1460, %v1715
    %v1815 = vadd.f32 %v1461, %v1718
    %v1816 = vadd.f32 %v1462, %v1721
    %v1817 = vadd.f32 %v1463, %v1724
    %v1818 = vadd.f32 %v1464, %v1727
    %v1819 = vadd.f32 %v1465, %v1730
    %v1820 = vadd.f32 %v1466, %v1733
    %v1821 = vadd.f32 %v1467, %v1736
    %v1822 = vadd.f32 %v1468, %v1739
    %v1823 = vadd.f32 %v1469, %v1742
    %v1824 = vadd.f32 %v1470, %v1745
    %v1825 = vadd.f32 %v1471, %v1748
    %v1826 = vadd.f32 %v1472, %v1751
    %v1827 = vadd.f32 %v1473, %v1754
    %v1828 = vadd.f32 %v1474, %v1757
    %v1829 = vadd.f32 %v1475, %v1760
    %v1830 = vadd.f32 %v1476, %v1763
    %v1831 = vadd.f32 %v1477, %v1766
    %v1832 = vld [vmem:[%s480 + $0x1] sm:$0xff]
    %v1833 = vld [vmem:[%s480 + $0x9] sm:$0xff]
    %v1834 = vld [vmem:[%s480 + $0x19] sm:$0xff]
    %v1835 = vld [vmem:[%s480 + $0x21] sm:$0xff]
    %v1836 = vld [vmem:[%s480 + $0x31] sm:$0xff]
    %v1837 = vld [vmem:[%s480 + $0x39] sm:$0xff]
    %v1838 = vld [vmem:[%s480 + $0x49] sm:$0xff]
    %v1839 = vld [vmem:[%s480 + $0x51] sm:$0xff]
    %v1840 = vld [vmem:[%s480 + $0x61] sm:$0xff]
    %v1841 = vld [vmem:[%s480 + $0x69] sm:$0xff]
    %v1842 = vld [vmem:[%s480 + $0x79] sm:$0xff]
    %v1843 = vld [vmem:[%s480 + $0x81] sm:$0xff]
    %v1844 = vld [vmem:[%s480 + $0x91] sm:$0xff]
    %v1845 = vld [vmem:[%s480 + $0x99] sm:$0xff]
    %v1846 = vld [vmem:[%s480 + $0xa9] sm:$0xff]
    %v1847 = vld [vmem:[%s480 + $0xb1] sm:$0xff]
    %v1848 = vld [vmem:[%s480 + $0xc1] sm:$0xff]
    %v1849 = vld [vmem:[%s480 + $0xc9] sm:$0xff]
    %v1850 = vld [vmem:[%s480 + $0xd9] sm:$0xff]
    %v1851 = vld [vmem:[%s480 + $0xe1] sm:$0xff]
    %v1852 = vld [vmem:[%s480 + $0xf1] sm:$0xff]
    %v1853 = vld [vmem:[%s480 + $0xf9] sm:$0xff]
    %v1854 = vld [vmem:[%s480 + $0x109] sm:$0xff]
    %v1855 = vld [vmem:[%s480 + $0x111] sm:$0xff]
    %v1856 = vld [vmem:[%s480 + $0x121] sm:$0xff]
    %v1857 = vld [vmem:[%s480 + $0x129] sm:$0xff]
    %v1858 = vld [vmem:[%s480 + $0x139] sm:$0xff]
    %v1859 = vld [vmem:[%s480 + $0x141] sm:$0xff]
    %v1860 = vld [vmem:[%s480 + $0x151] sm:$0xff]
    %v1861 = vld [vmem:[%s480 + $0x159] sm:$0xff]
    %v1862 = vld [vmem:[%s480 + $0x169] sm:$0xff]
    %v1863 = vld [vmem:[%s480 + $0x171] sm:$0xff]
    %v1864 = vld [vmem:[%s480 + $0x1b1] sm:$0xff]
    %v1865 = vld [vmem:[%s480 + $0x1b9] sm:$0xff]
    %v1866 = vld [vmem:[%s480 + $0x1c9] sm:$0xff]
    %v1867 = vld [vmem:[%s480 + $0x1d1] sm:$0xff]
    %v1868 = vld [vmem:[%s480 + $0x1e1] sm:$0xff]
    %v1869 = vld [vmem:[%s480 + $0x1e9] sm:$0xff]
    %v1870 = vld [vmem:[%s480 + $0x1f9] sm:$0xff]
    %v1871 = vld [vmem:[%s480 + $0x201] sm:$0xff]
    %v1872 = vld [vmem:[%s480 + $0x211] sm:$0xff]
    %v1873 = vld [vmem:[%s480 + $0x219] sm:$0xff]
    %v1874 = vld [vmem:[%s480 + $0x229] sm:$0xff]
    %v1875 = vld [vmem:[%s480 + $0x231] sm:$0xff]
    %v1876 = vld [vmem:[%s480 + $0x241] sm:$0xff]
    %v1877 = vld [vmem:[%s480 + $0x249] sm:$0xff]
    %v1878 = vld [vmem:[%s480 + $0x259] sm:$0xff]
    %v1879 = vld [vmem:[%s480 + $0x261] sm:$0xff]
    %v1880 = vld [vmem:[%s480 + $0x271] sm:$0xff]
    %v1881 = vld [vmem:[%s480 + $0x279] sm:$0xff]
    %v1882 = vld [vmem:[%s480 + $0x289] sm:$0xff]
    %v1883 = vld [vmem:[%s480 + $0x291] sm:$0xff]
    %v1884 = vld [vmem:[%s480 + $0x2a1] sm:$0xff]
    %v1885 = vld [vmem:[%s480 + $0x2a9] sm:$0xff]
    %v1886 = vld [vmem:[%s480 + $0x2b9] sm:$0xff]
    %v1887 = vld [vmem:[%s480 + $0x2c1] sm:$0xff]
    %v1888 = vld [vmem:[%s480 + $0x2d1] sm:$0xff]
    %v1889 = vld [vmem:[%s480 + $0x2d9] sm:$0xff]
    %v1890 = vld [vmem:[%s480 + $0x2e9] sm:$0xff]
    %v1891 = vld [vmem:[%s480 + $0x2f1] sm:$0xff]
    %v1892 = vld [vmem:[%s480 + $0x301] sm:$0xff]
    %v1893 = vld [vmem:[%s480 + $0x309] sm:$0xff]
    %v1894 = vld [vmem:[%s480 + $0x319] sm:$0xff]
    %v1895 = vld [vmem:[%s480 + $0x321] sm:$0xff]
    %s1896 = scalar_lea.vmem [#allocation6], 512
    %v1897 = vld [vmem:[%s1896] sm:$0xff]
    %v1898 = vld [vmem:[%s1896 + $0x8] sm:$0xff]
    %v1899 = vld [vmem:[%s1896 + $0x10] sm:$0xff]
    %v1900 = vld [vmem:[%s1896 + $0x18] sm:$0xff]
    %v1901 = vld [vmem:[%s1896 + $0x20] sm:$0xff]
    %v1902 = vld [vmem:[%s1896 + $0x28] sm:$0xff]
    %v1903 = vld [vmem:[%s1896 + $0x30] sm:$0xff]
    %v1904 = vld [vmem:[%s1896 + $0x38] sm:$0xff]
    %v1905 = vld [vmem:[%s1896 + $0x40] sm:$0xff]
    %v1906 = vld [vmem:[%s1896 + $0x48] sm:$0xff]
    %v1907 = vld [vmem:[%s1896 + $0x50] sm:$0xff]
    %v1908 = vld [vmem:[%s1896 + $0x58] sm:$0xff]
    %v1909 = vld [vmem:[%s1896 + $0x60] sm:$0xff]
    %v1910 = vld [vmem:[%s1896 + $0x68] sm:$0xff]
    %v1911 = vld [vmem:[%s1896 + $0x70] sm:$0xff]
    %v1912 = vld [vmem:[%s1896 + $0x78] sm:$0xff]
    %1913 = vmatpush.msra.mxu0 %v1912
    %1914 = vmatpush.msra.mxu0 %v1911
    %1915 = vmatpush.msra.mxu0 %v1910
    %1916 = vmatpush.msra.mxu0 %v1909
    %1917 = vmatpush.msra.mxu0 %v1908
    %1918 = vmatpush.msra.mxu0 %v1907
    %1919 = vmatpush.msra.mxu0 %v1906
    %1920 = vmatpush.msra.mxu0 %v1905
    %1921 = vmatpush.msra.mxu0 %v1904
    %1922 = vmatpush.msra.mxu0 %v1903
    %1923 = vmatpush.msra.mxu0 %v1902
    %1924 = vmatpush.msra.mxu0 %v1901
    %1925 = vmatpush.msra.mxu0 %v1900
    %1926 = vmatpush.msra.mxu0 %v1899
    %1927 = vmatpush.msra.mxu0 %v1898
    %1928 = vmatpush.msra.mxu0 %v1897
    %1929 = vmatmul.f32.gmra.mxu0 %v1832
    %v1930 = vpop.f32.mrf.mxu0
    %v1931 = vadd.f32 0.0, %v1930
    %1932 = vmatmul.f32.gmra.mxu0 %v1833
    %v1933 = vpop.f32.mrf.mxu0
    %v1934 = vadd.f32 0.0, %v1933
    %1935 = vmatmul.f32.gmra.mxu0 %v1834
    %v1936 = vpop.f32.mrf.mxu0
    %v1937 = vadd.f32 0.0, %v1936
    %1938 = vmatmul.f32.gmra.mxu0 %v1835
    %v1939 = vpop.f32.mrf.mxu0
    %v1940 = vadd.f32 0.0, %v1939
    %1941 = vmatmul.f32.gmra.mxu0 %v1836
    %v1942 = vpop.f32.mrf.mxu0
    %v1943 = vadd.f32 0.0, %v1942
    %1944 = vmatmul.f32.gmra.mxu0 %v1837
    %v1945 = vpop.f32.mrf.mxu0
    %v1946 = vadd.f32 0.0, %v1945
    %1947 = vmatmul.f32.gmra.mxu0 %v1838
    %v1948 = vpop.f32.mrf.mxu0
    %v1949 = vadd.f32 0.0, %v1948
    %1950 = vmatmul.f32.gmra.mxu0 %v1839
    %v1951 = vpop.f32.mrf.mxu0
    %v1952 = vadd.f32 0.0, %v1951
    %1953 = vmatmul.f32.gmra.mxu0 %v1840
    %v1954 = vpop.f32.mrf.mxu0
    %v1955 = vadd.f32 0.0, %v1954
    %1956 = vmatmul.f32.gmra.mxu0 %v1841
    %v1957 = vpop.f32.mrf.mxu0
    %v1958 = vadd.f32 0.0, %v1957
    %1959 = vmatmul.f32.gmra.mxu0 %v1842
    %v1960 = vpop.f32.mrf.mxu0
    %v1961 = vadd.f32 0.0, %v1960
    %1962 = vmatmul.f32.gmra.mxu0 %v1843
    %v1963 = vpop.f32.mrf.mxu0
    %v1964 = vadd.f32 0.0, %v1963
    %1965 = vmatmul.f32.gmra.mxu0 %v1844
    %v1966 = vpop.f32.mrf.mxu0
    %v1967 = vadd.f32 0.0, %v1966
    %1968 = vmatmul.f32.gmra.mxu0 %v1845
    %v1969 = vpop.f32.mrf.mxu0
    %v1970 = vadd.f32 0.0, %v1969
    %1971 = vmatmul.f32.gmra.mxu0 %v1846
    %v1972 = vpop.f32.mrf.mxu0
    %v1973 = vadd.f32 0.0, %v1972
    %1974 = vmatmul.f32.gmra.mxu0 %v1847
    %v1975 = vpop.f32.mrf.mxu0
    %v1976 = vadd.f32 0.0, %v1975
    %1977 = vmatmul.f32.gmra.mxu0 %v1848
    %v1978 = vpop.f32.mrf.mxu0
    %v1979 = vadd.f32 0.0, %v1978
    %1980 = vmatmul.f32.gmra.mxu0 %v1849
    %v1981 = vpop.f32.mrf.mxu0
    %v1982 = vadd.f32 0.0, %v1981
    %1983 = vmatmul.f32.gmra.mxu0 %v1850
    %v1984 = vpop.f32.mrf.mxu0
    %v1985 = vadd.f32 0.0, %v1984
    %1986 = vmatmul.f32.gmra.mxu0 %v1851
    %v1987 = vpop.f32.mrf.mxu0
    %v1988 = vadd.f32 0.0, %v1987
    %1989 = vmatmul.f32.gmra.mxu0 %v1852
    %v1990 = vpop.f32.mrf.mxu0
    %v1991 = vadd.f32 0.0, %v1990
    %1992 = vmatmul.f32.gmra.mxu0 %v1853
    %v1993 = vpop.f32.mrf.mxu0
    %v1994 = vadd.f32 0.0, %v1993
    %1995 = vmatmul.f32.gmra.mxu0 %v1854
    %v1996 = vpop.f32.mrf.mxu0
    %v1997 = vadd.f32 0.0, %v1996
    %1998 = vmatmul.f32.gmra.mxu0 %v1855
    %v1999 = vpop.f32.mrf.mxu0
    %v2000 = vadd.f32 0.0, %v1999
    %2001 = vmatmul.f32.gmra.mxu0 %v1856
    %v2002 = vpop.f32.mrf.mxu0
    %v2003 = vadd.f32 0.0, %v2002
    %2004 = vmatmul.f32.gmra.mxu0 %v1857
    %v2005 = vpop.f32.mrf.mxu0
    %v2006 = vadd.f32 0.0, %v2005
    %2007 = vmatmul.f32.gmra.mxu0 %v1858
    %v2008 = vpop.f32.mrf.mxu0
    %v2009 = vadd.f32 0.0, %v2008
    %2010 = vmatmul.f32.gmra.mxu0 %v1859
    %v2011 = vpop.f32.mrf.mxu0
    %v2012 = vadd.f32 0.0, %v2011
    %2013 = vmatmul.f32.gmra.mxu0 %v1860
    %v2014 = vpop.f32.mrf.mxu0
    %v2015 = vadd.f32 0.0, %v2014
    %2016 = vmatmul.f32.gmra.mxu0 %v1861
    %v2017 = vpop.f32.mrf.mxu0
    %v2018 = vadd.f32 0.0, %v2017
    %2019 = vmatmul.f32.gmra.mxu0 %v1862
    %v2020 = vpop.f32.mrf.mxu0
    %v2021 = vadd.f32 0.0, %v2020
    %2022 = vmatmul.f32.gmra.mxu0 %v1863
    %v2023 = vpop.f32.mrf.mxu0
    %v2024 = vadd.f32 0.0, %v2023
    %2025 = vmatmul.f32.gmra.mxu0 %v1864
    %v2026 = vpop.f32.mrf.mxu0
    %v2027 = vadd.f32 0.0, %v2026
    %2028 = vmatmul.f32.gmra.mxu0 %v1865
    %v2029 = vpop.f32.mrf.mxu0
    %v2030 = vadd.f32 0.0, %v2029
    %2031 = vmatmul.f32.gmra.mxu0 %v1866
    %v2032 = vpop.f32.mrf.mxu0
    %v2033 = vadd.f32 0.0, %v2032
    %2034 = vmatmul.f32.gmra.mxu0 %v1867
    %v2035 = vpop.f32.mrf.mxu0
    %v2036 = vadd.f32 0.0, %v2035
    %2037 = vmatmul.f32.gmra.mxu0 %v1868
    %v2038 = vpop.f32.mrf.mxu0
    %v2039 = vadd.f32 0.0, %v2038
    %2040 = vmatmul.f32.gmra.mxu0 %v1869
    %v2041 = vpop.f32.mrf.mxu0
    %v2042 = vadd.f32 0.0, %v2041
    %2043 = vmatmul.f32.gmra.mxu0 %v1870
    %v2044 = vpop.f32.mrf.mxu0
    %v2045 = vadd.f32 0.0, %v2044
    %2046 = vmatmul.f32.gmra.mxu0 %v1871
    %v2047 = vpop.f32.mrf.mxu0
    %v2048 = vadd.f32 0.0, %v2047
    %2049 = vmatmul.f32.gmra.mxu0 %v1872
    %v2050 = vpop.f32.mrf.mxu0
    %v2051 = vadd.f32 0.0, %v2050
    %2052 = vmatmul.f32.gmra.mxu0 %v1873
    %v2053 = vpop.f32.mrf.mxu0
    %v2054 = vadd.f32 0.0, %v2053
    %2055 = vmatmul.f32.gmra.mxu0 %v1874
    %v2056 = vpop.f32.mrf.mxu0
    %v2057 = vadd.f32 0.0, %v2056
    %2058 = vmatmul.f32.gmra.mxu0 %v1875
    %v2059 = vpop.f32.mrf.mxu0
    %v2060 = vadd.f32 0.0, %v2059
    %2061 = vmatmul.f32.gmra.mxu0 %v1876
    %v2062 = vpop.f32.mrf.mxu0
    %v2063 = vadd.f32 0.0, %v2062
    %2064 = vmatmul.f32.gmra.mxu0 %v1877
    %v2065 = vpop.f32.mrf.mxu0
    %v2066 = vadd.f32 0.0, %v2065
    %2067 = vmatmul.f32.gmra.mxu0 %v1878
    %v2068 = vpop.f32.mrf.mxu0
    %v2069 = vadd.f32 0.0, %v2068
    %2070 = vmatmul.f32.gmra.mxu0 %v1879
    %v2071 = vpop.f32.mrf.mxu0
    %v2072 = vadd.f32 0.0, %v2071
    %2073 = vmatmul.f32.gmra.mxu0 %v1880
    %v2074 = vpop.f32.mrf.mxu0
    %v2075 = vadd.f32 0.0, %v2074
    %2076 = vmatmul.f32.gmra.mxu0 %v1881
    %v2077 = vpop.f32.mrf.mxu0
    %v2078 = vadd.f32 0.0, %v2077
    %2079 = vmatmul.f32.gmra.mxu0 %v1882
    %v2080 = vpop.f32.mrf.mxu0
    %v2081 = vadd.f32 0.0, %v2080
    %2082 = vmatmul.f32.gmra.mxu0 %v1883
    %v2083 = vpop.f32.mrf.mxu0
    %v2084 = vadd.f32 0.0, %v2083
    %2085 = vmatmul.f32.gmra.mxu0 %v1884
    %v2086 = vpop.f32.mrf.mxu0
    %v2087 = vadd.f32 0.0, %v2086
    %2088 = vmatmul.f32.gmra.mxu0 %v1885
    %v2089 = vpop.f32.mrf.mxu0
    %v2090 = vadd.f32 0.0, %v2089
    %2091 = vmatmul.f32.gmra.mxu0 %v1886
    %v2092 = vpop.f32.mrf.mxu0
    %v2093 = vadd.f32 0.0, %v2092
    %2094 = vmatmul.f32.gmra.mxu0 %v1887
    %v2095 = vpop.f32.mrf.mxu0
    %v2096 = vadd.f32 0.0, %v2095
    %2097 = vmatmul.f32.gmra.mxu0 %v1888
    %v2098 = vpop.f32.mrf.mxu0
    %v2099 = vadd.f32 0.0, %v2098
    %2100 = vmatmul.f32.gmra.mxu0 %v1889
    %v2101 = vpop.f32.mrf.mxu0
    %v2102 = vadd.f32 0.0, %v2101
    %2103 = vmatmul.f32.gmra.mxu0 %v1890
    %v2104 = vpop.f32.mrf.mxu0
    %v2105 = vadd.f32 0.0, %v2104
    %2106 = vmatmul.f32.gmra.mxu0 %v1891
    %v2107 = vpop.f32.mrf.mxu0
    %v2108 = vadd.f32 0.0, %v2107
    %2109 = vmatmul.f32.gmra.mxu0 %v1892
    %v2110 = vpop.f32.mrf.mxu0
    %v2111 = vadd.f32 0.0, %v2110
    %2112 = vmatmul.f32.gmra.mxu0 %v1893
    %v2113 = vpop.f32.mrf.mxu0
    %v2114 = vadd.f32 0.0, %v2113
    %2115 = vmatmul.f32.gmra.mxu0 %v1894
    %v2116 = vpop.f32.mrf.mxu0
    %v2117 = vadd.f32 0.0, %v2116
    %2118 = vmatmul.f32.gmra.mxu0 %v1895
    %v2119 = vpop.f32.mrf.mxu0
    %v2120 = vadd.f32 0.0, %v2119
    %2121 = vdwg.mxu0
    %v2122 = vadd.f32 %v1768, %v1931
    %v2123 = vadd.f32 %v1769, %v1934
    %v2124 = vadd.f32 %v1770, %v1937
    %v2125 = vadd.f32 %v1771, %v1940
    %v2126 = vadd.f32 %v1772, %v1943
    %v2127 = vadd.f32 %v1773, %v1946
    %v2128 = vadd.f32 %v1774, %v1949
    %v2129 = vadd.f32 %v1775, %v1952
    %v2130 = vadd.f32 %v1776, %v1955
    %v2131 = vadd.f32 %v1777, %v1958
    %v2132 = vadd.f32 %v1778, %v1961
    %v2133 = vadd.f32 %v1779, %v1964
    %v2134 = vadd.f32 %v1780, %v1967
    %v2135 = vadd.f32 %v1781, %v1970
    %v2136 = vadd.f32 %v1782, %v1973
    %v2137 = vadd.f32 %v1783, %v1976
    %v2138 = vadd.f32 %v1784, %v1979
    %v2139 = vadd.f32 %v1785, %v1982
    %v2140 = vadd.f32 %v1786, %v1985
    %v2141 = vadd.f32 %v1787, %v1988
    %v2142 = vadd.f32 %v1788, %v1991
    %v2143 = vadd.f32 %v1789, %v1994
    %v2144 = vadd.f32 %v1790, %v1997
    %v2145 = vadd.f32 %v1791, %v2000
    %v2146 = vadd.f32 %v1792, %v2003
    %v2147 = vadd.f32 %v1793, %v2006
    %v2148 = vadd.f32 %v1794, %v2009
    %v2149 = vadd.f32 %v1795, %v2012
    %v2150 = vadd.f32 %v1796, %v2015
    %v2151 = vadd.f32 %v1797, %v2018
    %v2152 = vadd.f32 %v1798, %v2021
    %v2153 = vadd.f32 %v1799, %v2024
    %v2154 = vadd.f32 %v1800, %v2027
    %v2155 = vadd.f32 %v1801, %v2030
    %v2156 = vadd.f32 %v1802, %v2033
    %v2157 = vadd.f32 %v1803, %v2036
    %v2158 = vadd.f32 %v1804, %v2039
    %v2159 = vadd.f32 %v1805, %v2042
    %v2160 = vadd.f32 %v1806, %v2045
    %v2161 = vadd.f32 %v1807, %v2048
    %v2162 = vadd.f32 %v1808, %v2051
    %v2163 = vadd.f32 %v1809, %v2054
    %v2164 = vadd.f32 %v1810, %v2057
    %v2165 = vadd.f32 %v1811, %v2060
    %v2166 = vadd.f32 %v1812, %v2063
    %v2167 = vadd.f32 %v1813, %v2066
    %v2168 = vadd.f32 %v1814, %v2069
    %v2169 = vadd.f32 %v1815, %v2072
    %v2170 = vadd.f32 %v1816, %v2075
    %v2171 = vadd.f32 %v1817, %v2078
    %v2172 = vadd.f32 %v1818, %v2081
    %v2173 = vadd.f32 %v1819, %v2084
    %v2174 = vadd.f32 %v1820, %v2087
    %v2175 = vadd.f32 %v1821, %v2090
    %v2176 = vadd.f32 %v1822, %v2093
    %v2177 = vadd.f32 %v1823, %v2096
    %v2178 = vadd.f32 %v1824, %v2099
    %v2179 = vadd.f32 %v1825, %v2102
    %v2180 = vadd.f32 %v1826, %v2105
    %v2181 = vadd.f32 %v1827, %v2108
    %v2182 = vadd.f32 %v1828, %v2111
    %v2183 = vadd.f32 %v1829, %v2114
    %v2184 = vadd.f32 %v1830, %v2117
    %v2185 = vadd.f32 %v1831, %v2120
    %v2186 = vld [vmem:[%s480 + $0x2] sm:$0xff]
    %v2187 = vld [vmem:[%s480 + $0xa] sm:$0xff]
    %v2188 = vld [vmem:[%s480 + $0x1a] sm:$0xff]
    %v2189 = vld [vmem:[%s480 + $0x22] sm:$0xff]
    %v2190 = vld [vmem:[%s480 + $0x32] sm:$0xff]
    %v2191 = vld [vmem:[%s480 + $0x3a] sm:$0xff]
    %v2192 = vld [vmem:[%s480 + $0x4a] sm:$0xff]
    %v2193 = vld [vmem:[%s480 + $0x52] sm:$0xff]
    %v2194 = vld [vmem:[%s480 + $0x62] sm:$0xff]
    %v2195 = vld [vmem:[%s480 + $0x6a] sm:$0xff]
    %v2196 = vld [vmem:[%s480 + $0x7a] sm:$0xff]
    %v2197 = vld [vmem:[%s480 + $0x82] sm:$0xff]
    %v2198 = vld [vmem:[%s480 + $0x92] sm:$0xff]
    %v2199 = vld [vmem:[%s480 + $0x9a] sm:$0xff]
    %v2200 = vld [vmem:[%s480 + $0xaa] sm:$0xff]
    %v2201 = vld [vmem:[%s480 + $0xb2] sm:$0xff]
    %v2202 = vld [vmem:[%s480 + $0xc2] sm:$0xff]
    %v2203 = vld [vmem:[%s480 + $0xca] sm:$0xff]
    %v2204 = vld [vmem:[%s480 + $0xda] sm:$0xff]
    %v2205 = vld [vmem:[%s480 + $0xe2] sm:$0xff]
    %v2206 = vld [vmem:[%s480 + $0xf2] sm:$0xff]
    %v2207 = vld [vmem:[%s480 + $0xfa] sm:$0xff]
    %v2208 = vld [vmem:[%s480 + $0x10a] sm:$0xff]
    %v2209 = vld [vmem:[%s480 + $0x112] sm:$0xff]
    %v2210 = vld [vmem:[%s480 + $0x122] sm:$0xff]
    %v2211 = vld [vmem:[%s480 + $0x12a] sm:$0xff]
    %v2212 = vld [vmem:[%s480 + $0x13a] sm:$0xff]
    %v2213 = vld [vmem:[%s480 + $0x142] sm:$0xff]
    %v2214 = vld [vmem:[%s480 + $0x152] sm:$0xff]
    %v2215 = vld [vmem:[%s480 + $0x15a] sm:$0xff]
    %v2216 = vld [vmem:[%s480 + $0x16a] sm:$0xff]
    %v2217 = vld [vmem:[%s480 + $0x172] sm:$0xff]
    %v2218 = vld [vmem:[%s480 + $0x1b2] sm:$0xff]
    %v2219 = vld [vmem:[%s480 + $0x1ba] sm:$0xff]
    %v2220 = vld [vmem:[%s480 + $0x1ca] sm:$0xff]
    %v2221 = vld [vmem:[%s480 + $0x1d2] sm:$0xff]
    %v2222 = vld [vmem:[%s480 + $0x1e2] sm:$0xff]
    %v2223 = vld [vmem:[%s480 + $0x1ea] sm:$0xff]
    %v2224 = vld [vmem:[%s480 + $0x1fa] sm:$0xff]
    %v2225 = vld [vmem:[%s480 + $0x202] sm:$0xff]
    %v2226 = vld [vmem:[%s480 + $0x212] sm:$0xff]
    %v2227 = vld [vmem:[%s480 + $0x21a] sm:$0xff]
    %v2228 = vld [vmem:[%s480 + $0x22a] sm:$0xff]
    %v2229 = vld [vmem:[%s480 + $0x232] sm:$0xff]
    %v2230 = vld [vmem:[%s480 + $0x242] sm:$0xff]
    %v2231 = vld [vmem:[%s480 + $0x24a] sm:$0xff]
    %v2232 = vld [vmem:[%s480 + $0x25a] sm:$0xff]
    %v2233 = vld [vmem:[%s480 + $0x262] sm:$0xff]
    %v2234 = vld [vmem:[%s480 + $0x272] sm:$0xff]
    %v2235 = vld [vmem:[%s480 + $0x27a] sm:$0xff]
    %v2236 = vld [vmem:[%s480 + $0x28a] sm:$0xff]
    %v2237 = vld [vmem:[%s480 + $0x292] sm:$0xff]
    %v2238 = vld [vmem:[%s480 + $0x2a2] sm:$0xff]
    %v2239 = vld [vmem:[%s480 + $0x2aa] sm:$0xff]
    %v2240 = vld [vmem:[%s480 + $0x2ba] sm:$0xff]
    %v2241 = vld [vmem:[%s480 + $0x2c2] sm:$0xff]
    %v2242 = vld [vmem:[%s480 + $0x2d2] sm:$0xff]
    %v2243 = vld [vmem:[%s480 + $0x2da] sm:$0xff]
    %v2244 = vld [vmem:[%s480 + $0x2ea] sm:$0xff]
    %v2245 = vld [vmem:[%s480 + $0x2f2] sm:$0xff]
    %v2246 = vld [vmem:[%s480 + $0x302] sm:$0xff]
    %v2247 = vld [vmem:[%s480 + $0x30a] sm:$0xff]
    %v2248 = vld [vmem:[%s480 + $0x31a] sm:$0xff]
    %v2249 = vld [vmem:[%s480 + $0x322] sm:$0xff]
    %s2250 = scalar_lea.vmem [#allocation6], 640
    %v2251 = vld [vmem:[%s2250] sm:$0xff]
    %v2252 = vld [vmem:[%s2250 + $0x8] sm:$0xff]
    %v2253 = vld [vmem:[%s2250 + $0x10] sm:$0xff]
    %v2254 = vld [vmem:[%s2250 + $0x18] sm:$0xff]
    %v2255 = vld [vmem:[%s2250 + $0x20] sm:$0xff]
    %v2256 = vld [vmem:[%s2250 + $0x28] sm:$0xff]
    %v2257 = vld [vmem:[%s2250 + $0x30] sm:$0xff]
    %v2258 = vld [vmem:[%s2250 + $0x38] sm:$0xff]
    %v2259 = vld [vmem:[%s2250 + $0x40] sm:$0xff]
    %v2260 = vld [vmem:[%s2250 + $0x48] sm:$0xff]
    %v2261 = vld [vmem:[%s2250 + $0x50] sm:$0xff]
    %v2262 = vld [vmem:[%s2250 + $0x58] sm:$0xff]
    %v2263 = vld [vmem:[%s2250 + $0x60] sm:$0xff]
    %v2264 = vld [vmem:[%s2250 + $0x68] sm:$0xff]
    %v2265 = vld [vmem:[%s2250 + $0x70] sm:$0xff]
    %v2266 = vld [vmem:[%s2250 + $0x78] sm:$0xff]
    %2267 = vmatpush.msra.mxu0 %v2266
    %2268 = vmatpush.msra.mxu0 %v2265
    %2269 = vmatpush.msra.mxu0 %v2264
    %2270 = vmatpush.msra.mxu0 %v2263
    %2271 = vmatpush.msra.mxu0 %v2262
    %2272 = vmatpush.msra.mxu0 %v2261
    %2273 = vmatpush.msra.mxu0 %v2260
    %2274 = vmatpush.msra.mxu0 %v2259
    %2275 = vmatpush.msra.mxu0 %v2258
    %2276 = vmatpush.msra.mxu0 %v2257
    %2277 = vmatpush.msra.mxu0 %v2256
    %2278 = vmatpush.msra.mxu0 %v2255
    %2279 = vmatpush.msra.mxu0 %v2254
    %2280 = vmatpush.msra.mxu0 %v2253
    %2281 = vmatpush.msra.mxu0 %v2252
    %2282 = vmatpush.msra.mxu0 %v2251
    %2283 = vmatmul.f32.gmra.mxu0 %v2186
    %v2284 = vpop.f32.mrf.mxu0
    %v2285 = vadd.f32 0.0, %v2284
    %2286 = vmatmul.f32.gmra.mxu0 %v2187
    %v2287 = vpop.f32.mrf.mxu0
    %v2288 = vadd.f32 0.0, %v2287
    %2289 = vmatmul.f32.gmra.mxu0 %v2188
    %v2290 = vpop.f32.mrf.mxu0
    %v2291 = vadd.f32 0.0, %v2290
    %2292 = vmatmul.f32.gmra.mxu0 %v2189
    %v2293 = vpop.f32.mrf.mxu0
    %v2294 = vadd.f32 0.0, %v2293
    %2295 = vmatmul.f32.gmra.mxu0 %v2190
    %v2296 = vpop.f32.mrf.mxu0
    %v2297 = vadd.f32 0.0, %v2296
    %2298 = vmatmul.f32.gmra.mxu0 %v2191
    %v2299 = vpop.f32.mrf.mxu0
    %v2300 = vadd.f32 0.0, %v2299
    %2301 = vmatmul.f32.gmra.mxu0 %v2192
    %v2302 = vpop.f32.mrf.mxu0
    %v2303 = vadd.f32 0.0, %v2302
    %2304 = vmatmul.f32.gmra.mxu0 %v2193
    %v2305 = vpop.f32.mrf.mxu0
    %v2306 = vadd.f32 0.0, %v2305
    %2307 = vmatmul.f32.gmra.mxu0 %v2194
    %v2308 = vpop.f32.mrf.mxu0
    %v2309 = vadd.f32 0.0, %v2308
    %2310 = vmatmul.f32.gmra.mxu0 %v2195
    %v2311 = vpop.f32.mrf.mxu0
    %v2312 = vadd.f32 0.0, %v2311
    %2313 = vmatmul.f32.gmra.mxu0 %v2196
    %v2314 = vpop.f32.mrf.mxu0
    %v2315 = vadd.f32 0.0, %v2314
    %2316 = vmatmul.f32.gmra.mxu0 %v2197
    %v2317 = vpop.f32.mrf.mxu0
    %v2318 = vadd.f32 0.0, %v2317
    %2319 = vmatmul.f32.gmra.mxu0 %v2198
    %v2320 = vpop.f32.mrf.mxu0
    %v2321 = vadd.f32 0.0, %v2320
    %2322 = vmatmul.f32.gmra.mxu0 %v2199
    %v2323 = vpop.f32.mrf.mxu0
    %v2324 = vadd.f32 0.0, %v2323
    %2325 = vmatmul.f32.gmra.mxu0 %v2200
    %v2326 = vpop.f32.mrf.mxu0
    %v2327 = vadd.f32 0.0, %v2326
    %2328 = vmatmul.f32.gmra.mxu0 %v2201
    %v2329 = vpop.f32.mrf.mxu0
    %v2330 = vadd.f32 0.0, %v2329
    %2331 = vmatmul.f32.gmra.mxu0 %v2202
    %v2332 = vpop.f32.mrf.mxu0
    %v2333 = vadd.f32 0.0, %v2332
    %2334 = vmatmul.f32.gmra.mxu0 %v2203
    %v2335 = vpop.f32.mrf.mxu0
    %v2336 = vadd.f32 0.0, %v2335
    %2337 = vmatmul.f32.gmra.mxu0 %v2204
    %v2338 = vpop.f32.mrf.mxu0
    %v2339 = vadd.f32 0.0, %v2338
    %2340 = vmatmul.f32.gmra.mxu0 %v2205
    %v2341 = vpop.f32.mrf.mxu0
    %v2342 = vadd.f32 0.0, %v2341
    %2343 = vmatmul.f32.gmra.mxu0 %v2206
    %v2344 = vpop.f32.mrf.mxu0
    %v2345 = vadd.f32 0.0, %v2344
    %2346 = vmatmul.f32.gmra.mxu0 %v2207
    %v2347 = vpop.f32.mrf.mxu0
    %v2348 = vadd.f32 0.0, %v2347
    %2349 = vmatmul.f32.gmra.mxu0 %v2208
    %v2350 = vpop.f32.mrf.mxu0
    %v2351 = vadd.f32 0.0, %v2350
    %2352 = vmatmul.f32.gmra.mxu0 %v2209
    %v2353 = vpop.f32.mrf.mxu0
    %v2354 = vadd.f32 0.0, %v2353
    %2355 = vmatmul.f32.gmra.mxu0 %v2210
    %v2356 = vpop.f32.mrf.mxu0
    %v2357 = vadd.f32 0.0, %v2356
    %2358 = vmatmul.f32.gmra.mxu0 %v2211
    %v2359 = vpop.f32.mrf.mxu0
    %v2360 = vadd.f32 0.0, %v2359
    %2361 = vmatmul.f32.gmra.mxu0 %v2212
    %v2362 = vpop.f32.mrf.mxu0
    %v2363 = vadd.f32 0.0, %v2362
    %2364 = vmatmul.f32.gmra.mxu0 %v2213
    %v2365 = vpop.f32.mrf.mxu0
    %v2366 = vadd.f32 0.0, %v2365
    %2367 = vmatmul.f32.gmra.mxu0 %v2214
    %v2368 = vpop.f32.mrf.mxu0
    %v2369 = vadd.f32 0.0, %v2368
    %2370 = vmatmul.f32.gmra.mxu0 %v2215
    %v2371 = vpop.f32.mrf.mxu0
    %v2372 = vadd.f32 0.0, %v2371
    %2373 = vmatmul.f32.gmra.mxu0 %v2216
    %v2374 = vpop.f32.mrf.mxu0
    %v2375 = vadd.f32 0.0, %v2374
    %2376 = vmatmul.f32.gmra.mxu0 %v2217
    %v2377 = vpop.f32.mrf.mxu0
    %v2378 = vadd.f32 0.0, %v2377
    %2379 = vmatmul.f32.gmra.mxu0 %v2218
    %v2380 = vpop.f32.mrf.mxu0
    %v2381 = vadd.f32 0.0, %v2380
    %2382 = vmatmul.f32.gmra.mxu0 %v2219
    %v2383 = vpop.f32.mrf.mxu0
    %v2384 = vadd.f32 0.0, %v2383
    %2385 = vmatmul.f32.gmra.mxu0 %v2220
    %v2386 = vpop.f32.mrf.mxu0
    %v2387 = vadd.f32 0.0, %v2386
    %2388 = vmatmul.f32.gmra.mxu0 %v2221
    %v2389 = vpop.f32.mrf.mxu0
    %v2390 = vadd.f32 0.0, %v2389
    %2391 = vmatmul.f32.gmra.mxu0 %v2222
    %v2392 = vpop.f32.mrf.mxu0
    %v2393 = vadd.f32 0.0, %v2392
    %2394 = vmatmul.f32.gmra.mxu0 %v2223
    %v2395 = vpop.f32.mrf.mxu0
    %v2396 = vadd.f32 0.0, %v2395
    %2397 = vmatmul.f32.gmra.mxu0 %v2224
    %v2398 = vpop.f32.mrf.mxu0
    %v2399 = vadd.f32 0.0, %v2398
    %2400 = vmatmul.f32.gmra.mxu0 %v2225
    %v2401 = vpop.f32.mrf.mxu0
    %v2402 = vadd.f32 0.0, %v2401
    %2403 = vmatmul.f32.gmra.mxu0 %v2226
    %v2404 = vpop.f32.mrf.mxu0
    %v2405 = vadd.f32 0.0, %v2404
    %2406 = vmatmul.f32.gmra.mxu0 %v2227
    %v2407 = vpop.f32.mrf.mxu0
    %v2408 = vadd.f32 0.0, %v2407
    %2409 = vmatmul.f32.gmra.mxu0 %v2228
    %v2410 = vpop.f32.mrf.mxu0
    %v2411 = vadd.f32 0.0, %v2410
    %2412 = vmatmul.f32.gmra.mxu0 %v2229
    %v2413 = vpop.f32.mrf.mxu0
    %v2414 = vadd.f32 0.0, %v2413
    %2415 = vmatmul.f32.gmra.mxu0 %v2230
    %v2416 = vpop.f32.mrf.mxu0
    %v2417 = vadd.f32 0.0, %v2416
    %2418 = vmatmul.f32.gmra.mxu0 %v2231
    %v2419 = vpop.f32.mrf.mxu0
    %v2420 = vadd.f32 0.0, %v2419
    %2421 = vmatmul.f32.gmra.mxu0 %v2232
    %v2422 = vpop.f32.mrf.mxu0
    %v2423 = vadd.f32 0.0, %v2422
    %2424 = vmatmul.f32.gmra.mxu0 %v2233
    %v2425 = vpop.f32.mrf.mxu0
    %v2426 = vadd.f32 0.0, %v2425
    %2427 = vmatmul.f32.gmra.mxu0 %v2234
    %v2428 = vpop.f32.mrf.mxu0
    %v2429 = vadd.f32 0.0, %v2428
    %2430 = vmatmul.f32.gmra.mxu0 %v2235
    %v2431 = vpop.f32.mrf.mxu0
    %v2432 = vadd.f32 0.0, %v2431
    %2433 = vmatmul.f32.gmra.mxu0 %v2236
    %v2434 = vpop.f32.mrf.mxu0
    %v2435 = vadd.f32 0.0, %v2434
    %2436 = vmatmul.f32.gmra.mxu0 %v2237
    %v2437 = vpop.f32.mrf.mxu0
    %v2438 = vadd.f32 0.0, %v2437
    %2439 = vmatmul.f32.gmra.mxu0 %v2238
    %v2440 = vpop.f32.mrf.mxu0
    %v2441 = vadd.f32 0.0, %v2440
    %2442 = vmatmul.f32.gmra.mxu0 %v2239
    %v2443 = vpop.f32.mrf.mxu0
    %v2444 = vadd.f32 0.0, %v2443
    %2445 = vmatmul.f32.gmra.mxu0 %v2240
    %v2446 = vpop.f32.mrf.mxu0
    %v2447 = vadd.f32 0.0, %v2446
    %2448 = vmatmul.f32.gmra.mxu0 %v2241
    %v2449 = vpop.f32.mrf.mxu0
    %v2450 = vadd.f32 0.0, %v2449
    %2451 = vmatmul.f32.gmra.mxu0 %v2242
    %v2452 = vpop.f32.mrf.mxu0
    %v2453 = vadd.f32 0.0, %v2452
    %2454 = vmatmul.f32.gmra.mxu0 %v2243
    %v2455 = vpop.f32.mrf.mxu0
    %v2456 = vadd.f32 0.0, %v2455
    %2457 = vmatmul.f32.gmra.mxu0 %v2244
    %v2458 = vpop.f32.mrf.mxu0
    %v2459 = vadd.f32 0.0, %v2458
    %2460 = vmatmul.f32.gmra.mxu0 %v2245
    %v2461 = vpop.f32.mrf.mxu0
    %v2462 = vadd.f32 0.0, %v2461
    %2463 = vmatmul.f32.gmra.mxu0 %v2246
    %v2464 = vpop.f32.mrf.mxu0
    %v2465 = vadd.f32 0.0, %v2464
    %2466 = vmatmul.f32.gmra.mxu0 %v2247
    %v2467 = vpop.f32.mrf.mxu0
    %v2468 = vadd.f32 0.0, %v2467
    %2469 = vmatmul.f32.gmra.mxu0 %v2248
    %v2470 = vpop.f32.mrf.mxu0
    %v2471 = vadd.f32 0.0, %v2470
    %2472 = vmatmul.f32.gmra.mxu0 %v2249
    %v2473 = vpop.f32.mrf.mxu0
    %v2474 = vadd.f32 0.0, %v2473
    %2475 = vdwg.mxu0
    %v2476 = vadd.f32 %v2122, %v2285
    %v2477 = vadd.f32 %v2123, %v2288
    %v2478 = vadd.f32 %v2124, %v2291
    %v2479 = vadd.f32 %v2125, %v2294
    %v2480 = vadd.f32 %v2126, %v2297
    %v2481 = vadd.f32 %v2127, %v2300
    %v2482 = vadd.f32 %v2128, %v2303
    %v2483 = vadd.f32 %v2129, %v2306
    %v2484 = vadd.f32 %v2130, %v2309
    %v2485 = vadd.f32 %v2131, %v2312
    %v2486 = vadd.f32 %v2132, %v2315
    %v2487 = vadd.f32 %v2133, %v2318
    %v2488 = vadd.f32 %v2134, %v2321
    %v2489 = vadd.f32 %v2135, %v2324
    %v2490 = vadd.f32 %v2136, %v2327
    %v2491 = vadd.f32 %v2137, %v2330
    %v2492 = vadd.f32 %v2138, %v2333
    %v2493 = vadd.f32 %v2139, %v2336
    %v2494 = vadd.f32 %v2140, %v2339
    %v2495 = vadd.f32 %v2141, %v2342
    %v2496 = vadd.f32 %v2142, %v2345
    %v2497 = vadd.f32 %v2143, %v2348
    %v2498 = vadd.f32 %v2144, %v2351
    %v2499 = vadd.f32 %v2145, %v2354
    %v2500 = vadd.f32 %v2146, %v2357
    %v2501 = vadd.f32 %v2147, %v2360
    %v2502 = vadd.f32 %v2148, %v2363
    %v2503 = vadd.f32 %v2149, %v2366
    %v2504 = vadd.f32 %v2150, %v2369
    %v2505 = vadd.f32 %v2151, %v2372
    %v2506 = vadd.f32 %v2152, %v2375
    %v2507 = vadd.f32 %v2153, %v2378
    %v2508 = vadd.f32 %v2154, %v2381
    %v2509 = vadd.f32 %v2155, %v2384
    %v2510 = vadd.f32 %v2156, %v2387
    %v2511 = vadd.f32 %v2157, %v2390
    %v2512 = vadd.f32 %v2158, %v2393
    %v2513 = vadd.f32 %v2159, %v2396
    %v2514 = vadd.f32 %v2160, %v2399
    %v2515 = vadd.f32 %v2161, %v2402
    %v2516 = vadd.f32 %v2162, %v2405
    %v2517 = vadd.f32 %v2163, %v2408
    %v2518 = vadd.f32 %v2164, %v2411
    %v2519 = vadd.f32 %v2165, %v2414
    %v2520 = vadd.f32 %v2166, %v2417
    %v2521 = vadd.f32 %v2167, %v2420
    %v2522 = vadd.f32 %v2168, %v2423
    %v2523 = vadd.f32 %v2169, %v2426
    %v2524 = vadd.f32 %v2170, %v2429
    %v2525 = vadd.f32 %v2171, %v2432
    %v2526 = vadd.f32 %v2172, %v2435
    %v2527 = vadd.f32 %v2173, %v2438
    %v2528 = vadd.f32 %v2174, %v2441
    %v2529 = vadd.f32 %v2175, %v2444
    %v2530 = vadd.f32 %v2176, %v2447
    %v2531 = vadd.f32 %v2177, %v2450
    %v2532 = vadd.f32 %v2178, %v2453
    %v2533 = vadd.f32 %v2179, %v2456
    %v2534 = vadd.f32 %v2180, %v2459
    %v2535 = vadd.f32 %v2181, %v2462
    %v2536 = vadd.f32 %v2182, %v2465
    %v2537 = vadd.f32 %v2183, %v2468
    %v2538 = vadd.f32 %v2184, %v2471
    %v2539 = vadd.f32 %v2185, %v2474
    %s2540 = scalar_lea.vmem [#allocation2], 48
    %v2541 = vld [vmem:[%s2540] sm:$0xff]
    %v2542 = vld [vmem:[%s2540 + $0x8] sm:$0xff]
    %v2543 = vld [vmem:[%s2540 + $0x18] sm:$0xff]
    %v2544 = vld [vmem:[%s2540 + $0x20] sm:$0xff]
    %v2545 = vld [vmem:[%s2540 + $0x30] sm:$0xff]
    %v2546 = vld [vmem:[%s2540 + $0x38] sm:$0xff]
    %v2547 = vld [vmem:[%s2540 + $0x48] sm:$0xff]
    %v2548 = vld [vmem:[%s2540 + $0x50] sm:$0xff]
    %v2549 = vld [vmem:[%s2540 + $0x60] sm:$0xff]
    %v2550 = vld [vmem:[%s2540 + $0x68] sm:$0xff]
    %v2551 = vld [vmem:[%s2540 + $0x78] sm:$0xff]
    %v2552 = vld [vmem:[%s2540 + $0x80] sm:$0xff]
    %v2553 = vld [vmem:[%s2540 + $0x90] sm:$0xff]
    %v2554 = vld [vmem:[%s2540 + $0x98] sm:$0xff]
    %v2555 = vld [vmem:[%s2540 + $0xa8] sm:$0xff]
    %v2556 = vld [vmem:[%s2540 + $0xb0] sm:$0xff]
    %v2557 = vld [vmem:[%s2540 + $0xc0] sm:$0xff]
    %v2558 = vld [vmem:[%s2540 + $0xc8] sm:$0xff]
    %v2559 = vld [vmem:[%s2540 + $0xd8] sm:$0xff]
    %v2560 = vld [vmem:[%s2540 + $0xe0] sm:$0xff]
    %v2561 = vld [vmem:[%s2540 + $0xf0] sm:$0xff]
    %v2562 = vld [vmem:[%s2540 + $0xf8] sm:$0xff]
    %v2563 = vld [vmem:[%s2540 + $0x108] sm:$0xff]
    %v2564 = vld [vmem:[%s2540 + $0x110] sm:$0xff]
    %v2565 = vld [vmem:[%s2540 + $0x120] sm:$0xff]
    %v2566 = vld [vmem:[%s2540 + $0x128] sm:$0xff]
    %v2567 = vld [vmem:[%s2540 + $0x138] sm:$0xff]
    %v2568 = vld [vmem:[%s2540 + $0x140] sm:$0xff]
    %v2569 = vld [vmem:[%s2540 + $0x150] sm:$0xff]
    %v2570 = vld [vmem:[%s2540 + $0x158] sm:$0xff]
    %v2571 = vld [vmem:[%s2540 + $0x168] sm:$0xff]
    %v2572 = vld [vmem:[%s2540 + $0x170] sm:$0xff]
    %v2573 = vld [vmem:[%s2540 + $0x1b0] sm:$0xff]
    %v2574 = vld [vmem:[%s2540 + $0x1b8] sm:$0xff]
    %v2575 = vld [vmem:[%s2540 + $0x1c8] sm:$0xff]
    %v2576 = vld [vmem:[%s2540 + $0x1d0] sm:$0xff]
    %v2577 = vld [vmem:[%s2540 + $0x1e0] sm:$0xff]
    %v2578 = vld [vmem:[%s2540 + $0x1e8] sm:$0xff]
    %v2579 = vld [vmem:[%s2540 + $0x1f8] sm:$0xff]
    %v2580 = vld [vmem:[%s2540 + $0x200] sm:$0xff]
    %v2581 = vld [vmem:[%s2540 + $0x210] sm:$0xff]
    %v2582 = vld [vmem:[%s2540 + $0x218] sm:$0xff]
    %v2583 = vld [vmem:[%s2540 + $0x228] sm:$0xff]
    %v2584 = vld [vmem:[%s2540 + $0x230] sm:$0xff]
    %v2585 = vld [vmem:[%s2540 + $0x240] sm:$0xff]
    %v2586 = vld [vmem:[%s2540 + $0x248] sm:$0xff]
    %v2587 = vld [vmem:[%s2540 + $0x258] sm:$0xff]
    %v2588 = vld [vmem:[%s2540 + $0x260] sm:$0xff]
    %v2589 = vld [vmem:[%s2540 + $0x270] sm:$0xff]
    %v2590 = vld [vmem:[%s2540 + $0x278] sm:$0xff]
    %v2591 = vld [vmem:[%s2540 + $0x288] sm:$0xff]
    %v2592 = vld [vmem:[%s2540 + $0x290] sm:$0xff]
    %v2593 = vld [vmem:[%s2540 + $0x2a0] sm:$0xff]
    %v2594 = vld [vmem:[%s2540 + $0x2a8] sm:$0xff]
    %v2595 = vld [vmem:[%s2540 + $0x2b8] sm:$0xff]
    %v2596 = vld [vmem:[%s2540 + $0x2c0] sm:$0xff]
    %v2597 = vld [vmem:[%s2540 + $0x2d0] sm:$0xff]
    %v2598 = vld [vmem:[%s2540 + $0x2d8] sm:$0xff]
    %v2599 = vld [vmem:[%s2540 + $0x2e8] sm:$0xff]
    %v2600 = vld [vmem:[%s2540 + $0x2f0] sm:$0xff]
    %v2601 = vld [vmem:[%s2540 + $0x300] sm:$0xff]
    %v2602 = vld [vmem:[%s2540 + $0x308] sm:$0xff]
    %v2603 = vld [vmem:[%s2540 + $0x318] sm:$0xff]
    %v2604 = vld [vmem:[%s2540 + $0x320] sm:$0xff]
    %s2605 = scalar_lea.vmem [#allocation6], 768
    %v2606 = vld [vmem:[%s2605] sm:$0xff]
    %v2607 = vld [vmem:[%s2605 + $0x8] sm:$0xff]
    %v2608 = vld [vmem:[%s2605 + $0x10] sm:$0xff]
    %v2609 = vld [vmem:[%s2605 + $0x18] sm:$0xff]
    %v2610 = vld [vmem:[%s2605 + $0x20] sm:$0xff]
    %v2611 = vld [vmem:[%s2605 + $0x28] sm:$0xff]
    %v2612 = vld [vmem:[%s2605 + $0x30] sm:$0xff]
    %v2613 = vld [vmem:[%s2605 + $0x38] sm:$0xff]
    %v2614 = vld [vmem:[%s2605 + $0x40] sm:$0xff]
    %v2615 = vld [vmem:[%s2605 + $0x48] sm:$0xff]
    %v2616 = vld [vmem:[%s2605 + $0x50] sm:$0xff]
    %v2617 = vld [vmem:[%s2605 + $0x58] sm:$0xff]
    %v2618 = vld [vmem:[%s2605 + $0x60] sm:$0xff]
    %v2619 = vld [vmem:[%s2605 + $0x68] sm:$0xff]
    %v2620 = vld [vmem:[%s2605 + $0x70] sm:$0xff]
    %v2621 = vld [vmem:[%s2605 + $0x78] sm:$0xff]
    %2622 = vmatpush.msra.mxu0 %v2621
    %2623 = vmatpush.msra.mxu0 %v2620
    %2624 = vmatpush.msra.mxu0 %v2619
    %2625 = vmatpush.msra.mxu0 %v2618
    %2626 = vmatpush.msra.mxu0 %v2617
    %2627 = vmatpush.msra.mxu0 %v2616
    %2628 = vmatpush.msra.mxu0 %v2615
    %2629 = vmatpush.msra.mxu0 %v2614
    %2630 = vmatpush.msra.mxu0 %v2613
    %2631 = vmatpush.msra.mxu0 %v2612
    %2632 = vmatpush.msra.mxu0 %v2611
    %2633 = vmatpush.msra.mxu0 %v2610
    %2634 = vmatpush.msra.mxu0 %v2609
    %2635 = vmatpush.msra.mxu0 %v2608
    %2636 = vmatpush.msra.mxu0 %v2607
    %2637 = vmatpush.msra.mxu0 %v2606
    %2638 = vmatmul.f32.gmra.mxu0 %v2541
    %v2639 = vpop.f32.mrf.mxu0
    %v2640 = vadd.f32 0.0, %v2639
    %2641 = vmatmul.f32.gmra.mxu0 %v2542
    %v2642 = vpop.f32.mrf.mxu0
    %v2643 = vadd.f32 0.0, %v2642
    %2644 = vmatmul.f32.gmra.mxu0 %v2543
    %v2645 = vpop.f32.mrf.mxu0
    %v2646 = vadd.f32 0.0, %v2645
    %2647 = vmatmul.f32.gmra.mxu0 %v2544
    %v2648 = vpop.f32.mrf.mxu0
    %v2649 = vadd.f32 0.0, %v2648
    %2650 = vmatmul.f32.gmra.mxu0 %v2545
    %v2651 = vpop.f32.mrf.mxu0
    %v2652 = vadd.f32 0.0, %v2651
    %2653 = vmatmul.f32.gmra.mxu0 %v2546
    %v2654 = vpop.f32.mrf.mxu0
    %v2655 = vadd.f32 0.0, %v2654
    %2656 = vmatmul.f32.gmra.mxu0 %v2547
    %v2657 = vpop.f32.mrf.mxu0
    %v2658 = vadd.f32 0.0, %v2657
    %2659 = vmatmul.f32.gmra.mxu0 %v2548
    %v2660 = vpop.f32.mrf.mxu0
    %v2661 = vadd.f32 0.0, %v2660
    %2662 = vmatmul.f32.gmra.mxu0 %v2549
    %v2663 = vpop.f32.mrf.mxu0
    %v2664 = vadd.f32 0.0, %v2663
    %2665 = vmatmul.f32.gmra.mxu0 %v2550
    %v2666 = vpop.f32.mrf.mxu0
    %v2667 = vadd.f32 0.0, %v2666
    %2668 = vmatmul.f32.gmra.mxu0 %v2551
    %v2669 = vpop.f32.mrf.mxu0
    %v2670 = vadd.f32 0.0, %v2669
    %2671 = vmatmul.f32.gmra.mxu0 %v2552
    %v2672 = vpop.f32.mrf.mxu0
    %v2673 = vadd.f32 0.0, %v2672
    %2674 = vmatmul.f32.gmra.mxu0 %v2553
    %v2675 = vpop.f32.mrf.mxu0
    %v2676 = vadd.f32 0.0, %v2675
    %2677 = vmatmul.f32.gmra.mxu0 %v2554
    %v2678 = vpop.f32.mrf.mxu0
    %v2679 = vadd.f32 0.0, %v2678
    %2680 = vmatmul.f32.gmra.mxu0 %v2555
    %v2681 = vpop.f32.mrf.mxu0
    %v2682 = vadd.f32 0.0, %v2681
    %2683 = vmatmul.f32.gmra.mxu0 %v2556
    %v2684 = vpop.f32.mrf.mxu0
    %v2685 = vadd.f32 0.0, %v2684
    %2686 = vmatmul.f32.gmra.mxu0 %v2557
    %v2687 = vpop.f32.mrf.mxu0
    %v2688 = vadd.f32 0.0, %v2687
    %2689 = vmatmul.f32.gmra.mxu0 %v2558
    %v2690 = vpop.f32.mrf.mxu0
    %v2691 = vadd.f32 0.0, %v2690
    %2692 = vmatmul.f32.gmra.mxu0 %v2559
    %v2693 = vpop.f32.mrf.mxu0
    %v2694 = vadd.f32 0.0, %v2693
    %2695 = vmatmul.f32.gmra.mxu0 %v2560
    %v2696 = vpop.f32.mrf.mxu0
    %v2697 = vadd.f32 0.0, %v2696
    %2698 = vmatmul.f32.gmra.mxu0 %v2561
    %v2699 = vpop.f32.mrf.mxu0
    %v2700 = vadd.f32 0.0, %v2699
    %2701 = vmatmul.f32.gmra.mxu0 %v2562
    %v2702 = vpop.f32.mrf.mxu0
    %v2703 = vadd.f32 0.0, %v2702
    %2704 = vmatmul.f32.gmra.mxu0 %v2563
    %v2705 = vpop.f32.mrf.mxu0
    %v2706 = vadd.f32 0.0, %v2705
    %2707 = vmatmul.f32.gmra.mxu0 %v2564
    %v2708 = vpop.f32.mrf.mxu0
    %v2709 = vadd.f32 0.0, %v2708
    %2710 = vmatmul.f32.gmra.mxu0 %v2565
    %v2711 = vpop.f32.mrf.mxu0
    %v2712 = vadd.f32 0.0, %v2711
    %2713 = vmatmul.f32.gmra.mxu0 %v2566
    %v2714 = vpop.f32.mrf.mxu0
    %v2715 = vadd.f32 0.0, %v2714
    %2716 = vmatmul.f32.gmra.mxu0 %v2567
    %v2717 = vpop.f32.mrf.mxu0
    %v2718 = vadd.f32 0.0, %v2717
    %2719 = vmatmul.f32.gmra.mxu0 %v2568
    %v2720 = vpop.f32.mrf.mxu0
    %v2721 = vadd.f32 0.0, %v2720
    %2722 = vmatmul.f32.gmra.mxu0 %v2569
    %v2723 = vpop.f32.mrf.mxu0
    %v2724 = vadd.f32 0.0, %v2723
    %2725 = vmatmul.f32.gmra.mxu0 %v2570
    %v2726 = vpop.f32.mrf.mxu0
    %v2727 = vadd.f32 0.0, %v2726
    %2728 = vmatmul.f32.gmra.mxu0 %v2571
    %v2729 = vpop.f32.mrf.mxu0
    %v2730 = vadd.f32 0.0, %v2729
    %2731 = vmatmul.f32.gmra.mxu0 %v2572
    %v2732 = vpop.f32.mrf.mxu0
    %v2733 = vadd.f32 0.0, %v2732
    %2734 = vmatmul.f32.gmra.mxu0 %v2573
    %v2735 = vpop.f32.mrf.mxu0
    %v2736 = vadd.f32 0.0, %v2735
    %2737 = vmatmul.f32.gmra.mxu0 %v2574
    %v2738 = vpop.f32.mrf.mxu0
    %v2739 = vadd.f32 0.0, %v2738
    %2740 = vmatmul.f32.gmra.mxu0 %v2575
    %v2741 = vpop.f32.mrf.mxu0
    %v2742 = vadd.f32 0.0, %v2741
    %2743 = vmatmul.f32.gmra.mxu0 %v2576
    %v2744 = vpop.f32.mrf.mxu0
    %v2745 = vadd.f32 0.0, %v2744
    %2746 = vmatmul.f32.gmra.mxu0 %v2577
    %v2747 = vpop.f32.mrf.mxu0
    %v2748 = vadd.f32 0.0, %v2747
    %2749 = vmatmul.f32.gmra.mxu0 %v2578
    %v2750 = vpop.f32.mrf.mxu0
    %v2751 = vadd.f32 0.0, %v2750
    %2752 = vmatmul.f32.gmra.mxu0 %v2579
    %v2753 = vpop.f32.mrf.mxu0
    %v2754 = vadd.f32 0.0, %v2753
    %2755 = vmatmul.f32.gmra.mxu0 %v2580
    %v2756 = vpop.f32.mrf.mxu0
    %v2757 = vadd.f32 0.0, %v2756
    %2758 = vmatmul.f32.gmra.mxu0 %v2581
    %v2759 = vpop.f32.mrf.mxu0
    %v2760 = vadd.f32 0.0, %v2759
    %2761 = vmatmul.f32.gmra.mxu0 %v2582
    %v2762 = vpop.f32.mrf.mxu0
    %v2763 = vadd.f32 0.0, %v2762
    %2764 = vmatmul.f32.gmra.mxu0 %v2583
    %v2765 = vpop.f32.mrf.mxu0
    %v2766 = vadd.f32 0.0, %v2765
    %2767 = vmatmul.f32.gmra.mxu0 %v2584
    %v2768 = vpop.f32.mrf.mxu0
    %v2769 = vadd.f32 0.0, %v2768
    %2770 = vmatmul.f32.gmra.mxu0 %v2585
    %v2771 = vpop.f32.mrf.mxu0
    %v2772 = vadd.f32 0.0, %v2771
    %2773 = vmatmul.f32.gmra.mxu0 %v2586
    %v2774 = vpop.f32.mrf.mxu0
    %v2775 = vadd.f32 0.0, %v2774
    %2776 = vmatmul.f32.gmra.mxu0 %v2587
    %v2777 = vpop.f32.mrf.mxu0
    %v2778 = vadd.f32 0.0, %v2777
    %2779 = vmatmul.f32.gmra.mxu0 %v2588
    %v2780 = vpop.f32.mrf.mxu0
    %v2781 = vadd.f32 0.0, %v2780
    %2782 = vmatmul.f32.gmra.mxu0 %v2589
    %v2783 = vpop.f32.mrf.mxu0
    %v2784 = vadd.f32 0.0, %v2783
    %2785 = vmatmul.f32.gmra.mxu0 %v2590
    %v2786 = vpop.f32.mrf.mxu0
    %v2787 = vadd.f32 0.0, %v2786
    %2788 = vmatmul.f32.gmra.mxu0 %v2591
    %v2789 = vpop.f32.mrf.mxu0
    %v2790 = vadd.f32 0.0, %v2789
    %2791 = vmatmul.f32.gmra.mxu0 %v2592
    %v2792 = vpop.f32.mrf.mxu0
    %v2793 = vadd.f32 0.0, %v2792
    %2794 = vmatmul.f32.gmra.mxu0 %v2593
    %v2795 = vpop.f32.mrf.mxu0
    %v2796 = vadd.f32 0.0, %v2795
    %2797 = vmatmul.f32.gmra.mxu0 %v2594
    %v2798 = vpop.f32.mrf.mxu0
    %v2799 = vadd.f32 0.0, %v2798
    %2800 = vmatmul.f32.gmra.mxu0 %v2595
    %v2801 = vpop.f32.mrf.mxu0
    %v2802 = vadd.f32 0.0, %v2801
    %2803 = vmatmul.f32.gmra.mxu0 %v2596
    %v2804 = vpop.f32.mrf.mxu0
    %v2805 = vadd.f32 0.0, %v2804
    %2806 = vmatmul.f32.gmra.mxu0 %v2597
    %v2807 = vpop.f32.mrf.mxu0
    %v2808 = vadd.f32 0.0, %v2807
    %2809 = vmatmul.f32.gmra.mxu0 %v2598
    %v2810 = vpop.f32.mrf.mxu0
    %v2811 = vadd.f32 0.0, %v2810
    %2812 = vmatmul.f32.gmra.mxu0 %v2599
    %v2813 = vpop.f32.mrf.mxu0
    %v2814 = vadd.f32 0.0, %v2813
    %2815 = vmatmul.f32.gmra.mxu0 %v2600
    %v2816 = vpop.f32.mrf.mxu0
    %v2817 = vadd.f32 0.0, %v2816
    %2818 = vmatmul.f32.gmra.mxu0 %v2601
    %v2819 = vpop.f32.mrf.mxu0
    %v2820 = vadd.f32 0.0, %v2819
    %2821 = vmatmul.f32.gmra.mxu0 %v2602
    %v2822 = vpop.f32.mrf.mxu0
    %v2823 = vadd.f32 0.0, %v2822
    %2824 = vmatmul.f32.gmra.mxu0 %v2603
    %v2825 = vpop.f32.mrf.mxu0
    %v2826 = vadd.f32 0.0, %v2825
    %2827 = vmatmul.f32.gmra.mxu0 %v2604
    %v2828 = vpop.f32.mrf.mxu0
    %v2829 = vadd.f32 0.0, %v2828
    %2830 = vdwg.mxu0
    %v2831 = vadd.f32 %v2476, %v2640
    %v2832 = vadd.f32 %v2477, %v2643
    %v2833 = vadd.f32 %v2478, %v2646
    %v2834 = vadd.f32 %v2479, %v2649
    %v2835 = vadd.f32 %v2480, %v2652
    %v2836 = vadd.f32 %v2481, %v2655
    %v2837 = vadd.f32 %v2482, %v2658
    %v2838 = vadd.f32 %v2483, %v2661
    %v2839 = vadd.f32 %v2484, %v2664
    %v2840 = vadd.f32 %v2485, %v2667
    %v2841 = vadd.f32 %v2486, %v2670
    %v2842 = vadd.f32 %v2487, %v2673
    %v2843 = vadd.f32 %v2488, %v2676
    %v2844 = vadd.f32 %v2489, %v2679
    %v2845 = vadd.f32 %v2490, %v2682
    %v2846 = vadd.f32 %v2491, %v2685
    %v2847 = vadd.f32 %v2492, %v2688
    %v2848 = vadd.f32 %v2493, %v2691
    %v2849 = vadd.f32 %v2494, %v2694
    %v2850 = vadd.f32 %v2495, %v2697
    %v2851 = vadd.f32 %v2496, %v2700
    %v2852 = vadd.f32 %v2497, %v2703
    %v2853 = vadd.f32 %v2498, %v2706
    %v2854 = vadd.f32 %v2499, %v2709
    %v2855 = vadd.f32 %v2500, %v2712
    %v2856 = vadd.f32 %v2501, %v2715
    %v2857 = vadd.f32 %v2502, %v2718
    %v2858 = vadd.f32 %v2503, %v2721
    %v2859 = vadd.f32 %v2504, %v2724
    %v2860 = vadd.f32 %v2505, %v2727
    %v2861 = vadd.f32 %v2506, %v2730
    %v2862 = vadd.f32 %v2507, %v2733
    %v2863 = vadd.f32 %v2508, %v2736
    %v2864 = vadd.f32 %v2509, %v2739
    %v2865 = vadd.f32 %v2510, %v2742
    %v2866 = vadd.f32 %v2511, %v2745
    %v2867 = vadd.f32 %v2512, %v2748
    %v2868 = vadd.f32 %v2513, %v2751
    %v2869 = vadd.f32 %v2514, %v2754
    %v2870 = vadd.f32 %v2515, %v2757
    %v2871 = vadd.f32 %v2516, %v2760
    %v2872 = vadd.f32 %v2517, %v2763
    %v2873 = vadd.f32 %v2518, %v2766
    %v2874 = vadd.f32 %v2519, %v2769
    %v2875 = vadd.f32 %v2520, %v2772
    %v2876 = vadd.f32 %v2521, %v2775
    %v2877 = vadd.f32 %v2522, %v2778
    %v2878 = vadd.f32 %v2523, %v2781
    %v2879 = vadd.f32 %v2524, %v2784
    %v2880 = vadd.f32 %v2525, %v2787
    %v2881 = vadd.f32 %v2526, %v2790
    %v2882 = vadd.f32 %v2527, %v2793
    %v2883 = vadd.f32 %v2528, %v2796
    %v2884 = vadd.f32 %v2529, %v2799
    %v2885 = vadd.f32 %v2530, %v2802
    %v2886 = vadd.f32 %v2531, %v2805
    %v2887 = vadd.f32 %v2532, %v2808
    %v2888 = vadd.f32 %v2533, %v2811
    %v2889 = vadd.f32 %v2534, %v2814
    %v2890 = vadd.f32 %v2535, %v2817
    %v2891 = vadd.f32 %v2536, %v2820
    %v2892 = vadd.f32 %v2537, %v2823
    %v2893 = vadd.f32 %v2538, %v2826
    %v2894 = vadd.f32 %v2539, %v2829
    %v2895 = vld [vmem:[%s2540 + $0x1] sm:$0xff]
    %v2896 = vld [vmem:[%s2540 + $0x9] sm:$0xff]
    %v2897 = vld [vmem:[%s2540 + $0x19] sm:$0xff]
    %v2898 = vld [vmem:[%s2540 + $0x21] sm:$0xff]
    %v2899 = vld [vmem:[%s2540 + $0x31] sm:$0xff]
    %v2900 = vld [vmem:[%s2540 + $0x39] sm:$0xff]
    %v2901 = vld [vmem:[%s2540 + $0x49] sm:$0xff]
    %v2902 = vld [vmem:[%s2540 + $0x51] sm:$0xff]
    %v2903 = vld [vmem:[%s2540 + $0x61] sm:$0xff]
    %v2904 = vld [vmem:[%s2540 + $0x69] sm:$0xff]
    %v2905 = vld [vmem:[%s2540 + $0x79] sm:$0xff]
    %v2906 = vld [vmem:[%s2540 + $0x81] sm:$0xff]
    %v2907 = vld [vmem:[%s2540 + $0x91] sm:$0xff]
    %v2908 = vld [vmem:[%s2540 + $0x99] sm:$0xff]
    %v2909 = vld [vmem:[%s2540 + $0xa9] sm:$0xff]
    %v2910 = vld [vmem:[%s2540 + $0xb1] sm:$0xff]
    %v2911 = vld [vmem:[%s2540 + $0xc1] sm:$0xff]
    %v2912 = vld [vmem:[%s2540 + $0xc9] sm:$0xff]
    %v2913 = vld [vmem:[%s2540 + $0xd9] sm:$0xff]
    %v2914 = vld [vmem:[%s2540 + $0xe1] sm:$0xff]
    %v2915 = vld [vmem:[%s2540 + $0xf1] sm:$0xff]
    %v2916 = vld [vmem:[%s2540 + $0xf9] sm:$0xff]
    %v2917 = vld [vmem:[%s2540 + $0x109] sm:$0xff]
    %v2918 = vld [vmem:[%s2540 + $0x111] sm:$0xff]
    %v2919 = vld [vmem:[%s2540 + $0x121] sm:$0xff]
    %v2920 = vld [vmem:[%s2540 + $0x129] sm:$0xff]
    %v2921 = vld [vmem:[%s2540 + $0x139] sm:$0xff]
    %v2922 = vld [vmem:[%s2540 + $0x141] sm:$0xff]
    %v2923 = vld [vmem:[%s2540 + $0x151] sm:$0xff]
    %v2924 = vld [vmem:[%s2540 + $0x159] sm:$0xff]
    %v2925 = vld [vmem:[%s2540 + $0x169] sm:$0xff]
    %v2926 = vld [vmem:[%s2540 + $0x171] sm:$0xff]
    %v2927 = vld [vmem:[%s2540 + $0x1b1] sm:$0xff]
    %v2928 = vld [vmem:[%s2540 + $0x1b9] sm:$0xff]
    %v2929 = vld [vmem:[%s2540 + $0x1c9] sm:$0xff]
    %v2930 = vld [vmem:[%s2540 + $0x1d1] sm:$0xff]
    %v2931 = vld [vmem:[%s2540 + $0x1e1] sm:$0xff]
    %v2932 = vld [vmem:[%s2540 + $0x1e9] sm:$0xff]
    %v2933 = vld [vmem:[%s2540 + $0x1f9] sm:$0xff]
    %v2934 = vld [vmem:[%s2540 + $0x201] sm:$0xff]
    %v2935 = vld [vmem:[%s2540 + $0x211] sm:$0xff]
    %v2936 = vld [vmem:[%s2540 + $0x219] sm:$0xff]
    %v2937 = vld [vmem:[%s2540 + $0x229] sm:$0xff]
    %v2938 = vld [vmem:[%s2540 + $0x231] sm:$0xff]
    %v2939 = vld [vmem:[%s2540 + $0x241] sm:$0xff]
    %v2940 = vld [vmem:[%s2540 + $0x249] sm:$0xff]
    %v2941 = vld [vmem:[%s2540 + $0x259] sm:$0xff]
    %v2942 = vld [vmem:[%s2540 + $0x261] sm:$0xff]
    %v2943 = vld [vmem:[%s2540 + $0x271] sm:$0xff]
    %v2944 = vld [vmem:[%s2540 + $0x279] sm:$0xff]
    %v2945 = vld [vmem:[%s2540 + $0x289] sm:$0xff]
    %v2946 = vld [vmem:[%s2540 + $0x291] sm:$0xff]
    %v2947 = vld [vmem:[%s2540 + $0x2a1] sm:$0xff]
    %v2948 = vld [vmem:[%s2540 + $0x2a9] sm:$0xff]
    %v2949 = vld [vmem:[%s2540 + $0x2b9] sm:$0xff]
    %v2950 = vld [vmem:[%s2540 + $0x2c1] sm:$0xff]
    %v2951 = vld [vmem:[%s2540 + $0x2d1] sm:$0xff]
    %v2952 = vld [vmem:[%s2540 + $0x2d9] sm:$0xff]
    %v2953 = vld [vmem:[%s2540 + $0x2e9] sm:$0xff]
    %v2954 = vld [vmem:[%s2540 + $0x2f1] sm:$0xff]
    %v2955 = vld [vmem:[%s2540 + $0x301] sm:$0xff]
    %v2956 = vld [vmem:[%s2540 + $0x309] sm:$0xff]
    %v2957 = vld [vmem:[%s2540 + $0x319] sm:$0xff]
    %v2958 = vld [vmem:[%s2540 + $0x321] sm:$0xff]
    %s2959 = scalar_lea.vmem [#allocation6], 896
    %v2960 = vld [vmem:[%s2959] sm:$0xff]
    %v2961 = vld [vmem:[%s2959 + $0x8] sm:$0xff]
    %v2962 = vld [vmem:[%s2959 + $0x10] sm:$0xff]
    %v2963 = vld [vmem:[%s2959 + $0x18] sm:$0xff]
    %v2964 = vld [vmem:[%s2959 + $0x20] sm:$0xff]
    %v2965 = vld [vmem:[%s2959 + $0x28] sm:$0xff]
    %v2966 = vld [vmem:[%s2959 + $0x30] sm:$0xff]
    %v2967 = vld [vmem:[%s2959 + $0x38] sm:$0xff]
    %v2968 = vld [vmem:[%s2959 + $0x40] sm:$0xff]
    %v2969 = vld [vmem:[%s2959 + $0x48] sm:$0xff]
    %v2970 = vld [vmem:[%s2959 + $0x50] sm:$0xff]
    %v2971 = vld [vmem:[%s2959 + $0x58] sm:$0xff]
    %v2972 = vld [vmem:[%s2959 + $0x60] sm:$0xff]
    %v2973 = vld [vmem:[%s2959 + $0x68] sm:$0xff]
    %v2974 = vld [vmem:[%s2959 + $0x70] sm:$0xff]
    %v2975 = vld [vmem:[%s2959 + $0x78] sm:$0xff]
    %2976 = vmatpush.msra.mxu0 %v2975
    %2977 = vmatpush.msra.mxu0 %v2974
    %2978 = vmatpush.msra.mxu0 %v2973
    %2979 = vmatpush.msra.mxu0 %v2972
    %2980 = vmatpush.msra.mxu0 %v2971
    %2981 = vmatpush.msra.mxu0 %v2970
    %2982 = vmatpush.msra.mxu0 %v2969
    %2983 = vmatpush.msra.mxu0 %v2968
    %2984 = vmatpush.msra.mxu0 %v2967
    %2985 = vmatpush.msra.mxu0 %v2966
    %2986 = vmatpush.msra.mxu0 %v2965
    %2987 = vmatpush.msra.mxu0 %v2964
    %2988 = vmatpush.msra.mxu0 %v2963
    %2989 = vmatpush.msra.mxu0 %v2962
    %2990 = vmatpush.msra.mxu0 %v2961
    %2991 = vmatpush.msra.mxu0 %v2960
    %2992 = vmatmul.f32.gmra.mxu0 %v2895
    %v2993 = vpop.f32.mrf.mxu0
    %v2994 = vadd.f32 0.0, %v2993
    %2995 = vmatmul.f32.gmra.mxu0 %v2896
    %v2996 = vpop.f32.mrf.mxu0
    %v2997 = vadd.f32 0.0, %v2996
    %2998 = vmatmul.f32.gmra.mxu0 %v2897
    %v2999 = vpop.f32.mrf.mxu0
    %v3000 = vadd.f32 0.0, %v2999
    %3001 = vmatmul.f32.gmra.mxu0 %v2898
    %v3002 = vpop.f32.mrf.mxu0
    %v3003 = vadd.f32 0.0, %v3002
    %3004 = vmatmul.f32.gmra.mxu0 %v2899
    %v3005 = vpop.f32.mrf.mxu0
    %v3006 = vadd.f32 0.0, %v3005
    %3007 = vmatmul.f32.gmra.mxu0 %v2900
    %v3008 = vpop.f32.mrf.mxu0
    %v3009 = vadd.f32 0.0, %v3008
    %3010 = vmatmul.f32.gmra.mxu0 %v2901
    %v3011 = vpop.f32.mrf.mxu0
    %v3012 = vadd.f32 0.0, %v3011
    %3013 = vmatmul.f32.gmra.mxu0 %v2902
    %v3014 = vpop.f32.mrf.mxu0
    %v3015 = vadd.f32 0.0, %v3014
    %3016 = vmatmul.f32.gmra.mxu0 %v2903
    %v3017 = vpop.f32.mrf.mxu0
    %v3018 = vadd.f32 0.0, %v3017
    %3019 = vmatmul.f32.gmra.mxu0 %v2904
    %v3020 = vpop.f32.mrf.mxu0
    %v3021 = vadd.f32 0.0, %v3020
    %3022 = vmatmul.f32.gmra.mxu0 %v2905
    %v3023 = vpop.f32.mrf.mxu0
    %v3024 = vadd.f32 0.0, %v3023
    %3025 = vmatmul.f32.gmra.mxu0 %v2906
    %v3026 = vpop.f32.mrf.mxu0
    %v3027 = vadd.f32 0.0, %v3026
    %3028 = vmatmul.f32.gmra.mxu0 %v2907
    %v3029 = vpop.f32.mrf.mxu0
    %v3030 = vadd.f32 0.0, %v3029
    %3031 = vmatmul.f32.gmra.mxu0 %v2908
    %v3032 = vpop.f32.mrf.mxu0
    %v3033 = vadd.f32 0.0, %v3032
    %3034 = vmatmul.f32.gmra.mxu0 %v2909
    %v3035 = vpop.f32.mrf.mxu0
    %v3036 = vadd.f32 0.0, %v3035
    %3037 = vmatmul.f32.gmra.mxu0 %v2910
    %v3038 = vpop.f32.mrf.mxu0
    %v3039 = vadd.f32 0.0, %v3038
    %3040 = vmatmul.f32.gmra.mxu0 %v2911
    %v3041 = vpop.f32.mrf.mxu0
    %v3042 = vadd.f32 0.0, %v3041
    %3043 = vmatmul.f32.gmra.mxu0 %v2912
    %v3044 = vpop.f32.mrf.mxu0
    %v3045 = vadd.f32 0.0, %v3044
    %3046 = vmatmul.f32.gmra.mxu0 %v2913
    %v3047 = vpop.f32.mrf.mxu0
    %v3048 = vadd.f32 0.0, %v3047
    %3049 = vmatmul.f32.gmra.mxu0 %v2914
    %v3050 = vpop.f32.mrf.mxu0
    %v3051 = vadd.f32 0.0, %v3050
    %3052 = vmatmul.f32.gmra.mxu0 %v2915
    %v3053 = vpop.f32.mrf.mxu0
    %v3054 = vadd.f32 0.0, %v3053
    %3055 = vmatmul.f32.gmra.mxu0 %v2916
    %v3056 = vpop.f32.mrf.mxu0
    %v3057 = vadd.f32 0.0, %v3056
    %3058 = vmatmul.f32.gmra.mxu0 %v2917
    %v3059 = vpop.f32.mrf.mxu0
    %v3060 = vadd.f32 0.0, %v3059
    %3061 = vmatmul.f32.gmra.mxu0 %v2918
    %v3062 = vpop.f32.mrf.mxu0
    %v3063 = vadd.f32 0.0, %v3062
    %3064 = vmatmul.f32.gmra.mxu0 %v2919
    %v3065 = vpop.f32.mrf.mxu0
    %v3066 = vadd.f32 0.0, %v3065
    %3067 = vmatmul.f32.gmra.mxu0 %v2920
    %v3068 = vpop.f32.mrf.mxu0
    %v3069 = vadd.f32 0.0, %v3068
    %3070 = vmatmul.f32.gmra.mxu0 %v2921
    %v3071 = vpop.f32.mrf.mxu0
    %v3072 = vadd.f32 0.0, %v3071
    %3073 = vmatmul.f32.gmra.mxu0 %v2922
    %v3074 = vpop.f32.mrf.mxu0
    %v3075 = vadd.f32 0.0, %v3074
    %3076 = vmatmul.f32.gmra.mxu0 %v2923
    %v3077 = vpop.f32.mrf.mxu0
    %v3078 = vadd.f32 0.0, %v3077
    %3079 = vmatmul.f32.gmra.mxu0 %v2924
    %v3080 = vpop.f32.mrf.mxu0
    %v3081 = vadd.f32 0.0, %v3080
    %3082 = vmatmul.f32.gmra.mxu0 %v2925
    %v3083 = vpop.f32.mrf.mxu0
    %v3084 = vadd.f32 0.0, %v3083
    %3085 = vmatmul.f32.gmra.mxu0 %v2926
    %v3086 = vpop.f32.mrf.mxu0
    %v3087 = vadd.f32 0.0, %v3086
    %3088 = vmatmul.f32.gmra.mxu0 %v2927
    %v3089 = vpop.f32.mrf.mxu0
    %v3090 = vadd.f32 0.0, %v3089
    %3091 = vmatmul.f32.gmra.mxu0 %v2928
    %v3092 = vpop.f32.mrf.mxu0
    %v3093 = vadd.f32 0.0, %v3092
    %3094 = vmatmul.f32.gmra.mxu0 %v2929
    %v3095 = vpop.f32.mrf.mxu0
    %v3096 = vadd.f32 0.0, %v3095
    %3097 = vmatmul.f32.gmra.mxu0 %v2930
    %v3098 = vpop.f32.mrf.mxu0
    %v3099 = vadd.f32 0.0, %v3098
    %3100 = vmatmul.f32.gmra.mxu0 %v2931
    %v3101 = vpop.f32.mrf.mxu0
    %v3102 = vadd.f32 0.0, %v3101
    %3103 = vmatmul.f32.gmra.mxu0 %v2932
    %v3104 = vpop.f32.mrf.mxu0
    %v3105 = vadd.f32 0.0, %v3104
    %3106 = vmatmul.f32.gmra.mxu0 %v2933
    %v3107 = vpop.f32.mrf.mxu0
    %v3108 = vadd.f32 0.0, %v3107
    %3109 = vmatmul.f32.gmra.mxu0 %v2934
    %v3110 = vpop.f32.mrf.mxu0
    %v3111 = vadd.f32 0.0, %v3110
    %3112 = vmatmul.f32.gmra.mxu0 %v2935
    %v3113 = vpop.f32.mrf.mxu0
    %v3114 = vadd.f32 0.0, %v3113
    %3115 = vmatmul.f32.gmra.mxu0 %v2936
    %v3116 = vpop.f32.mrf.mxu0
    %v3117 = vadd.f32 0.0, %v3116
    %3118 = vmatmul.f32.gmra.mxu0 %v2937
    %v3119 = vpop.f32.mrf.mxu0
    %v3120 = vadd.f32 0.0, %v3119
    %3121 = vmatmul.f32.gmra.mxu0 %v2938
    %v3122 = vpop.f32.mrf.mxu0
    %v3123 = vadd.f32 0.0, %v3122
    %3124 = vmatmul.f32.gmra.mxu0 %v2939
    %v3125 = vpop.f32.mrf.mxu0
    %v3126 = vadd.f32 0.0, %v3125
    %3127 = vmatmul.f32.gmra.mxu0 %v2940
    %v3128 = vpop.f32.mrf.mxu0
    %v3129 = vadd.f32 0.0, %v3128
    %3130 = vmatmul.f32.gmra.mxu0 %v2941
    %v3131 = vpop.f32.mrf.mxu0
    %v3132 = vadd.f32 0.0, %v3131
    %3133 = vmatmul.f32.gmra.mxu0 %v2942
    %v3134 = vpop.f32.mrf.mxu0
    %v3135 = vadd.f32 0.0, %v3134
    %3136 = vmatmul.f32.gmra.mxu0 %v2943
    %v3137 = vpop.f32.mrf.mxu0
    %v3138 = vadd.f32 0.0, %v3137
    %3139 = vmatmul.f32.gmra.mxu0 %v2944
    %v3140 = vpop.f32.mrf.mxu0
    %v3141 = vadd.f32 0.0, %v3140
    %3142 = vmatmul.f32.gmra.mxu0 %v2945
    %v3143 = vpop.f32.mrf.mxu0
    %v3144 = vadd.f32 0.0, %v3143
    %3145 = vmatmul.f32.gmra.mxu0 %v2946
    %v3146 = vpop.f32.mrf.mxu0
    %v3147 = vadd.f32 0.0, %v3146
    %3148 = vmatmul.f32.gmra.mxu0 %v2947
    %v3149 = vpop.f32.mrf.mxu0
    %v3150 = vadd.f32 0.0, %v3149
    %3151 = vmatmul.f32.gmra.mxu0 %v2948
    %v3152 = vpop.f32.mrf.mxu0
    %v3153 = vadd.f32 0.0, %v3152
    %3154 = vmatmul.f32.gmra.mxu0 %v2949
    %v3155 = vpop.f32.mrf.mxu0
    %v3156 = vadd.f32 0.0, %v3155
    %3157 = vmatmul.f32.gmra.mxu0 %v2950
    %v3158 = vpop.f32.mrf.mxu0
    %v3159 = vadd.f32 0.0, %v3158
    %3160 = vmatmul.f32.gmra.mxu0 %v2951
    %v3161 = vpop.f32.mrf.mxu0
    %v3162 = vadd.f32 0.0, %v3161
    %3163 = vmatmul.f32.gmra.mxu0 %v2952
    %v3164 = vpop.f32.mrf.mxu0
    %v3165 = vadd.f32 0.0, %v3164
    %3166 = vmatmul.f32.gmra.mxu0 %v2953
    %v3167 = vpop.f32.mrf.mxu0
    %v3168 = vadd.f32 0.0, %v3167
    %3169 = vmatmul.f32.gmra.mxu0 %v2954
    %v3170 = vpop.f32.mrf.mxu0
    %v3171 = vadd.f32 0.0, %v3170
    %3172 = vmatmul.f32.gmra.mxu0 %v2955
    %v3173 = vpop.f32.mrf.mxu0
    %v3174 = vadd.f32 0.0, %v3173
    %3175 = vmatmul.f32.gmra.mxu0 %v2956
    %v3176 = vpop.f32.mrf.mxu0
    %v3177 = vadd.f32 0.0, %v3176
    %3178 = vmatmul.f32.gmra.mxu0 %v2957
    %v3179 = vpop.f32.mrf.mxu0
    %v3180 = vadd.f32 0.0, %v3179
    %3181 = vmatmul.f32.gmra.mxu0 %v2958
    %v3182 = vpop.f32.mrf.mxu0
    %v3183 = vadd.f32 0.0, %v3182
    %3184 = vdwg.mxu0
    %v3185 = vadd.f32 %v2831, %v2994
    %v3186 = vadd.f32 %v2832, %v2997
    %v3187 = vadd.f32 %v2833, %v3000
    %v3188 = vadd.f32 %v2834, %v3003
    %v3189 = vadd.f32 %v2835, %v3006
    %v3190 = vadd.f32 %v2836, %v3009
    %v3191 = vadd.f32 %v2837, %v3012
    %v3192 = vadd.f32 %v2838, %v3015
    %v3193 = vadd.f32 %v2839, %v3018
    %v3194 = vadd.f32 %v2840, %v3021
    %v3195 = vadd.f32 %v2841, %v3024
    %v3196 = vadd.f32 %v2842, %v3027
    %v3197 = vadd.f32 %v2843, %v3030
    %v3198 = vadd.f32 %v2844, %v3033
    %v3199 = vadd.f32 %v2845, %v3036
    %v3200 = vadd.f32 %v2846, %v3039
    %v3201 = vadd.f32 %v2847, %v3042
    %v3202 = vadd.f32 %v2848, %v3045
    %v3203 = vadd.f32 %v2849, %v3048
    %v3204 = vadd.f32 %v2850, %v3051
    %v3205 = vadd.f32 %v2851, %v3054
    %v3206 = vadd.f32 %v2852, %v3057
    %v3207 = vadd.f32 %v2853, %v3060
    %v3208 = vadd.f32 %v2854, %v3063
    %v3209 = vadd.f32 %v2855, %v3066
    %v3210 = vadd.f32 %v2856, %v3069
    %v3211 = vadd.f32 %v2857, %v3072
    %v3212 = vadd.f32 %v2858, %v3075
    %v3213 = vadd.f32 %v2859, %v3078
    %v3214 = vadd.f32 %v2860, %v3081
    %v3215 = vadd.f32 %v2861, %v3084
    %v3216 = vadd.f32 %v2862, %v3087
    %v3217 = vadd.f32 %v2863, %v3090
    %v3218 = vadd.f32 %v2864, %v3093
    %v3219 = vadd.f32 %v2865, %v3096
    %v3220 = vadd.f32 %v2866, %v3099
    %v3221 = vadd.f32 %v2867, %v3102
    %v3222 = vadd.f32 %v2868, %v3105
    %v3223 = vadd.f32 %v2869, %v3108
    %v3224 = vadd.f32 %v2870, %v3111
    %v3225 = vadd.f32 %v2871, %v3114
    %v3226 = vadd.f32 %v2872, %v3117
    %v3227 = vadd.f32 %v2873, %v3120
    %v3228 = vadd.f32 %v2874, %v3123
    %v3229 = vadd.f32 %v2875, %v3126
    %v3230 = vadd.f32 %v2876, %v3129
    %v3231 = vadd.f32 %v2877, %v3132
    %v3232 = vadd.f32 %v2878, %v3135
    %v3233 = vadd.f32 %v2879, %v3138
    %v3234 = vadd.f32 %v2880, %v3141
    %v3235 = vadd.f32 %v2881, %v3144
    %v3236 = vadd.f32 %v2882, %v3147
    %v3237 = vadd.f32 %v2883, %v3150
    %v3238 = vadd.f32 %v2884, %v3153
    %v3239 = vadd.f32 %v2885, %v3156
    %v3240 = vadd.f32 %v2886, %v3159
    %v3241 = vadd.f32 %v2887, %v3162
    %v3242 = vadd.f32 %v2888, %v3165
    %v3243 = vadd.f32 %v2889, %v3168
    %v3244 = vadd.f32 %v2890, %v3171
    %v3245 = vadd.f32 %v2891, %v3174
    %v3246 = vadd.f32 %v2892, %v3177
    %v3247 = vadd.f32 %v2893, %v3180
    %v3248 = vadd.f32 %v2894, %v3183
    %v3249 = vld [vmem:[%s2540 + $0x2] sm:$0xff]
    %v3250 = vld [vmem:[%s2540 + $0xa] sm:$0xff]
    %v3251 = vld [vmem:[%s2540 + $0x1a] sm:$0xff]
    %v3252 = vld [vmem:[%s2540 + $0x22] sm:$0xff]
    %v3253 = vld [vmem:[%s2540 + $0x32] sm:$0xff]
    %v3254 = vld [vmem:[%s2540 + $0x3a] sm:$0xff]
    %v3255 = vld [vmem:[%s2540 + $0x4a] sm:$0xff]
    %v3256 = vld [vmem:[%s2540 + $0x52] sm:$0xff]
    %v3257 = vld [vmem:[%s2540 + $0x62] sm:$0xff]
    %v3258 = vld [vmem:[%s2540 + $0x6a] sm:$0xff]
    %v3259 = vld [vmem:[%s2540 + $0x7a] sm:$0xff]
    %v3260 = vld [vmem:[%s2540 + $0x82] sm:$0xff]
    %v3261 = vld [vmem:[%s2540 + $0x92] sm:$0xff]
    %v3262 = vld [vmem:[%s2540 + $0x9a] sm:$0xff]
    %v3263 = vld [vmem:[%s2540 + $0xaa] sm:$0xff]
    %v3264 = vld [vmem:[%s2540 + $0xb2] sm:$0xff]
    %v3265 = vld [vmem:[%s2540 + $0xc2] sm:$0xff]
    %v3266 = vld [vmem:[%s2540 + $0xca] sm:$0xff]
    %v3267 = vld [vmem:[%s2540 + $0xda] sm:$0xff]
    %v3268 = vld [vmem:[%s2540 + $0xe2] sm:$0xff]
    %v3269 = vld [vmem:[%s2540 + $0xf2] sm:$0xff]
    %v3270 = vld [vmem:[%s2540 + $0xfa] sm:$0xff]
    %v3271 = vld [vmem:[%s2540 + $0x10a] sm:$0xff]
    %v3272 = vld [vmem:[%s2540 + $0x112] sm:$0xff]
    %v3273 = vld [vmem:[%s2540 + $0x122] sm:$0xff]
    %v3274 = vld [vmem:[%s2540 + $0x12a] sm:$0xff]
    %v3275 = vld [vmem:[%s2540 + $0x13a] sm:$0xff]
    %v3276 = vld [vmem:[%s2540 + $0x142] sm:$0xff]
    %v3277 = vld [vmem:[%s2540 + $0x152] sm:$0xff]
    %v3278 = vld [vmem:[%s2540 + $0x15a] sm:$0xff]
    %v3279 = vld [vmem:[%s2540 + $0x16a] sm:$0xff]
    %v3280 = vld [vmem:[%s2540 + $0x172] sm:$0xff]
    %v3281 = vld [vmem:[%s2540 + $0x1b2] sm:$0xff]
    %v3282 = vld [vmem:[%s2540 + $0x1ba] sm:$0xff]
    %v3283 = vld [vmem:[%s2540 + $0x1ca] sm:$0xff]
    %v3284 = vld [vmem:[%s2540 + $0x1d2] sm:$0xff]
    %v3285 = vld [vmem:[%s2540 + $0x1e2] sm:$0xff]
    %v3286 = vld [vmem:[%s2540 + $0x1ea] sm:$0xff]
    %v3287 = vld [vmem:[%s2540 + $0x1fa] sm:$0xff]
    %v3288 = vld [vmem:[%s2540 + $0x202] sm:$0xff]
    %v3289 = vld [vmem:[%s2540 + $0x212] sm:$0xff]
    %v3290 = vld [vmem:[%s2540 + $0x21a] sm:$0xff]
    %v3291 = vld [vmem:[%s2540 + $0x22a] sm:$0xff]
    %v3292 = vld [vmem:[%s2540 + $0x232] sm:$0xff]
    %v3293 = vld [vmem:[%s2540 + $0x242] sm:$0xff]
    %v3294 = vld [vmem:[%s2540 + $0x24a] sm:$0xff]
    %v3295 = vld [vmem:[%s2540 + $0x25a] sm:$0xff]
    %v3296 = vld [vmem:[%s2540 + $0x262] sm:$0xff]
    %v3297 = vld [vmem:[%s2540 + $0x272] sm:$0xff]
    %v3298 = vld [vmem:[%s2540 + $0x27a] sm:$0xff]
    %v3299 = vld [vmem:[%s2540 + $0x28a] sm:$0xff]
    %v3300 = vld [vmem:[%s2540 + $0x292] sm:$0xff]
    %v3301 = vld [vmem:[%s2540 + $0x2a2] sm:$0xff]
    %v3302 = vld [vmem:[%s2540 + $0x2aa] sm:$0xff]
    %v3303 = vld [vmem:[%s2540 + $0x2ba] sm:$0xff]
    %v3304 = vld [vmem:[%s2540 + $0x2c2] sm:$0xff]
    %v3305 = vld [vmem:[%s2540 + $0x2d2] sm:$0xff]
    %v3306 = vld [vmem:[%s2540 + $0x2da] sm:$0xff]
    %v3307 = vld [vmem:[%s2540 + $0x2ea] sm:$0xff]
    %v3308 = vld [vmem:[%s2540 + $0x2f2] sm:$0xff]
    %v3309 = vld [vmem:[%s2540 + $0x302] sm:$0xff]
    %v3310 = vld [vmem:[%s2540 + $0x30a] sm:$0xff]
    %v3311 = vld [vmem:[%s2540 + $0x31a] sm:$0xff]
    %v3312 = vld [vmem:[%s2540 + $0x322] sm:$0xff]
    %s3313 = scalar_lea.vmem [#allocation6], 1024
    %v3314 = vld [vmem:[%s3313] sm:$0xff]
    %v3315 = vld [vmem:[%s3313 + $0x8] sm:$0xff]
    %v3316 = vld [vmem:[%s3313 + $0x10] sm:$0xff]
    %v3317 = vld [vmem:[%s3313 + $0x18] sm:$0xff]
    %v3318 = vld [vmem:[%s3313 + $0x20] sm:$0xff]
    %v3319 = vld [vmem:[%s3313 + $0x28] sm:$0xff]
    %v3320 = vld [vmem:[%s3313 + $0x30] sm:$0xff]
    %v3321 = vld [vmem:[%s3313 + $0x38] sm:$0xff]
    %v3322 = vld [vmem:[%s3313 + $0x40] sm:$0xff]
    %v3323 = vld [vmem:[%s3313 + $0x48] sm:$0xff]
    %v3324 = vld [vmem:[%s3313 + $0x50] sm:$0xff]
    %v3325 = vld [vmem:[%s3313 + $0x58] sm:$0xff]
    %v3326 = vld [vmem:[%s3313 + $0x60] sm:$0xff]
    %v3327 = vld [vmem:[%s3313 + $0x68] sm:$0xff]
    %v3328 = vld [vmem:[%s3313 + $0x70] sm:$0xff]
    %v3329 = vld [vmem:[%s3313 + $0x78] sm:$0xff]
    %3330 = vmatpush.msra.mxu0 %v3329
    %3331 = vmatpush.msra.mxu0 %v3328
    %3332 = vmatpush.msra.mxu0 %v3327
    %3333 = vmatpush.msra.mxu0 %v3326
    %3334 = vmatpush.msra.mxu0 %v3325
    %3335 = vmatpush.msra.mxu0 %v3324
    %3336 = vmatpush.msra.mxu0 %v3323
    %3337 = vmatpush.msra.mxu0 %v3322
    %3338 = vmatpush.msra.mxu0 %v3321
    %3339 = vmatpush.msra.mxu0 %v3320
    %3340 = vmatpush.msra.mxu0 %v3319
    %3341 = vmatpush.msra.mxu0 %v3318
    %3342 = vmatpush.msra.mxu0 %v3317
    %3343 = vmatpush.msra.mxu0 %v3316
    %3344 = vmatpush.msra.mxu0 %v3315
    %3345 = vmatpush.msra.mxu0 %v3314
    %3346 = vmatmul.f32.gmra.mxu0 %v3249
    %v3347 = vpop.f32.mrf.mxu0
    %v3348 = vadd.f32 0.0, %v3347
    %3349 = vmatmul.f32.gmra.mxu0 %v3250
    %v3350 = vpop.f32.mrf.mxu0
    %v3351 = vadd.f32 0.0, %v3350
    %3352 = vmatmul.f32.gmra.mxu0 %v3251
    %v3353 = vpop.f32.mrf.mxu0
    %v3354 = vadd.f32 0.0, %v3353
    %3355 = vmatmul.f32.gmra.mxu0 %v3252
    %v3356 = vpop.f32.mrf.mxu0
    %v3357 = vadd.f32 0.0, %v3356
    %3358 = vmatmul.f32.gmra.mxu0 %v3253
    %v3359 = vpop.f32.mrf.mxu0
    %v3360 = vadd.f32 0.0, %v3359
    %3361 = vmatmul.f32.gmra.mxu0 %v3254
    %v3362 = vpop.f32.mrf.mxu0
    %v3363 = vadd.f32 0.0, %v3362
    %3364 = vmatmul.f32.gmra.mxu0 %v3255
    %v3365 = vpop.f32.mrf.mxu0
    %v3366 = vadd.f32 0.0, %v3365
    %3367 = vmatmul.f32.gmra.mxu0 %v3256
    %v3368 = vpop.f32.mrf.mxu0
    %v3369 = vadd.f32 0.0, %v3368
    %3370 = vmatmul.f32.gmra.mxu0 %v3257
    %v3371 = vpop.f32.mrf.mxu0
    %v3372 = vadd.f32 0.0, %v3371
    %3373 = vmatmul.f32.gmra.mxu0 %v3258
    %v3374 = vpop.f32.mrf.mxu0
    %v3375 = vadd.f32 0.0, %v3374
    %3376 = vmatmul.f32.gmra.mxu0 %v3259
    %v3377 = vpop.f32.mrf.mxu0
    %v3378 = vadd.f32 0.0, %v3377
    %3379 = vmatmul.f32.gmra.mxu0 %v3260
    %v3380 = vpop.f32.mrf.mxu0
    %v3381 = vadd.f32 0.0, %v3380
    %3382 = vmatmul.f32.gmra.mxu0 %v3261
    %v3383 = vpop.f32.mrf.mxu0
    %v3384 = vadd.f32 0.0, %v3383
    %3385 = vmatmul.f32.gmra.mxu0 %v3262
    %v3386 = vpop.f32.mrf.mxu0
    %v3387 = vadd.f32 0.0, %v3386
    %3388 = vmatmul.f32.gmra.mxu0 %v3263
    %v3389 = vpop.f32.mrf.mxu0
    %v3390 = vadd.f32 0.0, %v3389
    %3391 = vmatmul.f32.gmra.mxu0 %v3264
    %v3392 = vpop.f32.mrf.mxu0
    %v3393 = vadd.f32 0.0, %v3392
    %3394 = vmatmul.f32.gmra.mxu0 %v3265
    %v3395 = vpop.f32.mrf.mxu0
    %v3396 = vadd.f32 0.0, %v3395
    %3397 = vmatmul.f32.gmra.mxu0 %v3266
    %v3398 = vpop.f32.mrf.mxu0
    %v3399 = vadd.f32 0.0, %v3398
    %3400 = vmatmul.f32.gmra.mxu0 %v3267
    %v3401 = vpop.f32.mrf.mxu0
    %v3402 = vadd.f32 0.0, %v3401
    %3403 = vmatmul.f32.gmra.mxu0 %v3268
    %v3404 = vpop.f32.mrf.mxu0
    %v3405 = vadd.f32 0.0, %v3404
    %3406 = vmatmul.f32.gmra.mxu0 %v3269
    %v3407 = vpop.f32.mrf.mxu0
    %v3408 = vadd.f32 0.0, %v3407
    %3409 = vmatmul.f32.gmra.mxu0 %v3270
    %v3410 = vpop.f32.mrf.mxu0
    %v3411 = vadd.f32 0.0, %v3410
    %3412 = vmatmul.f32.gmra.mxu0 %v3271
    %v3413 = vpop.f32.mrf.mxu0
    %v3414 = vadd.f32 0.0, %v3413
    %3415 = vmatmul.f32.gmra.mxu0 %v3272
    %v3416 = vpop.f32.mrf.mxu0
    %v3417 = vadd.f32 0.0, %v3416
    %3418 = vmatmul.f32.gmra.mxu0 %v3273
    %v3419 = vpop.f32.mrf.mxu0
    %v3420 = vadd.f32 0.0, %v3419
    %3421 = vmatmul.f32.gmra.mxu0 %v3274
    %v3422 = vpop.f32.mrf.mxu0
    %v3423 = vadd.f32 0.0, %v3422
    %3424 = vmatmul.f32.gmra.mxu0 %v3275
    %v3425 = vpop.f32.mrf.mxu0
    %v3426 = vadd.f32 0.0, %v3425
    %3427 = vmatmul.f32.gmra.mxu0 %v3276
    %v3428 = vpop.f32.mrf.mxu0
    %v3429 = vadd.f32 0.0, %v3428
    %3430 = vmatmul.f32.gmra.mxu0 %v3277
    %v3431 = vpop.f32.mrf.mxu0
    %v3432 = vadd.f32 0.0, %v3431
    %3433 = vmatmul.f32.gmra.mxu0 %v3278
    %v3434 = vpop.f32.mrf.mxu0
    %v3435 = vadd.f32 0.0, %v3434
    %3436 = vmatmul.f32.gmra.mxu0 %v3279
    %v3437 = vpop.f32.mrf.mxu0
    %v3438 = vadd.f32 0.0, %v3437
    %3439 = vmatmul.f32.gmra.mxu0 %v3280
    %v3440 = vpop.f32.mrf.mxu0
    %v3441 = vadd.f32 0.0, %v3440
    %3442 = vmatmul.f32.gmra.mxu0 %v3281
    %v3443 = vpop.f32.mrf.mxu0
    %v3444 = vadd.f32 0.0, %v3443
    %3445 = vmatmul.f32.gmra.mxu0 %v3282
    %v3446 = vpop.f32.mrf.mxu0
    %v3447 = vadd.f32 0.0, %v3446
    %3448 = vmatmul.f32.gmra.mxu0 %v3283
    %v3449 = vpop.f32.mrf.mxu0
    %v3450 = vadd.f32 0.0, %v3449
    %3451 = vmatmul.f32.gmra.mxu0 %v3284
    %v3452 = vpop.f32.mrf.mxu0
    %v3453 = vadd.f32 0.0, %v3452
    %3454 = vmatmul.f32.gmra.mxu0 %v3285
    %v3455 = vpop.f32.mrf.mxu0
    %v3456 = vadd.f32 0.0, %v3455
    %3457 = vmatmul.f32.gmra.mxu0 %v3286
    %v3458 = vpop.f32.mrf.mxu0
    %v3459 = vadd.f32 0.0, %v3458
    %3460 = vmatmul.f32.gmra.mxu0 %v3287
    %v3461 = vpop.f32.mrf.mxu0
    %v3462 = vadd.f32 0.0, %v3461
    %3463 = vmatmul.f32.gmra.mxu0 %v3288
    %v3464 = vpop.f32.mrf.mxu0
    %v3465 = vadd.f32 0.0, %v3464
    %3466 = vmatmul.f32.gmra.mxu0 %v3289
    %v3467 = vpop.f32.mrf.mxu0
    %v3468 = vadd.f32 0.0, %v3467
    %3469 = vmatmul.f32.gmra.mxu0 %v3290
    %v3470 = vpop.f32.mrf.mxu0
    %v3471 = vadd.f32 0.0, %v3470
    %3472 = vmatmul.f32.gmra.mxu0 %v3291
    %v3473 = vpop.f32.mrf.mxu0
    %v3474 = vadd.f32 0.0, %v3473
    %3475 = vmatmul.f32.gmra.mxu0 %v3292
    %v3476 = vpop.f32.mrf.mxu0
    %v3477 = vadd.f32 0.0, %v3476
    %3478 = vmatmul.f32.gmra.mxu0 %v3293
    %v3479 = vpop.f32.mrf.mxu0
    %v3480 = vadd.f32 0.0, %v3479
    %3481 = vmatmul.f32.gmra.mxu0 %v3294
    %v3482 = vpop.f32.mrf.mxu0
    %v3483 = vadd.f32 0.0, %v3482
    %3484 = vmatmul.f32.gmra.mxu0 %v3295
    %v3485 = vpop.f32.mrf.mxu0
    %v3486 = vadd.f32 0.0, %v3485
    %3487 = vmatmul.f32.gmra.mxu0 %v3296
    %v3488 = vpop.f32.mrf.mxu0
    %v3489 = vadd.f32 0.0, %v3488
    %3490 = vmatmul.f32.gmra.mxu0 %v3297
    %v3491 = vpop.f32.mrf.mxu0
    %v3492 = vadd.f32 0.0, %v3491
    %3493 = vmatmul.f32.gmra.mxu0 %v3298
    %v3494 = vpop.f32.mrf.mxu0
    %v3495 = vadd.f32 0.0, %v3494
    %3496 = vmatmul.f32.gmra.mxu0 %v3299
    %v3497 = vpop.f32.mrf.mxu0
    %v3498 = vadd.f32 0.0, %v3497
    %3499 = vmatmul.f32.gmra.mxu0 %v3300
    %v3500 = vpop.f32.mrf.mxu0
    %v3501 = vadd.f32 0.0, %v3500
    %3502 = vmatmul.f32.gmra.mxu0 %v3301
    %v3503 = vpop.f32.mrf.mxu0
    %v3504 = vadd.f32 0.0, %v3503
    %3505 = vmatmul.f32.gmra.mxu0 %v3302
    %v3506 = vpop.f32.mrf.mxu0
    %v3507 = vadd.f32 0.0, %v3506
    %3508 = vmatmul.f32.gmra.mxu0 %v3303
    %v3509 = vpop.f32.mrf.mxu0
    %v3510 = vadd.f32 0.0, %v3509
    %3511 = vmatmul.f32.gmra.mxu0 %v3304
    %v3512 = vpop.f32.mrf.mxu0
    %v3513 = vadd.f32 0.0, %v3512
    %3514 = vmatmul.f32.gmra.mxu0 %v3305
    %v3515 = vpop.f32.mrf.mxu0
    %v3516 = vadd.f32 0.0, %v3515
    %3517 = vmatmul.f32.gmra.mxu0 %v3306
    %v3518 = vpop.f32.mrf.mxu0
    %v3519 = vadd.f32 0.0, %v3518
    %3520 = vmatmul.f32.gmra.mxu0 %v3307
    %v3521 = vpop.f32.mrf.mxu0
    %v3522 = vadd.f32 0.0, %v3521
    %3523 = vmatmul.f32.gmra.mxu0 %v3308
    %v3524 = vpop.f32.mrf.mxu0
    %v3525 = vadd.f32 0.0, %v3524
    %3526 = vmatmul.f32.gmra.mxu0 %v3309
    %v3527 = vpop.f32.mrf.mxu0
    %v3528 = vadd.f32 0.0, %v3527
    %3529 = vmatmul.f32.gmra.mxu0 %v3310
    %v3530 = vpop.f32.mrf.mxu0
    %v3531 = vadd.f32 0.0, %v3530
    %3532 = vmatmul.f32.gmra.mxu0 %v3311
    %v3533 = vpop.f32.mrf.mxu0
    %v3534 = vadd.f32 0.0, %v3533
    %3535 = vmatmul.f32.gmra.mxu0 %v3312
    %v3536 = vpop.f32.mrf.mxu0
    %v3537 = vadd.f32 0.0, %v3536
    %3538 = vdwg.mxu0
    %v3539 = vadd.f32 %v3185, %v3348
    %v3540 = vadd.f32 %v3186, %v3351
    %v3541 = vadd.f32 %v3187, %v3354
    %v3542 = vadd.f32 %v3188, %v3357
    %v3543 = vadd.f32 %v3189, %v3360
    %v3544 = vadd.f32 %v3190, %v3363
    %v3545 = vadd.f32 %v3191, %v3366
    %v3546 = vadd.f32 %v3192, %v3369
    %v3547 = vadd.f32 %v3193, %v3372
    %v3548 = vadd.f32 %v3194, %v3375
    %v3549 = vadd.f32 %v3195, %v3378
    %v3550 = vadd.f32 %v3196, %v3381
    %v3551 = vadd.f32 %v3197, %v3384
    %v3552 = vadd.f32 %v3198, %v3387
    %v3553 = vadd.f32 %v3199, %v3390
    %v3554 = vadd.f32 %v3200, %v3393
    %v3555 = vadd.f32 %v3201, %v3396
    %v3556 = vadd.f32 %v3202, %v3399
    %v3557 = vadd.f32 %v3203, %v3402
    %v3558 = vadd.f32 %v3204, %v3405
    %v3559 = vadd.f32 %v3205, %v3408
    %v3560 = vadd.f32 %v3206, %v3411
    %v3561 = vadd.f32 %v3207, %v3414
    %v3562 = vadd.f32 %v3208, %v3417
    %v3563 = vadd.f32 %v3209, %v3420
    %v3564 = vadd.f32 %v3210, %v3423
    %v3565 = vadd.f32 %v3211, %v3426
    %v3566 = vadd.f32 %v3212, %v3429
    %v3567 = vadd.f32 %v3213, %v3432
    %v3568 = vadd.f32 %v3214, %v3435
    %v3569 = vadd.f32 %v3215, %v3438
    %v3570 = vadd.f32 %v3216, %v3441
    %v3571 = vadd.f32 %v3217, %v3444
    %v3572 = vadd.f32 %v3218, %v3447
    %v3573 = vadd.f32 %v3219, %v3450
    %v3574 = vadd.f32 %v3220, %v3453
    %v3575 = vadd.f32 %v3221, %v3456
    %v3576 = vadd.f32 %v3222, %v3459
    %v3577 = vadd.f32 %v3223, %v3462
    %v3578 = vadd.f32 %v3224, %v3465
    %v3579 = vadd.f32 %v3225, %v3468
    %v3580 = vadd.f32 %v3226, %v3471
    %v3581 = vadd.f32 %v3227, %v3474
    %v3582 = vadd.f32 %v3228, %v3477
    %v3583 = vadd.f32 %v3229, %v3480
    %v3584 = vadd.f32 %v3230, %v3483
    %v3585 = vadd.f32 %v3231, %v3486
    %v3586 = vadd.f32 %v3232, %v3489
    %v3587 = vadd.f32 %v3233, %v3492
    %v3588 = vadd.f32 %v3234, %v3495
    %v3589 = vadd.f32 %v3235, %v3498
    %v3590 = vadd.f32 %v3236, %v3501
    %v3591 = vadd.f32 %v3237, %v3504
    %v3592 = vadd.f32 %v3238, %v3507
    %v3593 = vadd.f32 %v3239, %v3510
    %v3594 = vadd.f32 %v3240, %v3513
    %v3595 = vadd.f32 %v3241, %v3516
    %v3596 = vadd.f32 %v3242, %v3519
    %v3597 = vadd.f32 %v3243, %v3522
    %v3598 = vadd.f32 %v3244, %v3525
    %v3599 = vadd.f32 %v3245, %v3528
    %v3600 = vadd.f32 %v3246, %v3531
    %v3601 = vadd.f32 %v3247, %v3534
    %v3602 = vadd.f32 %v3248, %v3537
    %v3603 = vld [vmem:[%s7] sm:$0xff]
    %v3604 = vld [vmem:[%s7 + $0x8] sm:$0xff]
    %v3605 = vld [vmem:[%s7 + $0x10] sm:$0xff]
    %v3606 = vld [vmem:[%s7 + $0x18] sm:$0xff]
    %v3607 = vld [vmem:[%s7 + $0x20] sm:$0xff]
    %v3608 = vld [vmem:[%s7 + $0x28] sm:$0xff]
    %v3609 = vld [vmem:[%s7 + $0x30] sm:$0xff]
    %v3610 = vld [vmem:[%s7 + $0x38] sm:$0xff]
    %v3611 = vld [vmem:[%s7 + $0x40] sm:$0xff]
    %v3612 = vld [vmem:[%s7 + $0x48] sm:$0xff]
    %v3613 = vld [vmem:[%s7 + $0x50] sm:$0xff]
    %v3614 = vld [vmem:[%s7 + $0x58] sm:$0xff]
    %v3615 = vld [vmem:[%s7 + $0x60] sm:$0xff]
    %v3616 = vld [vmem:[%s7 + $0x68] sm:$0xff]
    %v3617 = vld [vmem:[%s7 + $0x70] sm:$0xff]
    %v3618 = vld [vmem:[%s7 + $0x78] sm:$0xff]
    %v3619 = vld [vmem:[%s7 + $0x80] sm:$0xff]
    %v3620 = vld [vmem:[%s7 + $0x88] sm:$0xff]
    %v3621 = vld [vmem:[%s7 + $0x90] sm:$0xff]
    %v3622 = vld [vmem:[%s7 + $0x98] sm:$0xff]
    %v3623 = vld [vmem:[%s7 + $0xa0] sm:$0xff]
    %v3624 = vld [vmem:[%s7 + $0xa8] sm:$0xff]
    %v3625 = vld [vmem:[%s7 + $0xb0] sm:$0xff]
    %v3626 = vld [vmem:[%s7 + $0xb8] sm:$0xff]
    %v3627 = vld [vmem:[%s7 + $0xc0] sm:$0xff]
    %v3628 = vld [vmem:[%s7 + $0xc8] sm:$0xff]
    %v3629 = vld [vmem:[%s7 + $0xd0] sm:$0xff]
    %v3630 = vld [vmem:[%s7 + $0xd8] sm:$0xff]
    %v3631 = vld [vmem:[%s7 + $0xe0] sm:$0xff]
    %v3632 = vld [vmem:[%s7 + $0xe8] sm:$0xff]
    %v3633 = vld [vmem:[%s7 + $0xf0] sm:$0xff]
    %v3634 = vld [vmem:[%s7 + $0xf8] sm:$0xff]
    %v3635 = vld [vmem:[%s7 + $0x100] sm:$0xff]
    %v3636 = vld [vmem:[%s7 + $0x108] sm:$0xff]
    %v3637 = vld [vmem:[%s7 + $0x110] sm:$0xff]
    %v3638 = vld [vmem:[%s7 + $0x118] sm:$0xff]
    %v3639 = vld [vmem:[%s7 + $0x120] sm:$0xff]
    %v3640 = vld [vmem:[%s7 + $0x128] sm:$0xff]
    %v3641 = vld [vmem:[%s7 + $0x130] sm:$0xff]
    %v3642 = vld [vmem:[%s7 + $0x138] sm:$0xff]
    %v3643 = vld [vmem:[%s7 + $0x140] sm:$0xff]
    %v3644 = vld [vmem:[%s7 + $0x148] sm:$0xff]
    %v3645 = vld [vmem:[%s7 + $0x150] sm:$0xff]
    %v3646 = vld [vmem:[%s7 + $0x158] sm:$0xff]
    %v3647 = vld [vmem:[%s7 + $0x160] sm:$0xff]
    %v3648 = vld [vmem:[%s7 + $0x168] sm:$0xff]
    %v3649 = vld [vmem:[%s7 + $0x170] sm:$0xff]
    %v3650 = vld [vmem:[%s7 + $0x178] sm:$0xff]
    %v3651 = vld [vmem:[%s7 + $0x180] sm:$0xff]
    %v3652 = vld [vmem:[%s7 + $0x188] sm:$0xff]
    %v3653 = vld [vmem:[%s7 + $0x190] sm:$0xff]
    %v3654 = vld [vmem:[%s7 + $0x198] sm:$0xff]
    %v3655 = vld [vmem:[%s7 + $0x1a0] sm:$0xff]
    %v3656 = vld [vmem:[%s7 + $0x1a8] sm:$0xff]
    %v3657 = vld [vmem:[%s7 + $0x1b0] sm:$0xff]
    %v3658 = vld [vmem:[%s7 + $0x1b8] sm:$0xff]
    %v3659 = vld [vmem:[%s7 + $0x1c0] sm:$0xff]
    %v3660 = vld [vmem:[%s7 + $0x1c8] sm:$0xff]
    %v3661 = vld [vmem:[%s7 + $0x1d0] sm:$0xff]
    %v3662 = vld [vmem:[%s7 + $0x1d8] sm:$0xff]
    %v3663 = vld [vmem:[%s7 + $0x1e0] sm:$0xff]
    %v3664 = vld [vmem:[%s7 + $0x1e8] sm:$0xff]
    %v3665 = vld [vmem:[%s7 + $0x1f0] sm:$0xff]
    %v3666 = vld [vmem:[%s7 + $0x1f8] sm:$0xff]
    %v3667 = vld [vmem:[%s4] sm:$0x1]
    %v3669 = vperm.slane %v3667, 0
    %3671 = vmatpush.msra.mxu0 %v3554
    %3672 = vmatpush.msra.mxu0 %v3553
    %3673 = vmatpush.msra.mxu0 %v3552
    %3674 = vmatpush.msra.mxu0 %v3551
    %3675 = vmatpush.msra.mxu0 %v3550
    %3676 = vmatpush.msra.mxu0 %v3549
    %3677 = vmatpush.msra.mxu0 %v3548
    %3678 = vmatpush.msra.mxu0 %v3547
    %3679 = vmatpush.msra.mxu0 %v3546
    %3680 = vmatpush.msra.mxu0 %v3545
    %3681 = vmatpush.msra.mxu0 %v3544
    %3682 = vmatpush.msra.mxu0 %v3543
    %3683 = vmatpush.msra.mxu0 %v3542
    %3684 = vmatpush.msra.mxu0 %v3541
    %3685 = vmatpush.msra.mxu0 %v3540
    %3686 = vmatpush.msra.mxu0 %v3539
    %3687 = vmatmul.f32.gmra.mxu0 %v3603
    %v3688 = vpop.f32.mrf.mxu0
    %v3689 = vadd.f32 %v3669, %v3688
    %3690 = vmatmul.f32.gmra.mxu0 %v3607
    %v3691 = vpop.f32.mrf.mxu0
    %v3692 = vadd.f32 %v3669, %v3691
    %3693 = vmatmul.f32.gmra.mxu0 %v3611
    %v3694 = vpop.f32.mrf.mxu0
    %v3695 = vadd.f32 %v3669, %v3694
    %3696 = vmatmul.f32.gmra.mxu0 %v3615
    %v3697 = vpop.f32.mrf.mxu0
    %v3698 = vadd.f32 %v3669, %v3697
    %3699 = vmatmul.f32.gmra.mxu0 %v3619
    %v3700 = vpop.f32.mrf.mxu0
    %v3701 = vadd.f32 %v3669, %v3700
    %3702 = vmatmul.f32.gmra.mxu0 %v3623
    %v3703 = vpop.f32.mrf.mxu0
    %v3704 = vadd.f32 %v3669, %v3703
    %3705 = vmatmul.f32.gmra.mxu0 %v3627
    %v3706 = vpop.f32.mrf.mxu0
    %v3707 = vadd.f32 %v3669, %v3706
    %3708 = vmatmul.f32.gmra.mxu0 %v3631
    %v3709 = vpop.f32.mrf.mxu0
    %v3710 = vadd.f32 %v3669, %v3709
    %3711 = vmatmul.f32.gmra.mxu0 %v3635
    %v3712 = vpop.f32.mrf.mxu0
    %v3713 = vadd.f32 %v3669, %v3712
    %3714 = vmatmul.f32.gmra.mxu0 %v3639
    %v3715 = vpop.f32.mrf.mxu0
    %v3716 = vadd.f32 %v3669, %v3715
    %3717 = vmatmul.f32.gmra.mxu0 %v3643
    %v3718 = vpop.f32.mrf.mxu0
    %v3719 = vadd.f32 %v3669, %v3718
    %3720 = vmatmul.f32.gmra.mxu0 %v3647
    %v3721 = vpop.f32.mrf.mxu0
    %v3722 = vadd.f32 %v3669, %v3721
    %3723 = vmatmul.f32.gmra.mxu0 %v3651
    %v3724 = vpop.f32.mrf.mxu0
    %v3725 = vadd.f32 %v3669, %v3724
    %3726 = vmatmul.f32.gmra.mxu0 %v3655
    %v3727 = vpop.f32.mrf.mxu0
    %v3728 = vadd.f32 %v3669, %v3727
    %3729 = vmatmul.f32.gmra.mxu0 %v3659
    %v3730 = vpop.f32.mrf.mxu0
    %v3731 = vadd.f32 %v3669, %v3730
    %3732 = vmatmul.f32.gmra.mxu0 %v3663
    %v3733 = vpop.f32.mrf.mxu0
    %v3734 = vadd.f32 %v3669, %v3733
    %3735 = vdwg.mxu0
    %3736 = vmatpush.msra.mxu0 %v3570
    %3737 = vmatpush.msra.mxu0 %v3569
    %3738 = vmatpush.msra.mxu0 %v3568
    %3739 = vmatpush.msra.mxu0 %v3567
    %3740 = vmatpush.msra.mxu0 %v3566
    %3741 = vmatpush.msra.mxu0 %v3565
    %3742 = vmatpush.msra.mxu0 %v3564
    %3743 = vmatpush.msra.mxu0 %v3563
    %3744 = vmatpush.msra.mxu0 %v3562
    %3745 = vmatpush.msra.mxu0 %v3561
    %3746 = vmatpush.msra.mxu0 %v3560
    %3747 = vmatpush.msra.mxu0 %v3559
    %3748 = vmatpush.msra.mxu0 %v3558
    %3749 = vmatpush.msra.mxu0 %v3557
    %3750 = vmatpush.msra.mxu0 %v3556
    %3751 = vmatpush.msra.mxu0 %v3555
    %3752 = vmatmul.f32.gmra.mxu0 %v3604
    %v3753 = vpop.f32.mrf.mxu0
    %v3754 = vadd.f32 %v3689, %v3753
    %3755 = vmatmul.f32.gmra.mxu0 %v3608
    %v3756 = vpop.f32.mrf.mxu0
    %v3757 = vadd.f32 %v3692, %v3756
    %3758 = vmatmul.f32.gmra.mxu0 %v3612
    %v3759 = vpop.f32.mrf.mxu0
    %v3760 = vadd.f32 %v3695, %v3759
    %3761 = vmatmul.f32.gmra.mxu0 %v3616
    %v3762 = vpop.f32.mrf.mxu0
    %v3763 = vadd.f32 %v3698, %v3762
    %3764 = vmatmul.f32.gmra.mxu0 %v3620
    %v3765 = vpop.f32.mrf.mxu0
    %v3766 = vadd.f32 %v3701, %v3765
    %3767 = vmatmul.f32.gmra.mxu0 %v3624
    %v3768 = vpop.f32.mrf.mxu0
    %v3769 = vadd.f32 %v3704, %v3768
    %3770 = vmatmul.f32.gmra.mxu0 %v3628
    %v3771 = vpop.f32.mrf.mxu0
    %v3772 = vadd.f32 %v3707, %v3771
    %3773 = vmatmul.f32.gmra.mxu0 %v3632
    %v3774 = vpop.f32.mrf.mxu0
    %v3775 = vadd.f32 %v3710, %v3774
    %3776 = vmatmul.f32.gmra.mxu0 %v3636
    %v3777 = vpop.f32.mrf.mxu0
    %v3778 = vadd.f32 %v3713, %v3777
    %3779 = vmatmul.f32.gmra.mxu0 %v3640
    %v3780 = vpop.f32.mrf.mxu0
    %v3781 = vadd.f32 %v3716, %v3780
    %3782 = vmatmul.f32.gmra.mxu0 %v3644
    %v3783 = vpop.f32.mrf.mxu0
    %v3784 = vadd.f32 %v3719, %v3783
    %3785 = vmatmul.f32.gmra.mxu0 %v3648
    %v3786 = vpop.f32.mrf.mxu0
    %v3787 = vadd.f32 %v3722, %v3786
    %3788 = vmatmul.f32.gmra.mxu0 %v3652
    %v3789 = vpop.f32.mrf.mxu0
    %v3790 = vadd.f32 %v3725, %v3789
    %3791 = vmatmul.f32.gmra.mxu0 %v3656
    %v3792 = vpop.f32.mrf.mxu0
    %v3793 = vadd.f32 %v3728, %v3792
    %3794 = vmatmul.f32.gmra.mxu0 %v3660
    %v3795 = vpop.f32.mrf.mxu0
    %v3796 = vadd.f32 %v3731, %v3795
    %3797 = vmatmul.f32.gmra.mxu0 %v3664
    %v3798 = vpop.f32.mrf.mxu0
    %v3799 = vadd.f32 %v3734, %v3798
    %3800 = vdwg.mxu0
    %3801 = vmatpush.msra.mxu0 %v3586
    %3802 = vmatpush.msra.mxu0 %v3585
    %3803 = vmatpush.msra.mxu0 %v3584
    %3804 = vmatpush.msra.mxu0 %v3583
    %3805 = vmatpush.msra.mxu0 %v3582
    %3806 = vmatpush.msra.mxu0 %v3581
    %3807 = vmatpush.msra.mxu0 %v3580
    %3808 = vmatpush.msra.mxu0 %v3579
    %3809 = vmatpush.msra.mxu0 %v3578
    %3810 = vmatpush.msra.mxu0 %v3577
    %3811 = vmatpush.msra.mxu0 %v3576
    %3812 = vmatpush.msra.mxu0 %v3575
    %3813 = vmatpush.msra.mxu0 %v3574
    %3814 = vmatpush.msra.mxu0 %v3573
    %3815 = vmatpush.msra.mxu0 %v3572
    %3816 = vmatpush.msra.mxu0 %v3571
    %3817 = vmatmul.f32.gmra.mxu0 %v3605
    %v3818 = vpop.f32.mrf.mxu0
    %v3819 = vadd.f32 %v3754, %v3818
    %3820 = vmatmul.f32.gmra.mxu0 %v3609
    %v3821 = vpop.f32.mrf.mxu0
    %v3822 = vadd.f32 %v3757, %v3821
    %3823 = vmatmul.f32.gmra.mxu0 %v3613
    %v3824 = vpop.f32.mrf.mxu0
    %v3825 = vadd.f32 %v3760, %v3824
    %3826 = vmatmul.f32.gmra.mxu0 %v3617
    %v3827 = vpop.f32.mrf.mxu0
    %v3828 = vadd.f32 %v3763, %v3827
    %3829 = vmatmul.f32.gmra.mxu0 %v3621
    %v3830 = vpop.f32.mrf.mxu0
    %v3831 = vadd.f32 %v3766, %v3830
    %3832 = vmatmul.f32.gmra.mxu0 %v3625
    %v3833 = vpop.f32.mrf.mxu0
    %v3834 = vadd.f32 %v3769, %v3833
    %3835 = vmatmul.f32.gmra.mxu0 %v3629
    %v3836 = vpop.f32.mrf.mxu0
    %v3837 = vadd.f32 %v3772, %v3836
    %3838 = vmatmul.f32.gmra.mxu0 %v3633
    %v3839 = vpop.f32.mrf.mxu0
    %v3840 = vadd.f32 %v3775, %v3839
    %3841 = vmatmul.f32.gmra.mxu0 %v3637
    %v3842 = vpop.f32.mrf.mxu0
    %v3843 = vadd.f32 %v3778, %v3842
    %3844 = vmatmul.f32.gmra.mxu0 %v3641
    %v3845 = vpop.f32.mrf.mxu0
    %v3846 = vadd.f32 %v3781, %v3845
    %3847 = vmatmul.f32.gmra.mxu0 %v3645
    %v3848 = vpop.f32.mrf.mxu0
    %v3849 = vadd.f32 %v3784, %v3848
    %3850 = vmatmul.f32.gmra.mxu0 %v3649
    %v3851 = vpop.f32.mrf.mxu0
    %v3852 = vadd.f32 %v3787, %v3851
    %3853 = vmatmul.f32.gmra.mxu0 %v3653
    %v3854 = vpop.f32.mrf.mxu0
    %v3855 = vadd.f32 %v3790, %v3854
    %3856 = vmatmul.f32.gmra.mxu0 %v3657
    %v3857 = vpop.f32.mrf.mxu0
    %v3858 = vadd.f32 %v3793, %v3857
    %3859 = vmatmul.f32.gmra.mxu0 %v3661
    %v3860 = vpop.f32.mrf.mxu0
    %v3861 = vadd.f32 %v3796, %v3860
    %3862 = vmatmul.f32.gmra.mxu0 %v3665
    %v3863 = vpop.f32.mrf.mxu0
    %v3864 = vadd.f32 %v3799, %v3863
    %3865 = vdwg.mxu0
    %3866 = vmatpush.msra.mxu0 %v3602
    %3867 = vmatpush.msra.mxu0 %v3601
    %3868 = vmatpush.msra.mxu0 %v3600
    %3869 = vmatpush.msra.mxu0 %v3599
    %3870 = vmatpush.msra.mxu0 %v3598
    %3871 = vmatpush.msra.mxu0 %v3597
    %3872 = vmatpush.msra.mxu0 %v3596
    %3873 = vmatpush.msra.mxu0 %v3595
    %3874 = vmatpush.msra.mxu0 %v3594
    %3875 = vmatpush.msra.mxu0 %v3593
    %3876 = vmatpush.msra.mxu0 %v3592
    %3877 = vmatpush.msra.mxu0 %v3591
    %3878 = vmatpush.msra.mxu0 %v3590
    %3879 = vmatpush.msra.mxu0 %v3589
    %3880 = vmatpush.msra.mxu0 %v3588
    %3881 = vmatpush.msra.mxu0 %v3587
    %3882 = vmatmul.f32.gmra.mxu0 %v3606
    %v3883 = vpop.f32.mrf.mxu0
    %v3884 = vadd.f32 %v3819, %v3883
    %3885 = vmatmul.f32.gmra.mxu0 %v3610
    %v3886 = vpop.f32.mrf.mxu0
    %v3887 = vadd.f32 %v3822, %v3886
    %3888 = vmatmul.f32.gmra.mxu0 %v3614
    %v3889 = vpop.f32.mrf.mxu0
    %v3890 = vadd.f32 %v3825, %v3889
    %3891 = vmatmul.f32.gmra.mxu0 %v3618
    %v3892 = vpop.f32.mrf.mxu0
    %v3893 = vadd.f32 %v3828, %v3892
    %3894 = vmatmul.f32.gmra.mxu0 %v3622
    %v3895 = vpop.f32.mrf.mxu0
    %v3896 = vadd.f32 %v3831, %v3895
    %3897 = vmatmul.f32.gmra.mxu0 %v3626
    %v3898 = vpop.f32.mrf.mxu0
    %v3899 = vadd.f32 %v3834, %v3898
    %3900 = vmatmul.f32.gmra.mxu0 %v3630
    %v3901 = vpop.f32.mrf.mxu0
    %v3902 = vadd.f32 %v3837, %v3901
    %3903 = vmatmul.f32.gmra.mxu0 %v3634
    %v3904 = vpop.f32.mrf.mxu0
    %v3905 = vadd.f32 %v3840, %v3904
    %3906 = vmatmul.f32.gmra.mxu0 %v3638
    %v3907 = vpop.f32.mrf.mxu0
    %v3908 = vadd.f32 %v3843, %v3907
    %3909 = vmatmul.f32.gmra.mxu0 %v3642
    %v3910 = vpop.f32.mrf.mxu0
    %v3911 = vadd.f32 %v3846, %v3910
    %3912 = vmatmul.f32.gmra.mxu0 %v3646
    %v3913 = vpop.f32.mrf.mxu0
    %v3914 = vadd.f32 %v3849, %v3913
    %3915 = vmatmul.f32.gmra.mxu0 %v3650
    %v3916 = vpop.f32.mrf.mxu0
    %v3917 = vadd.f32 %v3852, %v3916
    %3918 = vmatmul.f32.gmra.mxu0 %v3654
    %v3919 = vpop.f32.mrf.mxu0
    %v3920 = vadd.f32 %v3855, %v3919
    %3921 = vmatmul.f32.gmra.mxu0 %v3658
    %v3922 = vpop.f32.mrf.mxu0
    %v3923 = vadd.f32 %v3858, %v3922
    %3924 = vmatmul.f32.gmra.mxu0 %v3662
    %v3925 = vpop.f32.mrf.mxu0
    %v3926 = vadd.f32 %v3861, %v3925
    %3927 = vmatmul.f32.gmra.mxu0 %v3666
    %v3928 = vpop.f32.mrf.mxu0
    %v3929 = vadd.f32 %v3864, %v3928
    %3930 = vdwg.mxu0
    %v3931 = vmax.f32 %v3884, 0.0
    %v3932 = vmax.f32 %v3887, 0.0
    %v3933 = vmax.f32 %v3890, 0.0
    %v3934 = vmax.f32 %v3893, 0.0
    %v3935 = vmax.f32 %v3896, 0.0
    %v3936 = vmax.f32 %v3899, 0.0
    %v3937 = vmax.f32 %v3902, 0.0
    %v3938 = vmax.f32 %v3905, 0.0
    %v3939 = vmax.f32 %v3908, 0.0
    %v3940 = vmax.f32 %v3911, 0.0
    %v3941 = vmax.f32 %v3914, 0.0
    %v3942 = vmax.f32 %v3917, 0.0
    %v3943 = vmax.f32 %v3920, 0.0
    %v3944 = vmax.f32 %v3923, 0.0
    %v3945 = vmax.f32 %v3926, 0.0
    %v3946 = vmax.f32 %v3929, 0.0
    %3947 = vst [vmem:[#allocation3] sm:$0xff] 0.0
    %3948 = vst [vmem:[#allocation3 + $0x8] sm:$0x3] 0.0
    %3949 = vst [vmem:[#allocation3 + $0x10] sm:$0xff] 0.0
    %3950 = vst [vmem:[#allocation3 + $0x18] sm:$0x3] 0.0
    %3951 = vst [vmem:[#allocation3 + $0x20] sm:$0xff] 0.0
    %3952 = vst [vmem:[#allocation3 + $0x28] sm:$0x3] 0.0
    %3953 = vst [vmem:[#allocation3 + $0x30] sm:$0xff] 0.0
    %3954 = vst [vmem:[#allocation3 + $0x38] sm:$0x3] 0.0
    %3955 = vst [vmem:[#allocation3 + $0x40] sm:$0xff] 0.0
    %3956 = vst [vmem:[#allocation3 + $0x48] sm:$0x3] 0.0
    %3957 = vst [vmem:[#allocation3 + $0x50] sm:$0xff] 0.0
    %3958 = vst [vmem:[#allocation3 + $0x58] sm:$0x3] 0.0
    %3959 = vst [vmem:[#allocation3 + $0x60] sm:$0xff] 0.0
    %3960 = vst [vmem:[#allocation3 + $0x68] sm:$0x3] 0.0
    %3961 = vst [vmem:[#allocation3 + $0x70] sm:$0xff] 0.0
    %3962 = vst [vmem:[#allocation3 + $0x78] sm:$0x3] 0.0
    %3963 = vst [vmem:[#allocation3 + $0x80] sm:$0xff] 0.0
    %3964 = vst [vmem:[#allocation3 + $0x88] sm:$0x3] 0.0
    %3965 = vst [vmem:[#allocation3 + $0x90] sm:$0xff] 0.0
    %3966 = vst [vmem:[#allocation3 + $0x98] sm:$0x3] 0.0
    %3967 = vst [vmem:[#allocation3 + $0xa0] sm:$0xff] 0.0
    %3968 = vst [vmem:[#allocation3 + $0xa8] sm:$0x3] 0.0
    %3969 = vst [vmem:[#allocation3 + $0xb0] sm:$0xff] 0.0
    %3970 = vst [vmem:[#allocation3 + $0xb8] sm:$0x3] 0.0
    %3971 = vst [vmem:[#allocation3 + $0xc0] sm:$0xff] 0.0
    %3972 = vst [vmem:[#allocation3 + $0xc8] sm:$0x3] 0.0
    %3973 = vst [vmem:[#allocation3 + $0xd0] sm:$0xff] 0.0
    %3974 = vst [vmem:[#allocation3 + $0xd8] sm:$0x3] 0.0
    %3975 = vst [vmem:[#allocation3 + $0xe0] sm:$0xff] 0.0
    %3976 = vst [vmem:[#allocation3 + $0xe8] sm:$0x3] 0.0
    %3977 = vst [vmem:[#allocation3 + $0xf0] sm:$0xff] 0.0
    %3978 = vst [vmem:[#allocation3 + $0xf8] sm:$0x3] 0.0
    %3979 = vst [vmem:[#allocation3 + $0x100] sm:$0xff] 0.0
    %3980 = vst [vmem:[#allocation3 + $0x108] sm:$0x3] 0.0
    %3981 = vst [vmem:[#allocation3 + $0x110] sm:$0xff] 0.0
    %3982 = vst [vmem:[#allocation3 + $0x118] sm:$0x3] 0.0
    %3983 = vst [vmem:[#allocation3 + $0x120] sm:$0xff] 0.0
    %3984 = vst [vmem:[#allocation3 + $0x128] sm:$0x3] 0.0
    %3985 = vst [vmem:[#allocation3 + $0x130] sm:$0xff] 0.0
    %3986 = vst [vmem:[#allocation3 + $0x138] sm:$0x3] 0.0
    %s3987 = scalar_lea.vmem [#allocation3], 16
    %3988 = vst [vmem:[%s3987 + $0x1] sm:$0xff] %v3931
    %3989 = vst [vmem:[%s3987 + $0x11] sm:$0xff] %v3932
    %3990 = vst [vmem:[%s3987 + $0x21] sm:$0xff] %v3933
    %3991 = vst [vmem:[%s3987 + $0x31] sm:$0xff] %v3934
    %3992 = vst [vmem:[%s3987 + $0x41] sm:$0xff] %v3935
    %3993 = vst [vmem:[%s3987 + $0x51] sm:$0xff] %v3936
    %3994 = vst [vmem:[%s3987 + $0x61] sm:$0xff] %v3937
    %3995 = vst [vmem:[%s3987 + $0x71] sm:$0xff] %v3938
    %3996 = vst [vmem:[%s3987 + $0xa1] sm:$0xff] %v3939
    %3997 = vst [vmem:[%s3987 + $0xb1] sm:$0xff] %v3940
    %3998 = vst [vmem:[%s3987 + $0xc1] sm:$0xff] %v3941
    %3999 = vst [vmem:[%s3987 + $0xd1] sm:$0xff] %v3942
    %4000 = vst [vmem:[%s3987 + $0xe1] sm:$0xff] %v3943
    %4001 = vst [vmem:[%s3987 + $0xf1] sm:$0xff] %v3944
    %4002 = vst [vmem:[%s3987 + $0x101] sm:$0xff] %v3945
    %4003 = vst [vmem:[%s3987 + $0x111] sm:$0xff] %v3946
    %v4004 = vld [vmem:[#allocation3] sm:$0xff]
    %v4005 = vld [vmem:[#allocation3 + $0x10] sm:$0xff]
    %v4006 = vld [vmem:[#allocation3 + $0x20] sm:$0xff]
    %v4007 = vld [vmem:[#allocation3 + $0x30] sm:$0xff]
    %v4008 = vld [vmem:[#allocation3 + $0x40] sm:$0xff]
    %v4009 = vld [vmem:[#allocation3 + $0x50] sm:$0xff]
    %v4010 = vld [vmem:[#allocation3 + $0x60] sm:$0xff]
    %v4011 = vld [vmem:[#allocation3 + $0x70] sm:$0xff]
    %v4012 = vld [vmem:[#allocation3 + $0xa0] sm:$0xff]
    %v4013 = vld [vmem:[#allocation3 + $0xb0] sm:$0xff]
    %v4014 = vld [vmem:[#allocation3 + $0xc0] sm:$0xff]
    %v4015 = vld [vmem:[#allocation3 + $0xd0] sm:$0xff]
    %v4016 = vld [vmem:[#allocation3 + $0xe0] sm:$0xff]
    %v4017 = vld [vmem:[#allocation3 + $0xf0] sm:$0xff]
    %v4018 = vld [vmem:[#allocation3 + $0x100] sm:$0xff]
    %v4019 = vld [vmem:[#allocation3 + $0x110] sm:$0xff]
    %v4020 = vld [vmem:[#allocation9] sm:$0xff]
    %v4021 = vld [vmem:[#allocation9 + $0x8] sm:$0xff]
    %v4022 = vld [vmem:[#allocation9 + $0x10] sm:$0xff]
    %v4023 = vld [vmem:[#allocation9 + $0x18] sm:$0xff]
    %v4024 = vld [vmem:[#allocation9 + $0x20] sm:$0xff]
    %v4025 = vld [vmem:[#allocation9 + $0x28] sm:$0xff]
    %v4026 = vld [vmem:[#allocation9 + $0x30] sm:$0xff]
    %v4027 = vld [vmem:[#allocation9 + $0x38] sm:$0xff]
    %v4028 = vld [vmem:[#allocation9 + $0x40] sm:$0xff]
    %v4029 = vld [vmem:[#allocation9 + $0x48] sm:$0xff]
    %v4030 = vld [vmem:[#allocation9 + $0x50] sm:$0xff]
    %v4031 = vld [vmem:[#allocation9 + $0x58] sm:$0xff]
    %v4032 = vld [vmem:[#allocation9 + $0x60] sm:$0xff]
    %v4033 = vld [vmem:[#allocation9 + $0x68] sm:$0xff]
    %v4034 = vld [vmem:[#allocation9 + $0x70] sm:$0xff]
    %v4035 = vld [vmem:[#allocation9 + $0x78] sm:$0xff]
    %v4036 = vld [vmem:[#allocation3 + $0x1] sm:$0xff]
    %v4037 = vld [vmem:[#allocation3 + $0x11] sm:$0xff]
    %v4038 = vld [vmem:[#allocation3 + $0x21] sm:$0xff]
    %v4039 = vld [vmem:[#allocation3 + $0x31] sm:$0xff]
    %v4040 = vld [vmem:[#allocation3 + $0x41] sm:$0xff]
    %v4041 = vld [vmem:[#allocation3 + $0x51] sm:$0xff]
    %v4042 = vld [vmem:[#allocation3 + $0x61] sm:$0xff]
    %v4043 = vld [vmem:[#allocation3 + $0x71] sm:$0xff]
    %v4044 = vld [vmem:[#allocation3 + $0xa1] sm:$0xff]
    %v4045 = vld [vmem:[#allocation3 + $0xb1] sm:$0xff]
    %v4046 = vld [vmem:[#allocation3 + $0xc1] sm:$0xff]
    %v4047 = vld [vmem:[#allocation3 + $0xd1] sm:$0xff]
    %v4048 = vld [vmem:[#allocation3 + $0xe1] sm:$0xff]
    %v4049 = vld [vmem:[#allocation3 + $0xf1] sm:$0xff]
    %v4050 = vld [vmem:[#allocation3 + $0x101] sm:$0xff]
    %v4051 = vld [vmem:[#allocation3 + $0x111] sm:$0xff]
    %s4052 = scalar_lea.vmem [#allocation9], 128
    %v4053 = vld [vmem:[%s4052] sm:$0xff]
    %v4054 = vld [vmem:[%s4052 + $0x8] sm:$0xff]
    %v4055 = vld [vmem:[%s4052 + $0x10] sm:$0xff]
    %v4056 = vld [vmem:[%s4052 + $0x18] sm:$0xff]
    %v4057 = vld [vmem:[%s4052 + $0x20] sm:$0xff]
    %v4058 = vld [vmem:[%s4052 + $0x28] sm:$0xff]
    %v4059 = vld [vmem:[%s4052 + $0x30] sm:$0xff]
    %v4060 = vld [vmem:[%s4052 + $0x38] sm:$0xff]
    %v4061 = vld [vmem:[%s4052 + $0x40] sm:$0xff]
    %v4062 = vld [vmem:[%s4052 + $0x48] sm:$0xff]
    %v4063 = vld [vmem:[%s4052 + $0x50] sm:$0xff]
    %v4064 = vld [vmem:[%s4052 + $0x58] sm:$0xff]
    %v4065 = vld [vmem:[%s4052 + $0x60] sm:$0xff]
    %v4066 = vld [vmem:[%s4052 + $0x68] sm:$0xff]
    %v4067 = vld [vmem:[%s4052 + $0x70] sm:$0xff]
    %v4068 = vld [vmem:[%s4052 + $0x78] sm:$0xff]
    %4069 = vmatpush.msra.mxu0 %v4068
    %4070 = vmatpush.msra.mxu0 %v4067
    %4071 = vmatpush.msra.mxu0 %v4066
    %4072 = vmatpush.msra.mxu0 %v4065
    %4073 = vmatpush.msra.mxu0 %v4064
    %4074 = vmatpush.msra.mxu0 %v4063
    %4075 = vmatpush.msra.mxu0 %v4062
    %4076 = vmatpush.msra.mxu0 %v4061
    %4077 = vmatpush.msra.mxu0 %v4060
    %4078 = vmatpush.msra.mxu0 %v4059
    %4079 = vmatpush.msra.mxu0 %v4058
    %4080 = vmatpush.msra.mxu0 %v4057
    %4081 = vmatpush.msra.mxu0 %v4056
    %4082 = vmatpush.msra.mxu0 %v4055
    %4083 = vmatpush.msra.mxu0 %v4054
    %4084 = vmatpush.msra.mxu0 %v4053
    %4085 = vmatmul.f32.gmra.mxu0 %v4036
    %v4086 = vpop.f32.mrf.mxu0
    %v4087 = vadd.f32 0.0, %v4086
    %4088 = vmatmul.f32.gmra.mxu0 %v4037
    %v4089 = vpop.f32.mrf.mxu0
    %v4090 = vadd.f32 0.0, %v4089
    %4091 = vmatmul.f32.gmra.mxu0 %v4038
    %v4092 = vpop.f32.mrf.mxu0
    %v4093 = vadd.f32 0.0, %v4092
    %4094 = vmatmul.f32.gmra.mxu0 %v4039
    %v4095 = vpop.f32.mrf.mxu0
    %v4096 = vadd.f32 0.0, %v4095
    %4097 = vmatmul.f32.gmra.mxu0 %v4040
    %v4098 = vpop.f32.mrf.mxu0
    %v4099 = vadd.f32 0.0, %v4098
    %4100 = vmatmul.f32.gmra.mxu0 %v4041
    %v4101 = vpop.f32.mrf.mxu0
    %v4102 = vadd.f32 0.0, %v4101
    %4103 = vmatmul.f32.gmra.mxu0 %v4042
    %v4104 = vpop.f32.mrf.mxu0
    %v4105 = vadd.f32 0.0, %v4104
    %4106 = vmatmul.f32.gmra.mxu0 %v4043
    %v4107 = vpop.f32.mrf.mxu0
    %v4108 = vadd.f32 0.0, %v4107
    %4109 = vmatmul.f32.gmra.mxu0 %v4044
    %v4110 = vpop.f32.mrf.mxu0
    %v4111 = vadd.f32 0.0, %v4110
    %4112 = vmatmul.f32.gmra.mxu0 %v4045
    %v4113 = vpop.f32.mrf.mxu0
    %v4114 = vadd.f32 0.0, %v4113
    %4115 = vmatmul.f32.gmra.mxu0 %v4046
    %v4116 = vpop.f32.mrf.mxu0
    %v4117 = vadd.f32 0.0, %v4116
    %4118 = vmatmul.f32.gmra.mxu0 %v4047
    %v4119 = vpop.f32.mrf.mxu0
    %v4120 = vadd.f32 0.0, %v4119
    %4121 = vmatmul.f32.gmra.mxu0 %v4048
    %v4122 = vpop.f32.mrf.mxu0
    %v4123 = vadd.f32 0.0, %v4122
    %4124 = vmatmul.f32.gmra.mxu0 %v4049
    %v4125 = vpop.f32.mrf.mxu0
    %v4126 = vadd.f32 0.0, %v4125
    %4127 = vmatmul.f32.gmra.mxu0 %v4050
    %v4128 = vpop.f32.mrf.mxu0
    %v4129 = vadd.f32 0.0, %v4128
    %4130 = vmatmul.f32.gmra.mxu0 %v4051
    %v4131 = vpop.f32.mrf.mxu0
    %v4132 = vadd.f32 0.0, %v4131
    %4133 = vdwg.mxu0
    %4134 = vmatpush.msra.mxu0 %v4035
    %4135 = vmatpush.msra.mxu0 %v4034
    %4136 = vmatpush.msra.mxu0 %v4033
    %4137 = vmatpush.msra.mxu0 %v4032
    %4138 = vmatpush.msra.mxu0 %v4031
    %4139 = vmatpush.msra.mxu0 %v4030
    %4140 = vmatpush.msra.mxu0 %v4029
    %4141 = vmatpush.msra.mxu0 %v4028
    %4142 = vmatpush.msra.mxu0 %v4027
    %4143 = vmatpush.msra.mxu0 %v4026
    %4144 = vmatpush.msra.mxu0 %v4025
    %4145 = vmatpush.msra.mxu0 %v4024
    %4146 = vmatpush.msra.mxu0 %v4023
    %4147 = vmatpush.msra.mxu0 %v4022
    %4148 = vmatpush.msra.mxu0 %v4021
    %4149 = vmatpush.msra.mxu0 %v4020
    %4150 = vmatmul.f32.gmra.mxu0 %v4004
    %v4151 = vpop.f32.mrf.mxu0
    %v4152 = vadd.f32 %v4087, %v4151
    %4153 = vmatmul.f32.gmra.mxu0 %v4005
    %v4154 = vpop.f32.mrf.mxu0
    %v4155 = vadd.f32 %v4090, %v4154
    %4156 = vmatmul.f32.gmra.mxu0 %v4006
    %v4157 = vpop.f32.mrf.mxu0
    %v4158 = vadd.f32 %v4093, %v4157
    %4159 = vmatmul.f32.gmra.mxu0 %v4007
    %v4160 = vpop.f32.mrf.mxu0
    %v4161 = vadd.f32 %v4096, %v4160
    %4162 = vmatmul.f32.gmra.mxu0 %v4008
    %v4163 = vpop.f32.mrf.mxu0
    %v4164 = vadd.f32 %v4099, %v4163
    %4165 = vmatmul.f32.gmra.mxu0 %v4009
    %v4166 = vpop.f32.mrf.mxu0
    %v4167 = vadd.f32 %v4102, %v4166
    %4168 = vmatmul.f32.gmra.mxu0 %v4010
    %v4169 = vpop.f32.mrf.mxu0
    %v4170 = vadd.f32 %v4105, %v4169
    %4171 = vmatmul.f32.gmra.mxu0 %v4011
    %v4172 = vpop.f32.mrf.mxu0
    %v4173 = vadd.f32 %v4108, %v4172
    %4174 = vmatmul.f32.gmra.mxu0 %v4012
    %v4175 = vpop.f32.mrf.mxu0
    %v4176 = vadd.f32 %v4111, %v4175
    %4177 = vmatmul.f32.gmra.mxu0 %v4013
    %v4178 = vpop.f32.mrf.mxu0
    %v4179 = vadd.f32 %v4114, %v4178
    %4180 = vmatmul.f32.gmra.mxu0 %v4014
    %v4181 = vpop.f32.mrf.mxu0
    %v4182 = vadd.f32 %v4117, %v4181
    %4183 = vmatmul.f32.gmra.mxu0 %v4015
    %v4184 = vpop.f32.mrf.mxu0
    %v4185 = vadd.f32 %v4120, %v4184
    %4186 = vmatmul.f32.gmra.mxu0 %v4016
    %v4187 = vpop.f32.mrf.mxu0
    %v4188 = vadd.f32 %v4123, %v4187
    %4189 = vmatmul.f32.gmra.mxu0 %v4017
    %v4190 = vpop.f32.mrf.mxu0
    %v4191 = vadd.f32 %v4126, %v4190
    %4192 = vmatmul.f32.gmra.mxu0 %v4018
    %v4193 = vpop.f32.mrf.mxu0
    %v4194 = vadd.f32 %v4129, %v4193
    %4195 = vmatmul.f32.gmra.mxu0 %v4019
    %v4196 = vpop.f32.mrf.mxu0
    %v4197 = vadd.f32 %v4132, %v4196
    %4198 = vdwg.mxu0
    %v4199 = vld [vmem:[#allocation3 + $0x2] sm:$0xff]
    %v4200 = vld [vmem:[#allocation3 + $0x12] sm:$0xff]
    %v4201 = vld [vmem:[#allocation3 + $0x22] sm:$0xff]
    %v4202 = vld [vmem:[#allocation3 + $0x32] sm:$0xff]
    %v4203 = vld [vmem:[#allocation3 + $0x42] sm:$0xff]
    %v4204 = vld [vmem:[#allocation3 + $0x52] sm:$0xff]
    %v4205 = vld [vmem:[#allocation3 + $0x62] sm:$0xff]
    %v4206 = vld [vmem:[#allocation3 + $0x72] sm:$0xff]
    %v4207 = vld [vmem:[#allocation3 + $0xa2] sm:$0xff]
    %v4208 = vld [vmem:[#allocation3 + $0xb2] sm:$0xff]
    %v4209 = vld [vmem:[#allocation3 + $0xc2] sm:$0xff]
    %v4210 = vld [vmem:[#allocation3 + $0xd2] sm:$0xff]
    %v4211 = vld [vmem:[#allocation3 + $0xe2] sm:$0xff]
    %v4212 = vld [vmem:[#allocation3 + $0xf2] sm:$0xff]
    %v4213 = vld [vmem:[#allocation3 + $0x102] sm:$0xff]
    %v4214 = vld [vmem:[#allocation3 + $0x112] sm:$0xff]
    %s4215 = scalar_lea.vmem [#allocation9], 256
    %v4216 = vld [vmem:[%s4215] sm:$0xff]
    %v4217 = vld [vmem:[%s4215 + $0x8] sm:$0xff]
    %v4218 = vld [vmem:[%s4215 + $0x10] sm:$0xff]
    %v4219 = vld [vmem:[%s4215 + $0x18] sm:$0xff]
    %v4220 = vld [vmem:[%s4215 + $0x20] sm:$0xff]
    %v4221 = vld [vmem:[%s4215 + $0x28] sm:$0xff]
    %v4222 = vld [vmem:[%s4215 + $0x30] sm:$0xff]
    %v4223 = vld [vmem:[%s4215 + $0x38] sm:$0xff]
    %v4224 = vld [vmem:[%s4215 + $0x40] sm:$0xff]
    %v4225 = vld [vmem:[%s4215 + $0x48] sm:$0xff]
    %v4226 = vld [vmem:[%s4215 + $0x50] sm:$0xff]
    %v4227 = vld [vmem:[%s4215 + $0x58] sm:$0xff]
    %v4228 = vld [vmem:[%s4215 + $0x60] sm:$0xff]
    %v4229 = vld [vmem:[%s4215 + $0x68] sm:$0xff]
    %v4230 = vld [vmem:[%s4215 + $0x70] sm:$0xff]
    %v4231 = vld [vmem:[%s4215 + $0x78] sm:$0xff]
    %4232 = vmatpush.msra.mxu0 %v4231
    %4233 = vmatpush.msra.mxu0 %v4230
    %4234 = vmatpush.msra.mxu0 %v4229
    %4235 = vmatpush.msra.mxu0 %v4228
    %4236 = vmatpush.msra.mxu0 %v4227
    %4237 = vmatpush.msra.mxu0 %v4226
    %4238 = vmatpush.msra.mxu0 %v4225
    %4239 = vmatpush.msra.mxu0 %v4224
    %4240 = vmatpush.msra.mxu0 %v4223
    %4241 = vmatpush.msra.mxu0 %v4222
    %4242 = vmatpush.msra.mxu0 %v4221
    %4243 = vmatpush.msra.mxu0 %v4220
    %4244 = vmatpush.msra.mxu0 %v4219
    %4245 = vmatpush.msra.mxu0 %v4218
    %4246 = vmatpush.msra.mxu0 %v4217
    %4247 = vmatpush.msra.mxu0 %v4216
    %4248 = vmatmul.f32.gmra.mxu0 %v4199
    %v4249 = vpop.f32.mrf.mxu0
    %v4250 = vadd.f32 0.0, %v4249
    %4251 = vmatmul.f32.gmra.mxu0 %v4200
    %v4252 = vpop.f32.mrf.mxu0
    %v4253 = vadd.f32 0.0, %v4252
    %4254 = vmatmul.f32.gmra.mxu0 %v4201
    %v4255 = vpop.f32.mrf.mxu0
    %v4256 = vadd.f32 0.0, %v4255
    %4257 = vmatmul.f32.gmra.mxu0 %v4202
    %v4258 = vpop.f32.mrf.mxu0
    %v4259 = vadd.f32 0.0, %v4258
    %4260 = vmatmul.f32.gmra.mxu0 %v4203
    %v4261 = vpop.f32.mrf.mxu0
    %v4262 = vadd.f32 0.0, %v4261
    %4263 = vmatmul.f32.gmra.mxu0 %v4204
    %v4264 = vpop.f32.mrf.mxu0
    %v4265 = vadd.f32 0.0, %v4264
    %4266 = vmatmul.f32.gmra.mxu0 %v4205
    %v4267 = vpop.f32.mrf.mxu0
    %v4268 = vadd.f32 0.0, %v4267
    %4269 = vmatmul.f32.gmra.mxu0 %v4206
    %v4270 = vpop.f32.mrf.mxu0
    %v4271 = vadd.f32 0.0, %v4270
    %4272 = vmatmul.f32.gmra.mxu0 %v4207
    %v4273 = vpop.f32.mrf.mxu0
    %v4274 = vadd.f32 0.0, %v4273
    %4275 = vmatmul.f32.gmra.mxu0 %v4208
    %v4276 = vpop.f32.mrf.mxu0
    %v4277 = vadd.f32 0.0, %v4276
    %4278 = vmatmul.f32.gmra.mxu0 %v4209
    %v4279 = vpop.f32.mrf.mxu0
    %v4280 = vadd.f32 0.0, %v4279
    %4281 = vmatmul.f32.gmra.mxu0 %v4210
    %v4282 = vpop.f32.mrf.mxu0
    %v4283 = vadd.f32 0.0, %v4282
    %4284 = vmatmul.f32.gmra.mxu0 %v4211
    %v4285 = vpop.f32.mrf.mxu0
    %v4286 = vadd.f32 0.0, %v4285
    %4287 = vmatmul.f32.gmra.mxu0 %v4212
    %v4288 = vpop.f32.mrf.mxu0
    %v4289 = vadd.f32 0.0, %v4288
    %4290 = vmatmul.f32.gmra.mxu0 %v4213
    %v4291 = vpop.f32.mrf.mxu0
    %v4292 = vadd.f32 0.0, %v4291
    %4293 = vmatmul.f32.gmra.mxu0 %v4214
    %v4294 = vpop.f32.mrf.mxu0
    %v4295 = vadd.f32 0.0, %v4294
    %4296 = vdwg.mxu0
    %v4297 = vadd.f32 %v4152, %v4250
    %v4298 = vadd.f32 %v4155, %v4253
    %v4299 = vadd.f32 %v4158, %v4256
    %v4300 = vadd.f32 %v4161, %v4259
    %v4301 = vadd.f32 %v4164, %v4262
    %v4302 = vadd.f32 %v4167, %v4265
    %v4303 = vadd.f32 %v4170, %v4268
    %v4304 = vadd.f32 %v4173, %v4271
    %v4305 = vadd.f32 %v4176, %v4274
    %v4306 = vadd.f32 %v4179, %v4277
    %v4307 = vadd.f32 %v4182, %v4280
    %v4308 = vadd.f32 %v4185, %v4283
    %v4309 = vadd.f32 %v4188, %v4286
    %v4310 = vadd.f32 %v4191, %v4289
    %v4311 = vadd.f32 %v4194, %v4292
    %v4312 = vadd.f32 %v4197, %v4295
    %v4313 = vld [vmem:[%s3987] sm:$0xff]
    %v4314 = vld [vmem:[%s3987 + $0x10] sm:$0xff]
    %v4315 = vld [vmem:[%s3987 + $0x20] sm:$0xff]
    %v4316 = vld [vmem:[%s3987 + $0x30] sm:$0xff]
    %v4317 = vld [vmem:[%s3987 + $0x40] sm:$0xff]
    %v4318 = vld [vmem:[%s3987 + $0x50] sm:$0xff]
    %v4319 = vld [vmem:[%s3987 + $0x60] sm:$0xff]
    %v4320 = vld [vmem:[%s3987 + $0x70] sm:$0xff]
    %v4321 = vld [vmem:[%s3987 + $0xa0] sm:$0xff]
    %v4322 = vld [vmem:[%s3987 + $0xb0] sm:$0xff]
    %v4323 = vld [vmem:[%s3987 + $0xc0] sm:$0xff]
    %v4324 = vld [vmem:[%s3987 + $0xd0] sm:$0xff]
    %v4325 = vld [vmem:[%s3987 + $0xe0] sm:$0xff]
    %v4326 = vld [vmem:[%s3987 + $0xf0] sm:$0xff]
    %v4327 = vld [vmem:[%s3987 + $0x100] sm:$0xff]
    %v4328 = vld [vmem:[%s3987 + $0x110] sm:$0xff]
    %s4329 = scalar_lea.vmem [#allocation9], 384
    %v4330 = vld [vmem:[%s4329] sm:$0xff]
    %v4331 = vld [vmem:[%s4329 + $0x8] sm:$0xff]
    %v4332 = vld [vmem:[%s4329 + $0x10] sm:$0xff]
    %v4333 = vld [vmem:[%s4329 + $0x18] sm:$0xff]
    %v4334 = vld [vmem:[%s4329 + $0x20] sm:$0xff]
    %v4335 = vld [vmem:[%s4329 + $0x28] sm:$0xff]
    %v4336 = vld [vmem:[%s4329 + $0x30] sm:$0xff]
    %v4337 = vld [vmem:[%s4329 + $0x38] sm:$0xff]
    %v4338 = vld [vmem:[%s4329 + $0x40] sm:$0xff]
    %v4339 = vld [vmem:[%s4329 + $0x48] sm:$0xff]
    %v4340 = vld [vmem:[%s4329 + $0x50] sm:$0xff]
    %v4341 = vld [vmem:[%s4329 + $0x58] sm:$0xff]
    %v4342 = vld [vmem:[%s4329 + $0x60] sm:$0xff]
    %v4343 = vld [vmem:[%s4329 + $0x68] sm:$0xff]
    %v4344 = vld [vmem:[%s4329 + $0x70] sm:$0xff]
    %v4345 = vld [vmem:[%s4329 + $0x78] sm:$0xff]
    %4346 = vmatpush.msra.mxu0 %v4345
    %4347 = vmatpush.msra.mxu0 %v4344
    %4348 = vmatpush.msra.mxu0 %v4343
    %4349 = vmatpush.msra.mxu0 %v4342
    %4350 = vmatpush.msra.mxu0 %v4341
    %4351 = vmatpush.msra.mxu0 %v4340
    %4352 = vmatpush.msra.mxu0 %v4339
    %4353 = vmatpush.msra.mxu0 %v4338
    %4354 = vmatpush.msra.mxu0 %v4337
    %4355 = vmatpush.msra.mxu0 %v4336
    %4356 = vmatpush.msra.mxu0 %v4335
    %4357 = vmatpush.msra.mxu0 %v4334
    %4358 = vmatpush.msra.mxu0 %v4333
    %4359 = vmatpush.msra.mxu0 %v4332
    %4360 = vmatpush.msra.mxu0 %v4331
    %4361 = vmatpush.msra.mxu0 %v4330
    %4362 = vmatmul.f32.gmra.mxu0 %v4313
    %v4363 = vpop.f32.mrf.mxu0
    %v4364 = vadd.f32 0.0, %v4363
    %4365 = vmatmul.f32.gmra.mxu0 %v4314
    %v4366 = vpop.f32.mrf.mxu0
    %v4367 = vadd.f32 0.0, %v4366
    %4368 = vmatmul.f32.gmra.mxu0 %v4315
    %v4369 = vpop.f32.mrf.mxu0
    %v4370 = vadd.f32 0.0, %v4369
    %4371 = vmatmul.f32.gmra.mxu0 %v4316
    %v4372 = vpop.f32.mrf.mxu0
    %v4373 = vadd.f32 0.0, %v4372
    %4374 = vmatmul.f32.gmra.mxu0 %v4317
    %v4375 = vpop.f32.mrf.mxu0
    %v4376 = vadd.f32 0.0, %v4375
    %4377 = vmatmul.f32.gmra.mxu0 %v4318
    %v4378 = vpop.f32.mrf.mxu0
    %v4379 = vadd.f32 0.0, %v4378
    %4380 = vmatmul.f32.gmra.mxu0 %v4319
    %v4381 = vpop.f32.mrf.mxu0
    %v4382 = vadd.f32 0.0, %v4381
    %4383 = vmatmul.f32.gmra.mxu0 %v4320
    %v4384 = vpop.f32.mrf.mxu0
    %v4385 = vadd.f32 0.0, %v4384
    %4386 = vmatmul.f32.gmra.mxu0 %v4321
    %v4387 = vpop.f32.mrf.mxu0
    %v4388 = vadd.f32 0.0, %v4387
    %4389 = vmatmul.f32.gmra.mxu0 %v4322
    %v4390 = vpop.f32.mrf.mxu0
    %v4391 = vadd.f32 0.0, %v4390
    %4392 = vmatmul.f32.gmra.mxu0 %v4323
    %v4393 = vpop.f32.mrf.mxu0
    %v4394 = vadd.f32 0.0, %v4393
    %4395 = vmatmul.f32.gmra.mxu0 %v4324
    %v4396 = vpop.f32.mrf.mxu0
    %v4397 = vadd.f32 0.0, %v4396
    %4398 = vmatmul.f32.gmra.mxu0 %v4325
    %v4399 = vpop.f32.mrf.mxu0
    %v4400 = vadd.f32 0.0, %v4399
    %4401 = vmatmul.f32.gmra.mxu0 %v4326
    %v4402 = vpop.f32.mrf.mxu0
    %v4403 = vadd.f32 0.0, %v4402
    %4404 = vmatmul.f32.gmra.mxu0 %v4327
    %v4405 = vpop.f32.mrf.mxu0
    %v4406 = vadd.f32 0.0, %v4405
    %4407 = vmatmul.f32.gmra.mxu0 %v4328
    %v4408 = vpop.f32.mrf.mxu0
    %v4409 = vadd.f32 0.0, %v4408
    %4410 = vdwg.mxu0
    %v4411 = vadd.f32 %v4297, %v4364
    %v4412 = vadd.f32 %v4298, %v4367
    %v4413 = vadd.f32 %v4299, %v4370
    %v4414 = vadd.f32 %v4300, %v4373
    %v4415 = vadd.f32 %v4301, %v4376
    %v4416 = vadd.f32 %v4302, %v4379
    %v4417 = vadd.f32 %v4303, %v4382
    %v4418 = vadd.f32 %v4304, %v4385
    %v4419 = vadd.f32 %v4305, %v4388
    %v4420 = vadd.f32 %v4306, %v4391
    %v4421 = vadd.f32 %v4307, %v4394
    %v4422 = vadd.f32 %v4308, %v4397
    %v4423 = vadd.f32 %v4309, %v4400
    %v4424 = vadd.f32 %v4310, %v4403
    %v4425 = vadd.f32 %v4311, %v4406
    %v4426 = vadd.f32 %v4312, %v4409
    %v4427 = vld [vmem:[%s3987 + $0x1] sm:$0xff]
    %v4428 = vld [vmem:[%s3987 + $0x11] sm:$0xff]
    %v4429 = vld [vmem:[%s3987 + $0x21] sm:$0xff]
    %v4430 = vld [vmem:[%s3987 + $0x31] sm:$0xff]
    %v4431 = vld [vmem:[%s3987 + $0x41] sm:$0xff]
    %v4432 = vld [vmem:[%s3987 + $0x51] sm:$0xff]
    %v4433 = vld [vmem:[%s3987 + $0x61] sm:$0xff]
    %v4434 = vld [vmem:[%s3987 + $0x71] sm:$0xff]
    %v4435 = vld [vmem:[%s3987 + $0xa1] sm:$0xff]
    %v4436 = vld [vmem:[%s3987 + $0xb1] sm:$0xff]
    %v4437 = vld [vmem:[%s3987 + $0xc1] sm:$0xff]
    %v4438 = vld [vmem:[%s3987 + $0xd1] sm:$0xff]
    %v4439 = vld [vmem:[%s3987 + $0xe1] sm:$0xff]
    %v4440 = vld [vmem:[%s3987 + $0xf1] sm:$0xff]
    %v4441 = vld [vmem:[%s3987 + $0x101] sm:$0xff]
    %v4442 = vld [vmem:[%s3987 + $0x111] sm:$0xff]
    %s4443 = scalar_lea.vmem [#allocation9], 512
    %v4444 = vld [vmem:[%s4443] sm:$0xff]
    %v4445 = vld [vmem:[%s4443 + $0x8] sm:$0xff]
    %v4446 = vld [vmem:[%s4443 + $0x10] sm:$0xff]
    %v4447 = vld [vmem:[%s4443 + $0x18] sm:$0xff]
    %v4448 = vld [vmem:[%s4443 + $0x20] sm:$0xff]
    %v4449 = vld [vmem:[%s4443 + $0x28] sm:$0xff]
    %v4450 = vld [vmem:[%s4443 + $0x30] sm:$0xff]
    %v4451 = vld [vmem:[%s4443 + $0x38] sm:$0xff]
    %v4452 = vld [vmem:[%s4443 + $0x40] sm:$0xff]
    %v4453 = vld [vmem:[%s4443 + $0x48] sm:$0xff]
    %v4454 = vld [vmem:[%s4443 + $0x50] sm:$0xff]
    %v4455 = vld [vmem:[%s4443 + $0x58] sm:$0xff]
    %v4456 = vld [vmem:[%s4443 + $0x60] sm:$0xff]
    %v4457 = vld [vmem:[%s4443 + $0x68] sm:$0xff]
    %v4458 = vld [vmem:[%s4443 + $0x70] sm:$0xff]
    %v4459 = vld [vmem:[%s4443 + $0x78] sm:$0xff]
    %4460 = vmatpush.msra.mxu0 %v4459
    %4461 = vmatpush.msra.mxu0 %v4458
    %4462 = vmatpush.msra.mxu0 %v4457
    %4463 = vmatpush.msra.mxu0 %v4456
    %4464 = vmatpush.msra.mxu0 %v4455
    %4465 = vmatpush.msra.mxu0 %v4454
    %4466 = vmatpush.msra.mxu0 %v4453
    %4467 = vmatpush.msra.mxu0 %v4452
    %4468 = vmatpush.msra.mxu0 %v4451
    %4469 = vmatpush.msra.mxu0 %v4450
    %4470 = vmatpush.msra.mxu0 %v4449
    %4471 = vmatpush.msra.mxu0 %v4448
    %4472 = vmatpush.msra.mxu0 %v4447
    %4473 = vmatpush.msra.mxu0 %v4446
    %4474 = vmatpush.msra.mxu0 %v4445
    %4475 = vmatpush.msra.mxu0 %v4444
    %4476 = vmatmul.f32.gmra.mxu0 %v4427
    %v4477 = vpop.f32.mrf.mxu0
    %v4478 = vadd.f32 0.0, %v4477
    %4479 = vmatmul.f32.gmra.mxu0 %v4428
    %v4480 = vpop.f32.mrf.mxu0
    %v4481 = vadd.f32 0.0, %v4480
    %4482 = vmatmul.f32.gmra.mxu0 %v4429
    %v4483 = vpop.f32.mrf.mxu0
    %v4484 = vadd.f32 0.0, %v4483
    %4485 = vmatmul.f32.gmra.mxu0 %v4430
    %v4486 = vpop.f32.mrf.mxu0
    %v4487 = vadd.f32 0.0, %v4486
    %4488 = vmatmul.f32.gmra.mxu0 %v4431
    %v4489 = vpop.f32.mrf.mxu0
    %v4490 = vadd.f32 0.0, %v4489
    %4491 = vmatmul.f32.gmra.mxu0 %v4432
    %v4492 = vpop.f32.mrf.mxu0
    %v4493 = vadd.f32 0.0, %v4492
    %4494 = vmatmul.f32.gmra.mxu0 %v4433
    %v4495 = vpop.f32.mrf.mxu0
    %v4496 = vadd.f32 0.0, %v4495
    %4497 = vmatmul.f32.gmra.mxu0 %v4434
    %v4498 = vpop.f32.mrf.mxu0
    %v4499 = vadd.f32 0.0, %v4498
    %4500 = vmatmul.f32.gmra.mxu0 %v4435
    %v4501 = vpop.f32.mrf.mxu0
    %v4502 = vadd.f32 0.0, %v4501
    %4503 = vmatmul.f32.gmra.mxu0 %v4436
    %v4504 = vpop.f32.mrf.mxu0
    %v4505 = vadd.f32 0.0, %v4504
    %4506 = vmatmul.f32.gmra.mxu0 %v4437
    %v4507 = vpop.f32.mrf.mxu0
    %v4508 = vadd.f32 0.0, %v4507
    %4509 = vmatmul.f32.gmra.mxu0 %v4438
    %v4510 = vpop.f32.mrf.mxu0
    %v4511 = vadd.f32 0.0, %v4510
    %4512 = vmatmul.f32.gmra.mxu0 %v4439
    %v4513 = vpop.f32.mrf.mxu0
    %v4514 = vadd.f32 0.0, %v4513
    %4515 = vmatmul.f32.gmra.mxu0 %v4440
    %v4516 = vpop.f32.mrf.mxu0
    %v4517 = vadd.f32 0.0, %v4516
    %4518 = vmatmul.f32.gmra.mxu0 %v4441
    %v4519 = vpop.f32.mrf.mxu0
    %v4520 = vadd.f32 0.0, %v4519
    %4521 = vmatmul.f32.gmra.mxu0 %v4442
    %v4522 = vpop.f32.mrf.mxu0
    %v4523 = vadd.f32 0.0, %v4522
    %4524 = vdwg.mxu0
    %v4525 = vadd.f32 %v4411, %v4478
    %v4526 = vadd.f32 %v4412, %v4481
    %v4527 = vadd.f32 %v4413, %v4484
    %v4528 = vadd.f32 %v4414, %v4487
    %v4529 = vadd.f32 %v4415, %v4490
    %v4530 = vadd.f32 %v4416, %v4493
    %v4531 = vadd.f32 %v4417, %v4496
    %v4532 = vadd.f32 %v4418, %v4499
    %v4533 = vadd.f32 %v4419, %v4502
    %v4534 = vadd.f32 %v4420, %v4505
    %v4535 = vadd.f32 %v4421, %v4508
    %v4536 = vadd.f32 %v4422, %v4511
    %v4537 = vadd.f32 %v4423, %v4514
    %v4538 = vadd.f32 %v4424, %v4517
    %v4539 = vadd.f32 %v4425, %v4520
    %v4540 = vadd.f32 %v4426, %v4523
    %v4541 = vld [vmem:[%s3987 + $0x2] sm:$0xff]
    %v4542 = vld [vmem:[%s3987 + $0x12] sm:$0xff]
    %v4543 = vld [vmem:[%s3987 + $0x22] sm:$0xff]
    %v4544 = vld [vmem:[%s3987 + $0x32] sm:$0xff]
    %v4545 = vld [vmem:[%s3987 + $0x42] sm:$0xff]
    %v4546 = vld [vmem:[%s3987 + $0x52] sm:$0xff]
    %v4547 = vld [vmem:[%s3987 + $0x62] sm:$0xff]
    %v4548 = vld [vmem:[%s3987 + $0x72] sm:$0xff]
    %v4549 = vld [vmem:[%s3987 + $0xa2] sm:$0xff]
    %v4550 = vld [vmem:[%s3987 + $0xb2] sm:$0xff]
    %v4551 = vld [vmem:[%s3987 + $0xc2] sm:$0xff]
    %v4552 = vld [vmem:[%s3987 + $0xd2] sm:$0xff]
    %v4553 = vld [vmem:[%s3987 + $0xe2] sm:$0xff]
    %v4554 = vld [vmem:[%s3987 + $0xf2] sm:$0xff]
    %v4555 = vld [vmem:[%s3987 + $0x102] sm:$0xff]
    %v4556 = vld [vmem:[%s3987 + $0x112] sm:$0xff]
    %s4557 = scalar_lea.vmem [#allocation9], 640
    %v4558 = vld [vmem:[%s4557] sm:$0xff]
    %v4559 = vld [vmem:[%s4557 + $0x8] sm:$0xff]
    %v4560 = vld [vmem:[%s4557 + $0x10] sm:$0xff]
    %v4561 = vld [vmem:[%s4557 + $0x18] sm:$0xff]
    %v4562 = vld [vmem:[%s4557 + $0x20] sm:$0xff]
    %v4563 = vld [vmem:[%s4557 + $0x28] sm:$0xff]
    %v4564 = vld [vmem:[%s4557 + $0x30] sm:$0xff]
    %v4565 = vld [vmem:[%s4557 + $0x38] sm:$0xff]
    %v4566 = vld [vmem:[%s4557 + $0x40] sm:$0xff]
    %v4567 = vld [vmem:[%s4557 + $0x48] sm:$0xff]
    %v4568 = vld [vmem:[%s4557 + $0x50] sm:$0xff]
    %v4569 = vld [vmem:[%s4557 + $0x58] sm:$0xff]
    %v4570 = vld [vmem:[%s4557 + $0x60] sm:$0xff]
    %v4571 = vld [vmem:[%s4557 + $0x68] sm:$0xff]
    %v4572 = vld [vmem:[%s4557 + $0x70] sm:$0xff]
    %v4573 = vld [vmem:[%s4557 + $0x78] sm:$0xff]
    %4574 = vmatpush.msra.mxu0 %v4573
    %4575 = vmatpush.msra.mxu0 %v4572
    %4576 = vmatpush.msra.mxu0 %v4571
    %4577 = vmatpush.msra.mxu0 %v4570
    %4578 = vmatpush.msra.mxu0 %v4569
    %4579 = vmatpush.msra.mxu0 %v4568
    %4580 = vmatpush.msra.mxu0 %v4567
    %4581 = vmatpush.msra.mxu0 %v4566
    %4582 = vmatpush.msra.mxu0 %v4565
    %4583 = vmatpush.msra.mxu0 %v4564
    %4584 = vmatpush.msra.mxu0 %v4563
    %4585 = vmatpush.msra.mxu0 %v4562
    %4586 = vmatpush.msra.mxu0 %v4561
    %4587 = vmatpush.msra.mxu0 %v4560
    %4588 = vmatpush.msra.mxu0 %v4559
    %4589 = vmatpush.msra.mxu0 %v4558
    %4590 = vmatmul.f32.gmra.mxu0 %v4541
    %v4591 = vpop.f32.mrf.mxu0
    %v4592 = vadd.f32 0.0, %v4591
    %4593 = vmatmul.f32.gmra.mxu0 %v4542
    %v4594 = vpop.f32.mrf.mxu0
    %v4595 = vadd.f32 0.0, %v4594
    %4596 = vmatmul.f32.gmra.mxu0 %v4543
    %v4597 = vpop.f32.mrf.mxu0
    %v4598 = vadd.f32 0.0, %v4597
    %4599 = vmatmul.f32.gmra.mxu0 %v4544
    %v4600 = vpop.f32.mrf.mxu0
    %v4601 = vadd.f32 0.0, %v4600
    %4602 = vmatmul.f32.gmra.mxu0 %v4545
    %v4603 = vpop.f32.mrf.mxu0
    %v4604 = vadd.f32 0.0, %v4603
    %4605 = vmatmul.f32.gmra.mxu0 %v4546
    %v4606 = vpop.f32.mrf.mxu0
    %v4607 = vadd.f32 0.0, %v4606
    %4608 = vmatmul.f32.gmra.mxu0 %v4547
    %v4609 = vpop.f32.mrf.mxu0
    %v4610 = vadd.f32 0.0, %v4609
    %4611 = vmatmul.f32.gmra.mxu0 %v4548
    %v4612 = vpop.f32.mrf.mxu0
    %v4613 = vadd.f32 0.0, %v4612
    %4614 = vmatmul.f32.gmra.mxu0 %v4549
    %v4615 = vpop.f32.mrf.mxu0
    %v4616 = vadd.f32 0.0, %v4615
    %4617 = vmatmul.f32.gmra.mxu0 %v4550
    %v4618 = vpop.f32.mrf.mxu0
    %v4619 = vadd.f32 0.0, %v4618
    %4620 = vmatmul.f32.gmra.mxu0 %v4551
    %v4621 = vpop.f32.mrf.mxu0
    %v4622 = vadd.f32 0.0, %v4621
    %4623 = vmatmul.f32.gmra.mxu0 %v4552
    %v4624 = vpop.f32.mrf.mxu0
    %v4625 = vadd.f32 0.0, %v4624
    %4626 = vmatmul.f32.gmra.mxu0 %v4553
    %v4627 = vpop.f32.mrf.mxu0
    %v4628 = vadd.f32 0.0, %v4627
    %4629 = vmatmul.f32.gmra.mxu0 %v4554
    %v4630 = vpop.f32.mrf.mxu0
    %v4631 = vadd.f32 0.0, %v4630
    %4632 = vmatmul.f32.gmra.mxu0 %v4555
    %v4633 = vpop.f32.mrf.mxu0
    %v4634 = vadd.f32 0.0, %v4633
    %4635 = vmatmul.f32.gmra.mxu0 %v4556
    %v4636 = vpop.f32.mrf.mxu0
    %v4637 = vadd.f32 0.0, %v4636
    %4638 = vdwg.mxu0
    %v4639 = vadd.f32 %v4525, %v4592
    %v4640 = vadd.f32 %v4526, %v4595
    %v4641 = vadd.f32 %v4527, %v4598
    %v4642 = vadd.f32 %v4528, %v4601
    %v4643 = vadd.f32 %v4529, %v4604
    %v4644 = vadd.f32 %v4530, %v4607
    %v4645 = vadd.f32 %v4531, %v4610
    %v4646 = vadd.f32 %v4532, %v4613
    %v4647 = vadd.f32 %v4533, %v4616
    %v4648 = vadd.f32 %v4534, %v4619
    %v4649 = vadd.f32 %v4535, %v4622
    %v4650 = vadd.f32 %v4536, %v4625
    %v4651 = vadd.f32 %v4537, %v4628
    %v4652 = vadd.f32 %v4538, %v4631
    %v4653 = vadd.f32 %v4539, %v4634
    %v4654 = vadd.f32 %v4540, %v4637
    %s4655 = scalar_lea.vmem [#allocation3], 32
    %v4656 = vld [vmem:[%s4655] sm:$0xff]
    %v4657 = vld [vmem:[%s4655 + $0x10] sm:$0xff]
    %v4658 = vld [vmem:[%s4655 + $0x20] sm:$0xff]
    %v4659 = vld [vmem:[%s4655 + $0x30] sm:$0xff]
    %v4660 = vld [vmem:[%s4655 + $0x40] sm:$0xff]
    %v4661 = vld [vmem:[%s4655 + $0x50] sm:$0xff]
    %v4662 = vld [vmem:[%s4655 + $0x60] sm:$0xff]
    %v4663 = vld [vmem:[%s4655 + $0x70] sm:$0xff]
    %v4664 = vld [vmem:[%s4655 + $0xa0] sm:$0xff]
    %v4665 = vld [vmem:[%s4655 + $0xb0] sm:$0xff]
    %v4666 = vld [vmem:[%s4655 + $0xc0] sm:$0xff]
    %v4667 = vld [vmem:[%s4655 + $0xd0] sm:$0xff]
    %v4668 = vld [vmem:[%s4655 + $0xe0] sm:$0xff]
    %v4669 = vld [vmem:[%s4655 + $0xf0] sm:$0xff]
    %v4670 = vld [vmem:[%s4655 + $0x100] sm:$0xff]
    %v4671 = vld [vmem:[%s4655 + $0x110] sm:$0xff]
    %s4672 = scalar_lea.vmem [#allocation9], 768
    %v4673 = vld [vmem:[%s4672] sm:$0xff]
    %v4674 = vld [vmem:[%s4672 + $0x8] sm:$0xff]
    %v4675 = vld [vmem:[%s4672 + $0x10] sm:$0xff]
    %v4676 = vld [vmem:[%s4672 + $0x18] sm:$0xff]
    %v4677 = vld [vmem:[%s4672 + $0x20] sm:$0xff]
    %v4678 = vld [vmem:[%s4672 + $0x28] sm:$0xff]
    %v4679 = vld [vmem:[%s4672 + $0x30] sm:$0xff]
    %v4680 = vld [vmem:[%s4672 + $0x38] sm:$0xff]
    %v4681 = vld [vmem:[%s4672 + $0x40] sm:$0xff]
    %v4682 = vld [vmem:[%s4672 + $0x48] sm:$0xff]
    %v4683 = vld [vmem:[%s4672 + $0x50] sm:$0xff]
    %v4684 = vld [vmem:[%s4672 + $0x58] sm:$0xff]
    %v4685 = vld [vmem:[%s4672 + $0x60] sm:$0xff]
    %v4686 = vld [vmem:[%s4672 + $0x68] sm:$0xff]
    %v4687 = vld [vmem:[%s4672 + $0x70] sm:$0xff]
    %v4688 = vld [vmem:[%s4672 + $0x78] sm:$0xff]
    %4689 = vmatpush.msra.mxu0 %v4688
    %4690 = vmatpush.msra.mxu0 %v4687
    %4691 = vmatpush.msra.mxu0 %v4686
    %4692 = vmatpush.msra.mxu0 %v4685
    %4693 = vmatpush.msra.mxu0 %v4684
    %4694 = vmatpush.msra.mxu0 %v4683
    %4695 = vmatpush.msra.mxu0 %v4682
    %4696 = vmatpush.msra.mxu0 %v4681
    %4697 = vmatpush.msra.mxu0 %v4680
    %4698 = vmatpush.msra.mxu0 %v4679
    %4699 = vmatpush.msra.mxu0 %v4678
    %4700 = vmatpush.msra.mxu0 %v4677
    %4701 = vmatpush.msra.mxu0 %v4676
    %4702 = vmatpush.msra.mxu0 %v4675
    %4703 = vmatpush.msra.mxu0 %v4674
    %4704 = vmatpush.msra.mxu0 %v4673
    %4705 = vmatmul.f32.gmra.mxu0 %v4656
    %v4706 = vpop.f32.mrf.mxu0
    %v4707 = vadd.f32 0.0, %v4706
    %4708 = vmatmul.f32.gmra.mxu0 %v4657
    %v4709 = vpop.f32.mrf.mxu0
    %v4710 = vadd.f32 0.0, %v4709
    %4711 = vmatmul.f32.gmra.mxu0 %v4658
    %v4712 = vpop.f32.mrf.mxu0
    %v4713 = vadd.f32 0.0, %v4712
    %4714 = vmatmul.f32.gmra.mxu0 %v4659
    %v4715 = vpop.f32.mrf.mxu0
    %v4716 = vadd.f32 0.0, %v4715
    %4717 = vmatmul.f32.gmra.mxu0 %v4660
    %v4718 = vpop.f32.mrf.mxu0
    %v4719 = vadd.f32 0.0, %v4718
    %4720 = vmatmul.f32.gmra.mxu0 %v4661
    %v4721 = vpop.f32.mrf.mxu0
    %v4722 = vadd.f32 0.0, %v4721
    %4723 = vmatmul.f32.gmra.mxu0 %v4662
    %v4724 = vpop.f32.mrf.mxu0
    %v4725 = vadd.f32 0.0, %v4724
    %4726 = vmatmul.f32.gmra.mxu0 %v4663
    %v4727 = vpop.f32.mrf.mxu0
    %v4728 = vadd.f32 0.0, %v4727
    %4729 = vmatmul.f32.gmra.mxu0 %v4664
    %v4730 = vpop.f32.mrf.mxu0
    %v4731 = vadd.f32 0.0, %v4730
    %4732 = vmatmul.f32.gmra.mxu0 %v4665
    %v4733 = vpop.f32.mrf.mxu0
    %v4734 = vadd.f32 0.0, %v4733
    %4735 = vmatmul.f32.gmra.mxu0 %v4666
    %v4736 = vpop.f32.mrf.mxu0
    %v4737 = vadd.f32 0.0, %v4736
    %4738 = vmatmul.f32.gmra.mxu0 %v4667
    %v4739 = vpop.f32.mrf.mxu0
    %v4740 = vadd.f32 0.0, %v4739
    %4741 = vmatmul.f32.gmra.mxu0 %v4668
    %v4742 = vpop.f32.mrf.mxu0
    %v4743 = vadd.f32 0.0, %v4742
    %4744 = vmatmul.f32.gmra.mxu0 %v4669
    %v4745 = vpop.f32.mrf.mxu0
    %v4746 = vadd.f32 0.0, %v4745
    %4747 = vmatmul.f32.gmra.mxu0 %v4670
    %v4748 = vpop.f32.mrf.mxu0
    %v4749 = vadd.f32 0.0, %v4748
    %4750 = vmatmul.f32.gmra.mxu0 %v4671
    %v4751 = vpop.f32.mrf.mxu0
    %v4752 = vadd.f32 0.0, %v4751
    %4753 = vdwg.mxu0
    %v4754 = vadd.f32 %v4639, %v4707
    %v4755 = vadd.f32 %v4640, %v4710
    %v4756 = vadd.f32 %v4641, %v4713
    %v4757 = vadd.f32 %v4642, %v4716
    %v4758 = vadd.f32 %v4643, %v4719
    %v4759 = vadd.f32 %v4644, %v4722
    %v4760 = vadd.f32 %v4645, %v4725
    %v4761 = vadd.f32 %v4646, %v4728
    %v4762 = vadd.f32 %v4647, %v4731
    %v4763 = vadd.f32 %v4648, %v4734
    %v4764 = vadd.f32 %v4649, %v4737
    %v4765 = vadd.f32 %v4650, %v4740
    %v4766 = vadd.f32 %v4651, %v4743
    %v4767 = vadd.f32 %v4652, %v4746
    %v4768 = vadd.f32 %v4653, %v4749
    %v4769 = vadd.f32 %v4654, %v4752
    %v4770 = vld [vmem:[%s4655 + $0x1] sm:$0xff]
    %v4771 = vld [vmem:[%s4655 + $0x11] sm:$0xff]
    %v4772 = vld [vmem:[%s4655 + $0x21] sm:$0xff]
    %v4773 = vld [vmem:[%s4655 + $0x31] sm:$0xff]
    %v4774 = vld [vmem:[%s4655 + $0x41] sm:$0xff]
    %v4775 = vld [vmem:[%s4655 + $0x51] sm:$0xff]
    %v4776 = vld [vmem:[%s4655 + $0x61] sm:$0xff]
    %v4777 = vld [vmem:[%s4655 + $0x71] sm:$0xff]
    %v4778 = vld [vmem:[%s4655 + $0xa1] sm:$0xff]
    %v4779 = vld [vmem:[%s4655 + $0xb1] sm:$0xff]
    %v4780 = vld [vmem:[%s4655 + $0xc1] sm:$0xff]
    %v4781 = vld [vmem:[%s4655 + $0xd1] sm:$0xff]
    %v4782 = vld [vmem:[%s4655 + $0xe1] sm:$0xff]
    %v4783 = vld [vmem:[%s4655 + $0xf1] sm:$0xff]
    %v4784 = vld [vmem:[%s4655 + $0x101] sm:$0xff]
    %v4785 = vld [vmem:[%s4655 + $0x111] sm:$0xff]
    %s4786 = scalar_lea.vmem [#allocation9], 896
    %v4787 = vld [vmem:[%s4786] sm:$0xff]
    %v4788 = vld [vmem:[%s4786 + $0x8] sm:$0xff]
    %v4789 = vld [vmem:[%s4786 + $0x10] sm:$0xff]
    %v4790 = vld [vmem:[%s4786 + $0x18] sm:$0xff]
    %v4791 = vld [vmem:[%s4786 + $0x20] sm:$0xff]
    %v4792 = vld [vmem:[%s4786 + $0x28] sm:$0xff]
    %v4793 = vld [vmem:[%s4786 + $0x30] sm:$0xff]
    %v4794 = vld [vmem:[%s4786 + $0x38] sm:$0xff]
    %v4795 = vld [vmem:[%s4786 + $0x40] sm:$0xff]
    %v4796 = vld [vmem:[%s4786 + $0x48] sm:$0xff]
    %v4797 = vld [vmem:[%s4786 + $0x50] sm:$0xff]
    %v4798 = vld [vmem:[%s4786 + $0x58] sm:$0xff]
    %v4799 = vld [vmem:[%s4786 + $0x60] sm:$0xff]
    %v4800 = vld [vmem:[%s4786 + $0x68] sm:$0xff]
    %v4801 = vld [vmem:[%s4786 + $0x70] sm:$0xff]
    %v4802 = vld [vmem:[%s4786 + $0x78] sm:$0xff]
    %4803 = vmatpush.msra.mxu0 %v4802
    %4804 = vmatpush.msra.mxu0 %v4801
    %4805 = vmatpush.msra.mxu0 %v4800
    %4806 = vmatpush.msra.mxu0 %v4799
    %4807 = vmatpush.msra.mxu0 %v4798
    %4808 = vmatpush.msra.mxu0 %v4797
    %4809 = vmatpush.msra.mxu0 %v4796
    %4810 = vmatpush.msra.mxu0 %v4795
    %4811 = vmatpush.msra.mxu0 %v4794
    %4812 = vmatpush.msra.mxu0 %v4793
    %4813 = vmatpush.msra.mxu0 %v4792
    %4814 = vmatpush.msra.mxu0 %v4791
    %4815 = vmatpush.msra.mxu0 %v4790
    %4816 = vmatpush.msra.mxu0 %v4789
    %4817 = vmatpush.msra.mxu0 %v4788
    %4818 = vmatpush.msra.mxu0 %v4787
    %4819 = vmatmul.f32.gmra.mxu0 %v4770
    %v4820 = vpop.f32.mrf.mxu0
    %v4821 = vadd.f32 0.0, %v4820
    %4822 = vmatmul.f32.gmra.mxu0 %v4771
    %v4823 = vpop.f32.mrf.mxu0
    %v4824 = vadd.f32 0.0, %v4823
    %4825 = vmatmul.f32.gmra.mxu0 %v4772
    %v4826 = vpop.f32.mrf.mxu0
    %v4827 = vadd.f32 0.0, %v4826
    %4828 = vmatmul.f32.gmra.mxu0 %v4773
    %v4829 = vpop.f32.mrf.mxu0
    %v4830 = vadd.f32 0.0, %v4829
    %4831 = vmatmul.f32.gmra.mxu0 %v4774
    %v4832 = vpop.f32.mrf.mxu0
    %v4833 = vadd.f32 0.0, %v4832
    %4834 = vmatmul.f32.gmra.mxu0 %v4775
    %v4835 = vpop.f32.mrf.mxu0
    %v4836 = vadd.f32 0.0, %v4835
    %4837 = vmatmul.f32.gmra.mxu0 %v4776
    %v4838 = vpop.f32.mrf.mxu0
    %v4839 = vadd.f32 0.0, %v4838
    %4840 = vmatmul.f32.gmra.mxu0 %v4777
    %v4841 = vpop.f32.mrf.mxu0
    %v4842 = vadd.f32 0.0, %v4841
    %4843 = vmatmul.f32.gmra.mxu0 %v4778
    %v4844 = vpop.f32.mrf.mxu0
    %v4845 = vadd.f32 0.0, %v4844
    %4846 = vmatmul.f32.gmra.mxu0 %v4779
    %v4847 = vpop.f32.mrf.mxu0
    %v4848 = vadd.f32 0.0, %v4847
    %4849 = vmatmul.f32.gmra.mxu0 %v4780
    %v4850 = vpop.f32.mrf.mxu0
    %v4851 = vadd.f32 0.0, %v4850
    %4852 = vmatmul.f32.gmra.mxu0 %v4781
    %v4853 = vpop.f32.mrf.mxu0
    %v4854 = vadd.f32 0.0, %v4853
    %4855 = vmatmul.f32.gmra.mxu0 %v4782
    %v4856 = vpop.f32.mrf.mxu0
    %v4857 = vadd.f32 0.0, %v4856
    %4858 = vmatmul.f32.gmra.mxu0 %v4783
    %v4859 = vpop.f32.mrf.mxu0
    %v4860 = vadd.f32 0.0, %v4859
    %4861 = vmatmul.f32.gmra.mxu0 %v4784
    %v4862 = vpop.f32.mrf.mxu0
    %v4863 = vadd.f32 0.0, %v4862
    %4864 = vmatmul.f32.gmra.mxu0 %v4785
    %v4865 = vpop.f32.mrf.mxu0
    %v4866 = vadd.f32 0.0, %v4865
    %4867 = vdwg.mxu0
    %v4868 = vadd.f32 %v4754, %v4821
    %v4869 = vadd.f32 %v4755, %v4824
    %v4870 = vadd.f32 %v4756, %v4827
    %v4871 = vadd.f32 %v4757, %v4830
    %v4872 = vadd.f32 %v4758, %v4833
    %v4873 = vadd.f32 %v4759, %v4836
    %v4874 = vadd.f32 %v4760, %v4839
    %v4875 = vadd.f32 %v4761, %v4842
    %v4876 = vadd.f32 %v4762, %v4845
    %v4877 = vadd.f32 %v4763, %v4848
    %v4878 = vadd.f32 %v4764, %v4851
    %v4879 = vadd.f32 %v4765, %v4854
    %v4880 = vadd.f32 %v4766, %v4857
    %v4881 = vadd.f32 %v4767, %v4860
    %v4882 = vadd.f32 %v4768, %v4863
    %v4883 = vadd.f32 %v4769, %v4866
    %v4884 = vld [vmem:[%s4655 + $0x2] sm:$0xff]
    %v4885 = vld [vmem:[%s4655 + $0x12] sm:$0xff]
    %v4886 = vld [vmem:[%s4655 + $0x22] sm:$0xff]
    %v4887 = vld [vmem:[%s4655 + $0x32] sm:$0xff]
    %v4888 = vld [vmem:[%s4655 + $0x42] sm:$0xff]
    %v4889 = vld [vmem:[%s4655 + $0x52] sm:$0xff]
    %v4890 = vld [vmem:[%s4655 + $0x62] sm:$0xff]
    %v4891 = vld [vmem:[%s4655 + $0x72] sm:$0xff]
    %v4892 = vld [vmem:[%s4655 + $0xa2] sm:$0xff]
    %v4893 = vld [vmem:[%s4655 + $0xb2] sm:$0xff]
    %v4894 = vld [vmem:[%s4655 + $0xc2] sm:$0xff]
    %v4895 = vld [vmem:[%s4655 + $0xd2] sm:$0xff]
    %v4896 = vld [vmem:[%s4655 + $0xe2] sm:$0xff]
    %v4897 = vld [vmem:[%s4655 + $0xf2] sm:$0xff]
    %v4898 = vld [vmem:[%s4655 + $0x102] sm:$0xff]
    %v4899 = vld [vmem:[%s4655 + $0x112] sm:$0xff]
    %s4900 = scalar_lea.vmem [#allocation9], 1024
    %v4901 = vld [vmem:[%s4900] sm:$0xff]
    %v4902 = vld [vmem:[%s4900 + $0x8] sm:$0xff]
    %v4903 = vld [vmem:[%s4900 + $0x10] sm:$0xff]
    %v4904 = vld [vmem:[%s4900 + $0x18] sm:$0xff]
    %v4905 = vld [vmem:[%s4900 + $0x20] sm:$0xff]
    %v4906 = vld [vmem:[%s4900 + $0x28] sm:$0xff]
    %v4907 = vld [vmem:[%s4900 + $0x30] sm:$0xff]
    %v4908 = vld [vmem:[%s4900 + $0x38] sm:$0xff]
    %v4909 = vld [vmem:[%s4900 + $0x40] sm:$0xff]
    %v4910 = vld [vmem:[%s4900 + $0x48] sm:$0xff]
    %v4911 = vld [vmem:[%s4900 + $0x50] sm:$0xff]
    %v4912 = vld [vmem:[%s4900 + $0x58] sm:$0xff]
    %v4913 = vld [vmem:[%s4900 + $0x60] sm:$0xff]
    %v4914 = vld [vmem:[%s4900 + $0x68] sm:$0xff]
    %v4915 = vld [vmem:[%s4900 + $0x70] sm:$0xff]
    %v4916 = vld [vmem:[%s4900 + $0x78] sm:$0xff]
    %4917 = vmatpush.msra.mxu0 %v4916
    %4918 = vmatpush.msra.mxu0 %v4915
    %4919 = vmatpush.msra.mxu0 %v4914
    %4920 = vmatpush.msra.mxu0 %v4913
    %4921 = vmatpush.msra.mxu0 %v4912
    %4922 = vmatpush.msra.mxu0 %v4911
    %4923 = vmatpush.msra.mxu0 %v4910
    %4924 = vmatpush.msra.mxu0 %v4909
    %4925 = vmatpush.msra.mxu0 %v4908
    %4926 = vmatpush.msra.mxu0 %v4907
    %4927 = vmatpush.msra.mxu0 %v4906
    %4928 = vmatpush.msra.mxu0 %v4905
    %4929 = vmatpush.msra.mxu0 %v4904
    %4930 = vmatpush.msra.mxu0 %v4903
    %4931 = vmatpush.msra.mxu0 %v4902
    %4932 = vmatpush.msra.mxu0 %v4901
    %4933 = vmatmul.f32.gmra.mxu0 %v4884
    %v4934 = vpop.f32.mrf.mxu0
    %v4935 = vadd.f32 0.0, %v4934
    %4936 = vmatmul.f32.gmra.mxu0 %v4885
    %v4937 = vpop.f32.mrf.mxu0
    %v4938 = vadd.f32 0.0, %v4937
    %4939 = vmatmul.f32.gmra.mxu0 %v4886
    %v4940 = vpop.f32.mrf.mxu0
    %v4941 = vadd.f32 0.0, %v4940
    %4942 = vmatmul.f32.gmra.mxu0 %v4887
    %v4943 = vpop.f32.mrf.mxu0
    %v4944 = vadd.f32 0.0, %v4943
    %4945 = vmatmul.f32.gmra.mxu0 %v4888
    %v4946 = vpop.f32.mrf.mxu0
    %v4947 = vadd.f32 0.0, %v4946
    %4948 = vmatmul.f32.gmra.mxu0 %v4889
    %v4949 = vpop.f32.mrf.mxu0
    %v4950 = vadd.f32 0.0, %v4949
    %4951 = vmatmul.f32.gmra.mxu0 %v4890
    %v4952 = vpop.f32.mrf.mxu0
    %v4953 = vadd.f32 0.0, %v4952
    %4954 = vmatmul.f32.gmra.mxu0 %v4891
    %v4955 = vpop.f32.mrf.mxu0
    %v4956 = vadd.f32 0.0, %v4955
    %4957 = vmatmul.f32.gmra.mxu0 %v4892
    %v4958 = vpop.f32.mrf.mxu0
    %v4959 = vadd.f32 0.0, %v4958
    %4960 = vmatmul.f32.gmra.mxu0 %v4893
    %v4961 = vpop.f32.mrf.mxu0
    %v4962 = vadd.f32 0.0, %v4961
    %4963 = vmatmul.f32.gmra.mxu0 %v4894
    %v4964 = vpop.f32.mrf.mxu0
    %v4965 = vadd.f32 0.0, %v4964
    %4966 = vmatmul.f32.gmra.mxu0 %v4895
    %v4967 = vpop.f32.mrf.mxu0
    %v4968 = vadd.f32 0.0, %v4967
    %4969 = vmatmul.f32.gmra.mxu0 %v4896
    %v4970 = vpop.f32.mrf.mxu0
    %v4971 = vadd.f32 0.0, %v4970
    %4972 = vmatmul.f32.gmra.mxu0 %v4897
    %v4973 = vpop.f32.mrf.mxu0
    %v4974 = vadd.f32 0.0, %v4973
    %4975 = vmatmul.f32.gmra.mxu0 %v4898
    %v4976 = vpop.f32.mrf.mxu0
    %v4977 = vadd.f32 0.0, %v4976
    %4978 = vmatmul.f32.gmra.mxu0 %v4899
    %v4979 = vpop.f32.mrf.mxu0
    %v4980 = vadd.f32 0.0, %v4979
    %4981 = vdwg.mxu0
    %v4982 = vadd.f32 %v4868, %v4935
    %v4983 = vadd.f32 %v4869, %v4938
    %v4984 = vadd.f32 %v4870, %v4941
    %v4985 = vadd.f32 %v4871, %v4944
    %v4986 = vadd.f32 %v4872, %v4947
    %v4987 = vadd.f32 %v4873, %v4950
    %v4988 = vadd.f32 %v4874, %v4953
    %v4989 = vadd.f32 %v4875, %v4956
    %v4990 = vadd.f32 %v4876, %v4959
    %v4991 = vadd.f32 %v4877, %v4962
    %v4992 = vadd.f32 %v4878, %v4965
    %v4993 = vadd.f32 %v4879, %v4968
    %v4994 = vadd.f32 %v4880, %v4971
    %v4995 = vadd.f32 %v4881, %v4974
    %v4996 = vadd.f32 %v4882, %v4977
    %v4997 = vadd.f32 %v4883, %v4980
    %v4998 = vld [vmem:[%s7] sm:$0xff]
    %v4999 = vld [vmem:[%s7 + $0x8] sm:$0xff]
    %v5000 = vld [vmem:[%s7 + $0x10] sm:$0xff]
    %v5001 = vld [vmem:[%s7 + $0x18] sm:$0xff]
    %v5002 = vld [vmem:[%s7 + $0x20] sm:$0xff]
    %v5003 = vld [vmem:[%s7 + $0x28] sm:$0xff]
    %v5004 = vld [vmem:[%s7 + $0x30] sm:$0xff]
    %v5005 = vld [vmem:[%s7 + $0x38] sm:$0xff]
    %v5006 = vld [vmem:[%s7 + $0x40] sm:$0xff]
    %v5007 = vld [vmem:[%s7 + $0x48] sm:$0xff]
    %v5008 = vld [vmem:[%s7 + $0x50] sm:$0xff]
    %v5009 = vld [vmem:[%s7 + $0x58] sm:$0xff]
    %v5010 = vld [vmem:[%s7 + $0x60] sm:$0xff]
    %v5011 = vld [vmem:[%s7 + $0x68] sm:$0xff]
    %v5012 = vld [vmem:[%s7 + $0x70] sm:$0xff]
    %v5013 = vld [vmem:[%s7 + $0x78] sm:$0xff]
    %v5014 = vld [vmem:[%s7 + $0x80] sm:$0xff]
    %v5015 = vld [vmem:[%s7 + $0x88] sm:$0xff]
    %v5016 = vld [vmem:[%s7 + $0x90] sm:$0xff]
    %v5017 = vld [vmem:[%s7 + $0x98] sm:$0xff]
    %v5018 = vld [vmem:[%s7 + $0xa0] sm:$0xff]
    %v5019 = vld [vmem:[%s7 + $0xa8] sm:$0xff]
    %v5020 = vld [vmem:[%s7 + $0xb0] sm:$0xff]
    %v5021 = vld [vmem:[%s7 + $0xb8] sm:$0xff]
    %v5022 = vld [vmem:[%s7 + $0xc0] sm:$0xff]
    %v5023 = vld [vmem:[%s7 + $0xc8] sm:$0xff]
    %v5024 = vld [vmem:[%s7 + $0xd0] sm:$0xff]
    %v5025 = vld [vmem:[%s7 + $0xd8] sm:$0xff]
    %v5026 = vld [vmem:[%s7 + $0xe0] sm:$0xff]
    %v5027 = vld [vmem:[%s7 + $0xe8] sm:$0xff]
    %v5028 = vld [vmem:[%s7 + $0xf0] sm:$0xff]
    %v5029 = vld [vmem:[%s7 + $0xf8] sm:$0xff]
    %v5030 = vld [vmem:[%s7 + $0x100] sm:$0xff]
    %v5031 = vld [vmem:[%s7 + $0x108] sm:$0xff]
    %v5032 = vld [vmem:[%s7 + $0x110] sm:$0xff]
    %v5033 = vld [vmem:[%s7 + $0x118] sm:$0xff]
    %v5034 = vld [vmem:[%s7 + $0x120] sm:$0xff]
    %v5035 = vld [vmem:[%s7 + $0x128] sm:$0xff]
    %v5036 = vld [vmem:[%s7 + $0x130] sm:$0xff]
    %v5037 = vld [vmem:[%s7 + $0x138] sm:$0xff]
    %v5038 = vld [vmem:[%s7 + $0x140] sm:$0xff]
    %v5039 = vld [vmem:[%s7 + $0x148] sm:$0xff]
    %v5040 = vld [vmem:[%s7 + $0x150] sm:$0xff]
    %v5041 = vld [vmem:[%s7 + $0x158] sm:$0xff]
    %v5042 = vld [vmem:[%s7 + $0x160] sm:$0xff]
    %v5043 = vld [vmem:[%s7 + $0x168] sm:$0xff]
    %v5044 = vld [vmem:[%s7 + $0x170] sm:$0xff]
    %v5045 = vld [vmem:[%s7 + $0x178] sm:$0xff]
    %v5046 = vld [vmem:[%s7 + $0x180] sm:$0xff]
    %v5047 = vld [vmem:[%s7 + $0x188] sm:$0xff]
    %v5048 = vld [vmem:[%s7 + $0x190] sm:$0xff]
    %v5049 = vld [vmem:[%s7 + $0x198] sm:$0xff]
    %v5050 = vld [vmem:[%s7 + $0x1a0] sm:$0xff]
    %v5051 = vld [vmem:[%s7 + $0x1a8] sm:$0xff]
    %v5052 = vld [vmem:[%s7 + $0x1b0] sm:$0xff]
    %v5053 = vld [vmem:[%s7 + $0x1b8] sm:$0xff]
    %v5054 = vld [vmem:[%s7 + $0x1c0] sm:$0xff]
    %v5055 = vld [vmem:[%s7 + $0x1c8] sm:$0xff]
    %v5056 = vld [vmem:[%s7 + $0x1d0] sm:$0xff]
    %v5057 = vld [vmem:[%s7 + $0x1d8] sm:$0xff]
    %v5058 = vld [vmem:[%s7 + $0x1e0] sm:$0xff]
    %v5059 = vld [vmem:[%s7 + $0x1e8] sm:$0xff]
    %v5060 = vld [vmem:[%s7 + $0x1f0] sm:$0xff]
    %v5061 = vld [vmem:[%s7 + $0x1f8] sm:$0xff]
    %5062 = vmatpush.msra.mxu0 %v323
    %5063 = vmatpush.msra.mxu0 %v322
    %5064 = vmatpush.msra.mxu0 %v321
    %5065 = vmatpush.msra.mxu0 %v320
    %5066 = vmatpush.msra.mxu0 %v319
    %5067 = vmatpush.msra.mxu0 %v318
    %5068 = vmatpush.msra.mxu0 %v317
    %5069 = vmatpush.msra.mxu0 %v316
    %5070 = vmatpush.msra.mxu0 %v315
    %5071 = vmatpush.msra.mxu0 %v314
    %5072 = vmatpush.msra.mxu0 %v313
    %5073 = vmatpush.msra.mxu0 %v312
    %5074 = vmatpush.msra.mxu0 %v311
    %5075 = vmatpush.msra.mxu0 %v310
    %5076 = vmatpush.msra.mxu0 %v309
    %5077 = vmatpush.msra.mxu0 %v308
    %5078 = vmatmul.f32.gmra.mxu0 %v4998
    %v5079 = vpop.f32.mrf.mxu0
    %v5080 = vadd.f32 0.0, %v5079
    %5081 = vmatmul.f32.gmra.mxu0 %v5002
    %v5082 = vpop.f32.mrf.mxu0
    %v5083 = vadd.f32 0.0, %v5082
    %5084 = vmatmul.f32.gmra.mxu0 %v5006
    %v5085 = vpop.f32.mrf.mxu0
    %v5086 = vadd.f32 0.0, %v5085
    %5087 = vmatmul.f32.gmra.mxu0 %v5010
    %v5088 = vpop.f32.mrf.mxu0
    %v5089 = vadd.f32 0.0, %v5088
    %5090 = vmatmul.f32.gmra.mxu0 %v5014
    %v5091 = vpop.f32.mrf.mxu0
    %v5092 = vadd.f32 0.0, %v5091
    %5093 = vmatmul.f32.gmra.mxu0 %v5018
    %v5094 = vpop.f32.mrf.mxu0
    %v5095 = vadd.f32 0.0, %v5094
    %5096 = vmatmul.f32.gmra.mxu0 %v5022
    %v5097 = vpop.f32.mrf.mxu0
    %v5098 = vadd.f32 0.0, %v5097
    %5099 = vmatmul.f32.gmra.mxu0 %v5026
    %v5100 = vpop.f32.mrf.mxu0
    %v5101 = vadd.f32 0.0, %v5100
    %5102 = vmatmul.f32.gmra.mxu0 %v5030
    %v5103 = vpop.f32.mrf.mxu0
    %v5104 = vadd.f32 0.0, %v5103
    %5105 = vmatmul.f32.gmra.mxu0 %v5034
    %v5106 = vpop.f32.mrf.mxu0
    %v5107 = vadd.f32 0.0, %v5106
    %5108 = vmatmul.f32.gmra.mxu0 %v5038
    %v5109 = vpop.f32.mrf.mxu0
    %v5110 = vadd.f32 0.0, %v5109
    %5111 = vmatmul.f32.gmra.mxu0 %v5042
    %v5112 = vpop.f32.mrf.mxu0
    %v5113 = vadd.f32 0.0, %v5112
    %5114 = vmatmul.f32.gmra.mxu0 %v5046
    %v5115 = vpop.f32.mrf.mxu0
    %v5116 = vadd.f32 0.0, %v5115
    %5117 = vmatmul.f32.gmra.mxu0 %v5050
    %v5118 = vpop.f32.mrf.mxu0
    %v5119 = vadd.f32 0.0, %v5118
    %5120 = vmatmul.f32.gmra.mxu0 %v5054
    %v5121 = vpop.f32.mrf.mxu0
    %v5122 = vadd.f32 0.0, %v5121
    %5123 = vmatmul.f32.gmra.mxu0 %v5058
    %v5124 = vpop.f32.mrf.mxu0
    %v5125 = vadd.f32 0.0, %v5124
    %5126 = vdwg.mxu0
    %5127 = vmatpush.msra.mxu0 %v339
    %5128 = vmatpush.msra.mxu0 %v338
    %5129 = vmatpush.msra.mxu0 %v337
    %5130 = vmatpush.msra.mxu0 %v336
    %5131 = vmatpush.msra.mxu0 %v335
    %5132 = vmatpush.msra.mxu0 %v334
    %5133 = vmatpush.msra.mxu0 %v333
    %5134 = vmatpush.msra.mxu0 %v332
    %5135 = vmatpush.msra.mxu0 %v331
    %5136 = vmatpush.msra.mxu0 %v330
    %5137 = vmatpush.msra.mxu0 %v329
    %5138 = vmatpush.msra.mxu0 %v328
    %5139 = vmatpush.msra.mxu0 %v327
    %5140 = vmatpush.msra.mxu0 %v326
    %5141 = vmatpush.msra.mxu0 %v325
    %5142 = vmatpush.msra.mxu0 %v324
    %5143 = vmatmul.f32.gmra.mxu0 %v4999
    %v5144 = vpop.f32.mrf.mxu0
    %v5145 = vadd.f32 %v5080, %v5144
    %5146 = vmatmul.f32.gmra.mxu0 %v5003
    %v5147 = vpop.f32.mrf.mxu0
    %v5148 = vadd.f32 %v5083, %v5147
    %5149 = vmatmul.f32.gmra.mxu0 %v5007
    %v5150 = vpop.f32.mrf.mxu0
    %v5151 = vadd.f32 %v5086, %v5150
    %5152 = vmatmul.f32.gmra.mxu0 %v5011
    %v5153 = vpop.f32.mrf.mxu0
    %v5154 = vadd.f32 %v5089, %v5153
    %5155 = vmatmul.f32.gmra.mxu0 %v5015
    %v5156 = vpop.f32.mrf.mxu0
    %v5157 = vadd.f32 %v5092, %v5156
    %5158 = vmatmul.f32.gmra.mxu0 %v5019
    %v5159 = vpop.f32.mrf.mxu0
    %v5160 = vadd.f32 %v5095, %v5159
    %5161 = vmatmul.f32.gmra.mxu0 %v5023
    %v5162 = vpop.f32.mrf.mxu0
    %v5163 = vadd.f32 %v5098, %v5162
    %5164 = vmatmul.f32.gmra.mxu0 %v5027
    %v5165 = vpop.f32.mrf.mxu0
    %v5166 = vadd.f32 %v5101, %v5165
    %5167 = vmatmul.f32.gmra.mxu0 %v5031
    %v5168 = vpop.f32.mrf.mxu0
    %v5169 = vadd.f32 %v5104, %v5168
    %5170 = vmatmul.f32.gmra.mxu0 %v5035
    %v5171 = vpop.f32.mrf.mxu0
    %v5172 = vadd.f32 %v5107, %v5171
    %5173 = vmatmul.f32.gmra.mxu0 %v5039
    %v5174 = vpop.f32.mrf.mxu0
    %v5175 = vadd.f32 %v5110, %v5174
    %5176 = vmatmul.f32.gmra.mxu0 %v5043
    %v5177 = vpop.f32.mrf.mxu0
    %v5178 = vadd.f32 %v5113, %v5177
    %5179 = vmatmul.f32.gmra.mxu0 %v5047
    %v5180 = vpop.f32.mrf.mxu0
    %v5181 = vadd.f32 %v5116, %v5180
    %5182 = vmatmul.f32.gmra.mxu0 %v5051
    %v5183 = vpop.f32.mrf.mxu0
    %v5184 = vadd.f32 %v5119, %v5183
    %5185 = vmatmul.f32.gmra.mxu0 %v5055
    %v5186 = vpop.f32.mrf.mxu0
    %v5187 = vadd.f32 %v5122, %v5186
    %5188 = vmatmul.f32.gmra.mxu0 %v5059
    %v5189 = vpop.f32.mrf.mxu0
    %v5190 = vadd.f32 %v5125, %v5189
    %5191 = vdwg.mxu0
    %5192 = vmatpush.msra.mxu0 %v355
    %5193 = vmatpush.msra.mxu0 %v354
    %5194 = vmatpush.msra.mxu0 %v353
    %5195 = vmatpush.msra.mxu0 %v352
    %5196 = vmatpush.msra.mxu0 %v351
    %5197 = vmatpush.msra.mxu0 %v350
    %5198 = vmatpush.msra.mxu0 %v349
    %5199 = vmatpush.msra.mxu0 %v348
    %5200 = vmatpush.msra.mxu0 %v347
    %5201 = vmatpush.msra.mxu0 %v346
    %5202 = vmatpush.msra.mxu0 %v345
    %5203 = vmatpush.msra.mxu0 %v344
    %5204 = vmatpush.msra.mxu0 %v343
    %5205 = vmatpush.msra.mxu0 %v342
    %5206 = vmatpush.msra.mxu0 %v341
    %5207 = vmatpush.msra.mxu0 %v340
    %5208 = vmatmul.f32.gmra.mxu0 %v5000
    %v5209 = vpop.f32.mrf.mxu0
    %v5210 = vadd.f32 %v5145, %v5209
    %5211 = vmatmul.f32.gmra.mxu0 %v5004
    %v5212 = vpop.f32.mrf.mxu0
    %v5213 = vadd.f32 %v5148, %v5212
    %5214 = vmatmul.f32.gmra.mxu0 %v5008
    %v5215 = vpop.f32.mrf.mxu0
    %v5216 = vadd.f32 %v5151, %v5215
    %5217 = vmatmul.f32.gmra.mxu0 %v5012
    %v5218 = vpop.f32.mrf.mxu0
    %v5219 = vadd.f32 %v5154, %v5218
    %5220 = vmatmul.f32.gmra.mxu0 %v5016
    %v5221 = vpop.f32.mrf.mxu0
    %v5222 = vadd.f32 %v5157, %v5221
    %5223 = vmatmul.f32.gmra.mxu0 %v5020
    %v5224 = vpop.f32.mrf.mxu0
    %v5225 = vadd.f32 %v5160, %v5224
    %5226 = vmatmul.f32.gmra.mxu0 %v5024
    %v5227 = vpop.f32.mrf.mxu0
    %v5228 = vadd.f32 %v5163, %v5227
    %5229 = vmatmul.f32.gmra.mxu0 %v5028
    %v5230 = vpop.f32.mrf.mxu0
    %v5231 = vadd.f32 %v5166, %v5230
    %5232 = vmatmul.f32.gmra.mxu0 %v5032
    %v5233 = vpop.f32.mrf.mxu0
    %v5234 = vadd.f32 %v5169, %v5233
    %5235 = vmatmul.f32.gmra.mxu0 %v5036
    %v5236 = vpop.f32.mrf.mxu0
    %v5237 = vadd.f32 %v5172, %v5236
    %5238 = vmatmul.f32.gmra.mxu0 %v5040
    %v5239 = vpop.f32.mrf.mxu0
    %v5240 = vadd.f32 %v5175, %v5239
    %5241 = vmatmul.f32.gmra.mxu0 %v5044
    %v5242 = vpop.f32.mrf.mxu0
    %v5243 = vadd.f32 %v5178, %v5242
    %5244 = vmatmul.f32.gmra.mxu0 %v5048
    %v5245 = vpop.f32.mrf.mxu0
    %v5246 = vadd.f32 %v5181, %v5245
    %5247 = vmatmul.f32.gmra.mxu0 %v5052
    %v5248 = vpop.f32.mrf.mxu0
    %v5249 = vadd.f32 %v5184, %v5248
    %5250 = vmatmul.f32.gmra.mxu0 %v5056
    %v5251 = vpop.f32.mrf.mxu0
    %v5252 = vadd.f32 %v5187, %v5251
    %5253 = vmatmul.f32.gmra.mxu0 %v5060
    %v5254 = vpop.f32.mrf.mxu0
    %v5255 = vadd.f32 %v5190, %v5254
    %5256 = vdwg.mxu0
    %5257 = vmatpush.msra.mxu0 %v371
    %5258 = vmatpush.msra.mxu0 %v370
    %5259 = vmatpush.msra.mxu0 %v369
    %5260 = vmatpush.msra.mxu0 %v368
    %5261 = vmatpush.msra.mxu0 %v367
    %5262 = vmatpush.msra.mxu0 %v366
    %5263 = vmatpush.msra.mxu0 %v365
    %5264 = vmatpush.msra.mxu0 %v364
    %5265 = vmatpush.msra.mxu0 %v363
    %5266 = vmatpush.msra.mxu0 %v362
    %5267 = vmatpush.msra.mxu0 %v361
    %5268 = vmatpush.msra.mxu0 %v360
    %5269 = vmatpush.msra.mxu0 %v359
    %5270 = vmatpush.msra.mxu0 %v358
    %5271 = vmatpush.msra.mxu0 %v357
    %5272 = vmatpush.msra.mxu0 %v356
    %5273 = vmatmul.f32.gmra.mxu0 %v5001
    %v5274 = vpop.f32.mrf.mxu0
    %v5275 = vadd.f32 %v5210, %v5274
    %5276 = vmatmul.f32.gmra.mxu0 %v5005
    %v5277 = vpop.f32.mrf.mxu0
    %v5278 = vadd.f32 %v5213, %v5277
    %5279 = vmatmul.f32.gmra.mxu0 %v5009
    %v5280 = vpop.f32.mrf.mxu0
    %v5281 = vadd.f32 %v5216, %v5280
    %5282 = vmatmul.f32.gmra.mxu0 %v5013
    %v5283 = vpop.f32.mrf.mxu0
    %v5284 = vadd.f32 %v5219, %v5283
    %5285 = vmatmul.f32.gmra.mxu0 %v5017
    %v5286 = vpop.f32.mrf.mxu0
    %v5287 = vadd.f32 %v5222, %v5286
    %5288 = vmatmul.f32.gmra.mxu0 %v5021
    %v5289 = vpop.f32.mrf.mxu0
    %v5290 = vadd.f32 %v5225, %v5289
    %5291 = vmatmul.f32.gmra.mxu0 %v5025
    %v5292 = vpop.f32.mrf.mxu0
    %v5293 = vadd.f32 %v5228, %v5292
    %5294 = vmatmul.f32.gmra.mxu0 %v5029
    %v5295 = vpop.f32.mrf.mxu0
    %v5296 = vadd.f32 %v5231, %v5295
    %5297 = vmatmul.f32.gmra.mxu0 %v5033
    %v5298 = vpop.f32.mrf.mxu0
    %v5299 = vadd.f32 %v5234, %v5298
    %5300 = vmatmul.f32.gmra.mxu0 %v5037
    %v5301 = vpop.f32.mrf.mxu0
    %v5302 = vadd.f32 %v5237, %v5301
    %5303 = vmatmul.f32.gmra.mxu0 %v5041
    %v5304 = vpop.f32.mrf.mxu0
    %v5305 = vadd.f32 %v5240, %v5304
    %5306 = vmatmul.f32.gmra.mxu0 %v5045
    %v5307 = vpop.f32.mrf.mxu0
    %v5308 = vadd.f32 %v5243, %v5307
    %5309 = vmatmul.f32.gmra.mxu0 %v5049
    %v5310 = vpop.f32.mrf.mxu0
    %v5311 = vadd.f32 %v5246, %v5310
    %5312 = vmatmul.f32.gmra.mxu0 %v5053
    %v5313 = vpop.f32.mrf.mxu0
    %v5314 = vadd.f32 %v5249, %v5313
    %5315 = vmatmul.f32.gmra.mxu0 %v5057
    %v5316 = vpop.f32.mrf.mxu0
    %v5317 = vadd.f32 %v5252, %v5316
    %5318 = vmatmul.f32.gmra.mxu0 %v5061
    %v5319 = vpop.f32.mrf.mxu0
    %v5320 = vadd.f32 %v5255, %v5319
    %5321 = vdwg.mxu0
    %v5322 = vld [vmem:[#allocation11] sm:$0xff]
    %v5323 = vld [vmem:[#allocation11 + $0x8] sm:$0xff]
    %v5324 = vld [vmem:[#allocation11 + $0x10] sm:$0xff]
    %v5325 = vld [vmem:[#allocation11 + $0x18] sm:$0xff]
    %v5326 = vld [vmem:[#allocation11 + $0x20] sm:$0xff]
    %v5327 = vld [vmem:[#allocation11 + $0x28] sm:$0xff]
    %v5328 = vld [vmem:[#allocation11 + $0x30] sm:$0xff]
    %v5329 = vld [vmem:[#allocation11 + $0x38] sm:$0xff]
    %v5330 = vld [vmem:[#allocation11 + $0x40] sm:$0xff]
    %v5331 = vld [vmem:[#allocation11 + $0x48] sm:$0xff]
    %v5332 = vld [vmem:[#allocation11 + $0x50] sm:$0xff]
    %v5333 = vld [vmem:[#allocation11 + $0x58] sm:$0xff]
    %v5334 = vld [vmem:[#allocation11 + $0x60] sm:$0xff]
    %v5335 = vld [vmem:[#allocation11 + $0x68] sm:$0xff]
    %v5336 = vld [vmem:[#allocation11 + $0x70] sm:$0xff]
    %v5337 = vld [vmem:[#allocation11 + $0x78] sm:$0xff]
    %5338 = vmatpush.msra.mxu0 %v5337
    %5339 = vmatpush.msra.mxu0 %v5336
    %5340 = vmatpush.msra.mxu0 %v5335
    %5341 = vmatpush.msra.mxu0 %v5334
    %5342 = vmatpush.msra.mxu0 %v5333
    %5343 = vmatpush.msra.mxu0 %v5332
    %5344 = vmatpush.msra.mxu0 %v5331
    %5345 = vmatpush.msra.mxu0 %v5330
    %5346 = vmatpush.msra.mxu0 %v5329
    %5347 = vmatpush.msra.mxu0 %v5328
    %5348 = vmatpush.msra.mxu0 %v5327
    %5349 = vmatpush.msra.mxu0 %v5326
    %5350 = vmatpush.msra.mxu0 %v5325
    %5351 = vmatpush.msra.mxu0 %v5324
    %5352 = vmatpush.msra.mxu0 %v5323
    %5353 = vmatpush.msra.mxu0 %v5322
    %5354 = vmatmul.f32.gmra.mxu0 %v5275
    %v5355 = vpop.f32.mrf.mxu0
    %v5356 = vadd.f32 0.0, %v5355
    %5357 = vmatmul.f32.gmra.mxu0 %v5278
    %v5358 = vpop.f32.mrf.mxu0
    %v5359 = vadd.f32 0.0, %v5358
    %5360 = vmatmul.f32.gmra.mxu0 %v5281
    %v5361 = vpop.f32.mrf.mxu0
    %v5362 = vadd.f32 0.0, %v5361
    %5363 = vmatmul.f32.gmra.mxu0 %v5284
    %v5364 = vpop.f32.mrf.mxu0
    %v5365 = vadd.f32 0.0, %v5364
    %5366 = vmatmul.f32.gmra.mxu0 %v5287
    %v5367 = vpop.f32.mrf.mxu0
    %v5368 = vadd.f32 0.0, %v5367
    %5369 = vmatmul.f32.gmra.mxu0 %v5290
    %v5370 = vpop.f32.mrf.mxu0
    %v5371 = vadd.f32 0.0, %v5370
    %5372 = vmatmul.f32.gmra.mxu0 %v5293
    %v5373 = vpop.f32.mrf.mxu0
    %v5374 = vadd.f32 0.0, %v5373
    %5375 = vmatmul.f32.gmra.mxu0 %v5296
    %v5376 = vpop.f32.mrf.mxu0
    %v5377 = vadd.f32 0.0, %v5376
    %5378 = vmatmul.f32.gmra.mxu0 %v5299
    %v5379 = vpop.f32.mrf.mxu0
    %v5380 = vadd.f32 0.0, %v5379
    %5381 = vmatmul.f32.gmra.mxu0 %v5302
    %v5382 = vpop.f32.mrf.mxu0
    %v5383 = vadd.f32 0.0, %v5382
    %5384 = vmatmul.f32.gmra.mxu0 %v5305
    %v5385 = vpop.f32.mrf.mxu0
    %v5386 = vadd.f32 0.0, %v5385
    %5387 = vmatmul.f32.gmra.mxu0 %v5308
    %v5388 = vpop.f32.mrf.mxu0
    %v5389 = vadd.f32 0.0, %v5388
    %5390 = vmatmul.f32.gmra.mxu0 %v5311
    %v5391 = vpop.f32.mrf.mxu0
    %v5392 = vadd.f32 0.0, %v5391
    %5393 = vmatmul.f32.gmra.mxu0 %v5314
    %v5394 = vpop.f32.mrf.mxu0
    %v5395 = vadd.f32 0.0, %v5394
    %5396 = vmatmul.f32.gmra.mxu0 %v5317
    %v5397 = vpop.f32.mrf.mxu0
    %v5398 = vadd.f32 0.0, %v5397
    %5399 = vmatmul.f32.gmra.mxu0 %v5320
    %v5400 = vpop.f32.mrf.mxu0
    %v5401 = vadd.f32 0.0, %v5400
    %5402 = vdwg.mxu0
    %v5403 = vadd.f32 %v4982, %v5356
    %v5404 = vadd.f32 %v4983, %v5359
    %v5405 = vadd.f32 %v4984, %v5362
    %v5406 = vadd.f32 %v4985, %v5365
    %v5407 = vadd.f32 %v4986, %v5368
    %v5408 = vadd.f32 %v4987, %v5371
    %v5409 = vadd.f32 %v4988, %v5374
    %v5410 = vadd.f32 %v4989, %v5377
    %v5411 = vadd.f32 %v4990, %v5380
    %v5412 = vadd.f32 %v4991, %v5383
    %v5413 = vadd.f32 %v4992, %v5386
    %v5414 = vadd.f32 %v4993, %v5389
    %v5415 = vadd.f32 %v4994, %v5392
    %v5416 = vadd.f32 %v4995, %v5395
    %v5417 = vadd.f32 %v4996, %v5398
    %v5418 = vadd.f32 %v4997, %v5401
    %v5419 = vld [vmem:[%s8] sm:$0x1]
    %v5421 = vperm.slane %v5419, 0
    %v5423 = vmul.f32 %v5403, %v5421
    %v5424 = vmul.f32 %v5404, %v5421
    %v5425 = vmul.f32 %v5405, %v5421
    %v5426 = vmul.f32 %v5406, %v5421
    %v5427 = vmul.f32 %v5407, %v5421
    %v5428 = vmul.f32 %v5408, %v5421
    %v5429 = vmul.f32 %v5409, %v5421
    %v5430 = vmul.f32 %v5410, %v5421
    %v5431 = vmul.f32 %v5411, %v5421
    %v5432 = vmul.f32 %v5412, %v5421
    %v5433 = vmul.f32 %v5413, %v5421
    %v5434 = vmul.f32 %v5414, %v5421
    %v5435 = vmul.f32 %v5415, %v5421
    %v5436 = vmul.f32 %v5416, %v5421
    %v5437 = vmul.f32 %v5417, %v5421
    %v5438 = vmul.f32 %v5418, %v5421
    %v5439 = vld [vmem:[%s9] sm:$0x1]
    %v5441 = vperm.slane %v5439, 0
    %v5443 = vadd.f32 %v5423, %v5441
    %v5444 = vadd.f32 %v5424, %v5441
    %v5445 = vadd.f32 %v5425, %v5441
    %v5446 = vadd.f32 %v5426, %v5441
    %v5447 = vadd.f32 %v5427, %v5441
    %v5448 = vadd.f32 %v5428, %v5441
    %v5449 = vadd.f32 %v5429, %v5441
    %v5450 = vadd.f32 %v5430, %v5441
    %v5451 = vadd.f32 %v5431, %v5441
    %v5452 = vadd.f32 %v5432, %v5441
    %v5453 = vadd.f32 %v5433, %v5441
    %v5454 = vadd.f32 %v5434, %v5441
    %v5455 = vadd.f32 %v5435, %v5441
    %v5456 = vadd.f32 %v5436, %v5441
    %v5457 = vadd.f32 %v5437, %v5441
    %v5458 = vadd.f32 %v5438, %v5441
    %v5459 = vmax.f32 %v5443, 0.0
    %v5460 = vmax.f32 %v5444, 0.0
    %v5461 = vmax.f32 %v5445, 0.0
    %v5462 = vmax.f32 %v5446, 0.0
    %v5463 = vmax.f32 %v5447, 0.0
    %v5464 = vmax.f32 %v5448, 0.0
    %v5465 = vmax.f32 %v5449, 0.0
    %v5466 = vmax.f32 %v5450, 0.0
    %v5467 = vmax.f32 %v5451, 0.0
    %v5468 = vmax.f32 %v5452, 0.0
    %v5469 = vmax.f32 %v5453, 0.0
    %v5470 = vmax.f32 %v5454, 0.0
    %v5471 = vmax.f32 %v5455, 0.0
    %v5472 = vmax.f32 %v5456, 0.0
    %v5473 = vmax.f32 %v5457, 0.0
    %v5474 = vmax.f32 %v5458, 0.0
    %5475 = vst [vmem:[#allocation4] sm:$0xff] 0.0
    %5476 = vst [vmem:[#allocation4 + $0x8] sm:$0x3] 0.0
    %5477 = vst [vmem:[#allocation4 + $0x10] sm:$0xff] 0.0
    %5478 = vst [vmem:[#allocation4 + $0x18] sm:$0x3] 0.0
    %5479 = vst [vmem:[#allocation4 + $0x20] sm:$0xff] 0.0
    %5480 = vst [vmem:[#allocation4 + $0x28] sm:$0x3] 0.0
    %5481 = vst [vmem:[#allocation4 + $0x30] sm:$0xff] 0.0
    %5482 = vst [vmem:[#allocation4 + $0x38] sm:$0x3] 0.0
    %5483 = vst [vmem:[#allocation4 + $0x40] sm:$0xff] 0.0
    %5484 = vst [vmem:[#allocation4 + $0x48] sm:$0x3] 0.0
    %5485 = vst [vmem:[#allocation4 + $0x50] sm:$0xff] 0.0
    %5486 = vst [vmem:[#allocation4 + $0x58] sm:$0x3] 0.0
    %5487 = vst [vmem:[#allocation4 + $0x60] sm:$0xff] 0.0
    %5488 = vst [vmem:[#allocation4 + $0x68] sm:$0x3] 0.0
    %5489 = vst [vmem:[#allocation4 + $0x70] sm:$0xff] 0.0
    %5490 = vst [vmem:[#allocation4 + $0x78] sm:$0x3] 0.0
    %5491 = vst [vmem:[#allocation4 + $0x80] sm:$0xff] 0.0
    %5492 = vst [vmem:[#allocation4 + $0x88] sm:$0x3] 0.0
    %5493 = vst [vmem:[#allocation4 + $0x90] sm:$0xff] 0.0
    %5494 = vst [vmem:[#allocation4 + $0x98] sm:$0x3] 0.0
    %5495 = vst [vmem:[#allocation4 + $0xa0] sm:$0xff] 0.0
    %5496 = vst [vmem:[#allocation4 + $0xa8] sm:$0x3] 0.0
    %5497 = vst [vmem:[#allocation4 + $0xb0] sm:$0xff] 0.0
    %5498 = vst [vmem:[#allocation4 + $0xb8] sm:$0x3] 0.0
    %5499 = vst [vmem:[#allocation4 + $0xc0] sm:$0xff] 0.0
    %5500 = vst [vmem:[#allocation4 + $0xc8] sm:$0x3] 0.0
    %5501 = vst [vmem:[#allocation4 + $0xd0] sm:$0xff] 0.0
    %5502 = vst [vmem:[#allocation4 + $0xd8] sm:$0x3] 0.0
    %5503 = vst [vmem:[#allocation4 + $0xe0] sm:$0xff] 0.0
    %5504 = vst [vmem:[#allocation4 + $0xe8] sm:$0x3] 0.0
    %5505 = vst [vmem:[#allocation4 + $0xf0] sm:$0xff] 0.0
    %5506 = vst [vmem:[#allocation4 + $0xf8] sm:$0x3] 0.0
    %5507 = vst [vmem:[#allocation4 + $0x100] sm:$0xff] 0.0
    %5508 = vst [vmem:[#allocation4 + $0x108] sm:$0x3] 0.0
    %5509 = vst [vmem:[#allocation4 + $0x110] sm:$0xff] 0.0
    %5510 = vst [vmem:[#allocation4 + $0x118] sm:$0x3] 0.0
    %5511 = vst [vmem:[#allocation4 + $0x120] sm:$0xff] 0.0
    %5512 = vst [vmem:[#allocation4 + $0x128] sm:$0x3] 0.0
    %5513 = vst [vmem:[#allocation4 + $0x130] sm:$0xff] 0.0
    %5514 = vst [vmem:[#allocation4 + $0x138] sm:$0x3] 0.0
    %s5515 = scalar_lea.vmem [#allocation4], 16
    %5516 = vst [vmem:[%s5515 + $0x1] sm:$0xff] %v5459
    %5517 = vst [vmem:[%s5515 + $0x11] sm:$0xff] %v5460
    %5518 = vst [vmem:[%s5515 + $0x21] sm:$0xff] %v5461
    %5519 = vst [vmem:[%s5515 + $0x31] sm:$0xff] %v5462
    %5520 = vst [vmem:[%s5515 + $0x41] sm:$0xff] %v5463
    %5521 = vst [vmem:[%s5515 + $0x51] sm:$0xff] %v5464
    %5522 = vst [vmem:[%s5515 + $0x61] sm:$0xff] %v5465
    %5523 = vst [vmem:[%s5515 + $0x71] sm:$0xff] %v5466
    %5524 = vst [vmem:[%s5515 + $0xa1] sm:$0xff] %v5467
    %5525 = vst [vmem:[%s5515 + $0xb1] sm:$0xff] %v5468
    %5526 = vst [vmem:[%s5515 + $0xc1] sm:$0xff] %v5469
    %5527 = vst [vmem:[%s5515 + $0xd1] sm:$0xff] %v5470
    %5528 = vst [vmem:[%s5515 + $0xe1] sm:$0xff] %v5471
    %5529 = vst [vmem:[%s5515 + $0xf1] sm:$0xff] %v5472
    %5530 = vst [vmem:[%s5515 + $0x101] sm:$0xff] %v5473
    %5531 = vst [vmem:[%s5515 + $0x111] sm:$0xff] %v5474
    %v5532 = vld [vmem:[#allocation4] sm:$0xff]
    %v5533 = vld [vmem:[#allocation4 + $0x10] sm:$0xff]
    %v5534 = vld [vmem:[#allocation4 + $0x20] sm:$0xff]
    %v5535 = vld [vmem:[#allocation4 + $0x30] sm:$0xff]
    %v5536 = vld [vmem:[#allocation4 + $0x40] sm:$0xff]
    %v5537 = vld [vmem:[#allocation4 + $0x50] sm:$0xff]
    %v5538 = vld [vmem:[#allocation4 + $0x60] sm:$0xff]
    %v5539 = vld [vmem:[#allocation4 + $0x70] sm:$0xff]
    %v5540 = vld [vmem:[#allocation4 + $0xa0] sm:$0xff]
    %v5541 = vld [vmem:[#allocation4 + $0xb0] sm:$0xff]
    %v5542 = vld [vmem:[#allocation4 + $0xc0] sm:$0xff]
    %v5543 = vld [vmem:[#allocation4 + $0xd0] sm:$0xff]
    %v5544 = vld [vmem:[#allocation4 + $0xe0] sm:$0xff]
    %v5545 = vld [vmem:[#allocation4 + $0xf0] sm:$0xff]
    %v5546 = vld [vmem:[#allocation4 + $0x100] sm:$0xff]
    %v5547 = vld [vmem:[#allocation4 + $0x110] sm:$0xff]
    %v5548 = vld [vmem:[#allocation12] sm:$0xff]
    %v5549 = vld [vmem:[#allocation12 + $0x8] sm:$0xff]
    %v5550 = vld [vmem:[#allocation12 + $0x10] sm:$0xff]
    %v5551 = vld [vmem:[#allocation12 + $0x18] sm:$0xff]
    %v5552 = vld [vmem:[#allocation12 + $0x20] sm:$0xff]
    %v5553 = vld [vmem:[#allocation12 + $0x28] sm:$0xff]
    %v5554 = vld [vmem:[#allocation12 + $0x30] sm:$0xff]
    %v5555 = vld [vmem:[#allocation12 + $0x38] sm:$0xff]
    %v5556 = vld [vmem:[#allocation12 + $0x40] sm:$0xff]
    %v5557 = vld [vmem:[#allocation12 + $0x48] sm:$0xff]
    %v5558 = vld [vmem:[#allocation12 + $0x50] sm:$0xff]
    %v5559 = vld [vmem:[#allocation12 + $0x58] sm:$0xff]
    %v5560 = vld [vmem:[#allocation12 + $0x60] sm:$0xff]
    %v5561 = vld [vmem:[#allocation12 + $0x68] sm:$0xff]
    %v5562 = vld [vmem:[#allocation12 + $0x70] sm:$0xff]
    %v5563 = vld [vmem:[#allocation12 + $0x78] sm:$0xff]
    %v5564 = vld [vmem:[#allocation4 + $0x1] sm:$0xff]
    %v5565 = vld [vmem:[#allocation4 + $0x11] sm:$0xff]
    %v5566 = vld [vmem:[#allocation4 + $0x21] sm:$0xff]
    %v5567 = vld [vmem:[#allocation4 + $0x31] sm:$0xff]
    %v5568 = vld [vmem:[#allocation4 + $0x41] sm:$0xff]
    %v5569 = vld [vmem:[#allocation4 + $0x51] sm:$0xff]
    %v5570 = vld [vmem:[#allocation4 + $0x61] sm:$0xff]
    %v5571 = vld [vmem:[#allocation4 + $0x71] sm:$0xff]
    %v5572 = vld [vmem:[#allocation4 + $0xa1] sm:$0xff]
    %v5573 = vld [vmem:[#allocation4 + $0xb1] sm:$0xff]
    %v5574 = vld [vmem:[#allocation4 + $0xc1] sm:$0xff]
    %v5575 = vld [vmem:[#allocation4 + $0xd1] sm:$0xff]
    %v5576 = vld [vmem:[#allocation4 + $0xe1] sm:$0xff]
    %v5577 = vld [vmem:[#allocation4 + $0xf1] sm:$0xff]
    %v5578 = vld [vmem:[#allocation4 + $0x101] sm:$0xff]
    %v5579 = vld [vmem:[#allocation4 + $0x111] sm:$0xff]
    %s5580 = scalar_lea.vmem [#allocation12], 128
    %v5581 = vld [vmem:[%s5580] sm:$0xff]
    %v5582 = vld [vmem:[%s5580 + $0x8] sm:$0xff]
    %v5583 = vld [vmem:[%s5580 + $0x10] sm:$0xff]
    %v5584 = vld [vmem:[%s5580 + $0x18] sm:$0xff]
    %v5585 = vld [vmem:[%s5580 + $0x20] sm:$0xff]
    %v5586 = vld [vmem:[%s5580 + $0x28] sm:$0xff]
    %v5587 = vld [vmem:[%s5580 + $0x30] sm:$0xff]
    %v5588 = vld [vmem:[%s5580 + $0x38] sm:$0xff]
    %v5589 = vld [vmem:[%s5580 + $0x40] sm:$0xff]
    %v5590 = vld [vmem:[%s5580 + $0x48] sm:$0xff]
    %v5591 = vld [vmem:[%s5580 + $0x50] sm:$0xff]
    %v5592 = vld [vmem:[%s5580 + $0x58] sm:$0xff]
    %v5593 = vld [vmem:[%s5580 + $0x60] sm:$0xff]
    %v5594 = vld [vmem:[%s5580 + $0x68] sm:$0xff]
    %v5595 = vld [vmem:[%s5580 + $0x70] sm:$0xff]
    %v5596 = vld [vmem:[%s5580 + $0x78] sm:$0xff]
    %5597 = vmatpush.msra.mxu0 %v5596
    %5598 = vmatpush.msra.mxu0 %v5595
    %5599 = vmatpush.msra.mxu0 %v5594
    %5600 = vmatpush.msra.mxu0 %v5593
    %5601 = vmatpush.msra.mxu0 %v5592
    %5602 = vmatpush.msra.mxu0 %v5591
    %5603 = vmatpush.msra.mxu0 %v5590
    %5604 = vmatpush.msra.mxu0 %v5589
    %5605 = vmatpush.msra.mxu0 %v5588
    %5606 = vmatpush.msra.mxu0 %v5587
    %5607 = vmatpush.msra.mxu0 %v5586
    %5608 = vmatpush.msra.mxu0 %v5585
    %5609 = vmatpush.msra.mxu0 %v5584
    %5610 = vmatpush.msra.mxu0 %v5583
    %5611 = vmatpush.msra.mxu0 %v5582
    %5612 = vmatpush.msra.mxu0 %v5581
    %5613 = vmatmul.f32.gmra.mxu0 %v5564
    %v5614 = vpop.f32.mrf.mxu0
    %v5615 = vadd.f32 0.0, %v5614
    %5616 = vmatmul.f32.gmra.mxu0 %v5565
    %v5617 = vpop.f32.mrf.mxu0
    %v5618 = vadd.f32 0.0, %v5617
    %5619 = vmatmul.f32.gmra.mxu0 %v5566
    %v5620 = vpop.f32.mrf.mxu0
    %v5621 = vadd.f32 0.0, %v5620
    %5622 = vmatmul.f32.gmra.mxu0 %v5567
    %v5623 = vpop.f32.mrf.mxu0
    %v5624 = vadd.f32 0.0, %v5623
    %5625 = vmatmul.f32.gmra.mxu0 %v5568
    %v5626 = vpop.f32.mrf.mxu0
    %v5627 = vadd.f32 0.0, %v5626
    %5628 = vmatmul.f32.gmra.mxu0 %v5569
    %v5629 = vpop.f32.mrf.mxu0
    %v5630 = vadd.f32 0.0, %v5629
    %5631 = vmatmul.f32.gmra.mxu0 %v5570
    %v5632 = vpop.f32.mrf.mxu0
    %v5633 = vadd.f32 0.0, %v5632
    %5634 = vmatmul.f32.gmra.mxu0 %v5571
    %v5635 = vpop.f32.mrf.mxu0
    %v5636 = vadd.f32 0.0, %v5635
    %5637 = vmatmul.f32.gmra.mxu0 %v5572
    %v5638 = vpop.f32.mrf.mxu0
    %v5639 = vadd.f32 0.0, %v5638
    %5640 = vmatmul.f32.gmra.mxu0 %v5573
    %v5641 = vpop.f32.mrf.mxu0
    %v5642 = vadd.f32 0.0, %v5641
    %5643 = vmatmul.f32.gmra.mxu0 %v5574
    %v5644 = vpop.f32.mrf.mxu0
    %v5645 = vadd.f32 0.0, %v5644
    %5646 = vmatmul.f32.gmra.mxu0 %v5575
    %v5647 = vpop.f32.mrf.mxu0
    %v5648 = vadd.f32 0.0, %v5647
    %5649 = vmatmul.f32.gmra.mxu0 %v5576
    %v5650 = vpop.f32.mrf.mxu0
    %v5651 = vadd.f32 0.0, %v5650
    %5652 = vmatmul.f32.gmra.mxu0 %v5577
    %v5653 = vpop.f32.mrf.mxu0
    %v5654 = vadd.f32 0.0, %v5653
    %5655 = vmatmul.f32.gmra.mxu0 %v5578
    %v5656 = vpop.f32.mrf.mxu0
    %v5657 = vadd.f32 0.0, %v5656
    %5658 = vmatmul.f32.gmra.mxu0 %v5579
    %v5659 = vpop.f32.mrf.mxu0
    %v5660 = vadd.f32 0.0, %v5659
    %5661 = vdwg.mxu0
    %5662 = vmatpush.msra.mxu0 %v5563
    %5663 = vmatpush.msra.mxu0 %v5562
    %5664 = vmatpush.msra.mxu0 %v5561
    %5665 = vmatpush.msra.mxu0 %v5560
    %5666 = vmatpush.msra.mxu0 %v5559
    %5667 = vmatpush.msra.mxu0 %v5558
    %5668 = vmatpush.msra.mxu0 %v5557
    %5669 = vmatpush.msra.mxu0 %v5556
    %5670 = vmatpush.msra.mxu0 %v5555
    %5671 = vmatpush.msra.mxu0 %v5554
    %5672 = vmatpush.msra.mxu0 %v5553
    %5673 = vmatpush.msra.mxu0 %v5552
    %5674 = vmatpush.msra.mxu0 %v5551
    %5675 = vmatpush.msra.mxu0 %v5550
    %5676 = vmatpush.msra.mxu0 %v5549
    %5677 = vmatpush.msra.mxu0 %v5548
    %5678 = vmatmul.f32.gmra.mxu0 %v5532
    %v5679 = vpop.f32.mrf.mxu0
    %v5680 = vadd.f32 %v5615, %v5679
    %5681 = vmatmul.f32.gmra.mxu0 %v5533
    %v5682 = vpop.f32.mrf.mxu0
    %v5683 = vadd.f32 %v5618, %v5682
    %5684 = vmatmul.f32.gmra.mxu0 %v5534
    %v5685 = vpop.f32.mrf.mxu0
    %v5686 = vadd.f32 %v5621, %v5685
    %5687 = vmatmul.f32.gmra.mxu0 %v5535
    %v5688 = vpop.f32.mrf.mxu0
    %v5689 = vadd.f32 %v5624, %v5688
    %5690 = vmatmul.f32.gmra.mxu0 %v5536
    %v5691 = vpop.f32.mrf.mxu0
    %v5692 = vadd.f32 %v5627, %v5691
    %5693 = vmatmul.f32.gmra.mxu0 %v5537
    %v5694 = vpop.f32.mrf.mxu0
    %v5695 = vadd.f32 %v5630, %v5694
    %5696 = vmatmul.f32.gmra.mxu0 %v5538
    %v5697 = vpop.f32.mrf.mxu0
    %v5698 = vadd.f32 %v5633, %v5697
    %5699 = vmatmul.f32.gmra.mxu0 %v5539
    %v5700 = vpop.f32.mrf.mxu0
    %v5701 = vadd.f32 %v5636, %v5700
    %5702 = vmatmul.f32.gmra.mxu0 %v5540
    %v5703 = vpop.f32.mrf.mxu0
    %v5704 = vadd.f32 %v5639, %v5703
    %5705 = vmatmul.f32.gmra.mxu0 %v5541
    %v5706 = vpop.f32.mrf.mxu0
    %v5707 = vadd.f32 %v5642, %v5706
    %5708 = vmatmul.f32.gmra.mxu0 %v5542
    %v5709 = vpop.f32.mrf.mxu0
    %v5710 = vadd.f32 %v5645, %v5709
    %5711 = vmatmul.f32.gmra.mxu0 %v5543
    %v5712 = vpop.f32.mrf.mxu0
    %v5713 = vadd.f32 %v5648, %v5712
    %5714 = vmatmul.f32.gmra.mxu0 %v5544
    %v5715 = vpop.f32.mrf.mxu0
    %v5716 = vadd.f32 %v5651, %v5715
    %5717 = vmatmul.f32.gmra.mxu0 %v5545
    %v5718 = vpop.f32.mrf.mxu0
    %v5719 = vadd.f32 %v5654, %v5718
    %5720 = vmatmul.f32.gmra.mxu0 %v5546
    %v5721 = vpop.f32.mrf.mxu0
    %v5722 = vadd.f32 %v5657, %v5721
    %5723 = vmatmul.f32.gmra.mxu0 %v5547
    %v5724 = vpop.f32.mrf.mxu0
    %v5725 = vadd.f32 %v5660, %v5724
    %5726 = vdwg.mxu0
    %v5727 = vld [vmem:[#allocation4 + $0x2] sm:$0xff]
    %v5728 = vld [vmem:[#allocation4 + $0x12] sm:$0xff]
    %v5729 = vld [vmem:[#allocation4 + $0x22] sm:$0xff]
    %v5730 = vld [vmem:[#allocation4 + $0x32] sm:$0xff]
    %v5731 = vld [vmem:[#allocation4 + $0x42] sm:$0xff]
    %v5732 = vld [vmem:[#allocation4 + $0x52] sm:$0xff]
    %v5733 = vld [vmem:[#allocation4 + $0x62] sm:$0xff]
    %v5734 = vld [vmem:[#allocation4 + $0x72] sm:$0xff]
    %v5735 = vld [vmem:[#allocation4 + $0xa2] sm:$0xff]
    %v5736 = vld [vmem:[#allocation4 + $0xb2] sm:$0xff]
    %v5737 = vld [vmem:[#allocation4 + $0xc2] sm:$0xff]
    %v5738 = vld [vmem:[#allocation4 + $0xd2] sm:$0xff]
    %v5739 = vld [vmem:[#allocation4 + $0xe2] sm:$0xff]
    %v5740 = vld [vmem:[#allocation4 + $0xf2] sm:$0xff]
    %v5741 = vld [vmem:[#allocation4 + $0x102] sm:$0xff]
    %v5742 = vld [vmem:[#allocation4 + $0x112] sm:$0xff]
    %s5743 = scalar_lea.vmem [#allocation12], 256
    %v5744 = vld [vmem:[%s5743] sm:$0xff]
    %v5745 = vld [vmem:[%s5743 + $0x8] sm:$0xff]
    %v5746 = vld [vmem:[%s5743 + $0x10] sm:$0xff]
    %v5747 = vld [vmem:[%s5743 + $0x18] sm:$0xff]
    %v5748 = vld [vmem:[%s5743 + $0x20] sm:$0xff]
    %v5749 = vld [vmem:[%s5743 + $0x28] sm:$0xff]
    %v5750 = vld [vmem:[%s5743 + $0x30] sm:$0xff]
    %v5751 = vld [vmem:[%s5743 + $0x38] sm:$0xff]
    %v5752 = vld [vmem:[%s5743 + $0x40] sm:$0xff]
    %v5753 = vld [vmem:[%s5743 + $0x48] sm:$0xff]
    %v5754 = vld [vmem:[%s5743 + $0x50] sm:$0xff]
    %v5755 = vld [vmem:[%s5743 + $0x58] sm:$0xff]
    %v5756 = vld [vmem:[%s5743 + $0x60] sm:$0xff]
    %v5757 = vld [vmem:[%s5743 + $0x68] sm:$0xff]
    %v5758 = vld [vmem:[%s5743 + $0x70] sm:$0xff]
    %v5759 = vld [vmem:[%s5743 + $0x78] sm:$0xff]
    %5760 = vmatpush.msra.mxu0 %v5759
    %5761 = vmatpush.msra.mxu0 %v5758
    %5762 = vmatpush.msra.mxu0 %v5757
    %5763 = vmatpush.msra.mxu0 %v5756
    %5764 = vmatpush.msra.mxu0 %v5755
    %5765 = vmatpush.msra.mxu0 %v5754
    %5766 = vmatpush.msra.mxu0 %v5753
    %5767 = vmatpush.msra.mxu0 %v5752
    %5768 = vmatpush.msra.mxu0 %v5751
    %5769 = vmatpush.msra.mxu0 %v5750
    %5770 = vmatpush.msra.mxu0 %v5749
    %5771 = vmatpush.msra.mxu0 %v5748
    %5772 = vmatpush.msra.mxu0 %v5747
    %5773 = vmatpush.msra.mxu0 %v5746
    %5774 = vmatpush.msra.mxu0 %v5745
    %5775 = vmatpush.msra.mxu0 %v5744
    %5776 = vmatmul.f32.gmra.mxu0 %v5727
    %v5777 = vpop.f32.mrf.mxu0
    %v5778 = vadd.f32 0.0, %v5777
    %5779 = vmatmul.f32.gmra.mxu0 %v5728
    %v5780 = vpop.f32.mrf.mxu0
    %v5781 = vadd.f32 0.0, %v5780
    %5782 = vmatmul.f32.gmra.mxu0 %v5729
    %v5783 = vpop.f32.mrf.mxu0
    %v5784 = vadd.f32 0.0, %v5783
    %5785 = vmatmul.f32.gmra.mxu0 %v5730
    %v5786 = vpop.f32.mrf.mxu0
    %v5787 = vadd.f32 0.0, %v5786
    %5788 = vmatmul.f32.gmra.mxu0 %v5731
    %v5789 = vpop.f32.mrf.mxu0
    %v5790 = vadd.f32 0.0, %v5789
    %5791 = vmatmul.f32.gmra.mxu0 %v5732
    %v5792 = vpop.f32.mrf.mxu0
    %v5793 = vadd.f32 0.0, %v5792
    %5794 = vmatmul.f32.gmra.mxu0 %v5733
    %v5795 = vpop.f32.mrf.mxu0
    %v5796 = vadd.f32 0.0, %v5795
    %5797 = vmatmul.f32.gmra.mxu0 %v5734
    %v5798 = vpop.f32.mrf.mxu0
    %v5799 = vadd.f32 0.0, %v5798
    %5800 = vmatmul.f32.gmra.mxu0 %v5735
    %v5801 = vpop.f32.mrf.mxu0
    %v5802 = vadd.f32 0.0, %v5801
    %5803 = vmatmul.f32.gmra.mxu0 %v5736
    %v5804 = vpop.f32.mrf.mxu0
    %v5805 = vadd.f32 0.0, %v5804
    %5806 = vmatmul.f32.gmra.mxu0 %v5737
    %v5807 = vpop.f32.mrf.mxu0
    %v5808 = vadd.f32 0.0, %v5807
    %5809 = vmatmul.f32.gmra.mxu0 %v5738
    %v5810 = vpop.f32.mrf.mxu0
    %v5811 = vadd.f32 0.0, %v5810
    %5812 = vmatmul.f32.gmra.mxu0 %v5739
    %v5813 = vpop.f32.mrf.mxu0
    %v5814 = vadd.f32 0.0, %v5813
    %5815 = vmatmul.f32.gmra.mxu0 %v5740
    %v5816 = vpop.f32.mrf.mxu0
    %v5817 = vadd.f32 0.0, %v5816
    %5818 = vmatmul.f32.gmra.mxu0 %v5741
    %v5819 = vpop.f32.mrf.mxu0
    %v5820 = vadd.f32 0.0, %v5819
    %5821 = vmatmul.f32.gmra.mxu0 %v5742
    %v5822 = vpop.f32.mrf.mxu0
    %v5823 = vadd.f32 0.0, %v5822
    %5824 = vdwg.mxu0
    %v5825 = vadd.f32 %v5680, %v5778
    %v5826 = vadd.f32 %v5683, %v5781
    %v5827 = vadd.f32 %v5686, %v5784
    %v5828 = vadd.f32 %v5689, %v5787
    %v5829 = vadd.f32 %v5692, %v5790
    %v5830 = vadd.f32 %v5695, %v5793
    %v5831 = vadd.f32 %v5698, %v5796
    %v5832 = vadd.f32 %v5701, %v5799
    %v5833 = vadd.f32 %v5704, %v5802
    %v5834 = vadd.f32 %v5707, %v5805
    %v5835 = vadd.f32 %v5710, %v5808
    %v5836 = vadd.f32 %v5713, %v5811
    %v5837 = vadd.f32 %v5716, %v5814
    %v5838 = vadd.f32 %v5719, %v5817
    %v5839 = vadd.f32 %v5722, %v5820
    %v5840 = vadd.f32 %v5725, %v5823
    %v5841 = vld [vmem:[%s5515] sm:$0xff]
    %v5842 = vld [vmem:[%s5515 + $0x10] sm:$0xff]
    %v5843 = vld [vmem:[%s5515 + $0x20] sm:$0xff]
    %v5844 = vld [vmem:[%s5515 + $0x30] sm:$0xff]
    %v5845 = vld [vmem:[%s5515 + $0x40] sm:$0xff]
    %v5846 = vld [vmem:[%s5515 + $0x50] sm:$0xff]
    %v5847 = vld [vmem:[%s5515 + $0x60] sm:$0xff]
    %v5848 = vld [vmem:[%s5515 + $0x70] sm:$0xff]
    %v5849 = vld [vmem:[%s5515 + $0xa0] sm:$0xff]
    %v5850 = vld [vmem:[%s5515 + $0xb0] sm:$0xff]
    %v5851 = vld [vmem:[%s5515 + $0xc0] sm:$0xff]
    %v5852 = vld [vmem:[%s5515 + $0xd0] sm:$0xff]
    %v5853 = vld [vmem:[%s5515 + $0xe0] sm:$0xff]
    %v5854 = vld [vmem:[%s5515 + $0xf0] sm:$0xff]
    %v5855 = vld [vmem:[%s5515 + $0x100] sm:$0xff]
    %v5856 = vld [vmem:[%s5515 + $0x110] sm:$0xff]
    %s5857 = scalar_lea.vmem [#allocation12], 384
    %v5858 = vld [vmem:[%s5857] sm:$0xff]
    %v5859 = vld [vmem:[%s5857 + $0x8] sm:$0xff]
    %v5860 = vld [vmem:[%s5857 + $0x10] sm:$0xff]
    %v5861 = vld [vmem:[%s5857 + $0x18] sm:$0xff]
    %v5862 = vld [vmem:[%s5857 + $0x20] sm:$0xff]
    %v5863 = vld [vmem:[%s5857 + $0x28] sm:$0xff]
    %v5864 = vld [vmem:[%s5857 + $0x30] sm:$0xff]
    %v5865 = vld [vmem:[%s5857 + $0x38] sm:$0xff]
    %v5866 = vld [vmem:[%s5857 + $0x40] sm:$0xff]
    %v5867 = vld [vmem:[%s5857 + $0x48] sm:$0xff]
    %v5868 = vld [vmem:[%s5857 + $0x50] sm:$0xff]
    %v5869 = vld [vmem:[%s5857 + $0x58] sm:$0xff]
    %v5870 = vld [vmem:[%s5857 + $0x60] sm:$0xff]
    %v5871 = vld [vmem:[%s5857 + $0x68] sm:$0xff]
    %v5872 = vld [vmem:[%s5857 + $0x70] sm:$0xff]
    %v5873 = vld [vmem:[%s5857 + $0x78] sm:$0xff]
    %5874 = vmatpush.msra.mxu0 %v5873
    %5875 = vmatpush.msra.mxu0 %v5872
    %5876 = vmatpush.msra.mxu0 %v5871
    %5877 = vmatpush.msra.mxu0 %v5870
    %5878 = vmatpush.msra.mxu0 %v5869
    %5879 = vmatpush.msra.mxu0 %v5868
    %5880 = vmatpush.msra.mxu0 %v5867
    %5881 = vmatpush.msra.mxu0 %v5866
    %5882 = vmatpush.msra.mxu0 %v5865
    %5883 = vmatpush.msra.mxu0 %v5864
    %5884 = vmatpush.msra.mxu0 %v5863
    %5885 = vmatpush.msra.mxu0 %v5862
    %5886 = vmatpush.msra.mxu0 %v5861
    %5887 = vmatpush.msra.mxu0 %v5860
    %5888 = vmatpush.msra.mxu0 %v5859
    %5889 = vmatpush.msra.mxu0 %v5858
    %5890 = vmatmul.f32.gmra.mxu0 %v5841
    %v5891 = vpop.f32.mrf.mxu0
    %v5892 = vadd.f32 0.0, %v5891
    %5893 = vmatmul.f32.gmra.mxu0 %v5842
    %v5894 = vpop.f32.mrf.mxu0
    %v5895 = vadd.f32 0.0, %v5894
    %5896 = vmatmul.f32.gmra.mxu0 %v5843
    %v5897 = vpop.f32.mrf.mxu0
    %v5898 = vadd.f32 0.0, %v5897
    %5899 = vmatmul.f32.gmra.mxu0 %v5844
    %v5900 = vpop.f32.mrf.mxu0
    %v5901 = vadd.f32 0.0, %v5900
    %5902 = vmatmul.f32.gmra.mxu0 %v5845
    %v5903 = vpop.f32.mrf.mxu0
    %v5904 = vadd.f32 0.0, %v5903
    %5905 = vmatmul.f32.gmra.mxu0 %v5846
    %v5906 = vpop.f32.mrf.mxu0
    %v5907 = vadd.f32 0.0, %v5906
    %5908 = vmatmul.f32.gmra.mxu0 %v5847
    %v5909 = vpop.f32.mrf.mxu0
    %v5910 = vadd.f32 0.0, %v5909
    %5911 = vmatmul.f32.gmra.mxu0 %v5848
    %v5912 = vpop.f32.mrf.mxu0
    %v5913 = vadd.f32 0.0, %v5912
    %5914 = vmatmul.f32.gmra.mxu0 %v5849
    %v5915 = vpop.f32.mrf.mxu0
    %v5916 = vadd.f32 0.0, %v5915
    %5917 = vmatmul.f32.gmra.mxu0 %v5850
    %v5918 = vpop.f32.mrf.mxu0
    %v5919 = vadd.f32 0.0, %v5918
    %5920 = vmatmul.f32.gmra.mxu0 %v5851
    %v5921 = vpop.f32.mrf.mxu0
    %v5922 = vadd.f32 0.0, %v5921
    %5923 = vmatmul.f32.gmra.mxu0 %v5852
    %v5924 = vpop.f32.mrf.mxu0
    %v5925 = vadd.f32 0.0, %v5924
    %5926 = vmatmul.f32.gmra.mxu0 %v5853
    %v5927 = vpop.f32.mrf.mxu0
    %v5928 = vadd.f32 0.0, %v5927
    %5929 = vmatmul.f32.gmra.mxu0 %v5854
    %v5930 = vpop.f32.mrf.mxu0
    %v5931 = vadd.f32 0.0, %v5930
    %5932 = vmatmul.f32.gmra.mxu0 %v5855
    %v5933 = vpop.f32.mrf.mxu0
    %v5934 = vadd.f32 0.0, %v5933
    %5935 = vmatmul.f32.gmra.mxu0 %v5856
    %v5936 = vpop.f32.mrf.mxu0
    %v5937 = vadd.f32 0.0, %v5936
    %5938 = vdwg.mxu0
    %v5939 = vadd.f32 %v5825, %v5892
    %v5940 = vadd.f32 %v5826, %v5895
    %v5941 = vadd.f32 %v5827, %v5898
    %v5942 = vadd.f32 %v5828, %v5901
    %v5943 = vadd.f32 %v5829, %v5904
    %v5944 = vadd.f32 %v5830, %v5907
    %v5945 = vadd.f32 %v5831, %v5910
    %v5946 = vadd.f32 %v5832, %v5913
    %v5947 = vadd.f32 %v5833, %v5916
    %v5948 = vadd.f32 %v5834, %v5919
    %v5949 = vadd.f32 %v5835, %v5922
    %v5950 = vadd.f32 %v5836, %v5925
    %v5951 = vadd.f32 %v5837, %v5928
    %v5952 = vadd.f32 %v5838, %v5931
    %v5953 = vadd.f32 %v5839, %v5934
    %v5954 = vadd.f32 %v5840, %v5937
    %v5955 = vld [vmem:[%s5515 + $0x1] sm:$0xff]
    %v5956 = vld [vmem:[%s5515 + $0x11] sm:$0xff]
    %v5957 = vld [vmem:[%s5515 + $0x21] sm:$0xff]
    %v5958 = vld [vmem:[%s5515 + $0x31] sm:$0xff]
    %v5959 = vld [vmem:[%s5515 + $0x41] sm:$0xff]
    %v5960 = vld [vmem:[%s5515 + $0x51] sm:$0xff]
    %v5961 = vld [vmem:[%s5515 + $0x61] sm:$0xff]
    %v5962 = vld [vmem:[%s5515 + $0x71] sm:$0xff]
    %v5963 = vld [vmem:[%s5515 + $0xa1] sm:$0xff]
    %v5964 = vld [vmem:[%s5515 + $0xb1] sm:$0xff]
    %v5965 = vld [vmem:[%s5515 + $0xc1] sm:$0xff]
    %v5966 = vld [vmem:[%s5515 + $0xd1] sm:$0xff]
    %v5967 = vld [vmem:[%s5515 + $0xe1] sm:$0xff]
    %v5968 = vld [vmem:[%s5515 + $0xf1] sm:$0xff]
    %v5969 = vld [vmem:[%s5515 + $0x101] sm:$0xff]
    %v5970 = vld [vmem:[%s5515 + $0x111] sm:$0xff]
    %s5971 = scalar_lea.vmem [#allocation12], 512
    %v5972 = vld [vmem:[%s5971] sm:$0xff]
    %v5973 = vld [vmem:[%s5971 + $0x8] sm:$0xff]
    %v5974 = vld [vmem:[%s5971 + $0x10] sm:$0xff]
    %v5975 = vld [vmem:[%s5971 + $0x18] sm:$0xff]
    %v5976 = vld [vmem:[%s5971 + $0x20] sm:$0xff]
    %v5977 = vld [vmem:[%s5971 + $0x28] sm:$0xff]
    %v5978 = vld [vmem:[%s5971 + $0x30] sm:$0xff]
    %v5979 = vld [vmem:[%s5971 + $0x38] sm:$0xff]
    %v5980 = vld [vmem:[%s5971 + $0x40] sm:$0xff]
    %v5981 = vld [vmem:[%s5971 + $0x48] sm:$0xff]
    %v5982 = vld [vmem:[%s5971 + $0x50] sm:$0xff]
    %v5983 = vld [vmem:[%s5971 + $0x58] sm:$0xff]
    %v5984 = vld [vmem:[%s5971 + $0x60] sm:$0xff]
    %v5985 = vld [vmem:[%s5971 + $0x68] sm:$0xff]
    %v5986 = vld [vmem:[%s5971 + $0x70] sm:$0xff]
    %v5987 = vld [vmem:[%s5971 + $0x78] sm:$0xff]
    %5988 = vmatpush.msra.mxu0 %v5987
    %5989 = vmatpush.msra.mxu0 %v5986
    %5990 = vmatpush.msra.mxu0 %v5985
    %5991 = vmatpush.msra.mxu0 %v5984
    %5992 = vmatpush.msra.mxu0 %v5983
    %5993 = vmatpush.msra.mxu0 %v5982
    %5994 = vmatpush.msra.mxu0 %v5981
    %5995 = vmatpush.msra.mxu0 %v5980
    %5996 = vmatpush.msra.mxu0 %v5979
    %5997 = vmatpush.msra.mxu0 %v5978
    %5998 = vmatpush.msra.mxu0 %v5977
    %5999 = vmatpush.msra.mxu0 %v5976
    %6000 = vmatpush.msra.mxu0 %v5975
    %6001 = vmatpush.msra.mxu0 %v5974
    %6002 = vmatpush.msra.mxu0 %v5973
    %6003 = vmatpush.msra.mxu0 %v5972
    %6004 = vmatmul.f32.gmra.mxu0 %v5955
    %v6005 = vpop.f32.mrf.mxu0
    %v6006 = vadd.f32 0.0, %v6005
    %6007 = vmatmul.f32.gmra.mxu0 %v5956
    %v6008 = vpop.f32.mrf.mxu0
    %v6009 = vadd.f32 0.0, %v6008
    %6010 = vmatmul.f32.gmra.mxu0 %v5957
    %v6011 = vpop.f32.mrf.mxu0
    %v6012 = vadd.f32 0.0, %v6011
    %6013 = vmatmul.f32.gmra.mxu0 %v5958
    %v6014 = vpop.f32.mrf.mxu0
    %v6015 = vadd.f32 0.0, %v6014
    %6016 = vmatmul.f32.gmra.mxu0 %v5959
    %v6017 = vpop.f32.mrf.mxu0
    %v6018 = vadd.f32 0.0, %v6017
    %6019 = vmatmul.f32.gmra.mxu0 %v5960
    %v6020 = vpop.f32.mrf.mxu0
    %v6021 = vadd.f32 0.0, %v6020
    %6022 = vmatmul.f32.gmra.mxu0 %v5961
    %v6023 = vpop.f32.mrf.mxu0
    %v6024 = vadd.f32 0.0, %v6023
    %6025 = vmatmul.f32.gmra.mxu0 %v5962
    %v6026 = vpop.f32.mrf.mxu0
    %v6027 = vadd.f32 0.0, %v6026
    %6028 = vmatmul.f32.gmra.mxu0 %v5963
    %v6029 = vpop.f32.mrf.mxu0
    %v6030 = vadd.f32 0.0, %v6029
    %6031 = vmatmul.f32.gmra.mxu0 %v5964
    %v6032 = vpop.f32.mrf.mxu0
    %v6033 = vadd.f32 0.0, %v6032
    %6034 = vmatmul.f32.gmra.mxu0 %v5965
    %v6035 = vpop.f32.mrf.mxu0
    %v6036 = vadd.f32 0.0, %v6035
    %6037 = vmatmul.f32.gmra.mxu0 %v5966
    %v6038 = vpop.f32.mrf.mxu0
    %v6039 = vadd.f32 0.0, %v6038
    %6040 = vmatmul.f32.gmra.mxu0 %v5967
    %v6041 = vpop.f32.mrf.mxu0
    %v6042 = vadd.f32 0.0, %v6041
    %6043 = vmatmul.f32.gmra.mxu0 %v5968
    %v6044 = vpop.f32.mrf.mxu0
    %v6045 = vadd.f32 0.0, %v6044
    %6046 = vmatmul.f32.gmra.mxu0 %v5969
    %v6047 = vpop.f32.mrf.mxu0
    %v6048 = vadd.f32 0.0, %v6047
    %6049 = vmatmul.f32.gmra.mxu0 %v5970
    %v6050 = vpop.f32.mrf.mxu0
    %v6051 = vadd.f32 0.0, %v6050
    %6052 = vdwg.mxu0
    %v6053 = vadd.f32 %v5939, %v6006
    %v6054 = vadd.f32 %v5940, %v6009
    %v6055 = vadd.f32 %v5941, %v6012
    %v6056 = vadd.f32 %v5942, %v6015
    %v6057 = vadd.f32 %v5943, %v6018
    %v6058 = vadd.f32 %v5944, %v6021
    %v6059 = vadd.f32 %v5945, %v6024
    %v6060 = vadd.f32 %v5946, %v6027
    %v6061 = vadd.f32 %v5947, %v6030
    %v6062 = vadd.f32 %v5948, %v6033
    %v6063 = vadd.f32 %v5949, %v6036
    %v6064 = vadd.f32 %v5950, %v6039
    %v6065 = vadd.f32 %v5951, %v6042
    %v6066 = vadd.f32 %v5952, %v6045
    %v6067 = vadd.f32 %v5953, %v6048
    %v6068 = vadd.f32 %v5954, %v6051
    %v6069 = vld [vmem:[%s5515 + $0x2] sm:$0xff]
    %v6070 = vld [vmem:[%s5515 + $0x12] sm:$0xff]
    %v6071 = vld [vmem:[%s5515 + $0x22] sm:$0xff]
    %v6072 = vld [vmem:[%s5515 + $0x32] sm:$0xff]
    %v6073 = vld [vmem:[%s5515 + $0x42] sm:$0xff]
    %v6074 = vld [vmem:[%s5515 + $0x52] sm:$0xff]
    %v6075 = vld [vmem:[%s5515 + $0x62] sm:$0xff]
    %v6076 = vld [vmem:[%s5515 + $0x72] sm:$0xff]
    %v6077 = vld [vmem:[%s5515 + $0xa2] sm:$0xff]
    %v6078 = vld [vmem:[%s5515 + $0xb2] sm:$0xff]
    %v6079 = vld [vmem:[%s5515 + $0xc2] sm:$0xff]
    %v6080 = vld [vmem:[%s5515 + $0xd2] sm:$0xff]
    %v6081 = vld [vmem:[%s5515 + $0xe2] sm:$0xff]
    %v6082 = vld [vmem:[%s5515 + $0xf2] sm:$0xff]
    %v6083 = vld [vmem:[%s5515 + $0x102] sm:$0xff]
    %v6084 = vld [vmem:[%s5515 + $0x112] sm:$0xff]
    %s6085 = scalar_lea.vmem [#allocation12], 640
    %v6086 = vld [vmem:[%s6085] sm:$0xff]
    %v6087 = vld [vmem:[%s6085 + $0x8] sm:$0xff]
    %v6088 = vld [vmem:[%s6085 + $0x10] sm:$0xff]
    %v6089 = vld [vmem:[%s6085 + $0x18] sm:$0xff]
    %v6090 = vld [vmem:[%s6085 + $0x20] sm:$0xff]
    %v6091 = vld [vmem:[%s6085 + $0x28] sm:$0xff]
    %v6092 = vld [vmem:[%s6085 + $0x30] sm:$0xff]
    %v6093 = vld [vmem:[%s6085 + $0x38] sm:$0xff]
    %v6094 = vld [vmem:[%s6085 + $0x40] sm:$0xff]
    %v6095 = vld [vmem:[%s6085 + $0x48] sm:$0xff]
    %v6096 = vld [vmem:[%s6085 + $0x50] sm:$0xff]
    %v6097 = vld [vmem:[%s6085 + $0x58] sm:$0xff]
    %v6098 = vld [vmem:[%s6085 + $0x60] sm:$0xff]
    %v6099 = vld [vmem:[%s6085 + $0x68] sm:$0xff]
    %v6100 = vld [vmem:[%s6085 + $0x70] sm:$0xff]
    %v6101 = vld [vmem:[%s6085 + $0x78] sm:$0xff]
    %6102 = vmatpush.msra.mxu0 %v6101
    %6103 = vmatpush.msra.mxu0 %v6100
    %6104 = vmatpush.msra.mxu0 %v6099
    %6105 = vmatpush.msra.mxu0 %v6098
    %6106 = vmatpush.msra.mxu0 %v6097
    %6107 = vmatpush.msra.mxu0 %v6096
    %6108 = vmatpush.msra.mxu0 %v6095
    %6109 = vmatpush.msra.mxu0 %v6094
    %6110 = vmatpush.msra.mxu0 %v6093
    %6111 = vmatpush.msra.mxu0 %v6092
    %6112 = vmatpush.msra.mxu0 %v6091
    %6113 = vmatpush.msra.mxu0 %v6090
    %6114 = vmatpush.msra.mxu0 %v6089
    %6115 = vmatpush.msra.mxu0 %v6088
    %6116 = vmatpush.msra.mxu0 %v6087
    %6117 = vmatpush.msra.mxu0 %v6086
    %6118 = vmatmul.f32.gmra.mxu0 %v6069
    %v6119 = vpop.f32.mrf.mxu0
    %v6120 = vadd.f32 0.0, %v6119
    %6121 = vmatmul.f32.gmra.mxu0 %v6070
    %v6122 = vpop.f32.mrf.mxu0
    %v6123 = vadd.f32 0.0, %v6122
    %6124 = vmatmul.f32.gmra.mxu0 %v6071
    %v6125 = vpop.f32.mrf.mxu0
    %v6126 = vadd.f32 0.0, %v6125
    %6127 = vmatmul.f32.gmra.mxu0 %v6072
    %v6128 = vpop.f32.mrf.mxu0
    %v6129 = vadd.f32 0.0, %v6128
    %6130 = vmatmul.f32.gmra.mxu0 %v6073
    %v6131 = vpop.f32.mrf.mxu0
    %v6132 = vadd.f32 0.0, %v6131
    %6133 = vmatmul.f32.gmra.mxu0 %v6074
    %v6134 = vpop.f32.mrf.mxu0
    %v6135 = vadd.f32 0.0, %v6134
    %6136 = vmatmul.f32.gmra.mxu0 %v6075
    %v6137 = vpop.f32.mrf.mxu0
    %v6138 = vadd.f32 0.0, %v6137
    %6139 = vmatmul.f32.gmra.mxu0 %v6076
    %v6140 = vpop.f32.mrf.mxu0
    %v6141 = vadd.f32 0.0, %v6140
    %6142 = vmatmul.f32.gmra.mxu0 %v6077
    %v6143 = vpop.f32.mrf.mxu0
    %v6144 = vadd.f32 0.0, %v6143
    %6145 = vmatmul.f32.gmra.mxu0 %v6078
    %v6146 = vpop.f32.mrf.mxu0
    %v6147 = vadd.f32 0.0, %v6146
    %6148 = vmatmul.f32.gmra.mxu0 %v6079
    %v6149 = vpop.f32.mrf.mxu0
    %v6150 = vadd.f32 0.0, %v6149
    %6151 = vmatmul.f32.gmra.mxu0 %v6080
    %v6152 = vpop.f32.mrf.mxu0
    %v6153 = vadd.f32 0.0, %v6152
    %6154 = vmatmul.f32.gmra.mxu0 %v6081
    %v6155 = vpop.f32.mrf.mxu0
    %v6156 = vadd.f32 0.0, %v6155
    %6157 = vmatmul.f32.gmra.mxu0 %v6082
    %v6158 = vpop.f32.mrf.mxu0
    %v6159 = vadd.f32 0.0, %v6158
    %6160 = vmatmul.f32.gmra.mxu0 %v6083
    %v6161 = vpop.f32.mrf.mxu0
    %v6162 = vadd.f32 0.0, %v6161
    %6163 = vmatmul.f32.gmra.mxu0 %v6084
    %v6164 = vpop.f32.mrf.mxu0
    %v6165 = vadd.f32 0.0, %v6164
    %6166 = vdwg.mxu0
    %v6167 = vadd.f32 %v6053, %v6120
    %v6168 = vadd.f32 %v6054, %v6123
    %v6169 = vadd.f32 %v6055, %v6126
    %v6170 = vadd.f32 %v6056, %v6129
    %v6171 = vadd.f32 %v6057, %v6132
    %v6172 = vadd.f32 %v6058, %v6135
    %v6173 = vadd.f32 %v6059, %v6138
    %v6174 = vadd.f32 %v6060, %v6141
    %v6175 = vadd.f32 %v6061, %v6144
    %v6176 = vadd.f32 %v6062, %v6147
    %v6177 = vadd.f32 %v6063, %v6150
    %v6178 = vadd.f32 %v6064, %v6153
    %v6179 = vadd.f32 %v6065, %v6156
    %v6180 = vadd.f32 %v6066, %v6159
    %v6181 = vadd.f32 %v6067, %v6162
    %v6182 = vadd.f32 %v6068, %v6165
    %s6183 = scalar_lea.vmem [#allocation4], 32
    %v6184 = vld [vmem:[%s6183] sm:$0xff]
    %v6185 = vld [vmem:[%s6183 + $0x10] sm:$0xff]
    %v6186 = vld [vmem:[%s6183 + $0x20] sm:$0xff]
    %v6187 = vld [vmem:[%s6183 + $0x30] sm:$0xff]
    %v6188 = vld [vmem:[%s6183 + $0x40] sm:$0xff]
    %v6189 = vld [vmem:[%s6183 + $0x50] sm:$0xff]
    %v6190 = vld [vmem:[%s6183 + $0x60] sm:$0xff]
    %v6191 = vld [vmem:[%s6183 + $0x70] sm:$0xff]
    %v6192 = vld [vmem:[%s6183 + $0xa0] sm:$0xff]
    %v6193 = vld [vmem:[%s6183 + $0xb0] sm:$0xff]
    %v6194 = vld [vmem:[%s6183 + $0xc0] sm:$0xff]
    %v6195 = vld [vmem:[%s6183 + $0xd0] sm:$0xff]
    %v6196 = vld [vmem:[%s6183 + $0xe0] sm:$0xff]
    %v6197 = vld [vmem:[%s6183 + $0xf0] sm:$0xff]
    %v6198 = vld [vmem:[%s6183 + $0x100] sm:$0xff]
    %v6199 = vld [vmem:[%s6183 + $0x110] sm:$0xff]
    %s6200 = scalar_lea.vmem [#allocation12], 768
    %v6201 = vld [vmem:[%s6200] sm:$0xff]
    %v6202 = vld [vmem:[%s6200 + $0x8] sm:$0xff]
    %v6203 = vld [vmem:[%s6200 + $0x10] sm:$0xff]
    %v6204 = vld [vmem:[%s6200 + $0x18] sm:$0xff]
    %v6205 = vld [vmem:[%s6200 + $0x20] sm:$0xff]
    %v6206 = vld [vmem:[%s6200 + $0x28] sm:$0xff]
    %v6207 = vld [vmem:[%s6200 + $0x30] sm:$0xff]
    %v6208 = vld [vmem:[%s6200 + $0x38] sm:$0xff]
    %v6209 = vld [vmem:[%s6200 + $0x40] sm:$0xff]
    %v6210 = vld [vmem:[%s6200 + $0x48] sm:$0xff]
    %v6211 = vld [vmem:[%s6200 + $0x50] sm:$0xff]
    %v6212 = vld [vmem:[%s6200 + $0x58] sm:$0xff]
    %v6213 = vld [vmem:[%s6200 + $0x60] sm:$0xff]
    %v6214 = vld [vmem:[%s6200 + $0x68] sm:$0xff]
    %v6215 = vld [vmem:[%s6200 + $0x70] sm:$0xff]
    %v6216 = vld [vmem:[%s6200 + $0x78] sm:$0xff]
    %6217 = vmatpush.msra.mxu0 %v6216
    %6218 = vmatpush.msra.mxu0 %v6215
    %6219 = vmatpush.msra.mxu0 %v6214
    %6220 = vmatpush.msra.mxu0 %v6213
    %6221 = vmatpush.msra.mxu0 %v6212
    %6222 = vmatpush.msra.mxu0 %v6211
    %6223 = vmatpush.msra.mxu0 %v6210
    %6224 = vmatpush.msra.mxu0 %v6209
    %6225 = vmatpush.msra.mxu0 %v6208
    %6226 = vmatpush.msra.mxu0 %v6207
    %6227 = vmatpush.msra.mxu0 %v6206
    %6228 = vmatpush.msra.mxu0 %v6205
    %6229 = vmatpush.msra.mxu0 %v6204
    %6230 = vmatpush.msra.mxu0 %v6203
    %6231 = vmatpush.msra.mxu0 %v6202
    %6232 = vmatpush.msra.mxu0 %v6201
    %6233 = vmatmul.f32.gmra.mxu0 %v6184
    %v6234 = vpop.f32.mrf.mxu0
    %v6235 = vadd.f32 0.0, %v6234
    %6236 = vmatmul.f32.gmra.mxu0 %v6185
    %v6237 = vpop.f32.mrf.mxu0
    %v6238 = vadd.f32 0.0, %v6237
    %6239 = vmatmul.f32.gmra.mxu0 %v6186
    %v6240 = vpop.f32.mrf.mxu0
    %v6241 = vadd.f32 0.0, %v6240
    %6242 = vmatmul.f32.gmra.mxu0 %v6187
    %v6243 = vpop.f32.mrf.mxu0
    %v6244 = vadd.f32 0.0, %v6243
    %6245 = vmatmul.f32.gmra.mxu0 %v6188
    %v6246 = vpop.f32.mrf.mxu0
    %v6247 = vadd.f32 0.0, %v6246
    %6248 = vmatmul.f32.gmra.mxu0 %v6189
    %v6249 = vpop.f32.mrf.mxu0
    %v6250 = vadd.f32 0.0, %v6249
    %6251 = vmatmul.f32.gmra.mxu0 %v6190
    %v6252 = vpop.f32.mrf.mxu0
    %v6253 = vadd.f32 0.0, %v6252
    %6254 = vmatmul.f32.gmra.mxu0 %v6191
    %v6255 = vpop.f32.mrf.mxu0
    %v6256 = vadd.f32 0.0, %v6255
    %6257 = vmatmul.f32.gmra.mxu0 %v6192
    %v6258 = vpop.f32.mrf.mxu0
    %v6259 = vadd.f32 0.0, %v6258
    %6260 = vmatmul.f32.gmra.mxu0 %v6193
    %v6261 = vpop.f32.mrf.mxu0
    %v6262 = vadd.f32 0.0, %v6261
    %6263 = vmatmul.f32.gmra.mxu0 %v6194
    %v6264 = vpop.f32.mrf.mxu0
    %v6265 = vadd.f32 0.0, %v6264
    %6266 = vmatmul.f32.gmra.mxu0 %v6195
    %v6267 = vpop.f32.mrf.mxu0
    %v6268 = vadd.f32 0.0, %v6267
    %6269 = vmatmul.f32.gmra.mxu0 %v6196
    %v6270 = vpop.f32.mrf.mxu0
    %v6271 = vadd.f32 0.0, %v6270
    %6272 = vmatmul.f32.gmra.mxu0 %v6197
    %v6273 = vpop.f32.mrf.mxu0
    %v6274 = vadd.f32 0.0, %v6273
    %6275 = vmatmul.f32.gmra.mxu0 %v6198
    %v6276 = vpop.f32.mrf.mxu0
    %v6277 = vadd.f32 0.0, %v6276
    %6278 = vmatmul.f32.gmra.mxu0 %v6199
    %v6279 = vpop.f32.mrf.mxu0
    %v6280 = vadd.f32 0.0, %v6279
    %6281 = vdwg.mxu0
    %v6282 = vadd.f32 %v6167, %v6235
    %v6283 = vadd.f32 %v6168, %v6238
    %v6284 = vadd.f32 %v6169, %v6241
    %v6285 = vadd.f32 %v6170, %v6244
    %v6286 = vadd.f32 %v6171, %v6247
    %v6287 = vadd.f32 %v6172, %v6250
    %v6288 = vadd.f32 %v6173, %v6253
    %v6289 = vadd.f32 %v6174, %v6256
    %v6290 = vadd.f32 %v6175, %v6259
    %v6291 = vadd.f32 %v6176, %v6262
    %v6292 = vadd.f32 %v6177, %v6265
    %v6293 = vadd.f32 %v6178, %v6268
    %v6294 = vadd.f32 %v6179, %v6271
    %v6295 = vadd.f32 %v6180, %v6274
    %v6296 = vadd.f32 %v6181, %v6277
    %v6297 = vadd.f32 %v6182, %v6280
    %v6298 = vld [vmem:[%s6183 + $0x1] sm:$0xff]
    %v6299 = vld [vmem:[%s6183 + $0x11] sm:$0xff]
    %v6300 = vld [vmem:[%s6183 + $0x21] sm:$0xff]
    %v6301 = vld [vmem:[%s6183 + $0x31] sm:$0xff]
    %v6302 = vld [vmem:[%s6183 + $0x41] sm:$0xff]
    %v6303 = vld [vmem:[%s6183 + $0x51] sm:$0xff]
    %v6304 = vld [vmem:[%s6183 + $0x61] sm:$0xff]
    %v6305 = vld [vmem:[%s6183 + $0x71] sm:$0xff]
    %v6306 = vld [vmem:[%s6183 + $0xa1] sm:$0xff]
    %v6307 = vld [vmem:[%s6183 + $0xb1] sm:$0xff]
    %v6308 = vld [vmem:[%s6183 + $0xc1] sm:$0xff]
    %v6309 = vld [vmem:[%s6183 + $0xd1] sm:$0xff]
    %v6310 = vld [vmem:[%s6183 + $0xe1] sm:$0xff]
    %v6311 = vld [vmem:[%s6183 + $0xf1] sm:$0xff]
    %v6312 = vld [vmem:[%s6183 + $0x101] sm:$0xff]
    %v6313 = vld [vmem:[%s6183 + $0x111] sm:$0xff]
    %s6314 = scalar_lea.vmem [#allocation12], 896
    %v6315 = vld [vmem:[%s6314] sm:$0xff]
    %v6316 = vld [vmem:[%s6314 + $0x8] sm:$0xff]
    %v6317 = vld [vmem:[%s6314 + $0x10] sm:$0xff]
    %v6318 = vld [vmem:[%s6314 + $0x18] sm:$0xff]
    %v6319 = vld [vmem:[%s6314 + $0x20] sm:$0xff]
    %v6320 = vld [vmem:[%s6314 + $0x28] sm:$0xff]
    %v6321 = vld [vmem:[%s6314 + $0x30] sm:$0xff]
    %v6322 = vld [vmem:[%s6314 + $0x38] sm:$0xff]
    %v6323 = vld [vmem:[%s6314 + $0x40] sm:$0xff]
    %v6324 = vld [vmem:[%s6314 + $0x48] sm:$0xff]
    %v6325 = vld [vmem:[%s6314 + $0x50] sm:$0xff]
    %v6326 = vld [vmem:[%s6314 + $0x58] sm:$0xff]
    %v6327 = vld [vmem:[%s6314 + $0x60] sm:$0xff]
    %v6328 = vld [vmem:[%s6314 + $0x68] sm:$0xff]
    %v6329 = vld [vmem:[%s6314 + $0x70] sm:$0xff]
    %v6330 = vld [vmem:[%s6314 + $0x78] sm:$0xff]
    %6331 = vmatpush.msra.mxu0 %v6330
    %6332 = vmatpush.msra.mxu0 %v6329
    %6333 = vmatpush.msra.mxu0 %v6328
    %6334 = vmatpush.msra.mxu0 %v6327
    %6335 = vmatpush.msra.mxu0 %v6326
    %6336 = vmatpush.msra.mxu0 %v6325
    %6337 = vmatpush.msra.mxu0 %v6324
    %6338 = vmatpush.msra.mxu0 %v6323
    %6339 = vmatpush.msra.mxu0 %v6322
    %6340 = vmatpush.msra.mxu0 %v6321
    %6341 = vmatpush.msra.mxu0 %v6320
    %6342 = vmatpush.msra.mxu0 %v6319
    %6343 = vmatpush.msra.mxu0 %v6318
    %6344 = vmatpush.msra.mxu0 %v6317
    %6345 = vmatpush.msra.mxu0 %v6316
    %6346 = vmatpush.msra.mxu0 %v6315
    %6347 = vmatmul.f32.gmra.mxu0 %v6298
    %v6348 = vpop.f32.mrf.mxu0
    %v6349 = vadd.f32 0.0, %v6348
    %6350 = vmatmul.f32.gmra.mxu0 %v6299
    %v6351 = vpop.f32.mrf.mxu0
    %v6352 = vadd.f32 0.0, %v6351
    %6353 = vmatmul.f32.gmra.mxu0 %v6300
    %v6354 = vpop.f32.mrf.mxu0
    %v6355 = vadd.f32 0.0, %v6354
    %6356 = vmatmul.f32.gmra.mxu0 %v6301
    %v6357 = vpop.f32.mrf.mxu0
    %v6358 = vadd.f32 0.0, %v6357
    %6359 = vmatmul.f32.gmra.mxu0 %v6302
    %v6360 = vpop.f32.mrf.mxu0
    %v6361 = vadd.f32 0.0, %v6360
    %6362 = vmatmul.f32.gmra.mxu0 %v6303
    %v6363 = vpop.f32.mrf.mxu0
    %v6364 = vadd.f32 0.0, %v6363
    %6365 = vmatmul.f32.gmra.mxu0 %v6304
    %v6366 = vpop.f32.mrf.mxu0
    %v6367 = vadd.f32 0.0, %v6366
    %6368 = vmatmul.f32.gmra.mxu0 %v6305
    %v6369 = vpop.f32.mrf.mxu0
    %v6370 = vadd.f32 0.0, %v6369
    %6371 = vmatmul.f32.gmra.mxu0 %v6306
    %v6372 = vpop.f32.mrf.mxu0
    %v6373 = vadd.f32 0.0, %v6372
    %6374 = vmatmul.f32.gmra.mxu0 %v6307
    %v6375 = vpop.f32.mrf.mxu0
    %v6376 = vadd.f32 0.0, %v6375
    %6377 = vmatmul.f32.gmra.mxu0 %v6308
    %v6378 = vpop.f32.mrf.mxu0
    %v6379 = vadd.f32 0.0, %v6378
    %6380 = vmatmul.f32.gmra.mxu0 %v6309
    %v6381 = vpop.f32.mrf.mxu0
    %v6382 = vadd.f32 0.0, %v6381
    %6383 = vmatmul.f32.gmra.mxu0 %v6310
    %v6384 = vpop.f32.mrf.mxu0
    %v6385 = vadd.f32 0.0, %v6384
    %6386 = vmatmul.f32.gmra.mxu0 %v6311
    %v6387 = vpop.f32.mrf.mxu0
    %v6388 = vadd.f32 0.0, %v6387
    %6389 = vmatmul.f32.gmra.mxu0 %v6312
    %v6390 = vpop.f32.mrf.mxu0
    %v6391 = vadd.f32 0.0, %v6390
    %6392 = vmatmul.f32.gmra.mxu0 %v6313
    %v6393 = vpop.f32.mrf.mxu0
    %v6394 = vadd.f32 0.0, %v6393
    %6395 = vdwg.mxu0
    %v6396 = vadd.f32 %v6282, %v6349
    %v6397 = vadd.f32 %v6283, %v6352
    %v6398 = vadd.f32 %v6284, %v6355
    %v6399 = vadd.f32 %v6285, %v6358
    %v6400 = vadd.f32 %v6286, %v6361
    %v6401 = vadd.f32 %v6287, %v6364
    %v6402 = vadd.f32 %v6288, %v6367
    %v6403 = vadd.f32 %v6289, %v6370
    %v6404 = vadd.f32 %v6290, %v6373
    %v6405 = vadd.f32 %v6291, %v6376
    %v6406 = vadd.f32 %v6292, %v6379
    %v6407 = vadd.f32 %v6293, %v6382
    %v6408 = vadd.f32 %v6294, %v6385
    %v6409 = vadd.f32 %v6295, %v6388
    %v6410 = vadd.f32 %v6296, %v6391
    %v6411 = vadd.f32 %v6297, %v6394
    %v6412 = vld [vmem:[%s6183 + $0x2] sm:$0xff]
    %v6413 = vld [vmem:[%s6183 + $0x12] sm:$0xff]
    %v6414 = vld [vmem:[%s6183 + $0x22] sm:$0xff]
    %v6415 = vld [vmem:[%s6183 + $0x32] sm:$0xff]
    %v6416 = vld [vmem:[%s6183 + $0x42] sm:$0xff]
    %v6417 = vld [vmem:[%s6183 + $0x52] sm:$0xff]
    %v6418 = vld [vmem:[%s6183 + $0x62] sm:$0xff]
    %v6419 = vld [vmem:[%s6183 + $0x72] sm:$0xff]
    %v6420 = vld [vmem:[%s6183 + $0xa2] sm:$0xff]
    %v6421 = vld [vmem:[%s6183 + $0xb2] sm:$0xff]
    %v6422 = vld [vmem:[%s6183 + $0xc2] sm:$0xff]
    %v6423 = vld [vmem:[%s6183 + $0xd2] sm:$0xff]
    %v6424 = vld [vmem:[%s6183 + $0xe2] sm:$0xff]
    %v6425 = vld [vmem:[%s6183 + $0xf2] sm:$0xff]
    %v6426 = vld [vmem:[%s6183 + $0x102] sm:$0xff]
    %v6427 = vld [vmem:[%s6183 + $0x112] sm:$0xff]
    %s6428 = scalar_lea.vmem [#allocation12], 1024
    %v6429 = vld [vmem:[%s6428] sm:$0xff]
    %v6430 = vld [vmem:[%s6428 + $0x8] sm:$0xff]
    %v6431 = vld [vmem:[%s6428 + $0x10] sm:$0xff]
    %v6432 = vld [vmem:[%s6428 + $0x18] sm:$0xff]
    %v6433 = vld [vmem:[%s6428 + $0x20] sm:$0xff]
    %v6434 = vld [vmem:[%s6428 + $0x28] sm:$0xff]
    %v6435 = vld [vmem:[%s6428 + $0x30] sm:$0xff]
    %v6436 = vld [vmem:[%s6428 + $0x38] sm:$0xff]
    %v6437 = vld [vmem:[%s6428 + $0x40] sm:$0xff]
    %v6438 = vld [vmem:[%s6428 + $0x48] sm:$0xff]
    %v6439 = vld [vmem:[%s6428 + $0x50] sm:$0xff]
    %v6440 = vld [vmem:[%s6428 + $0x58] sm:$0xff]
    %v6441 = vld [vmem:[%s6428 + $0x60] sm:$0xff]
    %v6442 = vld [vmem:[%s6428 + $0x68] sm:$0xff]
    %v6443 = vld [vmem:[%s6428 + $0x70] sm:$0xff]
    %v6444 = vld [vmem:[%s6428 + $0x78] sm:$0xff]
    %6445 = vmatpush.msra.mxu0 %v6444
    %6446 = vmatpush.msra.mxu0 %v6443
    %6447 = vmatpush.msra.mxu0 %v6442
    %6448 = vmatpush.msra.mxu0 %v6441
    %6449 = vmatpush.msra.mxu0 %v6440
    %6450 = vmatpush.msra.mxu0 %v6439
    %6451 = vmatpush.msra.mxu0 %v6438
    %6452 = vmatpush.msra.mxu0 %v6437
    %6453 = vmatpush.msra.mxu0 %v6436
    %6454 = vmatpush.msra.mxu0 %v6435
    %6455 = vmatpush.msra.mxu0 %v6434
    %6456 = vmatpush.msra.mxu0 %v6433
    %6457 = vmatpush.msra.mxu0 %v6432
    %6458 = vmatpush.msra.mxu0 %v6431
    %6459 = vmatpush.msra.mxu0 %v6430
    %6460 = vmatpush.msra.mxu0 %v6429
    %6461 = vmatmul.f32.gmra.mxu0 %v6412
    %v6462 = vpop.f32.mrf.mxu0
    %v6463 = vadd.f32 0.0, %v6462
    %6464 = vmatmul.f32.gmra.mxu0 %v6413
    %v6465 = vpop.f32.mrf.mxu0
    %v6466 = vadd.f32 0.0, %v6465
    %6467 = vmatmul.f32.gmra.mxu0 %v6414
    %v6468 = vpop.f32.mrf.mxu0
    %v6469 = vadd.f32 0.0, %v6468
    %6470 = vmatmul.f32.gmra.mxu0 %v6415
    %v6471 = vpop.f32.mrf.mxu0
    %v6472 = vadd.f32 0.0, %v6471
    %6473 = vmatmul.f32.gmra.mxu0 %v6416
    %v6474 = vpop.f32.mrf.mxu0
    %v6475 = vadd.f32 0.0, %v6474
    %6476 = vmatmul.f32.gmra.mxu0 %v6417
    %v6477 = vpop.f32.mrf.mxu0
    %v6478 = vadd.f32 0.0, %v6477
    %6479 = vmatmul.f32.gmra.mxu0 %v6418
    %v6480 = vpop.f32.mrf.mxu0
    %v6481 = vadd.f32 0.0, %v6480
    %6482 = vmatmul.f32.gmra.mxu0 %v6419
    %v6483 = vpop.f32.mrf.mxu0
    %v6484 = vadd.f32 0.0, %v6483
    %6485 = vmatmul.f32.gmra.mxu0 %v6420
    %v6486 = vpop.f32.mrf.mxu0
    %v6487 = vadd.f32 0.0, %v6486
    %6488 = vmatmul.f32.gmra.mxu0 %v6421
    %v6489 = vpop.f32.mrf.mxu0
    %v6490 = vadd.f32 0.0, %v6489
    %6491 = vmatmul.f32.gmra.mxu0 %v6422
    %v6492 = vpop.f32.mrf.mxu0
    %v6493 = vadd.f32 0.0, %v6492
    %6494 = vmatmul.f32.gmra.mxu0 %v6423
    %v6495 = vpop.f32.mrf.mxu0
    %v6496 = vadd.f32 0.0, %v6495
    %6497 = vmatmul.f32.gmra.mxu0 %v6424
    %v6498 = vpop.f32.mrf.mxu0
    %v6499 = vadd.f32 0.0, %v6498
    %6500 = vmatmul.f32.gmra.mxu0 %v6425
    %v6501 = vpop.f32.mrf.mxu0
    %v6502 = vadd.f32 0.0, %v6501
    %6503 = vmatmul.f32.gmra.mxu0 %v6426
    %v6504 = vpop.f32.mrf.mxu0
    %v6505 = vadd.f32 0.0, %v6504
    %6506 = vmatmul.f32.gmra.mxu0 %v6427
    %v6507 = vpop.f32.mrf.mxu0
    %v6508 = vadd.f32 0.0, %v6507
    %6509 = vdwg.mxu0
    %v6510 = vadd.f32 %v6396, %v6463
    %v6511 = vadd.f32 %v6397, %v6466
    %v6512 = vadd.f32 %v6398, %v6469
    %v6513 = vadd.f32 %v6399, %v6472
    %v6514 = vadd.f32 %v6400, %v6475
    %v6515 = vadd.f32 %v6401, %v6478
    %v6516 = vadd.f32 %v6402, %v6481
    %v6517 = vadd.f32 %v6403, %v6484
    %v6518 = vadd.f32 %v6404, %v6487
    %v6519 = vadd.f32 %v6405, %v6490
    %v6520 = vadd.f32 %v6406, %v6493
    %v6521 = vadd.f32 %v6407, %v6496
    %v6522 = vadd.f32 %v6408, %v6499
    %v6523 = vadd.f32 %v6409, %v6502
    %v6524 = vadd.f32 %v6410, %v6505
    %v6525 = vadd.f32 %v6411, %v6508
    %v6526 = vld [vmem:[%s11] sm:$0x1]
    %v6528 = vperm.slane %v6526, 0
    %v6530 = vadd.f32 %v6510, %v6528
    %v6531 = vadd.f32 %v6511, %v6528
    %v6532 = vadd.f32 %v6512, %v6528
    %v6533 = vadd.f32 %v6513, %v6528
    %v6534 = vadd.f32 %v6514, %v6528
    %v6535 = vadd.f32 %v6515, %v6528
    %v6536 = vadd.f32 %v6516, %v6528
    %v6537 = vadd.f32 %v6517, %v6528
    %v6538 = vadd.f32 %v6518, %v6528
    %v6539 = vadd.f32 %v6519, %v6528
    %v6540 = vadd.f32 %v6520, %v6528
    %v6541 = vadd.f32 %v6521, %v6528
    %v6542 = vadd.f32 %v6522, %v6528
    %v6543 = vadd.f32 %v6523, %v6528
    %v6544 = vadd.f32 %v6524, %v6528
    %v6545 = vadd.f32 %v6525, %v6528
    %v6546 = vmax.f32 %v6530, 0.0
    %v6547 = vmax.f32 %v6531, 0.0
    %v6548 = vmax.f32 %v6532, 0.0
    %v6549 = vmax.f32 %v6533, 0.0
    %v6550 = vmax.f32 %v6534, 0.0
    %v6551 = vmax.f32 %v6535, 0.0
    %v6552 = vmax.f32 %v6536, 0.0
    %v6553 = vmax.f32 %v6537, 0.0
    %v6554 = vmax.f32 %v6538, 0.0
    %v6555 = vmax.f32 %v6539, 0.0
    %v6556 = vmax.f32 %v6540, 0.0
    %v6557 = vmax.f32 %v6541, 0.0
    %v6558 = vmax.f32 %v6542, 0.0
    %v6559 = vmax.f32 %v6543, 0.0
    %v6560 = vmax.f32 %v6544, 0.0
    %v6561 = vmax.f32 %v6545, 0.0
    %6562 = vst [vmem:[#allocation5] sm:$0xff] 0.0
    %6563 = vst [vmem:[#allocation5 + $0x8] sm:$0x3] 0.0
    %6564 = vst [vmem:[#allocation5 + $0x10] sm:$0xff] 0.0
    %6565 = vst [vmem:[#allocation5 + $0x18] sm:$0x3] 0.0
    %6566 = vst [vmem:[#allocation5 + $0x20] sm:$0xff] 0.0
    %6567 = vst [vmem:[#allocation5 + $0x28] sm:$0x3] 0.0
    %6568 = vst [vmem:[#allocation5 + $0x30] sm:$0xff] 0.0
    %6569 = vst [vmem:[#allocation5 + $0x38] sm:$0x3] 0.0
    %6570 = vst [vmem:[#allocation5 + $0x40] sm:$0xff] 0.0
    %6571 = vst [vmem:[#allocation5 + $0x48] sm:$0x3] 0.0
    %6572 = vst [vmem:[#allocation5 + $0x50] sm:$0xff] 0.0
    %6573 = vst [vmem:[#allocation5 + $0x58] sm:$0x3] 0.0
    %6574 = vst [vmem:[#allocation5 + $0x60] sm:$0xff] 0.0
    %6575 = vst [vmem:[#allocation5 + $0x68] sm:$0x3] 0.0
    %6576 = vst [vmem:[#allocation5 + $0x70] sm:$0xff] 0.0
    %6577 = vst [vmem:[#allocation5 + $0x78] sm:$0x3] 0.0
    %6578 = vst [vmem:[#allocation5 + $0x80] sm:$0xff] 0.0
    %6579 = vst [vmem:[#allocation5 + $0x88] sm:$0x3] 0.0
    %6580 = vst [vmem:[#allocation5 + $0x90] sm:$0xff] 0.0
    %6581 = vst [vmem:[#allocation5 + $0x98] sm:$0x3] 0.0
    %6582 = vst [vmem:[#allocation5 + $0xa0] sm:$0xff] 0.0
    %6583 = vst [vmem:[#allocation5 + $0xa8] sm:$0x3] 0.0
    %6584 = vst [vmem:[#allocation5 + $0xb0] sm:$0xff] 0.0
    %6585 = vst [vmem:[#allocation5 + $0xb8] sm:$0x3] 0.0
    %6586 = vst [vmem:[#allocation5 + $0xc0] sm:$0xff] 0.0
    %6587 = vst [vmem:[#allocation5 + $0xc8] sm:$0x3] 0.0
    %6588 = vst [vmem:[#allocation5 + $0xd0] sm:$0xff] 0.0
    %6589 = vst [vmem:[#allocation5 + $0xd8] sm:$0x3] 0.0
    %6590 = vst [vmem:[#allocation5 + $0xe0] sm:$0xff] 0.0
    %6591 = vst [vmem:[#allocation5 + $0xe8] sm:$0x3] 0.0
    %6592 = vst [vmem:[#allocation5 + $0xf0] sm:$0xff] 0.0
    %6593 = vst [vmem:[#allocation5 + $0xf8] sm:$0x3] 0.0
    %6594 = vst [vmem:[#allocation5 + $0x100] sm:$0xff] 0.0
    %6595 = vst [vmem:[#allocation5 + $0x108] sm:$0x3] 0.0
    %6596 = vst [vmem:[#allocation5 + $0x110] sm:$0xff] 0.0
    %6597 = vst [vmem:[#allocation5 + $0x118] sm:$0x3] 0.0
    %6598 = vst [vmem:[#allocation5 + $0x120] sm:$0xff] 0.0
    %6599 = vst [vmem:[#allocation5 + $0x128] sm:$0x3] 0.0
    %6600 = vst [vmem:[#allocation5 + $0x130] sm:$0xff] 0.0
    %6601 = vst [vmem:[#allocation5 + $0x138] sm:$0x3] 0.0
    %s6602 = scalar_lea.vmem [#allocation5], 16
    %6603 = vst [vmem:[%s6602 + $0x1] sm:$0xff] %v6546
    %6604 = vst [vmem:[%s6602 + $0x11] sm:$0xff] %v6547
    %6605 = vst [vmem:[%s6602 + $0x21] sm:$0xff] %v6548
    %6606 = vst [vmem:[%s6602 + $0x31] sm:$0xff] %v6549
    %6607 = vst [vmem:[%s6602 + $0x41] sm:$0xff] %v6550
    %6608 = vst [vmem:[%s6602 + $0x51] sm:$0xff] %v6551
    %6609 = vst [vmem:[%s6602 + $0x61] sm:$0xff] %v6552
    %6610 = vst [vmem:[%s6602 + $0x71] sm:$0xff] %v6553
    %6611 = vst [vmem:[%s6602 + $0xa1] sm:$0xff] %v6554
    %6612 = vst [vmem:[%s6602 + $0xb1] sm:$0xff] %v6555
    %6613 = vst [vmem:[%s6602 + $0xc1] sm:$0xff] %v6556
    %6614 = vst [vmem:[%s6602 + $0xd1] sm:$0xff] %v6557
    %6615 = vst [vmem:[%s6602 + $0xe1] sm:$0xff] %v6558
    %6616 = vst [vmem:[%s6602 + $0xf1] sm:$0xff] %v6559
    %6617 = vst [vmem:[%s6602 + $0x101] sm:$0xff] %v6560
    %6618 = vst [vmem:[%s6602 + $0x111] sm:$0xff] %v6561
    %v6619 = vld [vmem:[#allocation5] sm:$0xff]
    %v6620 = vld [vmem:[#allocation5 + $0x10] sm:$0xff]
    %v6621 = vld [vmem:[#allocation5 + $0x20] sm:$0xff]
    %v6622 = vld [vmem:[#allocation5 + $0x30] sm:$0xff]
    %v6623 = vld [vmem:[#allocation5 + $0x40] sm:$0xff]
    %v6624 = vld [vmem:[#allocation5 + $0x50] sm:$0xff]
    %v6625 = vld [vmem:[#allocation5 + $0x60] sm:$0xff]
    %v6626 = vld [vmem:[#allocation5 + $0x70] sm:$0xff]
    %v6627 = vld [vmem:[#allocation5 + $0xa0] sm:$0xff]
    %v6628 = vld [vmem:[#allocation5 + $0xb0] sm:$0xff]
    %v6629 = vld [vmem:[#allocation5 + $0xc0] sm:$0xff]
    %v6630 = vld [vmem:[#allocation5 + $0xd0] sm:$0xff]
    %v6631 = vld [vmem:[#allocation5 + $0xe0] sm:$0xff]
    %v6632 = vld [vmem:[#allocation5 + $0xf0] sm:$0xff]
    %v6633 = vld [vmem:[#allocation5 + $0x100] sm:$0xff]
    %v6634 = vld [vmem:[#allocation5 + $0x110] sm:$0xff]
    %v6635 = vld [vmem:[%s12] sm:$0xff]
    %v6636 = vld [vmem:[%s12 + $0x8] sm:$0xff]
    %v6637 = vld [vmem:[%s12 + $0x10] sm:$0xff]
    %v6638 = vld [vmem:[%s12 + $0x18] sm:$0xff]
    %v6639 = vld [vmem:[%s12 + $0x20] sm:$0xff]
    %v6640 = vld [vmem:[%s12 + $0x28] sm:$0xff]
    %v6641 = vld [vmem:[%s12 + $0x30] sm:$0xff]
    %v6642 = vld [vmem:[%s12 + $0x38] sm:$0xff]
    %v6643 = vld [vmem:[%s12 + $0x40] sm:$0xff]
    %v6644 = vld [vmem:[%s12 + $0x48] sm:$0xff]
    %v6645 = vld [vmem:[%s12 + $0x50] sm:$0xff]
    %v6646 = vld [vmem:[%s12 + $0x58] sm:$0xff]
    %v6647 = vld [vmem:[%s12 + $0x60] sm:$0xff]
    %v6648 = vld [vmem:[%s12 + $0x68] sm:$0xff]
    %v6649 = vld [vmem:[%s12 + $0x70] sm:$0xff]
    %v6650 = vld [vmem:[%s12 + $0x78] sm:$0xff]
    %v6651 = vld [vmem:[#allocation5 + $0x1] sm:$0xff]
    %v6652 = vld [vmem:[#allocation5 + $0x11] sm:$0xff]
    %v6653 = vld [vmem:[#allocation5 + $0x21] sm:$0xff]
    %v6654 = vld [vmem:[#allocation5 + $0x31] sm:$0xff]
    %v6655 = vld [vmem:[#allocation5 + $0x41] sm:$0xff]
    %v6656 = vld [vmem:[#allocation5 + $0x51] sm:$0xff]
    %v6657 = vld [vmem:[#allocation5 + $0x61] sm:$0xff]
    %v6658 = vld [vmem:[#allocation5 + $0x71] sm:$0xff]
    %v6659 = vld [vmem:[#allocation5 + $0xa1] sm:$0xff]
    %v6660 = vld [vmem:[#allocation5 + $0xb1] sm:$0xff]
    %v6661 = vld [vmem:[#allocation5 + $0xc1] sm:$0xff]
    %v6662 = vld [vmem:[#allocation5 + $0xd1] sm:$0xff]
    %v6663 = vld [vmem:[#allocation5 + $0xe1] sm:$0xff]
    %v6664 = vld [vmem:[#allocation5 + $0xf1] sm:$0xff]
    %v6665 = vld [vmem:[#allocation5 + $0x101] sm:$0xff]
    %v6666 = vld [vmem:[#allocation5 + $0x111] sm:$0xff]
    %s6667 = scalar_lea.vmem %s12, 128
    %v6668 = vld [vmem:[%s6667] sm:$0xff]
    %v6669 = vld [vmem:[%s6667 + $0x8] sm:$0xff]
    %v6670 = vld [vmem:[%s6667 + $0x10] sm:$0xff]
    %v6671 = vld [vmem:[%s6667 + $0x18] sm:$0xff]
    %v6672 = vld [vmem:[%s6667 + $0x20] sm:$0xff]
    %v6673 = vld [vmem:[%s6667 + $0x28] sm:$0xff]
    %v6674 = vld [vmem:[%s6667 + $0x30] sm:$0xff]
    %v6675 = vld [vmem:[%s6667 + $0x38] sm:$0xff]
    %v6676 = vld [vmem:[%s6667 + $0x40] sm:$0xff]
    %v6677 = vld [vmem:[%s6667 + $0x48] sm:$0xff]
    %v6678 = vld [vmem:[%s6667 + $0x50] sm:$0xff]
    %v6679 = vld [vmem:[%s6667 + $0x58] sm:$0xff]
    %v6680 = vld [vmem:[%s6667 + $0x60] sm:$0xff]
    %v6681 = vld [vmem:[%s6667 + $0x68] sm:$0xff]
    %v6682 = vld [vmem:[%s6667 + $0x70] sm:$0xff]
    %v6683 = vld [vmem:[%s6667 + $0x78] sm:$0xff]
    %6684 = vmatpush.msra.mxu0 %v6683
    %6685 = vmatpush.msra.mxu0 %v6682
    %6686 = vmatpush.msra.mxu0 %v6681
    %6687 = vmatpush.msra.mxu0 %v6680
    %6688 = vmatpush.msra.mxu0 %v6679
    %6689 = vmatpush.msra.mxu0 %v6678
    %6690 = vmatpush.msra.mxu0 %v6677
    %6691 = vmatpush.msra.mxu0 %v6676
    %6692 = vmatpush.msra.mxu0 %v6675
    %6693 = vmatpush.msra.mxu0 %v6674
    %6694 = vmatpush.msra.mxu0 %v6673
    %6695 = vmatpush.msra.mxu0 %v6672
    %6696 = vmatpush.msra.mxu0 %v6671
    %6697 = vmatpush.msra.mxu0 %v6670
    %6698 = vmatpush.msra.mxu0 %v6669
    %6699 = vmatpush.msra.mxu0 %v6668
    %6700 = vmatmul.f32.gmra.mxu0 %v6651
    %v6701 = vpop.f32.mrf.mxu0
    %v6702 = vadd.f32 0.0, %v6701
    %6703 = vmatmul.f32.gmra.mxu0 %v6652
    %v6704 = vpop.f32.mrf.mxu0
    %v6705 = vadd.f32 0.0, %v6704
    %6706 = vmatmul.f32.gmra.mxu0 %v6653
    %v6707 = vpop.f32.mrf.mxu0
    %v6708 = vadd.f32 0.0, %v6707
    %6709 = vmatmul.f32.gmra.mxu0 %v6654
    %v6710 = vpop.f32.mrf.mxu0
    %v6711 = vadd.f32 0.0, %v6710
    %6712 = vmatmul.f32.gmra.mxu0 %v6655
    %v6713 = vpop.f32.mrf.mxu0
    %v6714 = vadd.f32 0.0, %v6713
    %6715 = vmatmul.f32.gmra.mxu0 %v6656
    %v6716 = vpop.f32.mrf.mxu0
    %v6717 = vadd.f32 0.0, %v6716
    %6718 = vmatmul.f32.gmra.mxu0 %v6657
    %v6719 = vpop.f32.mrf.mxu0
    %v6720 = vadd.f32 0.0, %v6719
    %6721 = vmatmul.f32.gmra.mxu0 %v6658
    %v6722 = vpop.f32.mrf.mxu0
    %v6723 = vadd.f32 0.0, %v6722
    %6724 = vmatmul.f32.gmra.mxu0 %v6659
    %v6725 = vpop.f32.mrf.mxu0
    %v6726 = vadd.f32 0.0, %v6725
    %6727 = vmatmul.f32.gmra.mxu0 %v6660
    %v6728 = vpop.f32.mrf.mxu0
    %v6729 = vadd.f32 0.0, %v6728
    %6730 = vmatmul.f32.gmra.mxu0 %v6661
    %v6731 = vpop.f32.mrf.mxu0
    %v6732 = vadd.f32 0.0, %v6731
    %6733 = vmatmul.f32.gmra.mxu0 %v6662
    %v6734 = vpop.f32.mrf.mxu0
    %v6735 = vadd.f32 0.0, %v6734
    %6736 = vmatmul.f32.gmra.mxu0 %v6663
    %v6737 = vpop.f32.mrf.mxu0
    %v6738 = vadd.f32 0.0, %v6737
    %6739 = vmatmul.f32.gmra.mxu0 %v6664
    %v6740 = vpop.f32.mrf.mxu0
    %v6741 = vadd.f32 0.0, %v6740
    %6742 = vmatmul.f32.gmra.mxu0 %v6665
    %v6743 = vpop.f32.mrf.mxu0
    %v6744 = vadd.f32 0.0, %v6743
    %6745 = vmatmul.f32.gmra.mxu0 %v6666
    %v6746 = vpop.f32.mrf.mxu0
    %v6747 = vadd.f32 0.0, %v6746
    %6748 = vdwg.mxu0
    %6749 = vmatpush.msra.mxu0 %v6650
    %6750 = vmatpush.msra.mxu0 %v6649
    %6751 = vmatpush.msra.mxu0 %v6648
    %6752 = vmatpush.msra.mxu0 %v6647
    %6753 = vmatpush.msra.mxu0 %v6646
    %6754 = vmatpush.msra.mxu0 %v6645
    %6755 = vmatpush.msra.mxu0 %v6644
    %6756 = vmatpush.msra.mxu0 %v6643
    %6757 = vmatpush.msra.mxu0 %v6642
    %6758 = vmatpush.msra.mxu0 %v6641
    %6759 = vmatpush.msra.mxu0 %v6640
    %6760 = vmatpush.msra.mxu0 %v6639
    %6761 = vmatpush.msra.mxu0 %v6638
    %6762 = vmatpush.msra.mxu0 %v6637
    %6763 = vmatpush.msra.mxu0 %v6636
    %6764 = vmatpush.msra.mxu0 %v6635
    %6765 = vmatmul.f32.gmra.mxu0 %v6619
    %v6766 = vpop.f32.mrf.mxu0
    %v6767 = vadd.f32 %v6702, %v6766
    %6768 = vmatmul.f32.gmra.mxu0 %v6620
    %v6769 = vpop.f32.mrf.mxu0
    %v6770 = vadd.f32 %v6705, %v6769
    %6771 = vmatmul.f32.gmra.mxu0 %v6621
    %v6772 = vpop.f32.mrf.mxu0
    %v6773 = vadd.f32 %v6708, %v6772
    %6774 = vmatmul.f32.gmra.mxu0 %v6622
    %v6775 = vpop.f32.mrf.mxu0
    %v6776 = vadd.f32 %v6711, %v6775
    %6777 = vmatmul.f32.gmra.mxu0 %v6623
    %v6778 = vpop.f32.mrf.mxu0
    %v6779 = vadd.f32 %v6714, %v6778
    %6780 = vmatmul.f32.gmra.mxu0 %v6624
    %v6781 = vpop.f32.mrf.mxu0
    %v6782 = vadd.f32 %v6717, %v6781
    %6783 = vmatmul.f32.gmra.mxu0 %v6625
    %v6784 = vpop.f32.mrf.mxu0
    %v6785 = vadd.f32 %v6720, %v6784
    %6786 = vmatmul.f32.gmra.mxu0 %v6626
    %v6787 = vpop.f32.mrf.mxu0
    %v6788 = vadd.f32 %v6723, %v6787
    %6789 = vmatmul.f32.gmra.mxu0 %v6627
    %v6790 = vpop.f32.mrf.mxu0
    %v6791 = vadd.f32 %v6726, %v6790
    %6792 = vmatmul.f32.gmra.mxu0 %v6628
    %v6793 = vpop.f32.mrf.mxu0
    %v6794 = vadd.f32 %v6729, %v6793
    %6795 = vmatmul.f32.gmra.mxu0 %v6629
    %v6796 = vpop.f32.mrf.mxu0
    %v6797 = vadd.f32 %v6732, %v6796
    %6798 = vmatmul.f32.gmra.mxu0 %v6630
    %v6799 = vpop.f32.mrf.mxu0
    %v6800 = vadd.f32 %v6735, %v6799
    %6801 = vmatmul.f32.gmra.mxu0 %v6631
    %v6802 = vpop.f32.mrf.mxu0
    %v6803 = vadd.f32 %v6738, %v6802
    %6804 = vmatmul.f32.gmra.mxu0 %v6632
    %v6805 = vpop.f32.mrf.mxu0
    %v6806 = vadd.f32 %v6741, %v6805
    %6807 = vmatmul.f32.gmra.mxu0 %v6633
    %v6808 = vpop.f32.mrf.mxu0
    %v6809 = vadd.f32 %v6744, %v6808
    %6810 = vmatmul.f32.gmra.mxu0 %v6634
    %v6811 = vpop.f32.mrf.mxu0
    %v6812 = vadd.f32 %v6747, %v6811
    %6813 = vdwg.mxu0
    %v6814 = vld [vmem:[#allocation5 + $0x2] sm:$0xff]
    %v6815 = vld [vmem:[#allocation5 + $0x12] sm:$0xff]
    %v6816 = vld [vmem:[#allocation5 + $0x22] sm:$0xff]
    %v6817 = vld [vmem:[#allocation5 + $0x32] sm:$0xff]
    %v6818 = vld [vmem:[#allocation5 + $0x42] sm:$0xff]
    %v6819 = vld [vmem:[#allocation5 + $0x52] sm:$0xff]
    %v6820 = vld [vmem:[#allocation5 + $0x62] sm:$0xff]
    %v6821 = vld [vmem:[#allocation5 + $0x72] sm:$0xff]
    %v6822 = vld [vmem:[#allocation5 + $0xa2] sm:$0xff]
    %v6823 = vld [vmem:[#allocation5 + $0xb2] sm:$0xff]
    %v6824 = vld [vmem:[#allocation5 + $0xc2] sm:$0xff]
    %v6825 = vld [vmem:[#allocation5 + $0xd2] sm:$0xff]
    %v6826 = vld [vmem:[#allocation5 + $0xe2] sm:$0xff]
    %v6827 = vld [vmem:[#allocation5 + $0xf2] sm:$0xff]
    %v6828 = vld [vmem:[#allocation5 + $0x102] sm:$0xff]
    %v6829 = vld [vmem:[#allocation5 + $0x112] sm:$0xff]
    %s6830 = scalar_lea.vmem %s12, 256
    %v6831 = vld [vmem:[%s6830] sm:$0xff]
    %v6832 = vld [vmem:[%s6830 + $0x8] sm:$0xff]
    %v6833 = vld [vmem:[%s6830 + $0x10] sm:$0xff]
    %v6834 = vld [vmem:[%s6830 + $0x18] sm:$0xff]
    %v6835 = vld [vmem:[%s6830 + $0x20] sm:$0xff]
    %v6836 = vld [vmem:[%s6830 + $0x28] sm:$0xff]
    %v6837 = vld [vmem:[%s6830 + $0x30] sm:$0xff]
    %v6838 = vld [vmem:[%s6830 + $0x38] sm:$0xff]
    %v6839 = vld [vmem:[%s6830 + $0x40] sm:$0xff]
    %v6840 = vld [vmem:[%s6830 + $0x48] sm:$0xff]
    %v6841 = vld [vmem:[%s6830 + $0x50] sm:$0xff]
    %v6842 = vld [vmem:[%s6830 + $0x58] sm:$0xff]
    %v6843 = vld [vmem:[%s6830 + $0x60] sm:$0xff]
    %v6844 = vld [vmem:[%s6830 + $0x68] sm:$0xff]
    %v6845 = vld [vmem:[%s6830 + $0x70] sm:$0xff]
    %v6846 = vld [vmem:[%s6830 + $0x78] sm:$0xff]
    %6847 = vmatpush.msra.mxu0 %v6846
    %6848 = vmatpush.msra.mxu0 %v6845
    %6849 = vmatpush.msra.mxu0 %v6844
    %6850 = vmatpush.msra.mxu0 %v6843
    %6851 = vmatpush.msra.mxu0 %v6842
    %6852 = vmatpush.msra.mxu0 %v6841
    %6853 = vmatpush.msra.mxu0 %v6840
    %6854 = vmatpush.msra.mxu0 %v6839
    %6855 = vmatpush.msra.mxu0 %v6838
    %6856 = vmatpush.msra.mxu0 %v6837
    %6857 = vmatpush.msra.mxu0 %v6836
    %6858 = vmatpush.msra.mxu0 %v6835
    %6859 = vmatpush.msra.mxu0 %v6834
    %6860 = vmatpush.msra.mxu0 %v6833
    %6861 = vmatpush.msra.mxu0 %v6832
    %6862 = vmatpush.msra.mxu0 %v6831
    %6863 = vmatmul.f32.gmra.mxu0 %v6814
    %v6864 = vpop.f32.mrf.mxu0
    %v6865 = vadd.f32 0.0, %v6864
    %6866 = vmatmul.f32.gmra.mxu0 %v6815
    %v6867 = vpop.f32.mrf.mxu0
    %v6868 = vadd.f32 0.0, %v6867
    %6869 = vmatmul.f32.gmra.mxu0 %v6816
    %v6870 = vpop.f32.mrf.mxu0
    %v6871 = vadd.f32 0.0, %v6870
    %6872 = vmatmul.f32.gmra.mxu0 %v6817
    %v6873 = vpop.f32.mrf.mxu0
    %v6874 = vadd.f32 0.0, %v6873
    %6875 = vmatmul.f32.gmra.mxu0 %v6818
    %v6876 = vpop.f32.mrf.mxu0
    %v6877 = vadd.f32 0.0, %v6876
    %6878 = vmatmul.f32.gmra.mxu0 %v6819
    %v6879 = vpop.f32.mrf.mxu0
    %v6880 = vadd.f32 0.0, %v6879
    %6881 = vmatmul.f32.gmra.mxu0 %v6820
    %v6882 = vpop.f32.mrf.mxu0
    %v6883 = vadd.f32 0.0, %v6882
    %6884 = vmatmul.f32.gmra.mxu0 %v6821
    %v6885 = vpop.f32.mrf.mxu0
    %v6886 = vadd.f32 0.0, %v6885
    %6887 = vmatmul.f32.gmra.mxu0 %v6822
    %v6888 = vpop.f32.mrf.mxu0
    %v6889 = vadd.f32 0.0, %v6888
    %6890 = vmatmul.f32.gmra.mxu0 %v6823
    %v6891 = vpop.f32.mrf.mxu0
    %v6892 = vadd.f32 0.0, %v6891
    %6893 = vmatmul.f32.gmra.mxu0 %v6824
    %v6894 = vpop.f32.mrf.mxu0
    %v6895 = vadd.f32 0.0, %v6894
    %6896 = vmatmul.f32.gmra.mxu0 %v6825
    %v6897 = vpop.f32.mrf.mxu0
    %v6898 = vadd.f32 0.0, %v6897
    %6899 = vmatmul.f32.gmra.mxu0 %v6826
    %v6900 = vpop.f32.mrf.mxu0
    %v6901 = vadd.f32 0.0, %v6900
    %6902 = vmatmul.f32.gmra.mxu0 %v6827
    %v6903 = vpop.f32.mrf.mxu0
    %v6904 = vadd.f32 0.0, %v6903
    %6905 = vmatmul.f32.gmra.mxu0 %v6828
    %v6906 = vpop.f32.mrf.mxu0
    %v6907 = vadd.f32 0.0, %v6906
    %6908 = vmatmul.f32.gmra.mxu0 %v6829
    %v6909 = vpop.f32.mrf.mxu0
    %v6910 = vadd.f32 0.0, %v6909
    %6911 = vdwg.mxu0
    %v6912 = vadd.f32 %v6767, %v6865
    %v6913 = vadd.f32 %v6770, %v6868
    %v6914 = vadd.f32 %v6773, %v6871
    %v6915 = vadd.f32 %v6776, %v6874
    %v6916 = vadd.f32 %v6779, %v6877
    %v6917 = vadd.f32 %v6782, %v6880
    %v6918 = vadd.f32 %v6785, %v6883
    %v6919 = vadd.f32 %v6788, %v6886
    %v6920 = vadd.f32 %v6791, %v6889
    %v6921 = vadd.f32 %v6794, %v6892
    %v6922 = vadd.f32 %v6797, %v6895
    %v6923 = vadd.f32 %v6800, %v6898
    %v6924 = vadd.f32 %v6803, %v6901
    %v6925 = vadd.f32 %v6806, %v6904
    %v6926 = vadd.f32 %v6809, %v6907
    %v6927 = vadd.f32 %v6812, %v6910
    %v6928 = vld [vmem:[%s6602] sm:$0xff]
    %v6929 = vld [vmem:[%s6602 + $0x10] sm:$0xff]
    %v6930 = vld [vmem:[%s6602 + $0x20] sm:$0xff]
    %v6931 = vld [vmem:[%s6602 + $0x30] sm:$0xff]
    %v6932 = vld [vmem:[%s6602 + $0x40] sm:$0xff]
    %v6933 = vld [vmem:[%s6602 + $0x50] sm:$0xff]
    %v6934 = vld [vmem:[%s6602 + $0x60] sm:$0xff]
    %v6935 = vld [vmem:[%s6602 + $0x70] sm:$0xff]
    %v6936 = vld [vmem:[%s6602 + $0xa0] sm:$0xff]
    %v6937 = vld [vmem:[%s6602 + $0xb0] sm:$0xff]
    %v6938 = vld [vmem:[%s6602 + $0xc0] sm:$0xff]
    %v6939 = vld [vmem:[%s6602 + $0xd0] sm:$0xff]
    %v6940 = vld [vmem:[%s6602 + $0xe0] sm:$0xff]
    %v6941 = vld [vmem:[%s6602 + $0xf0] sm:$0xff]
    %v6942 = vld [vmem:[%s6602 + $0x100] sm:$0xff]
    %v6943 = vld [vmem:[%s6602 + $0x110] sm:$0xff]
    %s6944 = scalar_lea.vmem %s12, 384
    %v6945 = vld [vmem:[%s6944] sm:$0xff]
    %v6946 = vld [vmem:[%s6944 + $0x8] sm:$0xff]
    %v6947 = vld [vmem:[%s6944 + $0x10] sm:$0xff]
    %v6948 = vld [vmem:[%s6944 + $0x18] sm:$0xff]
    %v6949 = vld [vmem:[%s6944 + $0x20] sm:$0xff]
    %v6950 = vld [vmem:[%s6944 + $0x28] sm:$0xff]
    %v6951 = vld [vmem:[%s6944 + $0x30] sm:$0xff]
    %v6952 = vld [vmem:[%s6944 + $0x38] sm:$0xff]
    %v6953 = vld [vmem:[%s6944 + $0x40] sm:$0xff]
    %v6954 = vld [vmem:[%s6944 + $0x48] sm:$0xff]
    %v6955 = vld [vmem:[%s6944 + $0x50] sm:$0xff]
    %v6956 = vld [vmem:[%s6944 + $0x58] sm:$0xff]
    %v6957 = vld [vmem:[%s6944 + $0x60] sm:$0xff]
    %v6958 = vld [vmem:[%s6944 + $0x68] sm:$0xff]
    %v6959 = vld [vmem:[%s6944 + $0x70] sm:$0xff]
    %v6960 = vld [vmem:[%s6944 + $0x78] sm:$0xff]
    %6961 = vmatpush.msra.mxu0 %v6960
    %6962 = vmatpush.msra.mxu0 %v6959
    %6963 = vmatpush.msra.mxu0 %v6958
    %6964 = vmatpush.msra.mxu0 %v6957
    %6965 = vmatpush.msra.mxu0 %v6956
    %6966 = vmatpush.msra.mxu0 %v6955
    %6967 = vmatpush.msra.mxu0 %v6954
    %6968 = vmatpush.msra.mxu0 %v6953
    %6969 = vmatpush.msra.mxu0 %v6952
    %6970 = vmatpush.msra.mxu0 %v6951
    %6971 = vmatpush.msra.mxu0 %v6950
    %6972 = vmatpush.msra.mxu0 %v6949
    %6973 = vmatpush.msra.mxu0 %v6948
    %6974 = vmatpush.msra.mxu0 %v6947
    %6975 = vmatpush.msra.mxu0 %v6946
    %6976 = vmatpush.msra.mxu0 %v6945
    %6977 = vmatmul.f32.gmra.mxu0 %v6928
    %v6978 = vpop.f32.mrf.mxu0
    %v6979 = vadd.f32 0.0, %v6978
    %6980 = vmatmul.f32.gmra.mxu0 %v6929
    %v6981 = vpop.f32.mrf.mxu0
    %v6982 = vadd.f32 0.0, %v6981
    %6983 = vmatmul.f32.gmra.mxu0 %v6930
    %v6984 = vpop.f32.mrf.mxu0
    %v6985 = vadd.f32 0.0, %v6984
    %6986 = vmatmul.f32.gmra.mxu0 %v6931
    %v6987 = vpop.f32.mrf.mxu0
    %v6988 = vadd.f32 0.0, %v6987
    %6989 = vmatmul.f32.gmra.mxu0 %v6932
    %v6990 = vpop.f32.mrf.mxu0
    %v6991 = vadd.f32 0.0, %v6990
    %6992 = vmatmul.f32.gmra.mxu0 %v6933
    %v6993 = vpop.f32.mrf.mxu0
    %v6994 = vadd.f32 0.0, %v6993
    %6995 = vmatmul.f32.gmra.mxu0 %v6934
    %v6996 = vpop.f32.mrf.mxu0
    %v6997 = vadd.f32 0.0, %v6996
    %6998 = vmatmul.f32.gmra.mxu0 %v6935
    %v6999 = vpop.f32.mrf.mxu0
    %v7000 = vadd.f32 0.0, %v6999
    %7001 = vmatmul.f32.gmra.mxu0 %v6936
    %v7002 = vpop.f32.mrf.mxu0
    %v7003 = vadd.f32 0.0, %v7002
    %7004 = vmatmul.f32.gmra.mxu0 %v6937
    %v7005 = vpop.f32.mrf.mxu0
    %v7006 = vadd.f32 0.0, %v7005
    %7007 = vmatmul.f32.gmra.mxu0 %v6938
    %v7008 = vpop.f32.mrf.mxu0
    %v7009 = vadd.f32 0.0, %v7008
    %7010 = vmatmul.f32.gmra.mxu0 %v6939
    %v7011 = vpop.f32.mrf.mxu0
    %v7012 = vadd.f32 0.0, %v7011
    %7013 = vmatmul.f32.gmra.mxu0 %v6940
    %v7014 = vpop.f32.mrf.mxu0
    %v7015 = vadd.f32 0.0, %v7014
    %7016 = vmatmul.f32.gmra.mxu0 %v6941
    %v7017 = vpop.f32.mrf.mxu0
    %v7018 = vadd.f32 0.0, %v7017
    %7019 = vmatmul.f32.gmra.mxu0 %v6942
    %v7020 = vpop.f32.mrf.mxu0
    %v7021 = vadd.f32 0.0, %v7020
    %7022 = vmatmul.f32.gmra.mxu0 %v6943
    %v7023 = vpop.f32.mrf.mxu0
    %v7024 = vadd.f32 0.0, %v7023
    %7025 = vdwg.mxu0
    %v7026 = vadd.f32 %v6912, %v6979
    %v7027 = vadd.f32 %v6913, %v6982
    %v7028 = vadd.f32 %v6914, %v6985
    %v7029 = vadd.f32 %v6915, %v6988
    %v7030 = vadd.f32 %v6916, %v6991
    %v7031 = vadd.f32 %v6917, %v6994
    %v7032 = vadd.f32 %v6918, %v6997
    %v7033 = vadd.f32 %v6919, %v7000
    %v7034 = vadd.f32 %v6920, %v7003
    %v7035 = vadd.f32 %v6921, %v7006
    %v7036 = vadd.f32 %v6922, %v7009
    %v7037 = vadd.f32 %v6923, %v7012
    %v7038 = vadd.f32 %v6924, %v7015
    %v7039 = vadd.f32 %v6925, %v7018
    %v7040 = vadd.f32 %v6926, %v7021
    %v7041 = vadd.f32 %v6927, %v7024
    %v7042 = vld [vmem:[%s6602 + $0x1] sm:$0xff]
    %v7043 = vld [vmem:[%s6602 + $0x11] sm:$0xff]
    %v7044 = vld [vmem:[%s6602 + $0x21] sm:$0xff]
    %v7045 = vld [vmem:[%s6602 + $0x31] sm:$0xff]
    %v7046 = vld [vmem:[%s6602 + $0x41] sm:$0xff]
    %v7047 = vld [vmem:[%s6602 + $0x51] sm:$0xff]
    %v7048 = vld [vmem:[%s6602 + $0x61] sm:$0xff]
    %v7049 = vld [vmem:[%s6602 + $0x71] sm:$0xff]
    %v7050 = vld [vmem:[%s6602 + $0xa1] sm:$0xff]
    %v7051 = vld [vmem:[%s6602 + $0xb1] sm:$0xff]
    %v7052 = vld [vmem:[%s6602 + $0xc1] sm:$0xff]
    %v7053 = vld [vmem:[%s6602 + $0xd1] sm:$0xff]
    %v7054 = vld [vmem:[%s6602 + $0xe1] sm:$0xff]
    %v7055 = vld [vmem:[%s6602 + $0xf1] sm:$0xff]
    %v7056 = vld [vmem:[%s6602 + $0x101] sm:$0xff]
    %v7057 = vld [vmem:[%s6602 + $0x111] sm:$0xff]
    %s7058 = scalar_lea.vmem %s12, 512
    %v7059 = vld [vmem:[%s7058] sm:$0xff]
    %v7060 = vld [vmem:[%s7058 + $0x8] sm:$0xff]
    %v7061 = vld [vmem:[%s7058 + $0x10] sm:$0xff]
    %v7062 = vld [vmem:[%s7058 + $0x18] sm:$0xff]
    %v7063 = vld [vmem:[%s7058 + $0x20] sm:$0xff]
    %v7064 = vld [vmem:[%s7058 + $0x28] sm:$0xff]
    %v7065 = vld [vmem:[%s7058 + $0x30] sm:$0xff]
    %v7066 = vld [vmem:[%s7058 + $0x38] sm:$0xff]
    %v7067 = vld [vmem:[%s7058 + $0x40] sm:$0xff]
    %v7068 = vld [vmem:[%s7058 + $0x48] sm:$0xff]
    %v7069 = vld [vmem:[%s7058 + $0x50] sm:$0xff]
    %v7070 = vld [vmem:[%s7058 + $0x58] sm:$0xff]
    %v7071 = vld [vmem:[%s7058 + $0x60] sm:$0xff]
    %v7072 = vld [vmem:[%s7058 + $0x68] sm:$0xff]
    %v7073 = vld [vmem:[%s7058 + $0x70] sm:$0xff]
    %v7074 = vld [vmem:[%s7058 + $0x78] sm:$0xff]
    %7075 = vmatpush.msra.mxu0 %v7074
    %7076 = vmatpush.msra.mxu0 %v7073
    %7077 = vmatpush.msra.mxu0 %v7072
    %7078 = vmatpush.msra.mxu0 %v7071
    %7079 = vmatpush.msra.mxu0 %v7070
    %7080 = vmatpush.msra.mxu0 %v7069
    %7081 = vmatpush.msra.mxu0 %v7068
    %7082 = vmatpush.msra.mxu0 %v7067
    %7083 = vmatpush.msra.mxu0 %v7066
    %7084 = vmatpush.msra.mxu0 %v7065
    %7085 = vmatpush.msra.mxu0 %v7064
    %7086 = vmatpush.msra.mxu0 %v7063
    %7087 = vmatpush.msra.mxu0 %v7062
    %7088 = vmatpush.msra.mxu0 %v7061
    %7089 = vmatpush.msra.mxu0 %v7060
    %7090 = vmatpush.msra.mxu0 %v7059
    %7091 = vmatmul.f32.gmra.mxu0 %v7042
    %v7092 = vpop.f32.mrf.mxu0
    %v7093 = vadd.f32 0.0, %v7092
    %7094 = vmatmul.f32.gmra.mxu0 %v7043
    %v7095 = vpop.f32.mrf.mxu0
    %v7096 = vadd.f32 0.0, %v7095
    %7097 = vmatmul.f32.gmra.mxu0 %v7044
    %v7098 = vpop.f32.mrf.mxu0
    %v7099 = vadd.f32 0.0, %v7098
    %7100 = vmatmul.f32.gmra.mxu0 %v7045
    %v7101 = vpop.f32.mrf.mxu0
    %v7102 = vadd.f32 0.0, %v7101
    %7103 = vmatmul.f32.gmra.mxu0 %v7046
    %v7104 = vpop.f32.mrf.mxu0
    %v7105 = vadd.f32 0.0, %v7104
    %7106 = vmatmul.f32.gmra.mxu0 %v7047
    %v7107 = vpop.f32.mrf.mxu0
    %v7108 = vadd.f32 0.0, %v7107
    %7109 = vmatmul.f32.gmra.mxu0 %v7048
    %v7110 = vpop.f32.mrf.mxu0
    %v7111 = vadd.f32 0.0, %v7110
    %7112 = vmatmul.f32.gmra.mxu0 %v7049
    %v7113 = vpop.f32.mrf.mxu0
    %v7114 = vadd.f32 0.0, %v7113
    %7115 = vmatmul.f32.gmra.mxu0 %v7050
    %v7116 = vpop.f32.mrf.mxu0
    %v7117 = vadd.f32 0.0, %v7116
    %7118 = vmatmul.f32.gmra.mxu0 %v7051
    %v7119 = vpop.f32.mrf.mxu0
    %v7120 = vadd.f32 0.0, %v7119
    %7121 = vmatmul.f32.gmra.mxu0 %v7052
    %v7122 = vpop.f32.mrf.mxu0
    %v7123 = vadd.f32 0.0, %v7122
    %7124 = vmatmul.f32.gmra.mxu0 %v7053
    %v7125 = vpop.f32.mrf.mxu0
    %v7126 = vadd.f32 0.0, %v7125
    %7127 = vmatmul.f32.gmra.mxu0 %v7054
    %v7128 = vpop.f32.mrf.mxu0
    %v7129 = vadd.f32 0.0, %v7128
    %7130 = vmatmul.f32.gmra.mxu0 %v7055
    %v7131 = vpop.f32.mrf.mxu0
    %v7132 = vadd.f32 0.0, %v7131
    %7133 = vmatmul.f32.gmra.mxu0 %v7056
    %v7134 = vpop.f32.mrf.mxu0
    %v7135 = vadd.f32 0.0, %v7134
    %7136 = vmatmul.f32.gmra.mxu0 %v7057
    %v7137 = vpop.f32.mrf.mxu0
    %v7138 = vadd.f32 0.0, %v7137
    %7139 = vdwg.mxu0
    %v7140 = vadd.f32 %v7026, %v7093
    %v7141 = vadd.f32 %v7027, %v7096
    %v7142 = vadd.f32 %v7028, %v7099
    %v7143 = vadd.f32 %v7029, %v7102
    %v7144 = vadd.f32 %v7030, %v7105
    %v7145 = vadd.f32 %v7031, %v7108
    %v7146 = vadd.f32 %v7032, %v7111
    %v7147 = vadd.f32 %v7033, %v7114
    %v7148 = vadd.f32 %v7034, %v7117
    %v7149 = vadd.f32 %v7035, %v7120
    %v7150 = vadd.f32 %v7036, %v7123
    %v7151 = vadd.f32 %v7037, %v7126
    %v7152 = vadd.f32 %v7038, %v7129
    %v7153 = vadd.f32 %v7039, %v7132
    %v7154 = vadd.f32 %v7040, %v7135
    %v7155 = vadd.f32 %v7041, %v7138
    %v7156 = vld [vmem:[%s6602 + $0x2] sm:$0xff]
    %v7157 = vld [vmem:[%s6602 + $0x12] sm:$0xff]
    %v7158 = vld [vmem:[%s6602 + $0x22] sm:$0xff]
    %v7159 = vld [vmem:[%s6602 + $0x32] sm:$0xff]
    %v7160 = vld [vmem:[%s6602 + $0x42] sm:$0xff]
    %v7161 = vld [vmem:[%s6602 + $0x52] sm:$0xff]
    %v7162 = vld [vmem:[%s6602 + $0x62] sm:$0xff]
    %v7163 = vld [vmem:[%s6602 + $0x72] sm:$0xff]
    %v7164 = vld [vmem:[%s6602 + $0xa2] sm:$0xff]
    %v7165 = vld [vmem:[%s6602 + $0xb2] sm:$0xff]
    %v7166 = vld [vmem:[%s6602 + $0xc2] sm:$0xff]
    %v7167 = vld [vmem:[%s6602 + $0xd2] sm:$0xff]
    %v7168 = vld [vmem:[%s6602 + $0xe2] sm:$0xff]
    %v7169 = vld [vmem:[%s6602 + $0xf2] sm:$0xff]
    %v7170 = vld [vmem:[%s6602 + $0x102] sm:$0xff]
    %v7171 = vld [vmem:[%s6602 + $0x112] sm:$0xff]
    %s7172 = scalar_lea.vmem %s12, 640
    %v7173 = vld [vmem:[%s7172] sm:$0xff]
    %v7174 = vld [vmem:[%s7172 + $0x8] sm:$0xff]
    %v7175 = vld [vmem:[%s7172 + $0x10] sm:$0xff]
    %v7176 = vld [vmem:[%s7172 + $0x18] sm:$0xff]
    %v7177 = vld [vmem:[%s7172 + $0x20] sm:$0xff]
    %v7178 = vld [vmem:[%s7172 + $0x28] sm:$0xff]
    %v7179 = vld [vmem:[%s7172 + $0x30] sm:$0xff]
    %v7180 = vld [vmem:[%s7172 + $0x38] sm:$0xff]
    %v7181 = vld [vmem:[%s7172 + $0x40] sm:$0xff]
    %v7182 = vld [vmem:[%s7172 + $0x48] sm:$0xff]
    %v7183 = vld [vmem:[%s7172 + $0x50] sm:$0xff]
    %v7184 = vld [vmem:[%s7172 + $0x58] sm:$0xff]
    %v7185 = vld [vmem:[%s7172 + $0x60] sm:$0xff]
    %v7186 = vld [vmem:[%s7172 + $0x68] sm:$0xff]
    %v7187 = vld [vmem:[%s7172 + $0x70] sm:$0xff]
    %v7188 = vld [vmem:[%s7172 + $0x78] sm:$0xff]
    %7189 = vmatpush.msra.mxu0 %v7188
    %7190 = vmatpush.msra.mxu0 %v7187
    %7191 = vmatpush.msra.mxu0 %v7186
    %7192 = vmatpush.msra.mxu0 %v7185
    %7193 = vmatpush.msra.mxu0 %v7184
    %7194 = vmatpush.msra.mxu0 %v7183
    %7195 = vmatpush.msra.mxu0 %v7182
    %7196 = vmatpush.msra.mxu0 %v7181
    %7197 = vmatpush.msra.mxu0 %v7180
    %7198 = vmatpush.msra.mxu0 %v7179
    %7199 = vmatpush.msra.mxu0 %v7178
    %7200 = vmatpush.msra.mxu0 %v7177
    %7201 = vmatpush.msra.mxu0 %v7176
    %7202 = vmatpush.msra.mxu0 %v7175
    %7203 = vmatpush.msra.mxu0 %v7174
    %7204 = vmatpush.msra.mxu0 %v7173
    %7205 = vmatmul.f32.gmra.mxu0 %v7156
    %v7206 = vpop.f32.mrf.mxu0
    %v7207 = vadd.f32 0.0, %v7206
    %7208 = vmatmul.f32.gmra.mxu0 %v7157
    %v7209 = vpop.f32.mrf.mxu0
    %v7210 = vadd.f32 0.0, %v7209
    %7211 = vmatmul.f32.gmra.mxu0 %v7158
    %v7212 = vpop.f32.mrf.mxu0
    %v7213 = vadd.f32 0.0, %v7212
    %7214 = vmatmul.f32.gmra.mxu0 %v7159
    %v7215 = vpop.f32.mrf.mxu0
    %v7216 = vadd.f32 0.0, %v7215
    %7217 = vmatmul.f32.gmra.mxu0 %v7160
    %v7218 = vpop.f32.mrf.mxu0
    %v7219 = vadd.f32 0.0, %v7218
    %7220 = vmatmul.f32.gmra.mxu0 %v7161
    %v7221 = vpop.f32.mrf.mxu0
    %v7222 = vadd.f32 0.0, %v7221
    %7223 = vmatmul.f32.gmra.mxu0 %v7162
    %v7224 = vpop.f32.mrf.mxu0
    %v7225 = vadd.f32 0.0, %v7224
    %7226 = vmatmul.f32.gmra.mxu0 %v7163
    %v7227 = vpop.f32.mrf.mxu0
    %v7228 = vadd.f32 0.0, %v7227
    %7229 = vmatmul.f32.gmra.mxu0 %v7164
    %v7230 = vpop.f32.mrf.mxu0
    %v7231 = vadd.f32 0.0, %v7230
    %7232 = vmatmul.f32.gmra.mxu0 %v7165
    %v7233 = vpop.f32.mrf.mxu0
    %v7234 = vadd.f32 0.0, %v7233
    %7235 = vmatmul.f32.gmra.mxu0 %v7166
    %v7236 = vpop.f32.mrf.mxu0
    %v7237 = vadd.f32 0.0, %v7236
    %7238 = vmatmul.f32.gmra.mxu0 %v7167
    %v7239 = vpop.f32.mrf.mxu0
    %v7240 = vadd.f32 0.0, %v7239
    %7241 = vmatmul.f32.gmra.mxu0 %v7168
    %v7242 = vpop.f32.mrf.mxu0
    %v7243 = vadd.f32 0.0, %v7242
    %7244 = vmatmul.f32.gmra.mxu0 %v7169
    %v7245 = vpop.f32.mrf.mxu0
    %v7246 = vadd.f32 0.0, %v7245
    %7247 = vmatmul.f32.gmra.mxu0 %v7170
    %v7248 = vpop.f32.mrf.mxu0
    %v7249 = vadd.f32 0.0, %v7248
    %7250 = vmatmul.f32.gmra.mxu0 %v7171
    %v7251 = vpop.f32.mrf.mxu0
    %v7252 = vadd.f32 0.0, %v7251
    %7253 = vdwg.mxu0
    %v7254 = vadd.f32 %v7140, %v7207
    %v7255 = vadd.f32 %v7141, %v7210
    %v7256 = vadd.f32 %v7142, %v7213
    %v7257 = vadd.f32 %v7143, %v7216
    %v7258 = vadd.f32 %v7144, %v7219
    %v7259 = vadd.f32 %v7145, %v7222
    %v7260 = vadd.f32 %v7146, %v7225
    %v7261 = vadd.f32 %v7147, %v7228
    %v7262 = vadd.f32 %v7148, %v7231
    %v7263 = vadd.f32 %v7149, %v7234
    %v7264 = vadd.f32 %v7150, %v7237
    %v7265 = vadd.f32 %v7151, %v7240
    %v7266 = vadd.f32 %v7152, %v7243
    %v7267 = vadd.f32 %v7153, %v7246
    %v7268 = vadd.f32 %v7154, %v7249
    %v7269 = vadd.f32 %v7155, %v7252
    %s7270 = scalar_lea.vmem [#allocation5], 32
    %v7271 = vld [vmem:[%s7270] sm:$0xff]
    %v7272 = vld [vmem:[%s7270 + $0x10] sm:$0xff]
    %v7273 = vld [vmem:[%s7270 + $0x20] sm:$0xff]
    %v7274 = vld [vmem:[%s7270 + $0x30] sm:$0xff]
    %v7275 = vld [vmem:[%s7270 + $0x40] sm:$0xff]
    %v7276 = vld [vmem:[%s7270 + $0x50] sm:$0xff]
    %v7277 = vld [vmem:[%s7270 + $0x60] sm:$0xff]
    %v7278 = vld [vmem:[%s7270 + $0x70] sm:$0xff]
    %v7279 = vld [vmem:[%s7270 + $0xa0] sm:$0xff]
    %v7280 = vld [vmem:[%s7270 + $0xb0] sm:$0xff]
    %v7281 = vld [vmem:[%s7270 + $0xc0] sm:$0xff]
    %v7282 = vld [vmem:[%s7270 + $0xd0] sm:$0xff]
    %v7283 = vld [vmem:[%s7270 + $0xe0] sm:$0xff]
    %v7284 = vld [vmem:[%s7270 + $0xf0] sm:$0xff]
    %v7285 = vld [vmem:[%s7270 + $0x100] sm:$0xff]
    %v7286 = vld [vmem:[%s7270 + $0x110] sm:$0xff]
    %s7287 = scalar_lea.vmem %s12, 768
    %v7288 = vld [vmem:[%s7287] sm:$0xff]
    %v7289 = vld [vmem:[%s7287 + $0x8] sm:$0xff]
    %v7290 = vld [vmem:[%s7287 + $0x10] sm:$0xff]
    %v7291 = vld [vmem:[%s7287 + $0x18] sm:$0xff]
    %v7292 = vld [vmem:[%s7287 + $0x20] sm:$0xff]
    %v7293 = vld [vmem:[%s7287 + $0x28] sm:$0xff]
    %v7294 = vld [vmem:[%s7287 + $0x30] sm:$0xff]
    %v7295 = vld [vmem:[%s7287 + $0x38] sm:$0xff]
    %v7296 = vld [vmem:[%s7287 + $0x40] sm:$0xff]
    %v7297 = vld [vmem:[%s7287 + $0x48] sm:$0xff]
    %v7298 = vld [vmem:[%s7287 + $0x50] sm:$0xff]
    %v7299 = vld [vmem:[%s7287 + $0x58] sm:$0xff]
    %v7300 = vld [vmem:[%s7287 + $0x60] sm:$0xff]
    %v7301 = vld [vmem:[%s7287 + $0x68] sm:$0xff]
    %v7302 = vld [vmem:[%s7287 + $0x70] sm:$0xff]
    %v7303 = vld [vmem:[%s7287 + $0x78] sm:$0xff]
    %7304 = vmatpush.msra.mxu0 %v7303
    %7305 = vmatpush.msra.mxu0 %v7302
    %7306 = vmatpush.msra.mxu0 %v7301
    %7307 = vmatpush.msra.mxu0 %v7300
    %7308 = vmatpush.msra.mxu0 %v7299
    %7309 = vmatpush.msra.mxu0 %v7298
    %7310 = vmatpush.msra.mxu0 %v7297
    %7311 = vmatpush.msra.mxu0 %v7296
    %7312 = vmatpush.msra.mxu0 %v7295
    %7313 = vmatpush.msra.mxu0 %v7294
    %7314 = vmatpush.msra.mxu0 %v7293
    %7315 = vmatpush.msra.mxu0 %v7292
    %7316 = vmatpush.msra.mxu0 %v7291
    %7317 = vmatpush.msra.mxu0 %v7290
    %7318 = vmatpush.msra.mxu0 %v7289
    %7319 = vmatpush.msra.mxu0 %v7288
    %7320 = vmatmul.f32.gmra.mxu0 %v7271
    %v7321 = vpop.f32.mrf.mxu0
    %v7322 = vadd.f32 0.0, %v7321
    %7323 = vmatmul.f32.gmra.mxu0 %v7272
    %v7324 = vpop.f32.mrf.mxu0
    %v7325 = vadd.f32 0.0, %v7324
    %7326 = vmatmul.f32.gmra.mxu0 %v7273
    %v7327 = vpop.f32.mrf.mxu0
    %v7328 = vadd.f32 0.0, %v7327
    %7329 = vmatmul.f32.gmra.mxu0 %v7274
    %v7330 = vpop.f32.mrf.mxu0
    %v7331 = vadd.f32 0.0, %v7330
    %7332 = vmatmul.f32.gmra.mxu0 %v7275
    %v7333 = vpop.f32.mrf.mxu0
    %v7334 = vadd.f32 0.0, %v7333
    %7335 = vmatmul.f32.gmra.mxu0 %v7276
    %v7336 = vpop.f32.mrf.mxu0
    %v7337 = vadd.f32 0.0, %v7336
    %7338 = vmatmul.f32.gmra.mxu0 %v7277
    %v7339 = vpop.f32.mrf.mxu0
    %v7340 = vadd.f32 0.0, %v7339
    %7341 = vmatmul.f32.gmra.mxu0 %v7278
    %v7342 = vpop.f32.mrf.mxu0
    %v7343 = vadd.f32 0.0, %v7342
    %7344 = vmatmul.f32.gmra.mxu0 %v7279
    %v7345 = vpop.f32.mrf.mxu0
    %v7346 = vadd.f32 0.0, %v7345
    %7347 = vmatmul.f32.gmra.mxu0 %v7280
    %v7348 = vpop.f32.mrf.mxu0
    %v7349 = vadd.f32 0.0, %v7348
    %7350 = vmatmul.f32.gmra.mxu0 %v7281
    %v7351 = vpop.f32.mrf.mxu0
    %v7352 = vadd.f32 0.0, %v7351
    %7353 = vmatmul.f32.gmra.mxu0 %v7282
    %v7354 = vpop.f32.mrf.mxu0
    %v7355 = vadd.f32 0.0, %v7354
    %7356 = vmatmul.f32.gmra.mxu0 %v7283
    %v7357 = vpop.f32.mrf.mxu0
    %v7358 = vadd.f32 0.0, %v7357
    %7359 = vmatmul.f32.gmra.mxu0 %v7284
    %v7360 = vpop.f32.mrf.mxu0
    %v7361 = vadd.f32 0.0, %v7360
    %7362 = vmatmul.f32.gmra.mxu0 %v7285
    %v7363 = vpop.f32.mrf.mxu0
    %v7364 = vadd.f32 0.0, %v7363
    %7365 = vmatmul.f32.gmra.mxu0 %v7286
    %v7366 = vpop.f32.mrf.mxu0
    %v7367 = vadd.f32 0.0, %v7366
    %7368 = vdwg.mxu0
    %v7369 = vadd.f32 %v7254, %v7322
    %v7370 = vadd.f32 %v7255, %v7325
    %v7371 = vadd.f32 %v7256, %v7328
    %v7372 = vadd.f32 %v7257, %v7331
    %v7373 = vadd.f32 %v7258, %v7334
    %v7374 = vadd.f32 %v7259, %v7337
    %v7375 = vadd.f32 %v7260, %v7340
    %v7376 = vadd.f32 %v7261, %v7343
    %v7377 = vadd.f32 %v7262, %v7346
    %v7378 = vadd.f32 %v7263, %v7349
    %v7379 = vadd.f32 %v7264, %v7352
    %v7380 = vadd.f32 %v7265, %v7355
    %v7381 = vadd.f32 %v7266, %v7358
    %v7382 = vadd.f32 %v7267, %v7361
    %v7383 = vadd.f32 %v7268, %v7364
    %v7384 = vadd.f32 %v7269, %v7367
    %v7385 = vld [vmem:[%s7270 + $0x1] sm:$0xff]
    %v7386 = vld [vmem:[%s7270 + $0x11] sm:$0xff]
    %v7387 = vld [vmem:[%s7270 + $0x21] sm:$0xff]
    %v7388 = vld [vmem:[%s7270 + $0x31] sm:$0xff]
    %v7389 = vld [vmem:[%s7270 + $0x41] sm:$0xff]
    %v7390 = vld [vmem:[%s7270 + $0x51] sm:$0xff]
    %v7391 = vld [vmem:[%s7270 + $0x61] sm:$0xff]
    %v7392 = vld [vmem:[%s7270 + $0x71] sm:$0xff]
    %v7393 = vld [vmem:[%s7270 + $0xa1] sm:$0xff]
    %v7394 = vld [vmem:[%s7270 + $0xb1] sm:$0xff]
    %v7395 = vld [vmem:[%s7270 + $0xc1] sm:$0xff]
    %v7396 = vld [vmem:[%s7270 + $0xd1] sm:$0xff]
    %v7397 = vld [vmem:[%s7270 + $0xe1] sm:$0xff]
    %v7398 = vld [vmem:[%s7270 + $0xf1] sm:$0xff]
    %v7399 = vld [vmem:[%s7270 + $0x101] sm:$0xff]
    %v7400 = vld [vmem:[%s7270 + $0x111] sm:$0xff]
    %s7401 = scalar_lea.vmem %s12, 896
    %v7402 = vld [vmem:[%s7401] sm:$0xff]
    %v7403 = vld [vmem:[%s7401 + $0x8] sm:$0xff]
    %v7404 = vld [vmem:[%s7401 + $0x10] sm:$0xff]
    %v7405 = vld [vmem:[%s7401 + $0x18] sm:$0xff]
    %v7406 = vld [vmem:[%s7401 + $0x20] sm:$0xff]
    %v7407 = vld [vmem:[%s7401 + $0x28] sm:$0xff]
    %v7408 = vld [vmem:[%s7401 + $0x30] sm:$0xff]
    %v7409 = vld [vmem:[%s7401 + $0x38] sm:$0xff]
    %v7410 = vld [vmem:[%s7401 + $0x40] sm:$0xff]
    %v7411 = vld [vmem:[%s7401 + $0x48] sm:$0xff]
    %v7412 = vld [vmem:[%s7401 + $0x50] sm:$0xff]
    %v7413 = vld [vmem:[%s7401 + $0x58] sm:$0xff]
    %v7414 = vld [vmem:[%s7401 + $0x60] sm:$0xff]
    %v7415 = vld [vmem:[%s7401 + $0x68] sm:$0xff]
    %v7416 = vld [vmem:[%s7401 + $0x70] sm:$0xff]
    %v7417 = vld [vmem:[%s7401 + $0x78] sm:$0xff]
    %7418 = vmatpush.msra.mxu0 %v7417
    %7419 = vmatpush.msra.mxu0 %v7416
    %7420 = vmatpush.msra.mxu0 %v7415
    %7421 = vmatpush.msra.mxu0 %v7414
    %7422 = vmatpush.msra.mxu0 %v7413
    %7423 = vmatpush.msra.mxu0 %v7412
    %7424 = vmatpush.msra.mxu0 %v7411
    %7425 = vmatpush.msra.mxu0 %v7410
    %7426 = vmatpush.msra.mxu0 %v7409
    %7427 = vmatpush.msra.mxu0 %v7408
    %7428 = vmatpush.msra.mxu0 %v7407
    %7429 = vmatpush.msra.mxu0 %v7406
    %7430 = vmatpush.msra.mxu0 %v7405
    %7431 = vmatpush.msra.mxu0 %v7404
    %7432 = vmatpush.msra.mxu0 %v7403
    %7433 = vmatpush.msra.mxu0 %v7402
    %7434 = vmatmul.f32.gmra.mxu0 %v7385
    %v7435 = vpop.f32.mrf.mxu0
    %v7436 = vadd.f32 0.0, %v7435
    %7437 = vmatmul.f32.gmra.mxu0 %v7386
    %v7438 = vpop.f32.mrf.mxu0
    %v7439 = vadd.f32 0.0, %v7438
    %7440 = vmatmul.f32.gmra.mxu0 %v7387
    %v7441 = vpop.f32.mrf.mxu0
    %v7442 = vadd.f32 0.0, %v7441
    %7443 = vmatmul.f32.gmra.mxu0 %v7388
    %v7444 = vpop.f32.mrf.mxu0
    %v7445 = vadd.f32 0.0, %v7444
    %7446 = vmatmul.f32.gmra.mxu0 %v7389
    %v7447 = vpop.f32.mrf.mxu0
    %v7448 = vadd.f32 0.0, %v7447
    %7449 = vmatmul.f32.gmra.mxu0 %v7390
    %v7450 = vpop.f32.mrf.mxu0
    %v7451 = vadd.f32 0.0, %v7450
    %7452 = vmatmul.f32.gmra.mxu0 %v7391
    %v7453 = vpop.f32.mrf.mxu0
    %v7454 = vadd.f32 0.0, %v7453
    %7455 = vmatmul.f32.gmra.mxu0 %v7392
    %v7456 = vpop.f32.mrf.mxu0
    %v7457 = vadd.f32 0.0, %v7456
    %7458 = vmatmul.f32.gmra.mxu0 %v7393
    %v7459 = vpop.f32.mrf.mxu0
    %v7460 = vadd.f32 0.0, %v7459
    %7461 = vmatmul.f32.gmra.mxu0 %v7394
    %v7462 = vpop.f32.mrf.mxu0
    %v7463 = vadd.f32 0.0, %v7462
    %7464 = vmatmul.f32.gmra.mxu0 %v7395
    %v7465 = vpop.f32.mrf.mxu0
    %v7466 = vadd.f32 0.0, %v7465
    %7467 = vmatmul.f32.gmra.mxu0 %v7396
    %v7468 = vpop.f32.mrf.mxu0
    %v7469 = vadd.f32 0.0, %v7468
    %7470 = vmatmul.f32.gmra.mxu0 %v7397
    %v7471 = vpop.f32.mrf.mxu0
    %v7472 = vadd.f32 0.0, %v7471
    %7473 = vmatmul.f32.gmra.mxu0 %v7398
    %v7474 = vpop.f32.mrf.mxu0
    %v7475 = vadd.f32 0.0, %v7474
    %7476 = vmatmul.f32.gmra.mxu0 %v7399
    %v7477 = vpop.f32.mrf.mxu0
    %v7478 = vadd.f32 0.0, %v7477
    %7479 = vmatmul.f32.gmra.mxu0 %v7400
    %v7480 = vpop.f32.mrf.mxu0
    %v7481 = vadd.f32 0.0, %v7480
    %7482 = vdwg.mxu0
    %v7483 = vadd.f32 %v7369, %v7436
    %v7484 = vadd.f32 %v7370, %v7439
    %v7485 = vadd.f32 %v7371, %v7442
    %v7486 = vadd.f32 %v7372, %v7445
    %v7487 = vadd.f32 %v7373, %v7448
    %v7488 = vadd.f32 %v7374, %v7451
    %v7489 = vadd.f32 %v7375, %v7454
    %v7490 = vadd.f32 %v7376, %v7457
    %v7491 = vadd.f32 %v7377, %v7460
    %v7492 = vadd.f32 %v7378, %v7463
    %v7493 = vadd.f32 %v7379, %v7466
    %v7494 = vadd.f32 %v7380, %v7469
    %v7495 = vadd.f32 %v7381, %v7472
    %v7496 = vadd.f32 %v7382, %v7475
    %v7497 = vadd.f32 %v7383, %v7478
    %v7498 = vadd.f32 %v7384, %v7481
    %v7499 = vld [vmem:[%s7270 + $0x2] sm:$0xff]
    %v7500 = vld [vmem:[%s7270 + $0x12] sm:$0xff]
    %v7501 = vld [vmem:[%s7270 + $0x22] sm:$0xff]
    %v7502 = vld [vmem:[%s7270 + $0x32] sm:$0xff]
    %v7503 = vld [vmem:[%s7270 + $0x42] sm:$0xff]
    %v7504 = vld [vmem:[%s7270 + $0x52] sm:$0xff]
    %v7505 = vld [vmem:[%s7270 + $0x62] sm:$0xff]
    %v7506 = vld [vmem:[%s7270 + $0x72] sm:$0xff]
    %v7507 = vld [vmem:[%s7270 + $0xa2] sm:$0xff]
    %v7508 = vld [vmem:[%s7270 + $0xb2] sm:$0xff]
    %v7509 = vld [vmem:[%s7270 + $0xc2] sm:$0xff]
    %v7510 = vld [vmem:[%s7270 + $0xd2] sm:$0xff]
    %v7511 = vld [vmem:[%s7270 + $0xe2] sm:$0xff]
    %v7512 = vld [vmem:[%s7270 + $0xf2] sm:$0xff]
    %v7513 = vld [vmem:[%s7270 + $0x102] sm:$0xff]
    %v7514 = vld [vmem:[%s7270 + $0x112] sm:$0xff]
    %s7515 = scalar_lea.vmem %s12, 1024
    %v7516 = vld [vmem:[%s7515] sm:$0xff]
    %v7517 = vld [vmem:[%s7515 + $0x8] sm:$0xff]
    %v7518 = vld [vmem:[%s7515 + $0x10] sm:$0xff]
    %v7519 = vld [vmem:[%s7515 + $0x18] sm:$0xff]
    %v7520 = vld [vmem:[%s7515 + $0x20] sm:$0xff]
    %v7521 = vld [vmem:[%s7515 + $0x28] sm:$0xff]
    %v7522 = vld [vmem:[%s7515 + $0x30] sm:$0xff]
    %v7523 = vld [vmem:[%s7515 + $0x38] sm:$0xff]
    %v7524 = vld [vmem:[%s7515 + $0x40] sm:$0xff]
    %v7525 = vld [vmem:[%s7515 + $0x48] sm:$0xff]
    %v7526 = vld [vmem:[%s7515 + $0x50] sm:$0xff]
    %v7527 = vld [vmem:[%s7515 + $0x58] sm:$0xff]
    %v7528 = vld [vmem:[%s7515 + $0x60] sm:$0xff]
    %v7529 = vld [vmem:[%s7515 + $0x68] sm:$0xff]
    %v7530 = vld [vmem:[%s7515 + $0x70] sm:$0xff]
    %v7531 = vld [vmem:[%s7515 + $0x78] sm:$0xff]
    %7532 = vmatpush.msra.mxu0 %v7531
    %7533 = vmatpush.msra.mxu0 %v7530
    %7534 = vmatpush.msra.mxu0 %v7529
    %7535 = vmatpush.msra.mxu0 %v7528
    %7536 = vmatpush.msra.mxu0 %v7527
    %7537 = vmatpush.msra.mxu0 %v7526
    %7538 = vmatpush.msra.mxu0 %v7525
    %7539 = vmatpush.msra.mxu0 %v7524
    %7540 = vmatpush.msra.mxu0 %v7523
    %7541 = vmatpush.msra.mxu0 %v7522
    %7542 = vmatpush.msra.mxu0 %v7521
    %7543 = vmatpush.msra.mxu0 %v7520
    %7544 = vmatpush.msra.mxu0 %v7519
    %7545 = vmatpush.msra.mxu0 %v7518
    %7546 = vmatpush.msra.mxu0 %v7517
    %7547 = vmatpush.msra.mxu0 %v7516
    %7548 = vmatmul.f32.gmra.mxu0 %v7499
    %v7549 = vpop.f32.mrf.mxu0
    %v7550 = vadd.f32 0.0, %v7549
    %7551 = vmatmul.f32.gmra.mxu0 %v7500
    %v7552 = vpop.f32.mrf.mxu0
    %v7553 = vadd.f32 0.0, %v7552
    %7554 = vmatmul.f32.gmra.mxu0 %v7501
    %v7555 = vpop.f32.mrf.mxu0
    %v7556 = vadd.f32 0.0, %v7555
    %7557 = vmatmul.f32.gmra.mxu0 %v7502
    %v7558 = vpop.f32.mrf.mxu0
    %v7559 = vadd.f32 0.0, %v7558
    %7560 = vmatmul.f32.gmra.mxu0 %v7503
    %v7561 = vpop.f32.mrf.mxu0
    %v7562 = vadd.f32 0.0, %v7561
    %7563 = vmatmul.f32.gmra.mxu0 %v7504
    %v7564 = vpop.f32.mrf.mxu0
    %v7565 = vadd.f32 0.0, %v7564
    %7566 = vmatmul.f32.gmra.mxu0 %v7505
    %v7567 = vpop.f32.mrf.mxu0
    %v7568 = vadd.f32 0.0, %v7567
    %7569 = vmatmul.f32.gmra.mxu0 %v7506
    %v7570 = vpop.f32.mrf.mxu0
    %v7571 = vadd.f32 0.0, %v7570
    %7572 = vmatmul.f32.gmra.mxu0 %v7507
    %v7573 = vpop.f32.mrf.mxu0
    %v7574 = vadd.f32 0.0, %v7573
    %7575 = vmatmul.f32.gmra.mxu0 %v7508
    %v7576 = vpop.f32.mrf.mxu0
    %v7577 = vadd.f32 0.0, %v7576
    %7578 = vmatmul.f32.gmra.mxu0 %v7509
    %v7579 = vpop.f32.mrf.mxu0
    %v7580 = vadd.f32 0.0, %v7579
    %7581 = vmatmul.f32.gmra.mxu0 %v7510
    %v7582 = vpop.f32.mrf.mxu0
    %v7583 = vadd.f32 0.0, %v7582
    %7584 = vmatmul.f32.gmra.mxu0 %v7511
    %v7585 = vpop.f32.mrf.mxu0
    %v7586 = vadd.f32 0.0, %v7585
    %7587 = vmatmul.f32.gmra.mxu0 %v7512
    %v7588 = vpop.f32.mrf.mxu0
    %v7589 = vadd.f32 0.0, %v7588
    %7590 = vmatmul.f32.gmra.mxu0 %v7513
    %v7591 = vpop.f32.mrf.mxu0
    %v7592 = vadd.f32 0.0, %v7591
    %7593 = vmatmul.f32.gmra.mxu0 %v7514
    %v7594 = vpop.f32.mrf.mxu0
    %v7595 = vadd.f32 0.0, %v7594
    %7596 = vdwg.mxu0
    %v7597 = vadd.f32 %v7483, %v7550
    %v7598 = vadd.f32 %v7484, %v7553
    %v7599 = vadd.f32 %v7485, %v7556
    %v7600 = vadd.f32 %v7486, %v7559
    %v7601 = vadd.f32 %v7487, %v7562
    %v7602 = vadd.f32 %v7488, %v7565
    %v7603 = vadd.f32 %v7489, %v7568
    %v7604 = vadd.f32 %v7490, %v7571
    %v7605 = vadd.f32 %v7491, %v7574
    %v7606 = vadd.f32 %v7492, %v7577
    %v7607 = vadd.f32 %v7493, %v7580
    %v7608 = vadd.f32 %v7494, %v7583
    %v7609 = vadd.f32 %v7495, %v7586
    %v7610 = vadd.f32 %v7496, %v7589
    %v7611 = vadd.f32 %v7497, %v7592
    %v7612 = vadd.f32 %v7498, %v7595
    %v7613 = vadd.f32 %v7597, %v5403
    %v7614 = vadd.f32 %v7598, %v5404
    %v7615 = vadd.f32 %v7599, %v5405
    %v7616 = vadd.f32 %v7600, %v5406
    %v7617 = vadd.f32 %v7601, %v5407
    %v7618 = vadd.f32 %v7602, %v5408
    %v7619 = vadd.f32 %v7603, %v5409
    %v7620 = vadd.f32 %v7604, %v5410
    %v7621 = vadd.f32 %v7605, %v5411
    %v7622 = vadd.f32 %v7606, %v5412
    %v7623 = vadd.f32 %v7607, %v5413
    %v7624 = vadd.f32 %v7608, %v5414
    %v7625 = vadd.f32 %v7609, %v5415
    %v7626 = vadd.f32 %v7610, %v5416
    %v7627 = vadd.f32 %v7611, %v5417
    %v7628 = vadd.f32 %v7612, %v5418
    %7629 = vst [vmem:[#allocation14] sm:$0xff] %v7613
    %7630 = vst [vmem:[#allocation14 + $0x8] sm:$0xff] %v7614
    %7631 = vst [vmem:[#allocation14 + $0x10] sm:$0xff] %v7615
    %7632 = vst [vmem:[#allocation14 + $0x18] sm:$0xff] %v7616
    %7633 = vst [vmem:[#allocation14 + $0x20] sm:$0xff] %v7617
    %7634 = vst [vmem:[#allocation14 + $0x28] sm:$0xff] %v7618
    %7635 = vst [vmem:[#allocation14 + $0x30] sm:$0xff] %v7619
    %7636 = vst [vmem:[#allocation14 + $0x38] sm:$0xff] %v7620
    %7637 = vst [vmem:[#allocation14 + $0x40] sm:$0xff] %v7621
    %7638 = vst [vmem:[#allocation14 + $0x48] sm:$0xff] %v7622
    %7639 = vst [vmem:[#allocation14 + $0x50] sm:$0xff] %v7623
    %7640 = vst [vmem:[#allocation14 + $0x58] sm:$0xff] %v7624
    %7641 = vst [vmem:[#allocation14 + $0x60] sm:$0xff] %v7625
    %7642 = vst [vmem:[#allocation14 + $0x68] sm:$0xff] %v7626
    %7643 = vst [vmem:[#allocation14 + $0x70] sm:$0xff] %v7627
    %7644 = vst [vmem:[#allocation14 + $0x78] sm:$0xff] %v7628
    // Predicated region
    $region70: #{_lambda_.1} parent=1 // pred_check
      _
    $region71: #{_lambda_.1} parent=1 // pred_check_branch
      %7646 = sbr.rel (0) target = $region73
    $region72: #{_lambda_.1} parent=1 // pred_region
      %7648 = vsyncadd [#allocation8], 0
      %s7649 = sshll.u32 [#allocation14], 4
      %s7650 = int_to_ptr.vmem [resolvable:$true] %s7649
      %s7651 = sshll.u32 %s13, 4
      %s7652 = int_to_ptr.hbm [resolvable:$true] %s7651
      %7657 = dma.vmem_to_hbm [thread:$0]  %s7650, 2048, %s7652, [#allocation8], 128, 128, 8
    $region73: #{_lambda_.1} parent=1 // pred_fallthru
      _
    // Predicated region
    $region74: #{_lambda_.1} parent=1 // pred_check
      _
    $region75: #{_lambda_.1} parent=1 // pred_check_branch
      %7659 = sbr.rel (0) target = $region77
    $region76: #{_lambda_.1} parent=1 // pred_region
      %7661 = dma.done [#allocation8], 2048
    $region77: #{_lambda_.1} parent=1 // pred_fallthru
      _
    %7662 = vsyncpa [#allocation7], 1
    %7663 = vsyncpa [#allocation10], 1
    %7664 = vsyncpa [#allocation13], 1
    %7665 = vsyncpa [#allocation8], 1

</llo_original>
